<compile_context>
chip_gen: v7x
topology: tpu7x:2x2x1
jax: 0.10.0
libtpu: 0.0.40
codegen_flags: <defaults>
</compile_context>

<pallas_src>
import math

import jax
import jax.numpy as jnp
from jax.experimental import pallas as pl
from jax.experimental.pallas import tpu as pltpu

# ----------------------------- config ---------------------------------------
IMG_SIZE = 16
PATCH_SIZE = 4
IN_CHANNELS = 3
HIDDEN = 32
NUM_HEADS = 4
HEAD_DIM = HIDDEN // NUM_HEADS                      # 8
MLP_DIM = 64
NUM_LAYERS = 2
N_PATCHES = (IMG_SIZE // PATCH_SIZE) ** 2           # 16
PATCH_DIM = IN_CHANNELS * PATCH_SIZE * PATCH_SIZE   # 48
LN_EPS = 1e-6
ATTN_SCALE = 1.0 / math.sqrt(HEAD_DIM)

# rows of the packed per-layer (L, 6, HIDDEN) vector slab
ROW_LN1_G, ROW_LN1_B, ROW_LN2_G, ROW_LN2_B, ROW_BO, ROW_B2 = range(6)


# --------------------------- kernel helpers ----------------------------------
def _layernorm(x, gamma, beta):
    # x: (N, D); gamma/beta: (1, D).  Biased variance, eps=1e-6 (matches torch).
    mean = jnp.mean(x, axis=-1, keepdims=True)
    var = jnp.mean((x - mean) ** 2, axis=-1, keepdims=True)
    return (x - mean) * jax.lax.rsqrt(var + LN_EPS) * gamma + beta


def _gelu_exact(x):
    # torch.nn.functional.gelu default (erf based).
    return 0.5 * x * (1.0 + jax.lax.erf(x * 0.7071067811865476))


# ------------------------------ fused kernel ----------------------------------
def fused_transformer_kernel(patches_ref, wp_ref, pos_ref,
                             wqkv_ref, bqkv_ref, wo_ref, vec_ref,
                             w1_ref, b1_ref, w2_ref, encln_ref,
                             out_ref):
    # patches_ref: (1, N, P)         wp_ref:  (P, H)
    # pos_ref:     (N, H)            (= position embeddings + patch-conv bias)
    # wqkv_ref:    (L, 3, NH, H, HD) bqkv_ref: (L, 3, NH, 1, HD)
    # wo_ref:      (L, NH, HD, H)
    # vec_ref:     (L, 6, H)   rows: ln1_g, ln1_b, ln2_g, ln2_b, attn_out_b, fc2_b
    # w1_ref: (L, H, M)  b1_ref: (L, 1, M)  w2_ref: (L, M, H)  encln_ref: (2, H)

    # ---- patch embedding ----
    x = jnp.dot(patches_ref[0], wp_ref[...],
                preferred_element_type=jnp.float32) + pos_ref[...]

    for li in range(NUM_LAYERS):                      # static unroll over layers
        # ---------------- multi-head self-attention (pre-norm) ----------------
        res = x
        xn = _layernorm(x,
                        vec_ref[li, ROW_LN1_G:ROW_LN1_G + 1, :],
                        vec_ref[li, ROW_LN1_B:ROW_LN1_B + 1, :])

        attn = jnp.zeros((N_PATCHES, HIDDEN), jnp.float32)
        for h in range(NUM_HEADS):                    # static unroll over heads
            qh = jnp.dot(xn, wqkv_ref[li, 0, h],
                         preferred_element_type=jnp.float32) + bqkv_ref[li, 0, h]
            kh = jnp.dot(xn, wqkv_ref[li, 1, h],
                         preferred_element_type=jnp.float32) + bqkv_ref[li, 1, h]
            vh = jnp.dot(xn, wqkv_ref[li, 2, h],
                         preferred_element_type=jnp.float32) + bqkv_ref[li, 2, h]
            # scores = qh @ kh^T (transposed contraction, no explicit transpose)
            s = jax.lax.dot_general(qh, kh, (((1,), (1,)), ((), ())),
                                    preferred_element_type=jnp.float32) * ATTN_SCALE
            s = s - jnp.max(s, axis=-1, keepdims=True)
            e = jnp.exp(s)
            p = e * pl.reciprocal(jnp.sum(e, axis=-1, keepdims=True), approx=True)
            ctx = jnp.dot(p, vh, preferred_element_type=jnp.float32)      # (N, HD)
            # accumulate this head's contribution to the output projection
            attn = attn + jnp.dot(ctx, wo_ref[li, h],
                                  preferred_element_type=jnp.float32)
        x = attn + vec_ref[li, ROW_BO:ROW_BO + 1, :] + res

        # ----------------------------- MLP (pre-norm) --------------------------
        res = x
        xn = _layernorm(x,
                        vec_ref[li, ROW_LN2_G:ROW_LN2_G + 1, :],
                        vec_ref[li, ROW_LN2_B:ROW_LN2_B + 1, :])
        y = jnp.dot(xn, w1_ref[li], preferred_element_type=jnp.float32) + b1_ref[li]
        y = _gelu_exact(y)
        y = jnp.dot(y, w2_ref[li], preferred_element_type=jnp.float32) \
            + vec_ref[li, ROW_B2:ROW_B2 + 1, :]
        x = y + res

    # ---- final encoder LayerNorm ----
    out_ref[0] = _layernorm(x, encln_ref[0:1, :], encln_ref[1:2, :])


# --------------------------- pallas_call wrapper ------------------------------
def _full_spec(shape):
    nd = len(shape)
    return pl.BlockSpec(shape, lambda b, _nd=nd: (0,) * _nd)


def transformer_pallas(patches, kp):
    B = patches.shape[0]
    return pl.pallas_call(
        fused_transformer_kernel,
        out_shape=jax.ShapeDtypeStruct((B, N_PATCHES, HIDDEN), jnp.float32),
        grid=(B,),
        in_specs=[
            pl.BlockSpec((1, N_PATCHES, PATCH_DIM), lambda b: (b, 0, 0)),
            _full_spec(kp["w_patch"].shape),
            _full_spec(kp["pos_bias"].shape),
            _full_spec(kp["wqkv"].shape),
            _full_spec(kp["bqkv"].shape),
            _full_spec(kp["wo"].shape),
            _full_spec(kp["vecs"].shape),
            _full_spec(kp["w1"].shape),
            _full_spec(kp["b1"].shape),
            _full_spec(kp["w2"].shape),
            _full_spec(kp["enc_ln"].shape),
        ],
        out_specs=pl.BlockSpec((1, N_PATCHES, HIDDEN), lambda b: (b, 0, 0)),
        compiler_params=pltpu.CompilerParams(dimension_semantics=("parallel",)),
    )(patches, kp["w_patch"], kp["pos_bias"], kp["wqkv"], kp["bqkv"],
      kp["wo"], kp["vecs"], kp["w1"], kp["b1"], kp["w2"], kp["enc_ln"])


# ------------------------------ forward pass ----------------------------------
@jax.jit
def transformer_forward(x_nchw, kernel_params):
    B, C, Hh, Ww = x_nchw.shape
    ps = PATCH_SIZE
    hg, wg = Hh // ps, Ww // ps
    # Patch extraction == Conv2d(kernel=stride=ps) im2col; flattening order
    # matches PyTorch conv weight layout (C, kh, kw).
    patches = (x_nchw.reshape(B, C, hg, ps, wg, ps)
               .transpose(0, 2, 4, 1, 3, 5)
               .reshape(B, hg * wg, C * ps * ps))
    encoded = transformer_pallas(patches, kernel_params)
    # vis=False -> empty attention-weights list; non-hybrid -> features None.
    return encoded, (), None


# ------------------------------ parameters ------------------------------------
def init_params(key):
    """Logical (PyTorch-shaped) parameters."""
    def nrm(k, shape, scale=0.02):
        return scale * jax.random.normal(k, shape, jnp.float32)

    keys = jax.random.split(key, 3 + NUM_LAYERS)
    params = {
        "w_patch": nrm(keys[0], (PATCH_DIM, HIDDEN)),
        "b_patch": nrm(keys[1], (1, HIDDEN), 0.001),
        # position_embeddings initialized to zeros, as in the PyTorch module.
        "pos_emb": jnp.zeros((N_PATCHES, HIDDEN), jnp.float32),
        "enc_ln_g": jnp.ones((1, HIDDEN), jnp.float32),
        "enc_ln_b": jnp.zeros((1, HIDDEN), jnp.float32),
        "layers": [],
    }
    for li in range(NUM_LAYERS):
        lk = jax.random.split(keys[3 + li], 12)
        lp = {
            "ln1_g": jnp.ones((1, HIDDEN), jnp.float32),
            "ln1_b": jnp.zeros((1, HIDDEN), jnp.float32),
            "wq": nrm(lk[0], (HIDDEN, HIDDEN)), "bq": nrm(lk[1], (1, HIDDEN), 0.001),
            "wk": nrm(lk[2], (HIDDEN, HIDDEN)), "bk": nrm(lk[3], (1, HIDDEN), 0.001),
            "wv": nrm(lk[4], (HIDDEN, HIDDEN)), "bv": nrm(lk[5], (1, HIDDEN), 0.001),
            "wo": nrm(lk[6], (HIDDEN, HIDDEN)), "bo": nrm(lk[7], (1, HIDDEN), 0.001),
            "ln2_g": jnp.ones((1, HIDDEN), jnp.float32),
            "ln2_b": jnp.zeros((1, HIDDEN), jnp.float32),
            "w1": nrm(lk[8], (HIDDEN, MLP_DIM)), "b1": nrm(lk[9], (1, MLP_DIM), 1e-6),
            "w2": nrm(lk[10], (MLP_DIM, HIDDEN)), "b2": nrm(lk[11], (1, HIDDEN), 1e-6),
        }
        params["layers"].append(lp)
    return params


def pack_params(p):
    """Pack logical params into the stacked slab arrays the fused kernel wants."""
    H, NH, HD = HIDDEN, NUM_HEADS, HEAD_DIM

    def heads_in(w):      # (H, H) -> (NH, H, HD); output-column block h == head h
        return w.reshape(H, NH, HD).transpose(1, 0, 2)

    def heads_bias(b):    # (1, H) -> (NH, 1, HD)
        return b.reshape(NH, 1, HD)

    layers = p["layers"]
    wqkv = jnp.stack([jnp.stack([heads_in(lp["wq"]),
                                 heads_in(lp["wk"]),
                                 heads_in(lp["wv"])]) for lp in layers])
    bqkv = jnp.stack([jnp.stack([heads_bias(lp["bq"]),
                                 heads_bias(lp["bk"]),
                                 heads_bias(lp["bv"])]) for lp in layers])
    wo = jnp.stack([lp["wo"].reshape(NH, HD, H) for lp in layers])
    vecs = jnp.stack([jnp.concatenate(
        [lp["ln1_g"], lp["ln1_b"], lp["ln2_g"], lp["ln2_b"],
         lp["bo"], lp["b2"]], axis=0) for lp in layers])
    return {
        "w_patch": p["w_patch"],
        "pos_bias": p["pos_emb"] + p["b_patch"],     # fold patch-conv bias into pos
        "wqkv": wqkv,                                # (L, 3, NH, H, HD)
        "bqkv": bqkv,                                # (L, 3, NH, 1, HD)
        "wo": wo,                                    # (L, NH, HD, H)
        "vecs": vecs,                                # (L, 6, H)
        "w1": jnp.stack([lp["w1"] for lp in layers]),
        "b1": jnp.stack([lp["b1"] for lp in layers]),
        "w2": jnp.stack([lp["w2"] for lp in layers]),
        "enc_ln": jnp.concatenate([p["enc_ln_g"], p["enc_ln_b"]], axis=0),
    }


# --------------------------- pure-JAX reference --------------------------------
def reference_forward(x_nchw, p):
    B, C, Hh, Ww = x_nchw.shape
    ps = PATCH_SIZE
    hg, wg = Hh // ps, Ww // ps
    patches = (x_nchw.reshape(B, C, hg, ps, wg, ps)
               .transpose(0, 2, 4, 1, 3, 5)
               .reshape(B, hg * wg, C * ps * ps))

    def ln(x, g, b):
        m = jnp.mean(x, -1, keepdims=True)
        v = jnp.mean((x - m) ** 2, -1, keepdims=True)
        return (x - m) / jnp.sqrt(v + LN_EPS) * g + b

    def split(t):         # (B, N, H) -> (B, NH, N, HD)
        return t.reshape(B, N_PATCHES, NUM_HEADS, HEAD_DIM).transpose(0, 2, 1, 3)

    h = patches @ p["w_patch"] + p["b_patch"] + p["pos_emb"]
    for lp in p["layers"]:
        r = h
        xn = ln(h, lp["ln1_g"], lp["ln1_b"])
        q, k, v = (xn @ lp["wq"] + lp["bq"],
                   xn @ lp["wk"] + lp["bk"],
                   xn @ lp["wv"] + lp["bv"])
        qh, kh, vh = split(q), split(k), split(v)
        s = jnp.einsum('bhnd,bhmd->bhnm', qh, kh) * ATTN_SCALE
        a = jax.nn.softmax(s, axis=-1)
        ctx = jnp.einsum('bhnm,bhmd->bhnd', a, vh)
        ctx = ctx.transpose(0, 2, 1, 3).reshape(B, N_PATCHES, HIDDEN)
        h = ctx @ lp["wo"] + lp["bo"] + r
        r = h
        xn = ln(h, lp["ln2_g"], lp["ln2_b"])
        y = xn @ lp["w1"] + lp["b1"]
        y = 0.5 * y * (1.0 + jax.lax.erf(y * 0.7071067811865476))
        h = y @ lp["w2"] + lp["b2"] + r
    return ln(h, p["enc_ln_g"], p["enc_ln_b"])


# ---------------------------------- main ---------------------------------------
if __name__ == "__main__":
    B = 2
    x = jax.random.normal(jax.random.PRNGKey(0),
                          (B, IN_CHANNELS, IMG_SIZE, IMG_SIZE), jnp.float32)
    params = init_params(jax.random.PRNGKey(1))
    kparams = pack_params(params)

    encoded, attn_weights, features = transformer_forward(x, kparams)
    jax.block_until_ready(encoded)

    assert encoded.shape == (B, N_PATCHES, HIDDEN)
    assert features is None and len(attn_weights) == 0

    ref = reference_forward(x, params)
    err = float(jnp.max(jnp.abs(encoded - ref)))
    assert err < 1e-2, f"max abs error vs reference: {err}"
    print("KERNEL_OK")
</pallas_src>

<mosaic_0001>
module attributes {stable_mosaic.version = 11 : i64} {
  func.func @fused_transformer_kernel(%arg0: i32, %arg1: memref<1x16x48xf32, #tpu.memory_space<vmem>>, %arg2: memref<48x32xf32, #tpu.memory_space<vmem>>, %arg3: memref<16x32xf32, #tpu.memory_space<vmem>>, %arg4: memref<2x3x4x32x8xf32, #tpu.memory_space<vmem>>, %arg5: memref<2x3x4x1x8xf32, #tpu.memory_space<vmem>>, %arg6: memref<2x4x8x32xf32, #tpu.memory_space<vmem>>, %arg7: memref<2x6x32xf32, #tpu.memory_space<vmem>>, %arg8: memref<2x32x64xf32, #tpu.memory_space<vmem>>, %arg9: memref<2x1x64xf32, #tpu.memory_space<vmem>>, %arg10: memref<2x64x32xf32, #tpu.memory_space<vmem>>, %arg11: memref<2x32xf32, #tpu.memory_space<vmem>>, %arg12: memref<1x16x32xf32, #tpu.memory_space<vmem>>) attributes {dimension_semantics = [#tpu.dimension_semantics<parallel>], iteration_bounds = array<i64: 2>, scalar_prefetch = 0 : i64, scratch_operands = 0 : i64, tpu.core_type = #tpu.core_type<tc>, window_params = [{transform_indices = @transform_0, window_bounds = array<i64: 1, 16, 48>}, {pipeline_mode = #tpu.pipeline_mode<synchronous>, transform_indices = @transform_1, window_bounds = array<i64: 48, 32>}, {pipeline_mode = #tpu.pipeline_mode<synchronous>, transform_indices = @transform_2, window_bounds = array<i64: 16, 32>}, {pipeline_mode = #tpu.pipeline_mode<synchronous>, transform_indices = @transform_3, window_bounds = array<i64: 2, 3, 4, 32, 8>}, {pipeline_mode = #tpu.pipeline_mode<synchronous>, transform_indices = @transform_4, window_bounds = array<i64: 2, 3, 4, 1, 8>}, {pipeline_mode = #tpu.pipeline_mode<synchronous>, transform_indices = @transform_5, window_bounds = array<i64: 2, 4, 8, 32>}, {pipeline_mode = #tpu.pipeline_mode<synchronous>, transform_indices = @transform_6, window_bounds = array<i64: 2, 6, 32>}, {pipeline_mode = #tpu.pipeline_mode<synchronous>, transform_indices = @transform_7, window_bounds = array<i64: 2, 32, 64>}, {pipeline_mode = #tpu.pipeline_mode<synchronous>, transform_indices = @transform_8, window_bounds = array<i64: 2, 1, 64>}, {pipeline_mode = #tpu.pipeline_mode<synchronous>, transform_indices = @transform_9, window_bounds = array<i64: 2, 64, 32>}, {pipeline_mode = #tpu.pipeline_mode<synchronous>, transform_indices = @transform_10, window_bounds = array<i64: 2, 32>}, {transform_indices = @transform_11, window_bounds = array<i64: 1, 16, 32>}]} {
    %c0 = arith.constant 0 : index
    %c0_0 = arith.constant 0 : index
    %c0_1 = arith.constant 0 : index
    %0 = vector.load %arg1[%c0, %c0_0, %c0_1] : memref<1x16x48xf32, #tpu.memory_space<vmem>>, vector<1x16x48xf32>
    %1 = vector.shape_cast %0 : vector<1x16x48xf32> to vector<16x48xf32>
    %c0_2 = arith.constant 0 : index
    %c0_3 = arith.constant 0 : index
    %2 = vector.load %arg2[%c0_2, %c0_3] : memref<48x32xf32, #tpu.memory_space<vmem>>, vector<48x32xf32>
    %cst = arith.constant dense<0.000000e+00> : vector<16x32xf32>
    %3 = tpu.matmul %1, %2, %cst {dimension_numbers = #tpu.dot_dimension_numbers<[1], [0], [0], [1], [0, 0, 1, 1], [], []>} : vector<16x48xf32>, vector<48x32xf32>, vector<16x32xf32> -> vector<16x32xf32>
    %c0_4 = arith.constant 0 : index
    %c0_5 = arith.constant 0 : index
    %4 = vector.load %arg3[%c0_4, %c0_5] : memref<16x32xf32, #tpu.memory_space<vmem>>, vector<16x32xf32>
    %5 = arith.addf %3, %4 : vector<16x32xf32>
    %c0_6 = arith.constant 0 : index
    %c0_7 = arith.constant 0 : index
    %c0_8 = arith.constant 0 : index
    %6 = vector.load %arg7[%c0_6, %c0_7, %c0_8] : memref<2x6x32xf32, #tpu.memory_space<vmem>>, vector<1x1x32xf32>
    %7 = vector.shape_cast %6 : vector<1x1x32xf32> to vector<1x32xf32>
    %c0_9 = arith.constant 0 : index
    %c1 = arith.constant 1 : index
    %c0_10 = arith.constant 0 : index
    %8 = vector.load %arg7[%c0_9, %c1, %c0_10] : memref<2x6x32xf32, #tpu.memory_space<vmem>>, vector<1x1x32xf32>
    %9 = vector.shape_cast %8 : vector<1x1x32xf32> to vector<1x32xf32>
    %cst_11 = arith.constant dense<0.000000e+00> : vector<16xf32>
    %10 = vector.multi_reduction <add>, %5, %cst_11 [1] : vector<16x32xf32> to vector<16xf32>
    %11 = vector.shape_cast %10 : vector<16xf32> to vector<16x1xf32>
    %cst_12 = arith.constant 3.200000e+01 : f32
    %12 = vector.broadcast %cst_12 : f32 to vector<16x1xf32>
    %13 = arith.divf %11, %12 : vector<16x1xf32>
    %14 = vector.broadcast %13 : vector<16x1xf32> to vector<16x32xf32>
    %15 = arith.subf %5, %14 : vector<16x32xf32>
    %16 = arith.mulf %15, %15 : vector<16x32xf32>
    %cst_13 = arith.constant dense<0.000000e+00> : vector<16xf32>
    %17 = vector.multi_reduction <add>, %16, %cst_13 [1] : vector<16x32xf32> to vector<16xf32>
    %18 = vector.shape_cast %17 : vector<16xf32> to vector<16x1xf32>
    %cst_14 = arith.constant 3.200000e+01 : f32
    %19 = vector.broadcast %cst_14 : f32 to vector<16x1xf32>
    %20 = arith.divf %18, %19 : vector<16x1xf32>
    %21 = vector.broadcast %13 : vector<16x1xf32> to vector<16x32xf32>
    %22 = arith.subf %5, %21 : vector<16x32xf32>
    %cst_15 = arith.constant 9.99999997E-7 : f32
    %23 = vector.broadcast %cst_15 : f32 to vector<16x1xf32>
    %24 = arith.addf %20, %23 : vector<16x1xf32>
    %25 = math.rsqrt %24 : vector<16x1xf32>
    %26 = vector.broadcast %25 : vector<16x1xf32> to vector<16x32xf32>
    %27 = arith.mulf %22, %26 : vector<16x32xf32>
    %28 = vector.broadcast %7 : vector<1x32xf32> to vector<16x32xf32>
    %29 = arith.mulf %27, %28 : vector<16x32xf32>
    %30 = vector.broadcast %9 : vector<1x32xf32> to vector<16x32xf32>
    %31 = arith.addf %29, %30 : vector<16x32xf32>
    %cst_16 = arith.constant 0.000000e+00 : f32
    %32 = vector.broadcast %cst_16 : f32 to vector<16x32xf32>
    %c0_17 = arith.constant 0 : index
    %c0_18 = arith.constant 0 : index
    %c0_19 = arith.constant 0 : index
    %c0_20 = arith.constant 0 : index
    %c0_21 = arith.constant 0 : index
    %33 = vector.load %arg4[%c0_17, %c0_18, %c0_19, %c0_20, %c0_21] : memref<2x3x4x32x8xf32, #tpu.memory_space<vmem>>, vector<1x1x1x32x8xf32>
    %34 = vector.shape_cast %33 : vector<1x1x1x32x8xf32> to vector<32x8xf32>
    %cst_22 = arith.constant dense<0.000000e+00> : vector<16x8xf32>
    %35 = tpu.matmul %31, %34, %cst_22 {dimension_numbers = #tpu.dot_dimension_numbers<[1], [0], [0], [1], [0, 0, 1, 1], [], []>} : vector<16x32xf32>, vector<32x8xf32>, vector<16x8xf32> -> vector<16x8xf32>
    %c0_23 = arith.constant 0 : index
    %c0_24 = arith.constant 0 : index
    %c0_25 = arith.constant 0 : index
    %c0_26 = arith.constant 0 : index
    %c0_27 = arith.constant 0 : index
    %36 = vector.load %arg5[%c0_23, %c0_24, %c0_25, %c0_26, %c0_27] : memref<2x3x4x1x8xf32, #tpu.memory_space<vmem>>, vector<1x1x1x1x8xf32>
    %37 = vector.shape_cast %36 : vector<1x1x1x1x8xf32> to vector<1x8xf32>
    %38 = vector.broadcast %37 : vector<1x8xf32> to vector<16x8xf32>
    %39 = arith.addf %35, %38 : vector<16x8xf32>
    %c0_28 = arith.constant 0 : index
    %c1_29 = arith.constant 1 : index
    %c0_30 = arith.constant 0 : index
    %c0_31 = arith.constant 0 : index
    %c0_32 = arith.constant 0 : index
    %40 = vector.load %arg4[%c0_28, %c1_29, %c0_30, %c0_31, %c0_32] : memref<2x3x4x32x8xf32, #tpu.memory_space<vmem>>, vector<1x1x1x32x8xf32>
    %41 = vector.shape_cast %40 : vector<1x1x1x32x8xf32> to vector<32x8xf32>
    %cst_33 = arith.constant dense<0.000000e+00> : vector<16x8xf32>
    %42 = tpu.matmul %31, %41, %cst_33 {dimension_numbers = #tpu.dot_dimension_numbers<[1], [0], [0], [1], [0, 0, 1, 1], [], []>} : vector<16x32xf32>, vector<32x8xf32>, vector<16x8xf32> -> vector<16x8xf32>
    %c0_34 = arith.constant 0 : index
    %c1_35 = arith.constant 1 : index
    %c0_36 = arith.constant 0 : index
    %c0_37 = arith.constant 0 : index
    %c0_38 = arith.constant 0 : index
    %43 = vector.load %arg5[%c0_34, %c1_35, %c0_36, %c0_37, %c0_38] : memref<2x3x4x1x8xf32, #tpu.memory_space<vmem>>, vector<1x1x1x1x8xf32>
    %44 = vector.shape_cast %43 : vector<1x1x1x1x8xf32> to vector<1x8xf32>
    %45 = vector.broadcast %44 : vector<1x8xf32> to vector<16x8xf32>
    %46 = arith.addf %42, %45 : vector<16x8xf32>
    %c0_39 = arith.constant 0 : index
    %c2 = arith.constant 2 : index
    %c0_40 = arith.constant 0 : index
    %c0_41 = arith.constant 0 : index
    %c0_42 = arith.constant 0 : index
    %47 = vector.load %arg4[%c0_39, %c2, %c0_40, %c0_41, %c0_42] : memref<2x3x4x32x8xf32, #tpu.memory_space<vmem>>, vector<1x1x1x32x8xf32>
    %48 = vector.shape_cast %47 : vector<1x1x1x32x8xf32> to vector<32x8xf32>
    %cst_43 = arith.constant dense<0.000000e+00> : vector<16x8xf32>
    %49 = tpu.matmul %31, %48, %cst_43 {dimension_numbers = #tpu.dot_dimension_numbers<[1], [0], [0], [1], [0, 0, 1, 1], [], []>} : vector<16x32xf32>, vector<32x8xf32>, vector<16x8xf32> -> vector<16x8xf32>
    %c0_44 = arith.constant 0 : index
    %c2_45 = arith.constant 2 : index
    %c0_46 = arith.constant 0 : index
    %c0_47 = arith.constant 0 : index
    %c0_48 = arith.constant 0 : index
    %50 = vector.load %arg5[%c0_44, %c2_45, %c0_46, %c0_47, %c0_48] : memref<2x3x4x1x8xf32, #tpu.memory_space<vmem>>, vector<1x1x1x1x8xf32>
    %51 = vector.shape_cast %50 : vector<1x1x1x1x8xf32> to vector<1x8xf32>
    %52 = vector.broadcast %51 : vector<1x8xf32> to vector<16x8xf32>
    %53 = arith.addf %49, %52 : vector<16x8xf32>
    %cst_49 = arith.constant dense<0.000000e+00> : vector<16x16xf32>
    %54 = tpu.matmul %39, %46, %cst_49 {dimension_numbers = #tpu.dot_dimension_numbers<[1], [1], [0], [0], [0, 0, 1, 0], [], []>} : vector<16x8xf32>, vector<16x8xf32>, vector<16x16xf32> -> vector<16x16xf32>
    %cst_50 = arith.constant 0.353553385 : f32
    %55 = vector.broadcast %cst_50 : f32 to vector<16x16xf32>
    %56 = arith.mulf %54, %55 : vector<16x16xf32>
    %cst_51 = arith.constant dense<0xFF800000> : vector<16xf32>
    %57 = vector.multi_reduction <maximumf>, %56, %cst_51 [1] : vector<16x16xf32> to vector<16xf32>
    %58 = vector.shape_cast %57 : vector<16xf32> to vector<16x1xf32>
    %59 = vector.broadcast %58 : vector<16x1xf32> to vector<16x16xf32>
    %60 = arith.subf %56, %59 : vector<16x16xf32>
    %61 = math.exp %60 : vector<16x16xf32>
    %cst_52 = arith.constant dense<0.000000e+00> : vector<16xf32>
    %62 = vector.multi_reduction <add>, %61, %cst_52 [1] : vector<16x16xf32> to vector<16xf32>
    %63 = vector.shape_cast %62 : vector<16xf32> to vector<16x1xf32>
    %64 = tpu.reciprocal %63 {approx = true} : vector<16x1xf32> -> vector<16x1xf32>
    %65 = vector.broadcast %64 : vector<16x1xf32> to vector<16x16xf32>
    %66 = arith.mulf %61, %65 : vector<16x16xf32>
    %cst_53 = arith.constant dense<0.000000e+00> : vector<16x8xf32>
    %67 = tpu.matmul %66, %53, %cst_53 {dimension_numbers = #tpu.dot_dimension_numbers<[1], [0], [0], [1], [0, 0, 1, 1], [], []>} : vector<16x16xf32>, vector<16x8xf32>, vector<16x8xf32> -> vector<16x8xf32>
    %c0_54 = arith.constant 0 : index
    %c0_55 = arith.constant 0 : index
    %c0_56 = arith.constant 0 : index
    %c0_57 = arith.constant 0 : index
    %68 = vector.load %arg6[%c0_54, %c0_55, %c0_56, %c0_57] : memref<2x4x8x32xf32, #tpu.memory_space<vmem>>, vector<1x1x8x32xf32>
    %69 = vector.shape_cast %68 : vector<1x1x8x32xf32> to vector<8x32xf32>
    %cst_58 = arith.constant dense<0.000000e+00> : vector<16x32xf32>
    %70 = tpu.matmul %67, %69, %cst_58 {dimension_numbers = #tpu.dot_dimension_numbers<[1], [0], [0], [1], [0, 0, 1, 1], [], []>} : vector<16x8xf32>, vector<8x32xf32>, vector<16x32xf32> -> vector<16x32xf32>
    %71 = arith.addf %32, %70 : vector<16x32xf32>
    %c0_59 = arith.constant 0 : index
    %c0_60 = arith.constant 0 : index
    %c1_61 = arith.constant 1 : index
    %c0_62 = arith.constant 0 : index
    %c0_63 = arith.constant 0 : index
    %72 = vector.load %arg4[%c0_59, %c0_60, %c1_61, %c0_62, %c0_63] : memref<2x3x4x32x8xf32, #tpu.memory_space<vmem>>, vector<1x1x1x32x8xf32>
    %73 = vector.shape_cast %72 : vector<1x1x1x32x8xf32> to vector<32x8xf32>
    %cst_64 = arith.constant dense<0.000000e+00> : vector<16x8xf32>
    %74 = tpu.matmul %31, %73, %cst_64 {dimension_numbers = #tpu.dot_dimension_numbers<[1], [0], [0], [1], [0, 0, 1, 1], [], []>} : vector<16x32xf32>, vector<32x8xf32>, vector<16x8xf32> -> vector<16x8xf32>
    %c0_65 = arith.constant 0 : index
    %c0_66 = arith.constant 0 : index
    %c1_67 = arith.constant 1 : index
    %c0_68 = arith.constant 0 : index
    %c0_69 = arith.constant 0 : index
    %75 = vector.load %arg5[%c0_65, %c0_66, %c1_67, %c0_68, %c0_69] : memref<2x3x4x1x8xf32, #tpu.memory_space<vmem>>, vector<1x1x1x1x8xf32>
    %76 = vector.shape_cast %75 : vector<1x1x1x1x8xf32> to vector<1x8xf32>
    %77 = vector.broadcast %76 : vector<1x8xf32> to vector<16x8xf32>
    %78 = arith.addf %74, %77 : vector<16x8xf32>
    %c0_70 = arith.constant 0 : index
    %c1_71 = arith.constant 1 : index
    %c1_72 = arith.constant 1 : index
    %c0_73 = arith.constant 0 : index
    %c0_74 = arith.constant 0 : index
    %79 = vector.load %arg4[%c0_70, %c1_71, %c1_72, %c0_73, %c0_74] : memref<2x3x4x32x8xf32, #tpu.memory_space<vmem>>, vector<1x1x1x32x8xf32>
    %80 = vector.shape_cast %79 : vector<1x1x1x32x8xf32> to vector<32x8xf32>
    %cst_75 = arith.constant dense<0.000000e+00> : vector<16x8xf32>
    %81 = tpu.matmul %31, %80, %cst_75 {dimension_numbers = #tpu.dot_dimension_numbers<[1], [0], [0], [1], [0, 0, 1, 1], [], []>} : vector<16x32xf32>, vector<32x8xf32>, vector<16x8xf32> -> vector<16x8xf32>
    %c0_76 = arith.constant 0 : index
    %c1_77 = arith.constant 1 : index
    %c1_78 = arith.constant 1 : index
    %c0_79 = arith.constant 0 : index
    %c0_80 = arith.constant 0 : index
    %82 = vector.load %arg5[%c0_76, %c1_77, %c1_78, %c0_79, %c0_80] : memref<2x3x4x1x8xf32, #tpu.memory_space<vmem>>, vector<1x1x1x1x8xf32>
    %83 = vector.shape_cast %82 : vector<1x1x1x1x8xf32> to vector<1x8xf32>
    %84 = vector.broadcast %83 : vector<1x8xf32> to vector<16x8xf32>
    %85 = arith.addf %81, %84 : vector<16x8xf32>
    %c0_81 = arith.constant 0 : index
    %c2_82 = arith.constant 2 : index
    %c1_83 = arith.constant 1 : index
    %c0_84 = arith.constant 0 : index
    %c0_85 = arith.constant 0 : index
    %86 = vector.load %arg4[%c0_81, %c2_82, %c1_83, %c0_84, %c0_85] : memref<2x3x4x32x8xf32, #tpu.memory_space<vmem>>, vector<1x1x1x32x8xf32>
    %87 = vector.shape_cast %86 : vector<1x1x1x32x8xf32> to vector<32x8xf32>
    %cst_86 = arith.constant dense<0.000000e+00> : vector<16x8xf32>
    %88 = tpu.matmul %31, %87, %cst_86 {dimension_numbers = #tpu.dot_dimension_numbers<[1], [0], [0], [1], [0, 0, 1, 1], [], []>} : vector<16x32xf32>, vector<32x8xf32>, vector<16x8xf32> -> vector<16x8xf32>
    %c0_87 = arith.constant 0 : index
    %c2_88 = arith.constant 2 : index
    %c1_89 = arith.constant 1 : index
    %c0_90 = arith.constant 0 : index
    %c0_91 = arith.constant 0 : index
    %89 = vector.load %arg5[%c0_87, %c2_88, %c1_89, %c0_90, %c0_91] : memref<2x3x4x1x8xf32, #tpu.memory_space<vmem>>, vector<1x1x1x1x8xf32>
    %90 = vector.shape_cast %89 : vector<1x1x1x1x8xf32> to vector<1x8xf32>
    %91 = vector.broadcast %90 : vector<1x8xf32> to vector<16x8xf32>
    %92 = arith.addf %88, %91 : vector<16x8xf32>
    %cst_92 = arith.constant dense<0.000000e+00> : vector<16x16xf32>
    %93 = tpu.matmul %78, %85, %cst_92 {dimension_numbers = #tpu.dot_dimension_numbers<[1], [1], [0], [0], [0, 0, 1, 0], [], []>} : vector<16x8xf32>, vector<16x8xf32>, vector<16x16xf32> -> vector<16x16xf32>
    %cst_93 = arith.constant 0.353553385 : f32
    %94 = vector.broadcast %cst_93 : f32 to vector<16x16xf32>
    %95 = arith.mulf %93, %94 : vector<16x16xf32>
    %cst_94 = arith.constant dense<0xFF800000> : vector<16xf32>
    %96 = vector.multi_reduction <maximumf>, %95, %cst_94 [1] : vector<16x16xf32> to vector<16xf32>
    %97 = vector.shape_cast %96 : vector<16xf32> to vector<16x1xf32>
    %98 = vector.broadcast %97 : vector<16x1xf32> to vector<16x16xf32>
    %99 = arith.subf %95, %98 : vector<16x16xf32>
    %100 = math.exp %99 : vector<16x16xf32>
    %cst_95 = arith.constant dense<0.000000e+00> : vector<16xf32>
    %101 = vector.multi_reduction <add>, %100, %cst_95 [1] : vector<16x16xf32> to vector<16xf32>
    %102 = vector.shape_cast %101 : vector<16xf32> to vector<16x1xf32>
    %103 = tpu.reciprocal %102 {approx = true} : vector<16x1xf32> -> vector<16x1xf32>
    %104 = vector.broadcast %103 : vector<16x1xf32> to vector<16x16xf32>
    %105 = arith.mulf %100, %104 : vector<16x16xf32>
    %cst_96 = arith.constant dense<0.000000e+00> : vector<16x8xf32>
    %106 = tpu.matmul %105, %92, %cst_96 {dimension_numbers = #tpu.dot_dimension_numbers<[1], [0], [0], [1], [0, 0, 1, 1], [], []>} : vector<16x16xf32>, vector<16x8xf32>, vector<16x8xf32> -> vector<16x8xf32>
    %c0_97 = arith.constant 0 : index
    %c1_98 = arith.constant 1 : index
    %c0_99 = arith.constant 0 : index
    %c0_100 = arith.constant 0 : index
    %107 = vector.load %arg6[%c0_97, %c1_98, %c0_99, %c0_100] : memref<2x4x8x32xf32, #tpu.memory_space<vmem>>, vector<1x1x8x32xf32>
    %108 = vector.shape_cast %107 : vector<1x1x8x32xf32> to vector<8x32xf32>
    %cst_101 = arith.constant dense<0.000000e+00> : vector<16x32xf32>
    %109 = tpu.matmul %106, %108, %cst_101 {dimension_numbers = #tpu.dot_dimension_numbers<[1], [0], [0], [1], [0, 0, 1, 1], [], []>} : vector<16x8xf32>, vector<8x32xf32>, vector<16x32xf32> -> vector<16x32xf32>
    %110 = arith.addf %71, %109 : vector<16x32xf32>
    %c0_102 = arith.constant 0 : index
    %c0_103 = arith.constant 0 : index
    %c2_104 = arith.constant 2 : index
    %c0_105 = arith.constant 0 : index
    %c0_106 = arith.constant 0 : index
    %111 = vector.load %arg4[%c0_102, %c0_103, %c2_104, %c0_105, %c0_106] : memref<2x3x4x32x8xf32, #tpu.memory_space<vmem>>, vector<1x1x1x32x8xf32>
    %112 = vector.shape_cast %111 : vector<1x1x1x32x8xf32> to vector<32x8xf32>
    %cst_107 = arith.constant dense<0.000000e+00> : vector<16x8xf32>
    %113 = tpu.matmul %31, %112, %cst_107 {dimension_numbers = #tpu.dot_dimension_numbers<[1], [0], [0], [1], [0, 0, 1, 1], [], []>} : vector<16x32xf32>, vector<32x8xf32>, vector<16x8xf32> -> vector<16x8xf32>
    %c0_108 = arith.constant 0 : index
    %c0_109 = arith.constant 0 : index
    %c2_110 = arith.constant 2 : index
    %c0_111 = arith.constant 0 : index
    %c0_112 = arith.constant 0 : index
    %114 = vector.load %arg5[%c0_108, %c0_109, %c2_110, %c0_111, %c0_112] : memref<2x3x4x1x8xf32, #tpu.memory_space<vmem>>, vector<1x1x1x1x8xf32>
    %115 = vector.shape_cast %114 : vector<1x1x1x1x8xf32> to vector<1x8xf32>
    %116 = vector.broadcast %115 : vector<1x8xf32> to vector<16x8xf32>
    %117 = arith.addf %113, %116 : vector<16x8xf32>
    %c0_113 = arith.constant 0 : index
    %c1_114 = arith.constant 1 : index
    %c2_115 = arith.constant 2 : index
    %c0_116 = arith.constant 0 : index
    %c0_117 = arith.constant 0 : index
    %118 = vector.load %arg4[%c0_113, %c1_114, %c2_115, %c0_116, %c0_117] : memref<2x3x4x32x8xf32, #tpu.memory_space<vmem>>, vector<1x1x1x32x8xf32>
    %119 = vector.shape_cast %118 : vector<1x1x1x32x8xf32> to vector<32x8xf32>
    %cst_118 = arith.constant dense<0.000000e+00> : vector<16x8xf32>
    %120 = tpu.matmul %31, %119, %cst_118 {dimension_numbers = #tpu.dot_dimension_numbers<[1], [0], [0], [1], [0, 0, 1, 1], [], []>} : vector<16x32xf32>, vector<32x8xf32>, vector<16x8xf32> -> vector<16x8xf32>
    %c0_119 = arith.constant 0 : index
    %c1_120 = arith.constant 1 : index
    %c2_121 = arith.constant 2 : index
    %c0_122 = arith.constant 0 : index
    %c0_123 = arith.constant 0 : index
    %121 = vector.load %arg5[%c0_119, %c1_120, %c2_121, %c0_122, %c0_123] : memref<2x3x4x1x8xf32, #tpu.memory_space<vmem>>, vector<1x1x1x1x8xf32>
    %122 = vector.shape_cast %121 : vector<1x1x1x1x8xf32> to vector<1x8xf32>
    %123 = vector.broadcast %122 : vector<1x8xf32> to vector<16x8xf32>
    %124 = arith.addf %120, %123 : vector<16x8xf32>
    %c0_124 = arith.constant 0 : index
    %c2_125 = arith.constant 2 : index
    %c2_126 = arith.constant 2 : index
    %c0_127 = arith.constant 0 : index
    %c0_128 = arith.constant 0 : index
    %125 = vector.load %arg4[%c0_124, %c2_125, %c2_126, %c0_127, %c0_128] : memref<2x3x4x32x8xf32, #tpu.memory_space<vmem>>, vector<1x1x1x32x8xf32>
    %126 = vector.shape_cast %125 : vector<1x1x1x32x8xf32> to vector<32x8xf32>
    %cst_129 = arith.constant dense<0.000000e+00> : vector<16x8xf32>
    %127 = tpu.matmul %31, %126, %cst_129 {dimension_numbers = #tpu.dot_dimension_numbers<[1], [0], [0], [1], [0, 0, 1, 1], [], []>} : vector<16x32xf32>, vector<32x8xf32>, vector<16x8xf32> -> vector<16x8xf32>
    %c0_130 = arith.constant 0 : index
    %c2_131 = arith.constant 2 : index
    %c2_132 = arith.constant 2 : index
    %c0_133 = arith.constant 0 : index
    %c0_134 = arith.constant 0 : index
    %128 = vector.load %arg5[%c0_130, %c2_131, %c2_132, %c0_133, %c0_134] : memref<2x3x4x1x8xf32, #tpu.memory_space<vmem>>, vector<1x1x1x1x8xf32>
    %129 = vector.shape_cast %128 : vector<1x1x1x1x8xf32> to vector<1x8xf32>
    %130 = vector.broadcast %129 : vector<1x8xf32> to vector<16x8xf32>
    %131 = arith.addf %127, %130 : vector<16x8xf32>
    %cst_135 = arith.constant dense<0.000000e+00> : vector<16x16xf32>
    %132 = tpu.matmul %117, %124, %cst_135 {dimension_numbers = #tpu.dot_dimension_numbers<[1], [1], [0], [0], [0, 0, 1, 0], [], []>} : vector<16x8xf32>, vector<16x8xf32>, vector<16x16xf32> -> vector<16x16xf32>
    %cst_136 = arith.constant 0.353553385 : f32
    %133 = vector.broadcast %cst_136 : f32 to vector<16x16xf32>
    %134 = arith.mulf %132, %133 : vector<16x16xf32>
    %cst_137 = arith.constant dense<0xFF800000> : vector<16xf32>
    %135 = vector.multi_reduction <maximumf>, %134, %cst_137 [1] : vector<16x16xf32> to vector<16xf32>
    %136 = vector.shape_cast %135 : vector<16xf32> to vector<16x1xf32>
    %137 = vector.broadcast %136 : vector<16x1xf32> to vector<16x16xf32>
    %138 = arith.subf %134, %137 : vector<16x16xf32>
    %139 = math.exp %138 : vector<16x16xf32>
    %cst_138 = arith.constant dense<0.000000e+00> : vector<16xf32>
    %140 = vector.multi_reduction <add>, %139, %cst_138 [1] : vector<16x16xf32> to vector<16xf32>
    %141 = vector.shape_cast %140 : vector<16xf32> to vector<16x1xf32>
    %142 = tpu.reciprocal %141 {approx = true} : vector<16x1xf32> -> vector<16x1xf32>
    %143 = vector.broadcast %142 : vector<16x1xf32> to vector<16x16xf32>
    %144 = arith.mulf %139, %143 : vector<16x16xf32>
    %cst_139 = arith.constant dense<0.000000e+00> : vector<16x8xf32>
    %145 = tpu.matmul %144, %131, %cst_139 {dimension_numbers = #tpu.dot_dimension_numbers<[1], [0], [0], [1], [0, 0, 1, 1], [], []>} : vector<16x16xf32>, vector<16x8xf32>, vector<16x8xf32> -> vector<16x8xf32>
    %c0_140 = arith.constant 0 : index
    %c2_141 = arith.constant 2 : index
    %c0_142 = arith.constant 0 : index
    %c0_143 = arith.constant 0 : index
    %146 = vector.load %arg6[%c0_140, %c2_141, %c0_142, %c0_143] : memref<2x4x8x32xf32, #tpu.memory_space<vmem>>, vector<1x1x8x32xf32>
    %147 = vector.shape_cast %146 : vector<1x1x8x32xf32> to vector<8x32xf32>
    %cst_144 = arith.constant dense<0.000000e+00> : vector<16x32xf32>
    %148 = tpu.matmul %145, %147, %cst_144 {dimension_numbers = #tpu.dot_dimension_numbers<[1], [0], [0], [1], [0, 0, 1, 1], [], []>} : vector<16x8xf32>, vector<8x32xf32>, vector<16x32xf32> -> vector<16x32xf32>
    %149 = arith.addf %110, %148 : vector<16x32xf32>
    %c0_145 = arith.constant 0 : index
    %c0_146 = arith.constant 0 : index
    %c3 = arith.constant 3 : index
    %c0_147 = arith.constant 0 : index
    %c0_148 = arith.constant 0 : index
    %150 = vector.load %arg4[%c0_145, %c0_146, %c3, %c0_147, %c0_148] : memref<2x3x4x32x8xf32, #tpu.memory_space<vmem>>, vector<1x1x1x32x8xf32>
    %151 = vector.shape_cast %150 : vector<1x1x1x32x8xf32> to vector<32x8xf32>
    %cst_149 = arith.constant dense<0.000000e+00> : vector<16x8xf32>
    %152 = tpu.matmul %31, %151, %cst_149 {dimension_numbers = #tpu.dot_dimension_numbers<[1], [0], [0], [1], [0, 0, 1, 1], [], []>} : vector<16x32xf32>, vector<32x8xf32>, vector<16x8xf32> -> vector<16x8xf32>
    %c0_150 = arith.constant 0 : index
    %c0_151 = arith.constant 0 : index
    %c3_152 = arith.constant 3 : index
    %c0_153 = arith.constant 0 : index
    %c0_154 = arith.constant 0 : index
    %153 = vector.load %arg5[%c0_150, %c0_151, %c3_152, %c0_153, %c0_154] : memref<2x3x4x1x8xf32, #tpu.memory_space<vmem>>, vector<1x1x1x1x8xf32>
    %154 = vector.shape_cast %153 : vector<1x1x1x1x8xf32> to vector<1x8xf32>
    %155 = vector.broadcast %154 : vector<1x8xf32> to vector<16x8xf32>
    %156 = arith.addf %152, %155 : vector<16x8xf32>
    %c0_155 = arith.constant 0 : index
    %c1_156 = arith.constant 1 : index
    %c3_157 = arith.constant 3 : index
    %c0_158 = arith.constant 0 : index
    %c0_159 = arith.constant 0 : index
    %157 = vector.load %arg4[%c0_155, %c1_156, %c3_157, %c0_158, %c0_159] : memref<2x3x4x32x8xf32, #tpu.memory_space<vmem>>, vector<1x1x1x32x8xf32>
    %158 = vector.shape_cast %157 : vector<1x1x1x32x8xf32> to vector<32x8xf32>
    %cst_160 = arith.constant dense<0.000000e+00> : vector<16x8xf32>
    %159 = tpu.matmul %31, %158, %cst_160 {dimension_numbers = #tpu.dot_dimension_numbers<[1], [0], [0], [1], [0, 0, 1, 1], [], []>} : vector<16x32xf32>, vector<32x8xf32>, vector<16x8xf32> -> vector<16x8xf32>
    %c0_161 = arith.constant 0 : index
    %c1_162 = arith.constant 1 : index
    %c3_163 = arith.constant 3 : index
    %c0_164 = arith.constant 0 : index
    %c0_165 = arith.constant 0 : index
    %160 = vector.load %arg5[%c0_161, %c1_162, %c3_163, %c0_164, %c0_165] : memref<2x3x4x1x8xf32, #tpu.memory_space<vmem>>, vector<1x1x1x1x8xf32>
    %161 = vector.shape_cast %160 : vector<1x1x1x1x8xf32> to vector<1x8xf32>
    %162 = vector.broadcast %161 : vector<1x8xf32> to vector<16x8xf32>
    %163 = arith.addf %159, %162 : vector<16x8xf32>
    %c0_166 = arith.constant 0 : index
    %c2_167 = arith.constant 2 : index
    %c3_168 = arith.constant 3 : index
    %c0_169 = arith.constant 0 : index
    %c0_170 = arith.constant 0 : index
    %164 = vector.load %arg4[%c0_166, %c2_167, %c3_168, %c0_169, %c0_170] : memref<2x3x4x32x8xf32, #tpu.memory_space<vmem>>, vector<1x1x1x32x8xf32>
    %165 = vector.shape_cast %164 : vector<1x1x1x32x8xf32> to vector<32x8xf32>
    %cst_171 = arith.constant dense<0.000000e+00> : vector<16x8xf32>
    %166 = tpu.matmul %31, %165, %cst_171 {dimension_numbers = #tpu.dot_dimension_numbers<[1], [0], [0], [1], [0, 0, 1, 1], [], []>} : vector<16x32xf32>, vector<32x8xf32>, vector<16x8xf32> -> vector<16x8xf32>
    %c0_172 = arith.constant 0 : index
    %c2_173 = arith.constant 2 : index
    %c3_174 = arith.constant 3 : index
    %c0_175 = arith.constant 0 : index
    %c0_176 = arith.constant 0 : index
    %167 = vector.load %arg5[%c0_172, %c2_173, %c3_174, %c0_175, %c0_176] : memref<2x3x4x1x8xf32, #tpu.memory_space<vmem>>, vector<1x1x1x1x8xf32>
    %168 = vector.shape_cast %167 : vector<1x1x1x1x8xf32> to vector<1x8xf32>
    %169 = vector.broadcast %168 : vector<1x8xf32> to vector<16x8xf32>
    %170 = arith.addf %166, %169 : vector<16x8xf32>
    %cst_177 = arith.constant dense<0.000000e+00> : vector<16x16xf32>
    %171 = tpu.matmul %156, %163, %cst_177 {dimension_numbers = #tpu.dot_dimension_numbers<[1], [1], [0], [0], [0, 0, 1, 0], [], []>} : vector<16x8xf32>, vector<16x8xf32>, vector<16x16xf32> -> vector<16x16xf32>
    %cst_178 = arith.constant 0.353553385 : f32
    %172 = vector.broadcast %cst_178 : f32 to vector<16x16xf32>
    %173 = arith.mulf %171, %172 : vector<16x16xf32>
    %cst_179 = arith.constant dense<0xFF800000> : vector<16xf32>
    %174 = vector.multi_reduction <maximumf>, %173, %cst_179 [1] : vector<16x16xf32> to vector<16xf32>
    %175 = vector.shape_cast %174 : vector<16xf32> to vector<16x1xf32>
    %176 = vector.broadcast %175 : vector<16x1xf32> to vector<16x16xf32>
    %177 = arith.subf %173, %176 : vector<16x16xf32>
    %178 = math.exp %177 : vector<16x16xf32>
    %cst_180 = arith.constant dense<0.000000e+00> : vector<16xf32>
    %179 = vector.multi_reduction <add>, %178, %cst_180 [1] : vector<16x16xf32> to vector<16xf32>
    %180 = vector.shape_cast %179 : vector<16xf32> to vector<16x1xf32>
    %181 = tpu.reciprocal %180 {approx = true} : vector<16x1xf32> -> vector<16x1xf32>
    %182 = vector.broadcast %181 : vector<16x1xf32> to vector<16x16xf32>
    %183 = arith.mulf %178, %182 : vector<16x16xf32>
    %cst_181 = arith.constant dense<0.000000e+00> : vector<16x8xf32>
    %184 = tpu.matmul %183, %170, %cst_181 {dimension_numbers = #tpu.dot_dimension_numbers<[1], [0], [0], [1], [0, 0, 1, 1], [], []>} : vector<16x16xf32>, vector<16x8xf32>, vector<16x8xf32> -> vector<16x8xf32>
    %c0_182 = arith.constant 0 : index
    %c3_183 = arith.constant 3 : index
    %c0_184 = arith.constant 0 : index
    %c0_185 = arith.constant 0 : index
    %185 = vector.load %arg6[%c0_182, %c3_183, %c0_184, %c0_185] : memref<2x4x8x32xf32, #tpu.memory_space<vmem>>, vector<1x1x8x32xf32>
    %186 = vector.shape_cast %185 : vector<1x1x8x32xf32> to vector<8x32xf32>
    %cst_186 = arith.constant dense<0.000000e+00> : vector<16x32xf32>
    %187 = tpu.matmul %184, %186, %cst_186 {dimension_numbers = #tpu.dot_dimension_numbers<[1], [0], [0], [1], [0, 0, 1, 1], [], []>} : vector<16x8xf32>, vector<8x32xf32>, vector<16x32xf32> -> vector<16x32xf32>
    %188 = arith.addf %149, %187 : vector<16x32xf32>
    %c0_187 = arith.constant 0 : index
    %c4 = arith.constant 4 : index
    %c0_188 = arith.constant 0 : index
    %189 = vector.load %arg7[%c0_187, %c4, %c0_188] : memref<2x6x32xf32, #tpu.memory_space<vmem>>, vector<1x1x32xf32>
    %190 = vector.shape_cast %189 : vector<1x1x32xf32> to vector<1x32xf32>
    %191 = vector.broadcast %190 : vector<1x32xf32> to vector<16x32xf32>
    %192 = arith.addf %188, %191 : vector<16x32xf32>
    %193 = arith.addf %192, %5 : vector<16x32xf32>
    %c0_189 = arith.constant 0 : index
    %c2_190 = arith.constant 2 : index
    %c0_191 = arith.constant 0 : index
    %194 = vector.load %arg7[%c0_189, %c2_190, %c0_191] : memref<2x6x32xf32, #tpu.memory_space<vmem>>, vector<1x1x32xf32>
    %195 = vector.shape_cast %194 : vector<1x1x32xf32> to vector<1x32xf32>
    %c0_192 = arith.constant 0 : index
    %c3_193 = arith.constant 3 : index
    %c0_194 = arith.constant 0 : index
    %196 = vector.load %arg7[%c0_192, %c3_193, %c0_194] : memref<2x6x32xf32, #tpu.memory_space<vmem>>, vector<1x1x32xf32>
    %197 = vector.shape_cast %196 : vector<1x1x32xf32> to vector<1x32xf32>
    %cst_195 = arith.constant dense<0.000000e+00> : vector<16xf32>
    %198 = vector.multi_reduction <add>, %193, %cst_195 [1] : vector<16x32xf32> to vector<16xf32>
    %199 = vector.shape_cast %198 : vector<16xf32> to vector<16x1xf32>
    %cst_196 = arith.constant 3.200000e+01 : f32
    %200 = vector.broadcast %cst_196 : f32 to vector<16x1xf32>
    %201 = arith.divf %199, %200 : vector<16x1xf32>
    %202 = vector.broadcast %201 : vector<16x1xf32> to vector<16x32xf32>
    %203 = arith.subf %193, %202 : vector<16x32xf32>
    %204 = arith.mulf %203, %203 : vector<16x32xf32>
    %cst_197 = arith.constant dense<0.000000e+00> : vector<16xf32>
    %205 = vector.multi_reduction <add>, %204, %cst_197 [1] : vector<16x32xf32> to vector<16xf32>
    %206 = vector.shape_cast %205 : vector<16xf32> to vector<16x1xf32>
    %cst_198 = arith.constant 3.200000e+01 : f32
    %207 = vector.broadcast %cst_198 : f32 to vector<16x1xf32>
    %208 = arith.divf %206, %207 : vector<16x1xf32>
    %209 = vector.broadcast %201 : vector<16x1xf32> to vector<16x32xf32>
    %210 = arith.subf %193, %209 : vector<16x32xf32>
    %cst_199 = arith.constant 9.99999997E-7 : f32
    %211 = vector.broadcast %cst_199 : f32 to vector<16x1xf32>
    %212 = arith.addf %208, %211 : vector<16x1xf32>
    %213 = math.rsqrt %212 : vector<16x1xf32>
    %214 = vector.broadcast %213 : vector<16x1xf32> to vector<16x32xf32>
    %215 = arith.mulf %210, %214 : vector<16x32xf32>
    %216 = vector.broadcast %195 : vector<1x32xf32> to vector<16x32xf32>
    %217 = arith.mulf %215, %216 : vector<16x32xf32>
    %218 = vector.broadcast %197 : vector<1x32xf32> to vector<16x32xf32>
    %219 = arith.addf %217, %218 : vector<16x32xf32>
    %c0_200 = arith.constant 0 : index
    %c0_201 = arith.constant 0 : index
    %c0_202 = arith.constant 0 : index
    %220 = vector.load %arg8[%c0_200, %c0_201, %c0_202] : memref<2x32x64xf32, #tpu.memory_space<vmem>>, vector<1x32x64xf32>
    %221 = vector.shape_cast %220 : vector<1x32x64xf32> to vector<32x64xf32>
    %cst_203 = arith.constant dense<0.000000e+00> : vector<16x64xf32>
    %222 = tpu.matmul %219, %221, %cst_203 {dimension_numbers = #tpu.dot_dimension_numbers<[1], [0], [0], [1], [0, 0, 1, 1], [], []>} : vector<16x32xf32>, vector<32x64xf32>, vector<16x64xf32> -> vector<16x64xf32>
    %c0_204 = arith.constant 0 : index
    %c0_205 = arith.constant 0 : index
    %c0_206 = arith.constant 0 : index
    %223 = vector.load %arg9[%c0_204, %c0_205, %c0_206] : memref<2x1x64xf32, #tpu.memory_space<vmem>>, vector<1x1x64xf32>
    %224 = vector.shape_cast %223 : vector<1x1x64xf32> to vector<1x64xf32>
    %225 = vector.broadcast %224 : vector<1x64xf32> to vector<16x64xf32>
    %226 = arith.addf %222, %225 : vector<16x64xf32>
    %cst_207 = arith.constant 5.000000e-01 : f32
    %227 = vector.broadcast %cst_207 : f32 to vector<16x64xf32>
    %228 = arith.mulf %227, %226 : vector<16x64xf32>
    %cst_208 = arith.constant 0.707106769 : f32
    %229 = vector.broadcast %cst_208 : f32 to vector<16x64xf32>
    %230 = arith.mulf %226, %229 : vector<16x64xf32>
    %231 = math.erf %230 : vector<16x64xf32>
    %cst_209 = arith.constant 1.000000e+00 : f32
    %232 = vector.broadcast %cst_209 : f32 to vector<16x64xf32>
    %233 = arith.addf %232, %231 : vector<16x64xf32>
    %234 = arith.mulf %228, %233 : vector<16x64xf32>
    %c0_210 = arith.constant 0 : index
    %c0_211 = arith.constant 0 : index
    %c0_212 = arith.constant 0 : index
    %235 = vector.load %arg10[%c0_210, %c0_211, %c0_212] : memref<2x64x32xf32, #tpu.memory_space<vmem>>, vector<1x64x32xf32>
    %236 = vector.shape_cast %235 : vector<1x64x32xf32> to vector<64x32xf32>
    %cst_213 = arith.constant dense<0.000000e+00> : vector<16x32xf32>
    %237 = tpu.matmul %234, %236, %cst_213 {dimension_numbers = #tpu.dot_dimension_numbers<[1], [0], [0], [1], [0, 0, 1, 1], [], []>} : vector<16x64xf32>, vector<64x32xf32>, vector<16x32xf32> -> vector<16x32xf32>
    %c0_214 = arith.constant 0 : index
    %c5 = arith.constant 5 : index
    %c0_215 = arith.constant 0 : index
    %238 = vector.load %arg7[%c0_214, %c5, %c0_215] : memref<2x6x32xf32, #tpu.memory_space<vmem>>, vector<1x1x32xf32>
    %239 = vector.shape_cast %238 : vector<1x1x32xf32> to vector<1x32xf32>
    %240 = vector.broadcast %239 : vector<1x32xf32> to vector<16x32xf32>
    %241 = arith.addf %237, %240 : vector<16x32xf32>
    %242 = arith.addf %241, %193 : vector<16x32xf32>
    %c1_216 = arith.constant 1 : index
    %c0_217 = arith.constant 0 : index
    %c0_218 = arith.constant 0 : index
    %243 = vector.load %arg7[%c1_216, %c0_217, %c0_218] : memref<2x6x32xf32, #tpu.memory_space<vmem>>, vector<1x1x32xf32>
    %244 = vector.shape_cast %243 : vector<1x1x32xf32> to vector<1x32xf32>
    %c1_219 = arith.constant 1 : index
    %c1_220 = arith.constant 1 : index
    %c0_221 = arith.constant 0 : index
    %245 = vector.load %arg7[%c1_219, %c1_220, %c0_221] : memref<2x6x32xf32, #tpu.memory_space<vmem>>, vector<1x1x32xf32>
    %246 = vector.shape_cast %245 : vector<1x1x32xf32> to vector<1x32xf32>
    %cst_222 = arith.constant dense<0.000000e+00> : vector<16xf32>
    %247 = vector.multi_reduction <add>, %242, %cst_222 [1] : vector<16x32xf32> to vector<16xf32>
    %248 = vector.shape_cast %247 : vector<16xf32> to vector<16x1xf32>
    %cst_223 = arith.constant 3.200000e+01 : f32
    %249 = vector.broadcast %cst_223 : f32 to vector<16x1xf32>
    %250 = arith.divf %248, %249 : vector<16x1xf32>
    %251 = vector.broadcast %250 : vector<16x1xf32> to vector<16x32xf32>
    %252 = arith.subf %242, %251 : vector<16x32xf32>
    %253 = arith.mulf %252, %252 : vector<16x32xf32>
    %cst_224 = arith.constant dense<0.000000e+00> : vector<16xf32>
    %254 = vector.multi_reduction <add>, %253, %cst_224 [1] : vector<16x32xf32> to vector<16xf32>
    %255 = vector.shape_cast %254 : vector<16xf32> to vector<16x1xf32>
    %cst_225 = arith.constant 3.200000e+01 : f32
    %256 = vector.broadcast %cst_225 : f32 to vector<16x1xf32>
    %257 = arith.divf %255, %256 : vector<16x1xf32>
    %258 = vector.broadcast %250 : vector<16x1xf32> to vector<16x32xf32>
    %259 = arith.subf %242, %258 : vector<16x32xf32>
    %cst_226 = arith.constant 9.99999997E-7 : f32
    %260 = vector.broadcast %cst_226 : f32 to vector<16x1xf32>
    %261 = arith.addf %257, %260 : vector<16x1xf32>
    %262 = math.rsqrt %261 : vector<16x1xf32>
    %263 = vector.broadcast %262 : vector<16x1xf32> to vector<16x32xf32>
    %264 = arith.mulf %259, %263 : vector<16x32xf32>
    %265 = vector.broadcast %244 : vector<1x32xf32> to vector<16x32xf32>
    %266 = arith.mulf %264, %265 : vector<16x32xf32>
    %267 = vector.broadcast %246 : vector<1x32xf32> to vector<16x32xf32>
    %268 = arith.addf %266, %267 : vector<16x32xf32>
    %cst_227 = arith.constant 0.000000e+00 : f32
    %269 = vector.broadcast %cst_227 : f32 to vector<16x32xf32>
    %c1_228 = arith.constant 1 : index
    %c0_229 = arith.constant 0 : index
    %c0_230 = arith.constant 0 : index
    %c0_231 = arith.constant 0 : index
    %c0_232 = arith.constant 0 : index
    %270 = vector.load %arg4[%c1_228, %c0_229, %c0_230, %c0_231, %c0_232] : memref<2x3x4x32x8xf32, #tpu.memory_space<vmem>>, vector<1x1x1x32x8xf32>
    %271 = vector.shape_cast %270 : vector<1x1x1x32x8xf32> to vector<32x8xf32>
    %cst_233 = arith.constant dense<0.000000e+00> : vector<16x8xf32>
    %272 = tpu.matmul %268, %271, %cst_233 {dimension_numbers = #tpu.dot_dimension_numbers<[1], [0], [0], [1], [0, 0, 1, 1], [], []>} : vector<16x32xf32>, vector<32x8xf32>, vector<16x8xf32> -> vector<16x8xf32>
    %c1_234 = arith.constant 1 : index
    %c0_235 = arith.constant 0 : index
    %c0_236 = arith.constant 0 : index
    %c0_237 = arith.constant 0 : index
    %c0_238 = arith.constant 0 : index
    %273 = vector.load %arg5[%c1_234, %c0_235, %c0_236, %c0_237, %c0_238] : memref<2x3x4x1x8xf32, #tpu.memory_space<vmem>>, vector<1x1x1x1x8xf32>
    %274 = vector.shape_cast %273 : vector<1x1x1x1x8xf32> to vector<1x8xf32>
    %275 = vector.broadcast %274 : vector<1x8xf32> to vector<16x8xf32>
    %276 = arith.addf %272, %275 : vector<16x8xf32>
    %c1_239 = arith.constant 1 : index
    %c1_240 = arith.constant 1 : index
    %c0_241 = arith.constant 0 : index
    %c0_242 = arith.constant 0 : index
    %c0_243 = arith.constant 0 : index
    %277 = vector.load %arg4[%c1_239, %c1_240, %c0_241, %c0_242, %c0_243] : memref<2x3x4x32x8xf32, #tpu.memory_space<vmem>>, vector<1x1x1x32x8xf32>
    %278 = vector.shape_cast %277 : vector<1x1x1x32x8xf32> to vector<32x8xf32>
    %cst_244 = arith.constant dense<0.000000e+00> : vector<16x8xf32>
    %279 = tpu.matmul %268, %278, %cst_244 {dimension_numbers = #tpu.dot_dimension_numbers<[1], [0], [0], [1], [0, 0, 1, 1], [], []>} : vector<16x32xf32>, vector<32x8xf32>, vector<16x8xf32> -> vector<16x8xf32>
    %c1_245 = arith.constant 1 : index
    %c1_246 = arith.constant 1 : index
    %c0_247 = arith.constant 0 : index
    %c0_248 = arith.constant 0 : index
    %c0_249 = arith.constant 0 : index
    %280 = vector.load %arg5[%c1_245, %c1_246, %c0_247, %c0_248, %c0_249] : memref<2x3x4x1x8xf32, #tpu.memory_space<vmem>>, vector<1x1x1x1x8xf32>
    %281 = vector.shape_cast %280 : vector<1x1x1x1x8xf32> to vector<1x8xf32>
    %282 = vector.broadcast %281 : vector<1x8xf32> to vector<16x8xf32>
    %283 = arith.addf %279, %282 : vector<16x8xf32>
    %c1_250 = arith.constant 1 : index
    %c2_251 = arith.constant 2 : index
    %c0_252 = arith.constant 0 : index
    %c0_253 = arith.constant 0 : index
    %c0_254 = arith.constant 0 : index
    %284 = vector.load %arg4[%c1_250, %c2_251, %c0_252, %c0_253, %c0_254] : memref<2x3x4x32x8xf32, #tpu.memory_space<vmem>>, vector<1x1x1x32x8xf32>
    %285 = vector.shape_cast %284 : vector<1x1x1x32x8xf32> to vector<32x8xf32>
    %cst_255 = arith.constant dense<0.000000e+00> : vector<16x8xf32>
    %286 = tpu.matmul %268, %285, %cst_255 {dimension_numbers = #tpu.dot_dimension_numbers<[1], [0], [0], [1], [0, 0, 1, 1], [], []>} : vector<16x32xf32>, vector<32x8xf32>, vector<16x8xf32> -> vector<16x8xf32>
    %c1_256 = arith.constant 1 : index
    %c2_257 = arith.constant 2 : index
    %c0_258 = arith.constant 0 : index
    %c0_259 = arith.constant 0 : index
    %c0_260 = arith.constant 0 : index
    %287 = vector.load %arg5[%c1_256, %c2_257, %c0_258, %c0_259, %c0_260] : memref<2x3x4x1x8xf32, #tpu.memory_space<vmem>>, vector<1x1x1x1x8xf32>
    %288 = vector.shape_cast %287 : vector<1x1x1x1x8xf32> to vector<1x8xf32>
    %289 = vector.broadcast %288 : vector<1x8xf32> to vector<16x8xf32>
    %290 = arith.addf %286, %289 : vector<16x8xf32>
    %cst_261 = arith.constant dense<0.000000e+00> : vector<16x16xf32>
    %291 = tpu.matmul %276, %283, %cst_261 {dimension_numbers = #tpu.dot_dimension_numbers<[1], [1], [0], [0], [0, 0, 1, 0], [], []>} : vector<16x8xf32>, vector<16x8xf32>, vector<16x16xf32> -> vector<16x16xf32>
    %cst_262 = arith.constant 0.353553385 : f32
    %292 = vector.broadcast %cst_262 : f32 to vector<16x16xf32>
    %293 = arith.mulf %291, %292 : vector<16x16xf32>
    %cst_263 = arith.constant dense<0xFF800000> : vector<16xf32>
    %294 = vector.multi_reduction <maximumf>, %293, %cst_263 [1] : vector<16x16xf32> to vector<16xf32>
    %295 = vector.shape_cast %294 : vector<16xf32> to vector<16x1xf32>
    %296 = vector.broadcast %295 : vector<16x1xf32> to vector<16x16xf32>
    %297 = arith.subf %293, %296 : vector<16x16xf32>
    %298 = math.exp %297 : vector<16x16xf32>
    %cst_264 = arith.constant dense<0.000000e+00> : vector<16xf32>
    %299 = vector.multi_reduction <add>, %298, %cst_264 [1] : vector<16x16xf32> to vector<16xf32>
    %300 = vector.shape_cast %299 : vector<16xf32> to vector<16x1xf32>
    %301 = tpu.reciprocal %300 {approx = true} : vector<16x1xf32> -> vector<16x1xf32>
    %302 = vector.broadcast %301 : vector<16x1xf32> to vector<16x16xf32>
    %303 = arith.mulf %298, %302 : vector<16x16xf32>
    %cst_265 = arith.constant dense<0.000000e+00> : vector<16x8xf32>
    %304 = tpu.matmul %303, %290, %cst_265 {dimension_numbers = #tpu.dot_dimension_numbers<[1], [0], [0], [1], [0, 0, 1, 1], [], []>} : vector<16x16xf32>, vector<16x8xf32>, vector<16x8xf32> -> vector<16x8xf32>
    %c1_266 = arith.constant 1 : index
    %c0_267 = arith.constant 0 : index
    %c0_268 = arith.constant 0 : index
    %c0_269 = arith.constant 0 : index
    %305 = vector.load %arg6[%c1_266, %c0_267, %c0_268, %c0_269] : memref<2x4x8x32xf32, #tpu.memory_space<vmem>>, vector<1x1x8x32xf32>
    %306 = vector.shape_cast %305 : vector<1x1x8x32xf32> to vector<8x32xf32>
    %cst_270 = arith.constant dense<0.000000e+00> : vector<16x32xf32>
    %307 = tpu.matmul %304, %306, %cst_270 {dimension_numbers = #tpu.dot_dimension_numbers<[1], [0], [0], [1], [0, 0, 1, 1], [], []>} : vector<16x8xf32>, vector<8x32xf32>, vector<16x32xf32> -> vector<16x32xf32>
    %308 = arith.addf %269, %307 : vector<16x32xf32>
    %c1_271 = arith.constant 1 : index
    %c0_272 = arith.constant 0 : index
    %c1_273 = arith.constant 1 : index
    %c0_274 = arith.constant 0 : index
    %c0_275 = arith.constant 0 : index
    %309 = vector.load %arg4[%c1_271, %c0_272, %c1_273, %c0_274, %c0_275] : memref<2x3x4x32x8xf32, #tpu.memory_space<vmem>>, vector<1x1x1x32x8xf32>
    %310 = vector.shape_cast %309 : vector<1x1x1x32x8xf32> to vector<32x8xf32>
    %cst_276 = arith.constant dense<0.000000e+00> : vector<16x8xf32>
    %311 = tpu.matmul %268, %310, %cst_276 {dimension_numbers = #tpu.dot_dimension_numbers<[1], [0], [0], [1], [0, 0, 1, 1], [], []>} : vector<16x32xf32>, vector<32x8xf32>, vector<16x8xf32> -> vector<16x8xf32>
    %c1_277 = arith.constant 1 : index
    %c0_278 = arith.constant 0 : index
    %c1_279 = arith.constant 1 : index
    %c0_280 = arith.constant 0 : index
    %c0_281 = arith.constant 0 : index
    %312 = vector.load %arg5[%c1_277, %c0_278, %c1_279, %c0_280, %c0_281] : memref<2x3x4x1x8xf32, #tpu.memory_space<vmem>>, vector<1x1x1x1x8xf32>
    %313 = vector.shape_cast %312 : vector<1x1x1x1x8xf32> to vector<1x8xf32>
    %314 = vector.broadcast %313 : vector<1x8xf32> to vector<16x8xf32>
    %315 = arith.addf %311, %314 : vector<16x8xf32>
    %c1_282 = arith.constant 1 : index
    %c1_283 = arith.constant 1 : index
    %c1_284 = arith.constant 1 : index
    %c0_285 = arith.constant 0 : index
    %c0_286 = arith.constant 0 : index
    %316 = vector.load %arg4[%c1_282, %c1_283, %c1_284, %c0_285, %c0_286] : memref<2x3x4x32x8xf32, #tpu.memory_space<vmem>>, vector<1x1x1x32x8xf32>
    %317 = vector.shape_cast %316 : vector<1x1x1x32x8xf32> to vector<32x8xf32>
    %cst_287 = arith.constant dense<0.000000e+00> : vector<16x8xf32>
    %318 = tpu.matmul %268, %317, %cst_287 {dimension_numbers = #tpu.dot_dimension_numbers<[1], [0], [0], [1], [0, 0, 1, 1], [], []>} : vector<16x32xf32>, vector<32x8xf32>, vector<16x8xf32> -> vector<16x8xf32>
    %c1_288 = arith.constant 1 : index
    %c1_289 = arith.constant 1 : index
    %c1_290 = arith.constant 1 : index
    %c0_291 = arith.constant 0 : index
    %c0_292 = arith.constant 0 : index
    %319 = vector.load %arg5[%c1_288, %c1_289, %c1_290, %c0_291, %c0_292] : memref<2x3x4x1x8xf32, #tpu.memory_space<vmem>>, vector<1x1x1x1x8xf32>
    %320 = vector.shape_cast %319 : vector<1x1x1x1x8xf32> to vector<1x8xf32>
    %321 = vector.broadcast %320 : vector<1x8xf32> to vector<16x8xf32>
    %322 = arith.addf %318, %321 : vector<16x8xf32>
    %c1_293 = arith.constant 1 : index
    %c2_294 = arith.constant 2 : index
    %c1_295 = arith.constant 1 : index
    %c0_296 = arith.constant 0 : index
    %c0_297 = arith.constant 0 : index
    %323 = vector.load %arg4[%c1_293, %c2_294, %c1_295, %c0_296, %c0_297] : memref<2x3x4x32x8xf32, #tpu.memory_space<vmem>>, vector<1x1x1x32x8xf32>
    %324 = vector.shape_cast %323 : vector<1x1x1x32x8xf32> to vector<32x8xf32>
    %cst_298 = arith.constant dense<0.000000e+00> : vector<16x8xf32>
    %325 = tpu.matmul %268, %324, %cst_298 {dimension_numbers = #tpu.dot_dimension_numbers<[1], [0], [0], [1], [0, 0, 1, 1], [], []>} : vector<16x32xf32>, vector<32x8xf32>, vector<16x8xf32> -> vector<16x8xf32>
    %c1_299 = arith.constant 1 : index
    %c2_300 = arith.constant 2 : index
    %c1_301 = arith.constant 1 : index
    %c0_302 = arith.constant 0 : index
    %c0_303 = arith.constant 0 : index
    %326 = vector.load %arg5[%c1_299, %c2_300, %c1_301, %c0_302, %c0_303] : memref<2x3x4x1x8xf32, #tpu.memory_space<vmem>>, vector<1x1x1x1x8xf32>
    %327 = vector.shape_cast %326 : vector<1x1x1x1x8xf32> to vector<1x8xf32>
    %328 = vector.broadcast %327 : vector<1x8xf32> to vector<16x8xf32>
    %329 = arith.addf %325, %328 : vector<16x8xf32>
    %cst_304 = arith.constant dense<0.000000e+00> : vector<16x16xf32>
    %330 = tpu.matmul %315, %322, %cst_304 {dimension_numbers = #tpu.dot_dimension_numbers<[1], [1], [0], [0], [0, 0, 1, 0], [], []>} : vector<16x8xf32>, vector<16x8xf32>, vector<16x16xf32> -> vector<16x16xf32>
    %cst_305 = arith.constant 0.353553385 : f32
    %331 = vector.broadcast %cst_305 : f32 to vector<16x16xf32>
    %332 = arith.mulf %330, %331 : vector<16x16xf32>
    %cst_306 = arith.constant dense<0xFF800000> : vector<16xf32>
    %333 = vector.multi_reduction <maximumf>, %332, %cst_306 [1] : vector<16x16xf32> to vector<16xf32>
    %334 = vector.shape_cast %333 : vector<16xf32> to vector<16x1xf32>
    %335 = vector.broadcast %334 : vector<16x1xf32> to vector<16x16xf32>
    %336 = arith.subf %332, %335 : vector<16x16xf32>
    %337 = math.exp %336 : vector<16x16xf32>
    %cst_307 = arith.constant dense<0.000000e+00> : vector<16xf32>
    %338 = vector.multi_reduction <add>, %337, %cst_307 [1] : vector<16x16xf32> to vector<16xf32>
    %339 = vector.shape_cast %338 : vector<16xf32> to vector<16x1xf32>
    %340 = tpu.reciprocal %339 {approx = true} : vector<16x1xf32> -> vector<16x1xf32>
    %341 = vector.broadcast %340 : vector<16x1xf32> to vector<16x16xf32>
    %342 = arith.mulf %337, %341 : vector<16x16xf32>
    %cst_308 = arith.constant dense<0.000000e+00> : vector<16x8xf32>
    %343 = tpu.matmul %342, %329, %cst_308 {dimension_numbers = #tpu.dot_dimension_numbers<[1], [0], [0], [1], [0, 0, 1, 1], [], []>} : vector<16x16xf32>, vector<16x8xf32>, vector<16x8xf32> -> vector<16x8xf32>
    %c1_309 = arith.constant 1 : index
    %c1_310 = arith.constant 1 : index
    %c0_311 = arith.constant 0 : index
    %c0_312 = arith.constant 0 : index
    %344 = vector.load %arg6[%c1_309, %c1_310, %c0_311, %c0_312] : memref<2x4x8x32xf32, #tpu.memory_space<vmem>>, vector<1x1x8x32xf32>
    %345 = vector.shape_cast %344 : vector<1x1x8x32xf32> to vector<8x32xf32>
    %cst_313 = arith.constant dense<0.000000e+00> : vector<16x32xf32>
    %346 = tpu.matmul %343, %345, %cst_313 {dimension_numbers = #tpu.dot_dimension_numbers<[1], [0], [0], [1], [0, 0, 1, 1], [], []>} : vector<16x8xf32>, vector<8x32xf32>, vector<16x32xf32> -> vector<16x32xf32>
    %347 = arith.addf %308, %346 : vector<16x32xf32>
    %c1_314 = arith.constant 1 : index
    %c0_315 = arith.constant 0 : index
    %c2_316 = arith.constant 2 : index
    %c0_317 = arith.constant 0 : index
    %c0_318 = arith.constant 0 : index
    %348 = vector.load %arg4[%c1_314, %c0_315, %c2_316, %c0_317, %c0_318] : memref<2x3x4x32x8xf32, #tpu.memory_space<vmem>>, vector<1x1x1x32x8xf32>
    %349 = vector.shape_cast %348 : vector<1x1x1x32x8xf32> to vector<32x8xf32>
    %cst_319 = arith.constant dense<0.000000e+00> : vector<16x8xf32>
    %350 = tpu.matmul %268, %349, %cst_319 {dimension_numbers = #tpu.dot_dimension_numbers<[1], [0], [0], [1], [0, 0, 1, 1], [], []>} : vector<16x32xf32>, vector<32x8xf32>, vector<16x8xf32> -> vector<16x8xf32>
    %c1_320 = arith.constant 1 : index
    %c0_321 = arith.constant 0 : index
    %c2_322 = arith.constant 2 : index
    %c0_323 = arith.constant 0 : index
    %c0_324 = arith.constant 0 : index
    %351 = vector.load %arg5[%c1_320, %c0_321, %c2_322, %c0_323, %c0_324] : memref<2x3x4x1x8xf32, #tpu.memory_space<vmem>>, vector<1x1x1x1x8xf32>
    %352 = vector.shape_cast %351 : vector<1x1x1x1x8xf32> to vector<1x8xf32>
    %353 = vector.broadcast %352 : vector<1x8xf32> to vector<16x8xf32>
    %354 = arith.addf %350, %353 : vector<16x8xf32>
    %c1_325 = arith.constant 1 : index
    %c1_326 = arith.constant 1 : index
    %c2_327 = arith.constant 2 : index
    %c0_328 = arith.constant 0 : index
    %c0_329 = arith.constant 0 : index
    %355 = vector.load %arg4[%c1_325, %c1_326, %c2_327, %c0_328, %c0_329] : memref<2x3x4x32x8xf32, #tpu.memory_space<vmem>>, vector<1x1x1x32x8xf32>
    %356 = vector.shape_cast %355 : vector<1x1x1x32x8xf32> to vector<32x8xf32>
    %cst_330 = arith.constant dense<0.000000e+00> : vector<16x8xf32>
    %357 = tpu.matmul %268, %356, %cst_330 {dimension_numbers = #tpu.dot_dimension_numbers<[1], [0], [0], [1], [0, 0, 1, 1], [], []>} : vector<16x32xf32>, vector<32x8xf32>, vector<16x8xf32> -> vector<16x8xf32>
    %c1_331 = arith.constant 1 : index
    %c1_332 = arith.constant 1 : index
    %c2_333 = arith.constant 2 : index
    %c0_334 = arith.constant 0 : index
    %c0_335 = arith.constant 0 : index
    %358 = vector.load %arg5[%c1_331, %c1_332, %c2_333, %c0_334, %c0_335] : memref<2x3x4x1x8xf32, #tpu.memory_space<vmem>>, vector<1x1x1x1x8xf32>
    %359 = vector.shape_cast %358 : vector<1x1x1x1x8xf32> to vector<1x8xf32>
    %360 = vector.broadcast %359 : vector<1x8xf32> to vector<16x8xf32>
    %361 = arith.addf %357, %360 : vector<16x8xf32>
    %c1_336 = arith.constant 1 : index
    %c2_337 = arith.constant 2 : index
    %c2_338 = arith.constant 2 : index
    %c0_339 = arith.constant 0 : index
    %c0_340 = arith.constant 0 : index
    %362 = vector.load %arg4[%c1_336, %c2_337, %c2_338, %c0_339, %c0_340] : memref<2x3x4x32x8xf32, #tpu.memory_space<vmem>>, vector<1x1x1x32x8xf32>
    %363 = vector.shape_cast %362 : vector<1x1x1x32x8xf32> to vector<32x8xf32>
    %cst_341 = arith.constant dense<0.000000e+00> : vector<16x8xf32>
    %364 = tpu.matmul %268, %363, %cst_341 {dimension_numbers = #tpu.dot_dimension_numbers<[1], [0], [0], [1], [0, 0, 1, 1], [], []>} : vector<16x32xf32>, vector<32x8xf32>, vector<16x8xf32> -> vector<16x8xf32>
    %c1_342 = arith.constant 1 : index
    %c2_343 = arith.constant 2 : index
    %c2_344 = arith.constant 2 : index
    %c0_345 = arith.constant 0 : index
    %c0_346 = arith.constant 0 : index
    %365 = vector.load %arg5[%c1_342, %c2_343, %c2_344, %c0_345, %c0_346] : memref<2x3x4x1x8xf32, #tpu.memory_space<vmem>>, vector<1x1x1x1x8xf32>
    %366 = vector.shape_cast %365 : vector<1x1x1x1x8xf32> to vector<1x8xf32>
    %367 = vector.broadcast %366 : vector<1x8xf32> to vector<16x8xf32>
    %368 = arith.addf %364, %367 : vector<16x8xf32>
    %cst_347 = arith.constant dense<0.000000e+00> : vector<16x16xf32>
    %369 = tpu.matmul %354, %361, %cst_347 {dimension_numbers = #tpu.dot_dimension_numbers<[1], [1], [0], [0], [0, 0, 1, 0], [], []>} : vector<16x8xf32>, vector<16x8xf32>, vector<16x16xf32> -> vector<16x16xf32>
    %cst_348 = arith.constant 0.353553385 : f32
    %370 = vector.broadcast %cst_348 : f32 to vector<16x16xf32>
    %371 = arith.mulf %369, %370 : vector<16x16xf32>
    %cst_349 = arith.constant dense<0xFF800000> : vector<16xf32>
    %372 = vector.multi_reduction <maximumf>, %371, %cst_349 [1] : vector<16x16xf32> to vector<16xf32>
    %373 = vector.shape_cast %372 : vector<16xf32> to vector<16x1xf32>
    %374 = vector.broadcast %373 : vector<16x1xf32> to vector<16x16xf32>
    %375 = arith.subf %371, %374 : vector<16x16xf32>
    %376 = math.exp %375 : vector<16x16xf32>
    %cst_350 = arith.constant dense<0.000000e+00> : vector<16xf32>
    %377 = vector.multi_reduction <add>, %376, %cst_350 [1] : vector<16x16xf32> to vector<16xf32>
    %378 = vector.shape_cast %377 : vector<16xf32> to vector<16x1xf32>
    %379 = tpu.reciprocal %378 {approx = true} : vector<16x1xf32> -> vector<16x1xf32>
    %380 = vector.broadcast %379 : vector<16x1xf32> to vector<16x16xf32>
    %381 = arith.mulf %376, %380 : vector<16x16xf32>
    %cst_351 = arith.constant dense<0.000000e+00> : vector<16x8xf32>
    %382 = tpu.matmul %381, %368, %cst_351 {dimension_numbers = #tpu.dot_dimension_numbers<[1], [0], [0], [1], [0, 0, 1, 1], [], []>} : vector<16x16xf32>, vector<16x8xf32>, vector<16x8xf32> -> vector<16x8xf32>
    %c1_352 = arith.constant 1 : index
    %c2_353 = arith.constant 2 : index
    %c0_354 = arith.constant 0 : index
    %c0_355 = arith.constant 0 : index
    %383 = vector.load %arg6[%c1_352, %c2_353, %c0_354, %c0_355] : memref<2x4x8x32xf32, #tpu.memory_space<vmem>>, vector<1x1x8x32xf32>
    %384 = vector.shape_cast %383 : vector<1x1x8x32xf32> to vector<8x32xf32>
    %cst_356 = arith.constant dense<0.000000e+00> : vector<16x32xf32>
    %385 = tpu.matmul %382, %384, %cst_356 {dimension_numbers = #tpu.dot_dimension_numbers<[1], [0], [0], [1], [0, 0, 1, 1], [], []>} : vector<16x8xf32>, vector<8x32xf32>, vector<16x32xf32> -> vector<16x32xf32>
    %386 = arith.addf %347, %385 : vector<16x32xf32>
    %c1_357 = arith.constant 1 : index
    %c0_358 = arith.constant 0 : index
    %c3_359 = arith.constant 3 : index
    %c0_360 = arith.constant 0 : index
    %c0_361 = arith.constant 0 : index
    %387 = vector.load %arg4[%c1_357, %c0_358, %c3_359, %c0_360, %c0_361] : memref<2x3x4x32x8xf32, #tpu.memory_space<vmem>>, vector<1x1x1x32x8xf32>
    %388 = vector.shape_cast %387 : vector<1x1x1x32x8xf32> to vector<32x8xf32>
    %cst_362 = arith.constant dense<0.000000e+00> : vector<16x8xf32>
    %389 = tpu.matmul %268, %388, %cst_362 {dimension_numbers = #tpu.dot_dimension_numbers<[1], [0], [0], [1], [0, 0, 1, 1], [], []>} : vector<16x32xf32>, vector<32x8xf32>, vector<16x8xf32> -> vector<16x8xf32>
    %c1_363 = arith.constant 1 : index
    %c0_364 = arith.constant 0 : index
    %c3_365 = arith.constant 3 : index
    %c0_366 = arith.constant 0 : index
    %c0_367 = arith.constant 0 : index
    %390 = vector.load %arg5[%c1_363, %c0_364, %c3_365, %c0_366, %c0_367] : memref<2x3x4x1x8xf32, #tpu.memory_space<vmem>>, vector<1x1x1x1x8xf32>
    %391 = vector.shape_cast %390 : vector<1x1x1x1x8xf32> to vector<1x8xf32>
    %392 = vector.broadcast %391 : vector<1x8xf32> to vector<16x8xf32>
    %393 = arith.addf %389, %392 : vector<16x8xf32>
    %c1_368 = arith.constant 1 : index
    %c1_369 = arith.constant 1 : index
    %c3_370 = arith.constant 3 : index
    %c0_371 = arith.constant 0 : index
    %c0_372 = arith.constant 0 : index
    %394 = vector.load %arg4[%c1_368, %c1_369, %c3_370, %c0_371, %c0_372] : memref<2x3x4x32x8xf32, #tpu.memory_space<vmem>>, vector<1x1x1x32x8xf32>
    %395 = vector.shape_cast %394 : vector<1x1x1x32x8xf32> to vector<32x8xf32>
    %cst_373 = arith.constant dense<0.000000e+00> : vector<16x8xf32>
    %396 = tpu.matmul %268, %395, %cst_373 {dimension_numbers = #tpu.dot_dimension_numbers<[1], [0], [0], [1], [0, 0, 1, 1], [], []>} : vector<16x32xf32>, vector<32x8xf32>, vector<16x8xf32> -> vector<16x8xf32>
    %c1_374 = arith.constant 1 : index
    %c1_375 = arith.constant 1 : index
    %c3_376 = arith.constant 3 : index
    %c0_377 = arith.constant 0 : index
    %c0_378 = arith.constant 0 : index
    %397 = vector.load %arg5[%c1_374, %c1_375, %c3_376, %c0_377, %c0_378] : memref<2x3x4x1x8xf32, #tpu.memory_space<vmem>>, vector<1x1x1x1x8xf32>
    %398 = vector.shape_cast %397 : vector<1x1x1x1x8xf32> to vector<1x8xf32>
    %399 = vector.broadcast %398 : vector<1x8xf32> to vector<16x8xf32>
    %400 = arith.addf %396, %399 : vector<16x8xf32>
    %c1_379 = arith.constant 1 : index
    %c2_380 = arith.constant 2 : index
    %c3_381 = arith.constant 3 : index
    %c0_382 = arith.constant 0 : index
    %c0_383 = arith.constant 0 : index
    %401 = vector.load %arg4[%c1_379, %c2_380, %c3_381, %c0_382, %c0_383] : memref<2x3x4x32x8xf32, #tpu.memory_space<vmem>>, vector<1x1x1x32x8xf32>
    %402 = vector.shape_cast %401 : vector<1x1x1x32x8xf32> to vector<32x8xf32>
    %cst_384 = arith.constant dense<0.000000e+00> : vector<16x8xf32>
    %403 = tpu.matmul %268, %402, %cst_384 {dimension_numbers = #tpu.dot_dimension_numbers<[1], [0], [0], [1], [0, 0, 1, 1], [], []>} : vector<16x32xf32>, vector<32x8xf32>, vector<16x8xf32> -> vector<16x8xf32>
    %c1_385 = arith.constant 1 : index
    %c2_386 = arith.constant 2 : index
    %c3_387 = arith.constant 3 : index
    %c0_388 = arith.constant 0 : index
    %c0_389 = arith.constant 0 : index
    %404 = vector.load %arg5[%c1_385, %c2_386, %c3_387, %c0_388, %c0_389] : memref<2x3x4x1x8xf32, #tpu.memory_space<vmem>>, vector<1x1x1x1x8xf32>
    %405 = vector.shape_cast %404 : vector<1x1x1x1x8xf32> to vector<1x8xf32>
    %406 = vector.broadcast %405 : vector<1x8xf32> to vector<16x8xf32>
    %407 = arith.addf %403, %406 : vector<16x8xf32>
    %cst_390 = arith.constant dense<0.000000e+00> : vector<16x16xf32>
    %408 = tpu.matmul %393, %400, %cst_390 {dimension_numbers = #tpu.dot_dimension_numbers<[1], [1], [0], [0], [0, 0, 1, 0], [], []>} : vector<16x8xf32>, vector<16x8xf32>, vector<16x16xf32> -> vector<16x16xf32>
    %cst_391 = arith.constant 0.353553385 : f32
    %409 = vector.broadcast %cst_391 : f32 to vector<16x16xf32>
    %410 = arith.mulf %408, %409 : vector<16x16xf32>
    %cst_392 = arith.constant dense<0xFF800000> : vector<16xf32>
    %411 = vector.multi_reduction <maximumf>, %410, %cst_392 [1] : vector<16x16xf32> to vector<16xf32>
    %412 = vector.shape_cast %411 : vector<16xf32> to vector<16x1xf32>
    %413 = vector.broadcast %412 : vector<16x1xf32> to vector<16x16xf32>
    %414 = arith.subf %410, %413 : vector<16x16xf32>
    %415 = math.exp %414 : vector<16x16xf32>
    %cst_393 = arith.constant dense<0.000000e+00> : vector<16xf32>
    %416 = vector.multi_reduction <add>, %415, %cst_393 [1] : vector<16x16xf32> to vector<16xf32>
    %417 = vector.shape_cast %416 : vector<16xf32> to vector<16x1xf32>
    %418 = tpu.reciprocal %417 {approx = true} : vector<16x1xf32> -> vector<16x1xf32>
    %419 = vector.broadcast %418 : vector<16x1xf32> to vector<16x16xf32>
    %420 = arith.mulf %415, %419 : vector<16x16xf32>
    %cst_394 = arith.constant dense<0.000000e+00> : vector<16x8xf32>
    %421 = tpu.matmul %420, %407, %cst_394 {dimension_numbers = #tpu.dot_dimension_numbers<[1], [0], [0], [1], [0, 0, 1, 1], [], []>} : vector<16x16xf32>, vector<16x8xf32>, vector<16x8xf32> -> vector<16x8xf32>
    %c1_395 = arith.constant 1 : index
    %c3_396 = arith.constant 3 : index
    %c0_397 = arith.constant 0 : index
    %c0_398 = arith.constant 0 : index
    %422 = vector.load %arg6[%c1_395, %c3_396, %c0_397, %c0_398] : memref<2x4x8x32xf32, #tpu.memory_space<vmem>>, vector<1x1x8x32xf32>
    %423 = vector.shape_cast %422 : vector<1x1x8x32xf32> to vector<8x32xf32>
    %cst_399 = arith.constant dense<0.000000e+00> : vector<16x32xf32>
    %424 = tpu.matmul %421, %423, %cst_399 {dimension_numbers = #tpu.dot_dimension_numbers<[1], [0], [0], [1], [0, 0, 1, 1], [], []>} : vector<16x8xf32>, vector<8x32xf32>, vector<16x32xf32> -> vector<16x32xf32>
    %425 = arith.addf %386, %424 : vector<16x32xf32>
    %c1_400 = arith.constant 1 : index
    %c4_401 = arith.constant 4 : index
    %c0_402 = arith.constant 0 : index
    %426 = vector.load %arg7[%c1_400, %c4_401, %c0_402] : memref<2x6x32xf32, #tpu.memory_space<vmem>>, vector<1x1x32xf32>
    %427 = vector.shape_cast %426 : vector<1x1x32xf32> to vector<1x32xf32>
    %428 = vector.broadcast %427 : vector<1x32xf32> to vector<16x32xf32>
    %429 = arith.addf %425, %428 : vector<16x32xf32>
    %430 = arith.addf %429, %242 : vector<16x32xf32>
    %c1_403 = arith.constant 1 : index
    %c2_404 = arith.constant 2 : index
    %c0_405 = arith.constant 0 : index
    %431 = vector.load %arg7[%c1_403, %c2_404, %c0_405] : memref<2x6x32xf32, #tpu.memory_space<vmem>>, vector<1x1x32xf32>
    %432 = vector.shape_cast %431 : vector<1x1x32xf32> to vector<1x32xf32>
    %c1_406 = arith.constant 1 : index
    %c3_407 = arith.constant 3 : index
    %c0_408 = arith.constant 0 : index
    %433 = vector.load %arg7[%c1_406, %c3_407, %c0_408] : memref<2x6x32xf32, #tpu.memory_space<vmem>>, vector<1x1x32xf32>
    %434 = vector.shape_cast %433 : vector<1x1x32xf32> to vector<1x32xf32>
    %cst_409 = arith.constant dense<0.000000e+00> : vector<16xf32>
    %435 = vector.multi_reduction <add>, %430, %cst_409 [1] : vector<16x32xf32> to vector<16xf32>
    %436 = vector.shape_cast %435 : vector<16xf32> to vector<16x1xf32>
    %cst_410 = arith.constant 3.200000e+01 : f32
    %437 = vector.broadcast %cst_410 : f32 to vector<16x1xf32>
    %438 = arith.divf %436, %437 : vector<16x1xf32>
    %439 = vector.broadcast %438 : vector<16x1xf32> to vector<16x32xf32>
    %440 = arith.subf %430, %439 : vector<16x32xf32>
    %441 = arith.mulf %440, %440 : vector<16x32xf32>
    %cst_411 = arith.constant dense<0.000000e+00> : vector<16xf32>
    %442 = vector.multi_reduction <add>, %441, %cst_411 [1] : vector<16x32xf32> to vector<16xf32>
    %443 = vector.shape_cast %442 : vector<16xf32> to vector<16x1xf32>
    %cst_412 = arith.constant 3.200000e+01 : f32
    %444 = vector.broadcast %cst_412 : f32 to vector<16x1xf32>
    %445 = arith.divf %443, %444 : vector<16x1xf32>
    %446 = vector.broadcast %438 : vector<16x1xf32> to vector<16x32xf32>
    %447 = arith.subf %430, %446 : vector<16x32xf32>
    %cst_413 = arith.constant 9.99999997E-7 : f32
    %448 = vector.broadcast %cst_413 : f32 to vector<16x1xf32>
    %449 = arith.addf %445, %448 : vector<16x1xf32>
    %450 = math.rsqrt %449 : vector<16x1xf32>
    %451 = vector.broadcast %450 : vector<16x1xf32> to vector<16x32xf32>
    %452 = arith.mulf %447, %451 : vector<16x32xf32>
    %453 = vector.broadcast %432 : vector<1x32xf32> to vector<16x32xf32>
    %454 = arith.mulf %452, %453 : vector<16x32xf32>
    %455 = vector.broadcast %434 : vector<1x32xf32> to vector<16x32xf32>
    %456 = arith.addf %454, %455 : vector<16x32xf32>
    %c1_414 = arith.constant 1 : index
    %c0_415 = arith.constant 0 : index
    %c0_416 = arith.constant 0 : index
    %457 = vector.load %arg8[%c1_414, %c0_415, %c0_416] : memref<2x32x64xf32, #tpu.memory_space<vmem>>, vector<1x32x64xf32>
    %458 = vector.shape_cast %457 : vector<1x32x64xf32> to vector<32x64xf32>
    %cst_417 = arith.constant dense<0.000000e+00> : vector<16x64xf32>
    %459 = tpu.matmul %456, %458, %cst_417 {dimension_numbers = #tpu.dot_dimension_numbers<[1], [0], [0], [1], [0, 0, 1, 1], [], []>} : vector<16x32xf32>, vector<32x64xf32>, vector<16x64xf32> -> vector<16x64xf32>
    %c1_418 = arith.constant 1 : index
    %c0_419 = arith.constant 0 : index
    %c0_420 = arith.constant 0 : index
    %460 = vector.load %arg9[%c1_418, %c0_419, %c0_420] : memref<2x1x64xf32, #tpu.memory_space<vmem>>, vector<1x1x64xf32>
    %461 = vector.shape_cast %460 : vector<1x1x64xf32> to vector<1x64xf32>
    %462 = vector.broadcast %461 : vector<1x64xf32> to vector<16x64xf32>
    %463 = arith.addf %459, %462 : vector<16x64xf32>
    %cst_421 = arith.constant 5.000000e-01 : f32
    %464 = vector.broadcast %cst_421 : f32 to vector<16x64xf32>
    %465 = arith.mulf %464, %463 : vector<16x64xf32>
    %cst_422 = arith.constant 0.707106769 : f32
    %466 = vector.broadcast %cst_422 : f32 to vector<16x64xf32>
    %467 = arith.mulf %463, %466 : vector<16x64xf32>
    %468 = math.erf %467 : vector<16x64xf32>
    %cst_423 = arith.constant 1.000000e+00 : f32
    %469 = vector.broadcast %cst_423 : f32 to vector<16x64xf32>
    %470 = arith.addf %469, %468 : vector<16x64xf32>
    %471 = arith.mulf %465, %470 : vector<16x64xf32>
    %c1_424 = arith.constant 1 : index
    %c0_425 = arith.constant 0 : index
    %c0_426 = arith.constant 0 : index
    %472 = vector.load %arg10[%c1_424, %c0_425, %c0_426] : memref<2x64x32xf32, #tpu.memory_space<vmem>>, vector<1x64x32xf32>
    %473 = vector.shape_cast %472 : vector<1x64x32xf32> to vector<64x32xf32>
    %cst_427 = arith.constant dense<0.000000e+00> : vector<16x32xf32>
    %474 = tpu.matmul %471, %473, %cst_427 {dimension_numbers = #tpu.dot_dimension_numbers<[1], [0], [0], [1], [0, 0, 1, 1], [], []>} : vector<16x64xf32>, vector<64x32xf32>, vector<16x32xf32> -> vector<16x32xf32>
    %c1_428 = arith.constant 1 : index
    %c5_429 = arith.constant 5 : index
    %c0_430 = arith.constant 0 : index
    %475 = vector.load %arg7[%c1_428, %c5_429, %c0_430] : memref<2x6x32xf32, #tpu.memory_space<vmem>>, vector<1x1x32xf32>
    %476 = vector.shape_cast %475 : vector<1x1x32xf32> to vector<1x32xf32>
    %477 = vector.broadcast %476 : vector<1x32xf32> to vector<16x32xf32>
    %478 = arith.addf %474, %477 : vector<16x32xf32>
    %479 = arith.addf %478, %430 : vector<16x32xf32>
    %c0_431 = arith.constant 0 : index
    %c0_432 = arith.constant 0 : index
    %480 = vector.load %arg11[%c0_431, %c0_432] : memref<2x32xf32, #tpu.memory_space<vmem>>, vector<1x32xf32>
    %c1_433 = arith.constant 1 : index
    %c0_434 = arith.constant 0 : index
    %481 = vector.load %arg11[%c1_433, %c0_434] : memref<2x32xf32, #tpu.memory_space<vmem>>, vector<1x32xf32>
    %cst_435 = arith.constant dense<0.000000e+00> : vector<16xf32>
    %482 = vector.multi_reduction <add>, %479, %cst_435 [1] : vector<16x32xf32> to vector<16xf32>
    %483 = vector.shape_cast %482 : vector<16xf32> to vector<16x1xf32>
    %cst_436 = arith.constant 3.200000e+01 : f32
    %484 = vector.broadcast %cst_436 : f32 to vector<16x1xf32>
    %485 = arith.divf %483, %484 : vector<16x1xf32>
    %486 = vector.broadcast %485 : vector<16x1xf32> to vector<16x32xf32>
    %487 = arith.subf %479, %486 : vector<16x32xf32>
    %488 = arith.mulf %487, %487 : vector<16x32xf32>
    %cst_437 = arith.constant dense<0.000000e+00> : vector<16xf32>
    %489 = vector.multi_reduction <add>, %488, %cst_437 [1] : vector<16x32xf32> to vector<16xf32>
    %490 = vector.shape_cast %489 : vector<16xf32> to vector<16x1xf32>
    %cst_438 = arith.constant 3.200000e+01 : f32
    %491 = vector.broadcast %cst_438 : f32 to vector<16x1xf32>
    %492 = arith.divf %490, %491 : vector<16x1xf32>
    %493 = vector.broadcast %485 : vector<16x1xf32> to vector<16x32xf32>
    %494 = arith.subf %479, %493 : vector<16x32xf32>
    %cst_439 = arith.constant 9.99999997E-7 : f32
    %495 = vector.broadcast %cst_439 : f32 to vector<16x1xf32>
    %496 = arith.addf %492, %495 : vector<16x1xf32>
    %497 = math.rsqrt %496 : vector<16x1xf32>
    %498 = vector.broadcast %497 : vector<16x1xf32> to vector<16x32xf32>
    %499 = arith.mulf %494, %498 : vector<16x32xf32>
    %500 = vector.broadcast %480 : vector<1x32xf32> to vector<16x32xf32>
    %501 = arith.mulf %499, %500 : vector<16x32xf32>
    %502 = vector.broadcast %481 : vector<1x32xf32> to vector<16x32xf32>
    %503 = arith.addf %501, %502 : vector<16x32xf32>
    %c0_440 = arith.constant 0 : index
    %c0_441 = arith.constant 0 : index
    %c0_442 = arith.constant 0 : index
    %504 = vector.load %arg12[%c0_440, %c0_441, %c0_442] : memref<1x16x32xf32, #tpu.memory_space<vmem>>, vector<1x16x32xf32>
    %505 = vector.shape_cast %504 : vector<1x16x32xf32> to vector<16x32xf32>
    %506 = vector.shape_cast %503 : vector<16x32xf32> to vector<1x16x32xf32>
    tpu.vector_store %arg12[%c0_440, %c0_441, %c0_442], %506 {strides = array<i32>} : memref<1x16x32xf32, #tpu.memory_space<vmem>>, vector<1x16x32xf32>,
    return
  }
  func.func @transform_0(%arg0: i32) -> (i32, i32, i32) {
    %c0_i32 = arith.constant 0 : i32
    %c0_i32_0 = arith.constant 0 : i32
    %c0_i32_1 = arith.constant 0 : i32
    return %arg0, %c0_i32, %c0_i32_0 : i32, i32, i32
  }
  func.func @transform_1(%arg0: i32) -> (i32, i32) {
    %c0_i32 = arith.constant 0 : i32
    %c0_i32_0 = arith.constant 0 : i32
    %c0_i32_1 = arith.constant 0 : i32
    return %c0_i32, %c0_i32_0 : i32, i32
  }
  func.func @transform_2(%arg0: i32) -> (i32, i32) {
    %c0_i32 = arith.constant 0 : i32
    %c0_i32_0 = arith.constant 0 : i32
    %c0_i32_1 = arith.constant 0 : i32
    return %c0_i32, %c0_i32_0 : i32, i32
  }
  func.func @transform_3(%arg0: i32) -> (i32, i32, i32, i32, i32) {
    %c0_i32 = arith.constant 0 : i32
    %c0_i32_0 = arith.constant 0 : i32
    %c0_i32_1 = arith.constant 0 : i32
    %c0_i32_2 = arith.constant 0 : i32
    %c0_i32_3 = arith.constant 0 : i32
    %c0_i32_4 = arith.constant 0 : i32
    return %c0_i32, %c0_i32_0, %c0_i32_1, %c0_i32_2, %c0_i32_3 : i32, i32, i32, i32, i32
  }
  func.func @transform_4(%arg0: i32) -> (i32, i32, i32, i32, i32) {
    %c0_i32 = arith.constant 0 : i32
    %c0_i32_0 = arith.constant 0 : i32
    %c0_i32_1 = arith.constant 0 : i32
    %c0_i32_2 = arith.constant 0 : i32
    %c0_i32_3 = arith.constant 0 : i32
    %c0_i32_4 = arith.constant 0 : i32
    return %c0_i32, %c0_i32_0, %c0_i32_1, %c0_i32_2, %c0_i32_3 : i32, i32, i32, i32, i32
  }
  func.func @transform_5(%arg0: i32) -> (i32, i32, i32, i32) {
    %c0_i32 = arith.constant 0 : i32
    %c0_i32_0 = arith.constant 0 : i32
    %c0_i32_1 = arith.constant 0 : i32
    %c0_i32_2 = arith.constant 0 : i32
    %c0_i32_3 = arith.constant 0 : i32
    return %c0_i32, %c0_i32_0, %c0_i32_1, %c0_i32_2 : i32, i32, i32, i32
  }
  func.func @transform_6(%arg0: i32) -> (i32, i32, i32) {
    %c0_i32 = arith.constant 0 : i32
    %c0_i32_0 = arith.constant 0 : i32
    %c0_i32_1 = arith.constant 0 : i32
    %c0_i32_2 = arith.constant 0 : i32
    return %c0_i32, %c0_i32_0, %c0_i32_1 : i32, i32, i32
  }
  func.func @transform_7(%arg0: i32) -> (i32, i32, i32) {
    %c0_i32 = arith.constant 0 : i32
    %c0_i32_0 = arith.constant 0 : i32
    %c0_i32_1 = arith.constant 0 : i32
    %c0_i32_2 = arith.constant 0 : i32
    return %c0_i32, %c0_i32_0, %c0_i32_1 : i32, i32, i32
  }
  func.func @transform_8(%arg0: i32) -> (i32, i32, i32) {
    %c0_i32 = arith.constant 0 : i32
    %c0_i32_0 = arith.constant 0 : i32
    %c0_i32_1 = arith.constant 0 : i32
    %c0_i32_2 = arith.constant 0 : i32
    return %c0_i32, %c0_i32_0, %c0_i32_1 : i32, i32, i32
  }
  func.func @transform_9(%arg0: i32) -> (i32, i32, i32) {
    %c0_i32 = arith.constant 0 : i32
    %c0_i32_0 = arith.constant 0 : i32
    %c0_i32_1 = arith.constant 0 : i32
    %c0_i32_2 = arith.constant 0 : i32
    return %c0_i32, %c0_i32_0, %c0_i32_1 : i32, i32, i32
  }
  func.func @transform_10(%arg0: i32) -> (i32, i32) {
    %c0_i32 = arith.constant 0 : i32
    %c0_i32_0 = arith.constant 0 : i32
    %c0_i32_1 = arith.constant 0 : i32
    return %c0_i32, %c0_i32_0 : i32, i32
  }
  func.func @transform_11(%arg0: i32) -> (i32, i32, i32) {
    %c0_i32 = arith.constant 0 : i32
    %c0_i32_0 = arith.constant 0 : i32
    %c0_i32_1 = arith.constant 0 : i32
    return %arg0, %c0_i32, %c0_i32_0 : i32, i32, i32
  }
}

</mosaic_0001>

<llo_original>
// kernel: transformer_forward.1
$region0: #{transformer_forward.1}
  #allocation0 [shape = 'u32[]', space=smem, size = 0x4, offset = 0x4, fixed_abs, tag = 'smem constant byte address 0x4 - core index']
  #allocation1 [shape = 'u32[144,128]{1,0:T(1,128)}', space=vmem, size = 0x12000, scoped, tag = 'internal scratch']
  %s0 = inlined_call_operand.vmem [shape: f32[2,16,48], index: 0, kind: input, shape index: {}]
  %s1 = inlined_call_operand.vmem [shape: f32[48,32], index: 1, kind: input, shape index: {}]
  %s2 = inlined_call_operand.vmem [shape: f32[16,32], index: 2, kind: input, shape index: {}]
  %s3 = inlined_call_operand.vmem [shape: f32[2,3,4,32,8], index: 3, kind: input, shape index: {}]
  %s4 = inlined_call_operand.vmem [shape: f32[2,3,4,1,8], index: 4, kind: input, shape index: {}]
  %s5 = inlined_call_operand.vmem [shape: f32[2,4,8,32], index: 5, kind: input, shape index: {}]
  %s6 = inlined_call_operand.vmem [shape: f32[2,6,32], index: 6, kind: input, shape index: {}]
  %s7 = inlined_call_operand.vmem [shape: f32[2,32,64], index: 7, kind: input, shape index: {}]
  %s8 = inlined_call_operand.vmem [shape: f32[2,1,64], index: 8, kind: input, shape index: {}]
  %s9 = inlined_call_operand.vmem [shape: f32[2,64,32], index: 9, kind: input, shape index: {}]
  %s10 = inlined_call_operand.vmem [shape: f32[2,32], index: 10, kind: input, shape index: {}]
  %s11 = inlined_call_operand.hbm [shape: f32[2,16,32], index: 11, kind: output, shape index: {}]
  %s12 = sld [smem:[#allocation0]]
  $region77: #{transformer_forward.1} parent=0
    _
  %s14 = ssub.s32 1, %s12
  %s15 = scalar_select 0, %s14, %s12
  $region1: #{transformer_forward.1} parent=0
    #allocation2 [shape = 'u8[16384]{0}', space=vmem, size = 0x4000, scoped, tag = 'output window, operand 0']
    #allocation3 [shape = 's32[2]{0}', space=sflag, size = 0x8, scoped, tag = 'scoped memory for transformer_forward.1']
    %16 = vsyncpa [#allocation3], 0
    %s17 = scalar_lea.sflag [#allocation3], 1
    %18 = vsyncpa %s17, 0
    loop: start=0, step=1, limit=4
    $region2: #{transformer_forward.1} parent=1 // loop_pre_header
      _
    $region3: #{transformer_forward.1} parent=1 // loop_header
      %s20 = sphi 0, %s24
      %p21 = scmp.ge.s32.totalorder %s20, 4
      %s30 = sphi 0, %s32
      %s33 = sphi 0, %s30
      %s34 = sphi 0, %s33
      %s50 = sphi 0, %s34
      %s54 = sphi 0, %s54
      %s56 = sphi 0, %s54
      %s57 = sphi 0, %s56
      %s71 = sphi 0, %s57
      %s75 = sphi 0, %s75
      %s77 = sphi 0, %s75
      %s78 = sphi 0, %s77
      %s92 = sphi 0, %s78
      %s96 = sphi 0, %s96
      %s98 = sphi 0, %s96
      %s99 = sphi 0, %s98
      %s113 = sphi 0, %s99
      %s117 = sphi 0, %s117
      %s119 = sphi 0, %s117
      %s120 = sphi 0, %s119
      %s134 = sphi 0, %s120
      %s138 = sphi 0, %s138
      %s140 = sphi 0, %s138
      %s141 = sphi 0, %s140
      %s155 = sphi 0, %s141
      %s159 = sphi 0, %s159
      %s161 = sphi 0, %s159
      %s162 = sphi 0, %s161
      %s176 = sphi 0, %s162
      %s180 = sphi 0, %s180
      %s182 = sphi 0, %s180
      %s183 = sphi 0, %s182
      %s197 = sphi 0, %s183
      %s201 = sphi 0, %s201
      %s203 = sphi 0, %s201
      %s204 = sphi 0, %s203
      %s218 = sphi 0, %s204
      %s222 = sphi 0, %s222
      %s224 = sphi 0, %s222
      %s225 = sphi 0, %s224
      %s239 = sphi 0, %s225
      %s243 = sphi 0, %s243
      %s245 = sphi 0, %s243
      %s246 = sphi 0, %s245
      %s260 = sphi 0, %s246
      %s266 = sphi 0, %s268
      %s269 = sphi 0, %s266
      %s270 = sphi 0, %s269
      %s286 = sphi 0, %s270
    $region4: #{transformer_forward.1} parent=1 // loop_header_branch
      %23 = sbr.rel (%p21) target = $region8
    $region5: #{transformer_forward.1} parent=1 // loop_body
      %s25 = ssub.s32 %s20, 1
      %s26 = ssub.s32 %s20, 2
      %s27 = sadd.s32 %s20, 1
      %s28 = ssub.s32 %s20, %s27
      %p29 = scmp.eq.s32.totalorder %s28, 0
      %s31 = sadd.s32 %s30, 1
      %s32 = scalar_select %p29, %s30, %s31
      %p35 = pneg %p29
      %p36 = scmp.eq.s32.totalorder %s20, 1
      %p37 = por %p35, %p36
      %p38 = scmp.ne.s32.totalorder %s30, %s33
      %p39 = scmp.eq.s32.totalorder %s20, 0
      %p40 = por %p38, %p39
      %p41 = scmp.ne.s32.totalorder %s30, %s33
      %p42 = scmp.eq.s32.totalorder %s25, 1
      %p43 = por %p41, %p42
      %p44 = scmp.ne.s32.totalorder %s33, %s34
      %p45 = scmp.eq.s32.totalorder %s25, 0
      %p46 = por %p44, %p45
      %p47 = scmp.ne.s32.totalorder %s33, %s34
      %p48 = scmp.eq.s32.totalorder %s26, 1
      %p49 = por %p47, %p48
      %p51 = scmp.ne.s32.totalorder %s34, %s50
      %p52 = scmp.eq.s32.totalorder %s26, 0
      %p53 = por %p51, %p52
      %s55 = sadd.s32 %s54, 1
      %p58 = scmp.eq.s32.totalorder %s20, 1
      %p59 = scmp.ne.s32.totalorder %s54, %s56
      %p60 = scmp.eq.s32.totalorder %s20, 0
      %p61 = por %p59, %p60
      %p62 = scmp.ne.s32.totalorder %s54, %s56
      %p63 = scmp.eq.s32.totalorder %s25, 1
      %p64 = por %p62, %p63
      %p65 = scmp.ne.s32.totalorder %s56, %s57
      %p66 = scmp.eq.s32.totalorder %s25, 0
      %p67 = por %p65, %p66
      %p68 = scmp.ne.s32.totalorder %s56, %s57
      %p69 = scmp.eq.s32.totalorder %s26, 1
      %p70 = por %p68, %p69
      %p72 = scmp.ne.s32.totalorder %s57, %s71
      %p73 = scmp.eq.s32.totalorder %s26, 0
      %p74 = por %p72, %p73
      %s76 = sadd.s32 %s75, 1
      %p79 = scmp.eq.s32.totalorder %s20, 1
      %p80 = scmp.ne.s32.totalorder %s75, %s77
      %p81 = scmp.eq.s32.totalorder %s20, 0
      %p82 = por %p80, %p81
      %p83 = scmp.ne.s32.totalorder %s75, %s77
      %p84 = scmp.eq.s32.totalorder %s25, 1
      %p85 = por %p83, %p84
      %p86 = scmp.ne.s32.totalorder %s77, %s78
      %p87 = scmp.eq.s32.totalorder %s25, 0
      %p88 = por %p86, %p87
      %p89 = scmp.ne.s32.totalorder %s77, %s78
      %p90 = scmp.eq.s32.totalorder %s26, 1
      %p91 = por %p89, %p90
      %p93 = scmp.ne.s32.totalorder %s78, %s92
      %p94 = scmp.eq.s32.totalorder %s26, 0
      %p95 = por %p93, %p94
      %s97 = sadd.s32 %s96, 1
      %p100 = scmp.eq.s32.totalorder %s20, 1
      %p101 = scmp.ne.s32.totalorder %s96, %s98
      %p102 = scmp.eq.s32.totalorder %s20, 0
      %p103 = por %p101, %p102
      %p104 = scmp.ne.s32.totalorder %s96, %s98
      %p105 = scmp.eq.s32.totalorder %s25, 1
      %p106 = por %p104, %p105
      %p107 = scmp.ne.s32.totalorder %s98, %s99
      %p108 = scmp.eq.s32.totalorder %s25, 0
      %p109 = por %p107, %p108
      %p110 = scmp.ne.s32.totalorder %s98, %s99
      %p111 = scmp.eq.s32.totalorder %s26, 1
      %p112 = por %p110, %p111
      %p114 = scmp.ne.s32.totalorder %s99, %s113
      %p115 = scmp.eq.s32.totalorder %s26, 0
      %p116 = por %p114, %p115
      %s118 = sadd.s32 %s117, 1
      %p121 = scmp.eq.s32.totalorder %s20, 1
      %p122 = scmp.ne.s32.totalorder %s117, %s119
      %p123 = scmp.eq.s32.totalorder %s20, 0
      %p124 = por %p122, %p123
      %p125 = scmp.ne.s32.totalorder %s117, %s119
      %p126 = scmp.eq.s32.totalorder %s25, 1
      %p127 = por %p125, %p126
      %p128 = scmp.ne.s32.totalorder %s119, %s120
      %p129 = scmp.eq.s32.totalorder %s25, 0
      %p130 = por %p128, %p129
      %p131 = scmp.ne.s32.totalorder %s119, %s120
      %p132 = scmp.eq.s32.totalorder %s26, 1
      %p133 = por %p131, %p132
      %p135 = scmp.ne.s32.totalorder %s120, %s134
      %p136 = scmp.eq.s32.totalorder %s26, 0
      %p137 = por %p135, %p136
      %s139 = sadd.s32 %s138, 1
      %p142 = scmp.eq.s32.totalorder %s20, 1
      %p143 = scmp.ne.s32.totalorder %s138, %s140
      %p144 = scmp.eq.s32.totalorder %s20, 0
      %p145 = por %p143, %p144
      %p146 = scmp.ne.s32.totalorder %s138, %s140
      %p147 = scmp.eq.s32.totalorder %s25, 1
      %p148 = por %p146, %p147
      %p149 = scmp.ne.s32.totalorder %s140, %s141
      %p150 = scmp.eq.s32.totalorder %s25, 0
      %p151 = por %p149, %p150
      %p152 = scmp.ne.s32.totalorder %s140, %s141
      %p153 = scmp.eq.s32.totalorder %s26, 1
      %p154 = por %p152, %p153
      %p156 = scmp.ne.s32.totalorder %s141, %s155
      %p157 = scmp.eq.s32.totalorder %s26, 0
      %p158 = por %p156, %p157
      %s160 = sadd.s32 %s159, 1
      %p163 = scmp.eq.s32.totalorder %s20, 1
      %p164 = scmp.ne.s32.totalorder %s159, %s161
      %p165 = scmp.eq.s32.totalorder %s20, 0
      %p166 = por %p164, %p165
      %p167 = scmp.ne.s32.totalorder %s159, %s161
      %p168 = scmp.eq.s32.totalorder %s25, 1
      %p169 = por %p167, %p168
      %p170 = scmp.ne.s32.totalorder %s161, %s162
      %p171 = scmp.eq.s32.totalorder %s25, 0
      %p172 = por %p170, %p171
      %p173 = scmp.ne.s32.totalorder %s161, %s162
      %p174 = scmp.eq.s32.totalorder %s26, 1
      %p175 = por %p173, %p174
      %p177 = scmp.ne.s32.totalorder %s162, %s176
      %p178 = scmp.eq.s32.totalorder %s26, 0
      %p179 = por %p177, %p178
      %s181 = sadd.s32 %s180, 1
      %p184 = scmp.eq.s32.totalorder %s20, 1
      %p185 = scmp.ne.s32.totalorder %s180, %s182
      %p186 = scmp.eq.s32.totalorder %s20, 0
      %p187 = por %p185, %p186
      %p188 = scmp.ne.s32.totalorder %s180, %s182
      %p189 = scmp.eq.s32.totalorder %s25, 1
      %p190 = por %p188, %p189
      %p191 = scmp.ne.s32.totalorder %s182, %s183
      %p192 = scmp.eq.s32.totalorder %s25, 0
      %p193 = por %p191, %p192
      %p194 = scmp.ne.s32.totalorder %s182, %s183
      %p195 = scmp.eq.s32.totalorder %s26, 1
      %p196 = por %p194, %p195
      %p198 = scmp.ne.s32.totalorder %s183, %s197
      %p199 = scmp.eq.s32.totalorder %s26, 0
      %p200 = por %p198, %p199
      %s202 = sadd.s32 %s201, 1
      %p205 = scmp.eq.s32.totalorder %s20, 1
      %p206 = scmp.ne.s32.totalorder %s201, %s203
      %p207 = scmp.eq.s32.totalorder %s20, 0
      %p208 = por %p206, %p207
      %p209 = scmp.ne.s32.totalorder %s201, %s203
      %p210 = scmp.eq.s32.totalorder %s25, 1
      %p211 = por %p209, %p210
      %p212 = scmp.ne.s32.totalorder %s203, %s204
      %p213 = scmp.eq.s32.totalorder %s25, 0
      %p214 = por %p212, %p213
      %p215 = scmp.ne.s32.totalorder %s203, %s204
      %p216 = scmp.eq.s32.totalorder %s26, 1
      %p217 = por %p215, %p216
      %p219 = scmp.ne.s32.totalorder %s204, %s218
      %p220 = scmp.eq.s32.totalorder %s26, 0
      %p221 = por %p219, %p220
      %s223 = sadd.s32 %s222, 1
      %p226 = scmp.eq.s32.totalorder %s20, 1
      %p227 = scmp.ne.s32.totalorder %s222, %s224
      %p228 = scmp.eq.s32.totalorder %s20, 0
      %p229 = por %p227, %p228
      %p230 = scmp.ne.s32.totalorder %s222, %s224
      %p231 = scmp.eq.s32.totalorder %s25, 1
      %p232 = por %p230, %p231
      %p233 = scmp.ne.s32.totalorder %s224, %s225
      %p234 = scmp.eq.s32.totalorder %s25, 0
      %p235 = por %p233, %p234
      %p236 = scmp.ne.s32.totalorder %s224, %s225
      %p237 = scmp.eq.s32.totalorder %s26, 1
      %p238 = por %p236, %p237
      %p240 = scmp.ne.s32.totalorder %s225, %s239
      %p241 = scmp.eq.s32.totalorder %s26, 0
      %p242 = por %p240, %p241
      %s244 = sadd.s32 %s243, 1
      %p247 = scmp.eq.s32.totalorder %s20, 1
      %p248 = scmp.ne.s32.totalorder %s243, %s245
      %p249 = scmp.eq.s32.totalorder %s20, 0
      %p250 = por %p248, %p249
      %p251 = scmp.ne.s32.totalorder %s243, %s245
      %p252 = scmp.eq.s32.totalorder %s25, 1
      %p253 = por %p251, %p252
      %p254 = scmp.ne.s32.totalorder %s245, %s246
      %p255 = scmp.eq.s32.totalorder %s25, 0
      %p256 = por %p254, %p255
      %p257 = scmp.ne.s32.totalorder %s245, %s246
      %p258 = scmp.eq.s32.totalorder %s26, 1
      %p259 = por %p257, %p258
      %p261 = scmp.ne.s32.totalorder %s246, %s260
      %p262 = scmp.eq.s32.totalorder %s26, 0
      %p263 = por %p261, %p262
      %s264 = ssub.s32 %s20, %s27
      %p265 = scmp.eq.s32.totalorder %s264, 0
      %s267 = sadd.s32 %s266, 1
      %s268 = scalar_select %p265, %s266, %s267
      %p271 = pneg %p265
      %p272 = scmp.eq.s32.totalorder %s20, 1
      %p273 = por %p271, %p272
      %p274 = scmp.ne.s32.totalorder %s266, %s269
      %p275 = scmp.eq.s32.totalorder %s20, 0
      %p276 = por %p274, %p275
      %p277 = scmp.ne.s32.totalorder %s266, %s269
      %p278 = scmp.eq.s32.totalorder %s25, 1
      %p279 = por %p277, %p278
      %p280 = scmp.ne.s32.totalorder %s269, %s270
      %p281 = scmp.eq.s32.totalorder %s25, 0
      %p282 = por %p280, %p281
      %p283 = scmp.ne.s32.totalorder %s269, %s270
      %p284 = scmp.eq.s32.totalorder %s26, 1
      %p285 = por %p283, %p284
      %p287 = scmp.ne.s32.totalorder %s270, %s286
      %p288 = scmp.eq.s32.totalorder %s26, 0
      %p289 = por %p287, %p288
      %p290 = scmp.le.s32.totalorder 1, %s20
      %p291 = scmp.lt.s32.totalorder %s20, 3
      %p292 = pnand %p290, %p291
      %p293 = pneg %p292
      // Predicated region
      $region9: #{transformer_forward.1} parent=5 // pred_check
        _
      $region10: #{transformer_forward.1} parent=5 // pred_check_branch
        %295 = sbr.rel (%p292) target = $region12
      $region11: #{transformer_forward.1} parent=5 // pred_region
        %s296 = ssub.s32 %s20, 1
        // Predicated region
        $region13: #{transformer_forward.1} parent=11 // pred_check
          %p297 = pneg %p67
        $region14: #{transformer_forward.1} parent=11 // pred_check_branch
          %299 = sbr.rel (%p297) target = $region16
        $region15: #{transformer_forward.1} parent=11 // pred_region
          _
        $region16: #{transformer_forward.1} parent=11 // pred_fallthru
          _
        // Predicated region
        $region17: #{transformer_forward.1} parent=11 // pred_check
          %p300 = pneg %p88
        $region18: #{transformer_forward.1} parent=11 // pred_check_branch
          %302 = sbr.rel (%p300) target = $region20
        $region19: #{transformer_forward.1} parent=11 // pred_region
          _
        $region20: #{transformer_forward.1} parent=11 // pred_fallthru
          _
        // Predicated region
        $region21: #{transformer_forward.1} parent=11 // pred_check
          %p303 = pneg %p109
        $region22: #{transformer_forward.1} parent=11 // pred_check_branch
          %305 = sbr.rel (%p303) target = $region24
        $region23: #{transformer_forward.1} parent=11 // pred_region
          _
        $region24: #{transformer_forward.1} parent=11 // pred_fallthru
          _
        // Predicated region
        $region25: #{transformer_forward.1} parent=11 // pred_check
          %p306 = pneg %p130
        $region26: #{transformer_forward.1} parent=11 // pred_check_branch
          %308 = sbr.rel (%p306) target = $region28
        $region27: #{transformer_forward.1} parent=11 // pred_region
          _
        $region28: #{transformer_forward.1} parent=11 // pred_fallthru
          _
        // Predicated region
        $region29: #{transformer_forward.1} parent=11 // pred_check
          %p309 = pneg %p151
        $region30: #{transformer_forward.1} parent=11 // pred_check_branch
          %311 = sbr.rel (%p309) target = $region32
        $region31: #{transformer_forward.1} parent=11 // pred_region
          _
        $region32: #{transformer_forward.1} parent=11 // pred_fallthru
          _
        // Predicated region
        $region33: #{transformer_forward.1} parent=11 // pred_check
          %p312 = pneg %p172
        $region34: #{transformer_forward.1} parent=11 // pred_check_branch
          %314 = sbr.rel (%p312) target = $region36
        $region35: #{transformer_forward.1} parent=11 // pred_region
          _
        $region36: #{transformer_forward.1} parent=11 // pred_fallthru
          _
        // Predicated region
        $region37: #{transformer_forward.1} parent=11 // pred_check
          %p315 = pneg %p193
        $region38: #{transformer_forward.1} parent=11 // pred_check_branch
          %317 = sbr.rel (%p315) target = $region40
        $region39: #{transformer_forward.1} parent=11 // pred_region
          _
        $region40: #{transformer_forward.1} parent=11 // pred_fallthru
          _
        // Predicated region
        $region41: #{transformer_forward.1} parent=11 // pred_check
          %p318 = pneg %p214
        $region42: #{transformer_forward.1} parent=11 // pred_check_branch
          %320 = sbr.rel (%p318) target = $region44
        $region43: #{transformer_forward.1} parent=11 // pred_region
          _
        $region44: #{transformer_forward.1} parent=11 // pred_fallthru
          _
        // Predicated region
        $region45: #{transformer_forward.1} parent=11 // pred_check
          %p321 = pneg %p235
        $region46: #{transformer_forward.1} parent=11 // pred_check_branch
          %323 = sbr.rel (%p321) target = $region48
        $region47: #{transformer_forward.1} parent=11 // pred_region
          _
        $region48: #{transformer_forward.1} parent=11 // pred_fallthru
          _
        // Predicated region
        $region49: #{transformer_forward.1} parent=11 // pred_check
          %p324 = pneg %p256
        $region50: #{transformer_forward.1} parent=11 // pred_check_branch
          %326 = sbr.rel (%p324) target = $region52
        $region51: #{transformer_forward.1} parent=11 // pred_region
          _
        $region52: #{transformer_forward.1} parent=11 // pred_fallthru
          _
      $region12: #{transformer_forward.1} parent=5 // pred_fallthru
        _
      %p327 = scmp.lt.s32.totalorder %s20, 2
      // Predicated region
      $region53: #{transformer_forward.1} parent=5 // pred_check
        %p328 = pneg %p327
      $region54: #{transformer_forward.1} parent=5 // pred_check_branch
        %330 = sbr.rel (%p328) target = $region56
      $region55: #{transformer_forward.1} parent=5 // pred_region
        // Predicated region
        $region57: #{transformer_forward.1} parent=55 // pred_check
          %p331 = pneg %p40
        $region58: #{transformer_forward.1} parent=55 // pred_check_branch
          %333 = sbr.rel (%p331) target = $region60
        $region59: #{transformer_forward.1} parent=55 // pred_region
          %p334 = scmp.lt.s32.totalorder %s20, 1
          %s335 = scalar_select %p334, %s20, 1
          %s336 = smul.addr %s335, 2
          %s337 = smul.addr %s336, 8
          %s338 = scalar_lea.vmem %s0, %s337
        $region60: #{transformer_forward.1} parent=55 // pred_fallthru
          _
      $region56: #{transformer_forward.1} parent=5 // pred_fallthru
        _
      %p339 = scmp.le.s32.totalorder 1, %s20
      %p340 = scmp.lt.s32.totalorder %s20, 3
      %p341 = pnand %p339, %p340
      %p342 = pneg %p341
      // Predicated region
      $region61: #{transformer_forward.1} parent=5 // pred_check
        _
      $region62: #{transformer_forward.1} parent=5 // pred_check_branch
        %344 = sbr.rel (%p341) target = $region64
      $region63: #{transformer_forward.1} parent=5 // pred_region
        %s345 = ssub.s32 %s20, 1
        %p346 = scmp.lt.s32.totalorder %s25, 1
        %s347 = scalar_select %p346, %s25, 1
        %s348 = smul.addr %s347, 2
        %s349 = smul.addr %s348, 8
        %s350 = scalar_lea.vmem %s0, %s349
        %p351 = pneg %p46
        %p352 = pneg %p43
        %p353 = pneg %p67
        %p354 = pneg %p64
        %p355 = pneg %p88
        %p356 = pneg %p85
        %p357 = pneg %p109
        %p358 = pneg %p106
        %p359 = pneg %p130
        %p360 = pneg %p127
        %p361 = pneg %p151
        %p362 = pneg %p148
        %p363 = pneg %p172
        %p364 = pneg %p169
        %p365 = pneg %p193
        %p366 = pneg %p190
        %p367 = pneg %p214
        %p368 = pneg %p211
        %p369 = pneg %p235
        %p370 = pneg %p232
        %p371 = pneg %p256
        %p372 = pneg %p253
        %p373 = pneg %p282
        %p374 = pneg %p279
        %s375 = sand.u32 %s269, 1
        %s376 = scalar_lea.sflag [#allocation3], %s375
        %s377 = sand.u32 %s269, 1
        %s378 = smul.addr %s377, 16
        %s379 = scalar_lea.vmem [#allocation2], %s378
        %p380 = scmp.lt.s32.totalorder %s25, 1
        %s381 = scalar_select %p380, %s25, 1
        %s382 = smul.addr %s381, 2
        %s383 = smul.addr %s382, 8
        %s384 = scalar_lea.vmem %s0, %s383
        %v385 = vld [vmem:[%s384] sm:$0xff]
        %v386 = vld [vmem:[%s384 + $0x8] sm:$0xff]
        %v387 = vld [vmem:[%s1] sm:$0xff]
        %v388 = vld [vmem:[%s1 + $0x8] sm:$0xff]
        %v389 = vld [vmem:[%s1 + $0x10] sm:$0xff]
        %v390 = vld [vmem:[%s1 + $0x18] sm:$0xff]
        %v391 = vld [vmem:[%s1 + $0x20] sm:$0xff]
        %v392 = vld [vmem:[%s1 + $0x28] sm:$0xff]
        %v393 = vld [vmem:[%s2] sm:$0xff]
        %v394 = vld [vmem:[%s2 + $0x8] sm:$0xff]
        %vm395 = vcmask 392192
        %v397 = vsel %vm395, %v385, 0
        %v400 = vsel %vm395, %v386, 0
        %402 = vmatprep.subr.mxu0 0.0
        %403 = vmatpush1.msra.mxu0 %v387
        %404 = vmatprep.subr.mxu0 0.0
        %405 = vmatpush1.msra.mxu0 %v388
        %406 = vmatprep.subr.mxu0 0.0
        %407 = vmatpush1.msra.mxu0 %v389
        %408 = vmatprep.subr.mxu0 0.0
        %409 = vmatpush1.msra.mxu0 %v390
        %410 = vmatprep.subr.mxu0 0.0
        %411 = vmatpush1.msra.mxu0 %v391
        %412 = vmatprep.subr.mxu0 0.0
        %413 = vmatpush1.msra.mxu0 %v392
        %414 = vmatprep.subr.mxu0 0.0
        %415 = vmatpush1.msra.mxu0 0.0
        %416 = vmatprep.subr.mxu0 0.0
        %417 = vmatpush1.msra.mxu0 0.0
        %418 = vmatprep.subr.mxu0 0.0
        %419 = vmatpush1.msra.mxu0 0.0
        %420 = vmatprep.subr.mxu0 0.0
        %421 = vmatpush1.msra.mxu0 0.0
        %422 = vmatprep.subr.mxu0 0.0
        %423 = vmatpush1.msra.mxu0 0.0
        %424 = vmatprep.subr.mxu0 0.0
        %425 = vmatpush1.msra.mxu0 0.0
        %426 = vmatprep.subr.mxu0 0.0
        %427 = vmatpush1.msra.mxu0 0.0
        %428 = vmatprep.subr.mxu0 0.0
        %429 = vmatpush1.msra.mxu0 0.0
        %430 = vmatprep.subr.mxu0 0.0
        %431 = vmatpush1.msra.mxu0 0.0
        %432 = vmatprep.subr.mxu0 0.0
        %433 = vmatpush1.msra.mxu0 0.0
        %434 = vmatprep.subr.mxu0 0.0
        %435 = vmatpush1.msra.mxu0 0.0
        %436 = vmatprep.subr.mxu0 0.0
        %437 = vmatpush1.msra.mxu0 0.0
        %438 = vmatprep.subr.mxu0 0.0
        %439 = vmatpush1.msra.mxu0 0.0
        %440 = vmatprep.subr.mxu0 0.0
        %441 = vmatpush1.msra.mxu0 0.0
        %442 = vmatprep.subr.mxu0 0.0
        %443 = vmatpush1.msra.mxu0 0.0
        %444 = vmatprep.subr.mxu0 0.0
        %445 = vmatpush1.msra.mxu0 0.0
        %446 = vmatprep.subr.mxu0 0.0
        %447 = vmatpush1.msra.mxu0 0.0
        %448 = vmatprep.subr.mxu0 0.0
        %449 = vmatpush1.msra.mxu0 0.0
        %450 = vmatprep.subr.mxu0 0.0
        %451 = vmatpush1.msra.mxu0 0.0
        %452 = vmatprep.subr.mxu0 0.0
        %453 = vmatpush1.msra.mxu0 0.0
        %454 = vmatprep.subr.mxu0 0.0
        %455 = vmatpush1.msra.mxu0 0.0
        %456 = vmatprep.subr.mxu0 0.0
        %457 = vmatpush1.msra.mxu0 0.0
        %458 = vmatprep.subr.mxu0 0.0
        %459 = vmatpush1.msra.mxu0 0.0
        %460 = vmatprep.subr.mxu0 0.0
        %461 = vmatpush1.msra.mxu0 0.0
        %462 = vmatprep.subr.mxu0 0.0
        %463 = vmatpush1.msra.mxu0 0.0
        %464 = vmatprep.subr.mxu0 0.0
        %465 = vmatpush1.msra.mxu0 0.0
        %466 = vmatprep.mubr.f32.mxu0 0.0
        %467 = vmatmul.mubr.f32.gmra.mrb[0].mxu0 %v397
        %v468 = vpop.f32.mrb[0].mxu0
        %v469 = vadd.f32 %v393, %v468
        %v470 = vpop.f32.mrb[0].mxu0
        %471 = vmatprep.mubr.f32.mxu0 0.0
        %472 = vmatmul.mubr.f32.gmra.mrb[0].mxu0 %v400
        %v473 = vpop.f32.mrb[0].mxu0
        %v474 = vadd.f32 %v394, %v473
        %v475 = vpop.f32.mrb[0].mxu0
        %476 = vdwg.mxu0
        %v477 = vld [vmem:[%s6] sm:$0x1]
        %v478 = vld [vmem:[%s6 + $0x1] sm:$0x1]
        %vm479 = vcmask 261120
        %v480 = vsel %vm479, %v469, 0.0
        %481 = vadd.xlane.f32.xlu0 %v480
        %v482 = vpop.xlane.xlu0 %481
        %v483 = vsel %vm479, %v474, 0.0
        %484 = vadd.xlane.f32.xlu0 %v483
        %v485 = vpop.xlane.xlu0 %484
        %v486 = vrcp.pop 32.0
        %v487 = vmul.f32 %v482, %v486
        %v488 = vmul.f32 %v485, %v486
        %v489 = vsub.f32 %v469, %v487
        %v490 = vsub.f32 %v474, %v488
        %v491 = vmul.f32 %v489, %v489
        %v492 = vmul.f32 %v490, %v490
        %v493 = vsel %vm479, %v491, 0.0
        %494 = vadd.xlane.f32.xlu0 %v493
        %v495 = vpop.xlane.xlu0 %494
        %v496 = vsel %vm479, %v492, 0.0
        %497 = vadd.xlane.f32.xlu0 %v496
        %v498 = vpop.xlane.xlu0 %497
        %v499 = vmul.f32 %v495, %v486
        %v500 = vmul.f32 %v498, %v486
        %v501 = vadd.f32 %v499, 1e-06
        %v502 = vadd.f32 %v500, 1e-06
        %v503 = vrsqrt.pop %v501
        %v504 = vrsqrt.pop %v502
        %v505 = vmul.f32 %v489, %v503
        %v506 = vmul.f32 %v490, %v504
        %v507 = vlaneseq
        %v508 = vshrl.u32 %v507, 7
        %v509 = vsub.s32 0, %v508
        %v510 = vrot.slane %v477, %v509
        %v511 = vmul.f32 %v505, %v510
        %v512 = vmul.f32 %v506, %v510
        %v513 = vlaneseq
        %v514 = vshrl.u32 %v513, 7
        %v515 = vsub.s32 0, %v514
        %v516 = vrot.slane %v478, %v515
        %v517 = vadd.f32 %v511, %v516
        %v518 = vadd.f32 %v512, %v516
        %v519 = vld [vmem:[%s3] sm:$0xff]
        %v520 = vld [vmem:[%s3 + $0x8] sm:$0xff]
        %v521 = vld [vmem:[%s3 + $0x10] sm:$0xff]
        %v522 = vld [vmem:[%s3 + $0x18] sm:$0xff]
        %v523 = vld [vmem:[%s4] sm:$0x1]
        %v525 = vlaneseq
        %v526 = vshrl.u32 %v525, 7
        %v527 = vsub.s32 0, %v526
        %v528 = vrot.slane %v523, %v527
        %v531 = vsel %vm479, %v517, 0
        %v534 = vsel %vm479, %v518, 0
        %536 = vmatprep.subr.mxu0 0.0
        %537 = vmatpush1.msra.mxu0 %v519
        %538 = vmatprep.subr.mxu0 0.0
        %539 = vmatpush1.msra.mxu0 %v520
        %540 = vmatprep.subr.mxu0 0.0
        %541 = vmatpush1.msra.mxu0 %v521
        %542 = vmatprep.subr.mxu0 0.0
        %543 = vmatpush1.msra.mxu0 %v522
        %544 = vmatprep.subr.mxu0 0.0
        %545 = vmatpush1.msra.mxu0 0.0
        %546 = vmatprep.subr.mxu0 0.0
        %547 = vmatpush1.msra.mxu0 0.0
        %548 = vmatprep.subr.mxu0 0.0
        %549 = vmatpush1.msra.mxu0 0.0
        %550 = vmatprep.subr.mxu0 0.0
        %551 = vmatpush1.msra.mxu0 0.0
        %552 = vmatprep.subr.mxu0 0.0
        %553 = vmatpush1.msra.mxu0 0.0
        %554 = vmatprep.subr.mxu0 0.0
        %555 = vmatpush1.msra.mxu0 0.0
        %556 = vmatprep.subr.mxu0 0.0
        %557 = vmatpush1.msra.mxu0 0.0
        %558 = vmatprep.subr.mxu0 0.0
        %559 = vmatpush1.msra.mxu0 0.0
        %560 = vmatprep.subr.mxu0 0.0
        %561 = vmatpush1.msra.mxu0 0.0
        %562 = vmatprep.subr.mxu0 0.0
        %563 = vmatpush1.msra.mxu0 0.0
        %564 = vmatprep.subr.mxu0 0.0
        %565 = vmatpush1.msra.mxu0 0.0
        %566 = vmatprep.subr.mxu0 0.0
        %567 = vmatpush1.msra.mxu0 0.0
        %568 = vmatprep.subr.mxu0 0.0
        %569 = vmatpush1.msra.mxu0 0.0
        %570 = vmatprep.subr.mxu0 0.0
        %571 = vmatpush1.msra.mxu0 0.0
        %572 = vmatprep.subr.mxu0 0.0
        %573 = vmatpush1.msra.mxu0 0.0
        %574 = vmatprep.subr.mxu0 0.0
        %575 = vmatpush1.msra.mxu0 0.0
        %576 = vmatprep.subr.mxu0 0.0
        %577 = vmatpush1.msra.mxu0 0.0
        %578 = vmatprep.subr.mxu0 0.0
        %579 = vmatpush1.msra.mxu0 0.0
        %580 = vmatprep.subr.mxu0 0.0
        %581 = vmatpush1.msra.mxu0 0.0
        %582 = vmatprep.subr.mxu0 0.0
        %583 = vmatpush1.msra.mxu0 0.0
        %584 = vmatprep.subr.mxu0 0.0
        %585 = vmatpush1.msra.mxu0 0.0
        %586 = vmatprep.subr.mxu0 0.0
        %587 = vmatpush1.msra.mxu0 0.0
        %588 = vmatprep.subr.mxu0 0.0
        %589 = vmatpush1.msra.mxu0 0.0
        %590 = vmatprep.subr.mxu0 0.0
        %591 = vmatpush1.msra.mxu0 0.0
        %592 = vmatprep.subr.mxu0 0.0
        %593 = vmatpush1.msra.mxu0 0.0
        %594 = vmatprep.subr.mxu0 0.0
        %595 = vmatpush1.msra.mxu0 0.0
        %596 = vmatprep.subr.mxu0 0.0
        %597 = vmatpush1.msra.mxu0 0.0
        %598 = vmatprep.subr.mxu0 0.0
        %599 = vmatpush1.msra.mxu0 0.0
        %600 = vmatprep.mubr.f32.mxu0 0.0
        %601 = vmatmul.mubr.f32.gmra.mrb[0].mxu0 %v531
        %v602 = vpop.f32.mrb[0].mxu0
        %v603 = vadd.f32 %v528, %v602
        %v604 = vpop.f32.mrb[0].mxu0
        %605 = vmatprep.mubr.f32.mxu0 0.0
        %606 = vmatmul.mubr.f32.gmra.mrb[0].mxu0 %v534
        %v607 = vpop.f32.mrb[0].mxu0
        %v608 = vadd.f32 %v528, %v607
        %v609 = vpop.f32.mrb[0].mxu0
        %610 = vdwg.mxu0
        %s611 = scalar_lea.vmem %s3, 128
        %v612 = vld [vmem:[%s611] sm:$0xff]
        %v613 = vld [vmem:[%s611 + $0x8] sm:$0xff]
        %v614 = vld [vmem:[%s611 + $0x10] sm:$0xff]
        %v615 = vld [vmem:[%s611 + $0x18] sm:$0xff]
        %s616 = scalar_lea.vmem %s4, 4
        %v617 = vld [vmem:[%s616] sm:$0x1]
        %v619 = vlaneseq
        %v620 = vshrl.u32 %v619, 7
        %v621 = vsub.s32 0, %v620
        %v622 = vrot.slane %v617, %v621
        %624 = vmatprep.subr.mxu0 0.0
        %625 = vmatpush1.msra.mxu0 %v612
        %626 = vmatprep.subr.mxu0 0.0
        %627 = vmatpush1.msra.mxu0 %v613
        %628 = vmatprep.subr.mxu0 0.0
        %629 = vmatpush1.msra.mxu0 %v614
        %630 = vmatprep.subr.mxu0 0.0
        %631 = vmatpush1.msra.mxu0 %v615
        %632 = vmatprep.subr.mxu0 0.0
        %633 = vmatpush1.msra.mxu0 0.0
        %634 = vmatprep.subr.mxu0 0.0
        %635 = vmatpush1.msra.mxu0 0.0
        %636 = vmatprep.subr.mxu0 0.0
        %637 = vmatpush1.msra.mxu0 0.0
        %638 = vmatprep.subr.mxu0 0.0
        %639 = vmatpush1.msra.mxu0 0.0
        %640 = vmatprep.subr.mxu0 0.0
        %641 = vmatpush1.msra.mxu0 0.0
        %642 = vmatprep.subr.mxu0 0.0
        %643 = vmatpush1.msra.mxu0 0.0
        %644 = vmatprep.subr.mxu0 0.0
        %645 = vmatpush1.msra.mxu0 0.0
        %646 = vmatprep.subr.mxu0 0.0
        %647 = vmatpush1.msra.mxu0 0.0
        %648 = vmatprep.subr.mxu0 0.0
        %649 = vmatpush1.msra.mxu0 0.0
        %650 = vmatprep.subr.mxu0 0.0
        %651 = vmatpush1.msra.mxu0 0.0
        %652 = vmatprep.subr.mxu0 0.0
        %653 = vmatpush1.msra.mxu0 0.0
        %654 = vmatprep.subr.mxu0 0.0
        %655 = vmatpush1.msra.mxu0 0.0
        %656 = vmatprep.subr.mxu0 0.0
        %657 = vmatpush1.msra.mxu0 0.0
        %658 = vmatprep.subr.mxu0 0.0
        %659 = vmatpush1.msra.mxu0 0.0
        %660 = vmatprep.subr.mxu0 0.0
        %661 = vmatpush1.msra.mxu0 0.0
        %662 = vmatprep.subr.mxu0 0.0
        %663 = vmatpush1.msra.mxu0 0.0
        %664 = vmatprep.subr.mxu0 0.0
        %665 = vmatpush1.msra.mxu0 0.0
        %666 = vmatprep.subr.mxu0 0.0
        %667 = vmatpush1.msra.mxu0 0.0
        %668 = vmatprep.subr.mxu0 0.0
        %669 = vmatpush1.msra.mxu0 0.0
        %670 = vmatprep.subr.mxu0 0.0
        %671 = vmatpush1.msra.mxu0 0.0
        %672 = vmatprep.subr.mxu0 0.0
        %673 = vmatpush1.msra.mxu0 0.0
        %674 = vmatprep.subr.mxu0 0.0
        %675 = vmatpush1.msra.mxu0 0.0
        %676 = vmatprep.subr.mxu0 0.0
        %677 = vmatpush1.msra.mxu0 0.0
        %678 = vmatprep.subr.mxu0 0.0
        %679 = vmatpush1.msra.mxu0 0.0
        %680 = vmatprep.subr.mxu0 0.0
        %681 = vmatpush1.msra.mxu0 0.0
        %682 = vmatprep.subr.mxu0 0.0
        %683 = vmatpush1.msra.mxu0 0.0
        %684 = vmatprep.subr.mxu0 0.0
        %685 = vmatpush1.msra.mxu0 0.0
        %686 = vmatprep.subr.mxu0 0.0
        %687 = vmatpush1.msra.mxu0 0.0
        %688 = vmatprep.mubr.f32.mxu0 0.0
        %689 = vmatmul.mubr.f32.gmra.mrb[0].mxu0 %v531
        %v690 = vpop.f32.mrb[0].mxu0
        %v691 = vadd.f32 %v622, %v690
        %v692 = vpop.f32.mrb[0].mxu0
        %693 = vmatprep.mubr.f32.mxu0 0.0
        %694 = vmatmul.mubr.f32.gmra.mrb[0].mxu0 %v534
        %v695 = vpop.f32.mrb[0].mxu0
        %v696 = vadd.f32 %v622, %v695
        %v697 = vpop.f32.mrb[0].mxu0
        %698 = vdwg.mxu0
        %s699 = scalar_lea.vmem %s3, 256
        %v700 = vld [vmem:[%s699] sm:$0xff]
        %v701 = vld [vmem:[%s699 + $0x8] sm:$0xff]
        %v702 = vld [vmem:[%s699 + $0x10] sm:$0xff]
        %v703 = vld [vmem:[%s699 + $0x18] sm:$0xff]
        %s704 = scalar_lea.vmem %s4, 8
        %v705 = vld [vmem:[%s704] sm:$0x1]
        %v707 = vlaneseq
        %v708 = vshrl.u32 %v707, 7
        %v709 = vsub.s32 0, %v708
        %v710 = vrot.slane %v705, %v709
        %712 = vmatprep.subr.mxu0 0.0
        %713 = vmatpush1.msra.mxu0 %v700
        %714 = vmatprep.subr.mxu0 0.0
        %715 = vmatpush1.msra.mxu0 %v701
        %716 = vmatprep.subr.mxu0 0.0
        %717 = vmatpush1.msra.mxu0 %v702
        %718 = vmatprep.subr.mxu0 0.0
        %719 = vmatpush1.msra.mxu0 %v703
        %720 = vmatprep.subr.mxu0 0.0
        %721 = vmatpush1.msra.mxu0 0.0
        %722 = vmatprep.subr.mxu0 0.0
        %723 = vmatpush1.msra.mxu0 0.0
        %724 = vmatprep.subr.mxu0 0.0
        %725 = vmatpush1.msra.mxu0 0.0
        %726 = vmatprep.subr.mxu0 0.0
        %727 = vmatpush1.msra.mxu0 0.0
        %728 = vmatprep.subr.mxu0 0.0
        %729 = vmatpush1.msra.mxu0 0.0
        %730 = vmatprep.subr.mxu0 0.0
        %731 = vmatpush1.msra.mxu0 0.0
        %732 = vmatprep.subr.mxu0 0.0
        %733 = vmatpush1.msra.mxu0 0.0
        %734 = vmatprep.subr.mxu0 0.0
        %735 = vmatpush1.msra.mxu0 0.0
        %736 = vmatprep.subr.mxu0 0.0
        %737 = vmatpush1.msra.mxu0 0.0
        %738 = vmatprep.subr.mxu0 0.0
        %739 = vmatpush1.msra.mxu0 0.0
        %740 = vmatprep.subr.mxu0 0.0
        %741 = vmatpush1.msra.mxu0 0.0
        %742 = vmatprep.subr.mxu0 0.0
        %743 = vmatpush1.msra.mxu0 0.0
        %744 = vmatprep.subr.mxu0 0.0
        %745 = vmatpush1.msra.mxu0 0.0
        %746 = vmatprep.subr.mxu0 0.0
        %747 = vmatpush1.msra.mxu0 0.0
        %748 = vmatprep.subr.mxu0 0.0
        %749 = vmatpush1.msra.mxu0 0.0
        %750 = vmatprep.subr.mxu0 0.0
        %751 = vmatpush1.msra.mxu0 0.0
        %752 = vmatprep.subr.mxu0 0.0
        %753 = vmatpush1.msra.mxu0 0.0
        %754 = vmatprep.subr.mxu0 0.0
        %755 = vmatpush1.msra.mxu0 0.0
        %756 = vmatprep.subr.mxu0 0.0
        %757 = vmatpush1.msra.mxu0 0.0
        %758 = vmatprep.subr.mxu0 0.0
        %759 = vmatpush1.msra.mxu0 0.0
        %760 = vmatprep.subr.mxu0 0.0
        %761 = vmatpush1.msra.mxu0 0.0
        %762 = vmatprep.subr.mxu0 0.0
        %763 = vmatpush1.msra.mxu0 0.0
        %764 = vmatprep.subr.mxu0 0.0
        %765 = vmatpush1.msra.mxu0 0.0
        %766 = vmatprep.subr.mxu0 0.0
        %767 = vmatpush1.msra.mxu0 0.0
        %768 = vmatprep.subr.mxu0 0.0
        %769 = vmatpush1.msra.mxu0 0.0
        %770 = vmatprep.subr.mxu0 0.0
        %771 = vmatpush1.msra.mxu0 0.0
        %772 = vmatprep.subr.mxu0 0.0
        %773 = vmatpush1.msra.mxu0 0.0
        %774 = vmatprep.subr.mxu0 0.0
        %775 = vmatpush1.msra.mxu0 0.0
        %776 = vmatprep.mubr.f32.mxu0 0.0
        %777 = vmatmul.mubr.f32.gmra.mrb[0].mxu0 %v531
        %v778 = vpop.f32.mrb[0].mxu0
        %v779 = vadd.f32 %v710, %v778
        %v780 = vpop.f32.mrb[0].mxu0
        %781 = vmatprep.mubr.f32.mxu0 0.0
        %782 = vmatmul.mubr.f32.gmra.mrb[0].mxu0 %v534
        %v783 = vpop.f32.mrb[0].mxu0
        %v784 = vadd.f32 %v710, %v783
        %v785 = vpop.f32.mrb[0].mxu0
        %786 = vdwg.mxu0
        %vm787 = vcmask 64512
        %v789 = vsel %vm787, %v603, 0
        %v792 = vsel %vm787, %v608, 0
        %v795 = vsel %vm787, %v691, 0
        %v798 = vsel %vm787, %v696, 0
        %800 = vmatprep.subr.mxu0 0.0
        %801 = vmatpush1.xpose.msra.mxu0 %v795
        %802 = vmatprep.subr.mxu0 0.0
        %803 = vmatpush1.xpose.msra.mxu0 %v798
        %804 = vmatprep.subr.mxu0 0.0
        %805 = vmatpush1.xpose.msra.mxu0 0.0
        %806 = vmatprep.subr.mxu0 0.0
        %807 = vmatpush1.xpose.msra.mxu0 0.0
        %808 = vmatprep.subr.mxu0 0.0
        %809 = vmatpush1.xpose.msra.mxu0 0.0
        %810 = vmatprep.subr.mxu0 0.0
        %811 = vmatpush1.xpose.msra.mxu0 0.0
        %812 = vmatprep.subr.mxu0 0.0
        %813 = vmatpush1.xpose.msra.mxu0 0.0
        %814 = vmatprep.subr.mxu0 0.0
        %815 = vmatpush1.xpose.msra.mxu0 0.0
        %816 = vmatprep.subr.mxu0 0.0
        %817 = vmatpush1.xpose.msra.mxu0 0.0
        %818 = vmatprep.subr.mxu0 0.0
        %819 = vmatpush1.xpose.msra.mxu0 0.0
        %820 = vmatprep.subr.mxu0 0.0
        %821 = vmatpush1.xpose.msra.mxu0 0.0
        %822 = vmatprep.subr.mxu0 0.0
        %823 = vmatpush1.xpose.msra.mxu0 0.0
        %824 = vmatprep.subr.mxu0 0.0
        %825 = vmatpush1.xpose.msra.mxu0 0.0
        %826 = vmatprep.subr.mxu0 0.0
        %827 = vmatpush1.xpose.msra.mxu0 0.0
        %828 = vmatprep.subr.mxu0 0.0
        %829 = vmatpush1.xpose.msra.mxu0 0.0
        %830 = vmatprep.subr.mxu0 0.0
        %831 = vmatpush1.xpose.msra.mxu0 0.0
        %832 = vmatprep.subr.mxu0 0.0
        %833 = vmatpush1.xpose.msra.mxu0 0.0
        %834 = vmatprep.subr.mxu0 0.0
        %835 = vmatpush1.xpose.msra.mxu0 0.0
        %836 = vmatprep.subr.mxu0 0.0
        %837 = vmatpush1.xpose.msra.mxu0 0.0
        %838 = vmatprep.subr.mxu0 0.0
        %839 = vmatpush1.xpose.msra.mxu0 0.0
        %840 = vmatprep.subr.mxu0 0.0
        %841 = vmatpush1.xpose.msra.mxu0 0.0
        %842 = vmatprep.subr.mxu0 0.0
        %843 = vmatpush1.xpose.msra.mxu0 0.0
        %844 = vmatprep.subr.mxu0 0.0
        %845 = vmatpush1.xpose.msra.mxu0 0.0
        %846 = vmatprep.subr.mxu0 0.0
        %847 = vmatpush1.xpose.msra.mxu0 0.0
        %848 = vmatprep.subr.mxu0 0.0
        %849 = vmatpush1.xpose.msra.mxu0 0.0
        %850 = vmatprep.subr.mxu0 0.0
        %851 = vmatpush1.xpose.msra.mxu0 0.0
        %852 = vmatprep.subr.mxu0 0.0
        %853 = vmatpush1.xpose.msra.mxu0 0.0
        %854 = vmatprep.subr.mxu0 0.0
        %855 = vmatpush1.xpose.msra.mxu0 0.0
        %856 = vmatprep.subr.mxu0 0.0
        %857 = vmatpush1.xpose.msra.mxu0 0.0
        %858 = vmatprep.subr.mxu0 0.0
        %859 = vmatpush1.xpose.msra.mxu0 0.0
        %860 = vmatprep.subr.mxu0 0.0
        %861 = vmatpush1.xpose.msra.mxu0 0.0
        %862 = vmatprep.subr.mxu0 0.0
        %863 = vmatpush1.xpose.msra.mxu0 0.0
        %864 = vmatprep.mubr.f32.mxu0 0.0
        %865 = vmatmul.mubr.f32.gmra.mrb[0].mxu0 %v789
        %v866 = vpop.f32.mrb[0].mxu0
        %v867 = vadd.f32 0.0, %v866
        %v868 = vpop.f32.mrb[0].mxu0
        %869 = vmatprep.mubr.f32.mxu0 0.0
        %870 = vmatmul.mubr.f32.gmra.mrb[0].mxu0 %v792
        %v871 = vpop.f32.mrb[0].mxu0
        %v872 = vadd.f32 0.0, %v871
        %v873 = vpop.f32.mrb[0].mxu0
        %874 = vdwg.mxu0
        %v875 = vmul.f32 %v867, 0.35355338
        %v876 = vmul.f32 %v872, 0.35355338
        %vm877 = vcmask 130048
        %v878 = vsel %vm877, %v875, -inf
        %879 = vmax.xlane.f32.xlu0 %v878
        %v880 = vpop.xlane.xlu0 %879
        %v881 = vsel %vm877, %v876, -inf
        %882 = vmax.xlane.f32.xlu0 %v881
        %v883 = vpop.xlane.xlu0 %882
        %v884 = vsub.f32 %v875, %v880
        %v885 = vsub.f32 %v876, %v883
        %v886 = vmul.f32 %v884, 1.442695
        %v887 = vpow.pop %v886
        %v888 = vmul.f32 %v885, 1.442695
        %v889 = vpow.pop %v888
        %v890 = vsel %vm877, %v887, 0.0
        %891 = vadd.xlane.f32.xlu0 %v890
        %v892 = vpop.xlane.xlu0 %891
        %v893 = vsel %vm877, %v889, 0.0
        %894 = vadd.xlane.f32.xlu0 %v893
        %v895 = vpop.xlane.xlu0 %894
        %v896 = vrcp.pop %v892
        %v897 = vrcp.pop %v895
        %v898 = vmul.f32 %v887, %v896
        %v899 = vmul.f32 %v889, %v897
        %v901 = vsel %vm877, %v898, 0
        %v904 = vsel %vm877, %v899, 0
        %906 = vmatprep.subr.mxu0 0.0
        %907 = vmatpush1.msra.mxu0 %v779
        %908 = vmatprep.subr.mxu0 0.0
        %909 = vmatpush1.msra.mxu0 %v784
        %910 = vmatprep.subr.mxu0 0.0
        %911 = vmatpush1.msra.mxu0 0.0
        %912 = vmatprep.subr.mxu0 0.0
        %913 = vmatpush1.msra.mxu0 0.0
        %914 = vmatprep.subr.mxu0 0.0
        %915 = vmatpush1.msra.mxu0 0.0
        %916 = vmatprep.subr.mxu0 0.0
        %917 = vmatpush1.msra.mxu0 0.0
        %918 = vmatprep.subr.mxu0 0.0
        %919 = vmatpush1.msra.mxu0 0.0
        %920 = vmatprep.subr.mxu0 0.0
        %921 = vmatpush1.msra.mxu0 0.0
        %922 = vmatprep.subr.mxu0 0.0
        %923 = vmatpush1.msra.mxu0 0.0
        %924 = vmatprep.subr.mxu0 0.0
        %925 = vmatpush1.msra.mxu0 0.0
        %926 = vmatprep.subr.mxu0 0.0
        %927 = vmatpush1.msra.mxu0 0.0
        %928 = vmatprep.subr.mxu0 0.0
        %929 = vmatpush1.msra.mxu0 0.0
        %930 = vmatprep.subr.mxu0 0.0
        %931 = vmatpush1.msra.mxu0 0.0
        %932 = vmatprep.subr.mxu0 0.0
        %933 = vmatpush1.msra.mxu0 0.0
        %934 = vmatprep.subr.mxu0 0.0
        %935 = vmatpush1.msra.mxu0 0.0
        %936 = vmatprep.subr.mxu0 0.0
        %937 = vmatpush1.msra.mxu0 0.0
        %938 = vmatprep.subr.mxu0 0.0
        %939 = vmatpush1.msra.mxu0 0.0
        %940 = vmatprep.subr.mxu0 0.0
        %941 = vmatpush1.msra.mxu0 0.0
        %942 = vmatprep.subr.mxu0 0.0
        %943 = vmatpush1.msra.mxu0 0.0
        %944 = vmatprep.subr.mxu0 0.0
        %945 = vmatpush1.msra.mxu0 0.0
        %946 = vmatprep.subr.mxu0 0.0
        %947 = vmatpush1.msra.mxu0 0.0
        %948 = vmatprep.subr.mxu0 0.0
        %949 = vmatpush1.msra.mxu0 0.0
        %950 = vmatprep.subr.mxu0 0.0
        %951 = vmatpush1.msra.mxu0 0.0
        %952 = vmatprep.subr.mxu0 0.0
        %953 = vmatpush1.msra.mxu0 0.0
        %954 = vmatprep.subr.mxu0 0.0
        %955 = vmatpush1.msra.mxu0 0.0
        %956 = vmatprep.subr.mxu0 0.0
        %957 = vmatpush1.msra.mxu0 0.0
        %958 = vmatprep.subr.mxu0 0.0
        %959 = vmatpush1.msra.mxu0 0.0
        %960 = vmatprep.subr.mxu0 0.0
        %961 = vmatpush1.msra.mxu0 0.0
        %962 = vmatprep.subr.mxu0 0.0
        %963 = vmatpush1.msra.mxu0 0.0
        %964 = vmatprep.subr.mxu0 0.0
        %965 = vmatpush1.msra.mxu0 0.0
        %966 = vmatprep.subr.mxu0 0.0
        %967 = vmatpush1.msra.mxu0 0.0
        %968 = vmatprep.subr.mxu0 0.0
        %969 = vmatpush1.msra.mxu0 0.0
        %970 = vmatprep.mubr.f32.mxu0 0.0
        %971 = vmatmul.mubr.f32.gmra.mrb[0].mxu0 %v901
        %v972 = vpop.f32.mrb[0].mxu0
        %v973 = vadd.f32 0.0, %v972
        %v974 = vpop.f32.mrb[0].mxu0
        %975 = vmatprep.mubr.f32.mxu0 0.0
        %976 = vmatmul.mubr.f32.gmra.mrb[0].mxu0 %v904
        %v977 = vpop.f32.mrb[0].mxu0
        %v978 = vadd.f32 0.0, %v977
        %v979 = vpop.f32.mrb[0].mxu0
        %980 = vdwg.mxu0
        %v981 = vld [vmem:[%s5] sm:$0xff]
        %s982 = scalar_lea.vmem %s3, 32
        %v983 = vld [vmem:[%s982] sm:$0xff]
        %v984 = vld [vmem:[%s982 + $0x8] sm:$0xff]
        %v985 = vld [vmem:[%s982 + $0x10] sm:$0xff]
        %v986 = vld [vmem:[%s982 + $0x18] sm:$0xff]
        %s987 = scalar_lea.vmem %s4, 1
        %v988 = vld [vmem:[%s987] sm:$0x1]
        %v990 = vlaneseq
        %v991 = vshrl.u32 %v990, 7
        %v992 = vsub.s32 0, %v991
        %v993 = vrot.slane %v988, %v992
        %995 = vmatprep.subr.mxu0 0.0
        %996 = vmatpush1.msra.mxu0 %v983
        %997 = vmatprep.subr.mxu0 0.0
        %998 = vmatpush1.msra.mxu0 %v984
        %999 = vmatprep.subr.mxu0 0.0
        %1000 = vmatpush1.msra.mxu0 %v985
        %1001 = vmatprep.subr.mxu0 0.0
        %1002 = vmatpush1.msra.mxu0 %v986
        %1003 = vmatprep.subr.mxu0 0.0
        %1004 = vmatpush1.msra.mxu0 0.0
        %1005 = vmatprep.subr.mxu0 0.0
        %1006 = vmatpush1.msra.mxu0 0.0
        %1007 = vmatprep.subr.mxu0 0.0
        %1008 = vmatpush1.msra.mxu0 0.0
        %1009 = vmatprep.subr.mxu0 0.0
        %1010 = vmatpush1.msra.mxu0 0.0
        %1011 = vmatprep.subr.mxu0 0.0
        %1012 = vmatpush1.msra.mxu0 0.0
        %1013 = vmatprep.subr.mxu0 0.0
        %1014 = vmatpush1.msra.mxu0 0.0
        %1015 = vmatprep.subr.mxu0 0.0
        %1016 = vmatpush1.msra.mxu0 0.0
        %1017 = vmatprep.subr.mxu0 0.0
        %1018 = vmatpush1.msra.mxu0 0.0
        %1019 = vmatprep.subr.mxu0 0.0
        %1020 = vmatpush1.msra.mxu0 0.0
        %1021 = vmatprep.subr.mxu0 0.0
        %1022 = vmatpush1.msra.mxu0 0.0
        %1023 = vmatprep.subr.mxu0 0.0
        %1024 = vmatpush1.msra.mxu0 0.0
        %1025 = vmatprep.subr.mxu0 0.0
        %1026 = vmatpush1.msra.mxu0 0.0
        %1027 = vmatprep.subr.mxu0 0.0
        %1028 = vmatpush1.msra.mxu0 0.0
        %1029 = vmatprep.subr.mxu0 0.0
        %1030 = vmatpush1.msra.mxu0 0.0
        %1031 = vmatprep.subr.mxu0 0.0
        %1032 = vmatpush1.msra.mxu0 0.0
        %1033 = vmatprep.subr.mxu0 0.0
        %1034 = vmatpush1.msra.mxu0 0.0
        %1035 = vmatprep.subr.mxu0 0.0
        %1036 = vmatpush1.msra.mxu0 0.0
        %1037 = vmatprep.subr.mxu0 0.0
        %1038 = vmatpush1.msra.mxu0 0.0
        %1039 = vmatprep.subr.mxu0 0.0
        %1040 = vmatpush1.msra.mxu0 0.0
        %1041 = vmatprep.subr.mxu0 0.0
        %1042 = vmatpush1.msra.mxu0 0.0
        %1043 = vmatprep.subr.mxu0 0.0
        %1044 = vmatpush1.msra.mxu0 0.0
        %1045 = vmatprep.subr.mxu0 0.0
        %1046 = vmatpush1.msra.mxu0 0.0
        %1047 = vmatprep.subr.mxu0 0.0
        %1048 = vmatpush1.msra.mxu0 0.0
        %1049 = vmatprep.subr.mxu0 0.0
        %1050 = vmatpush1.msra.mxu0 0.0
        %1051 = vmatprep.subr.mxu0 0.0
        %1052 = vmatpush1.msra.mxu0 0.0
        %1053 = vmatprep.subr.mxu0 0.0
        %1054 = vmatpush1.msra.mxu0 0.0
        %1055 = vmatprep.subr.mxu0 0.0
        %1056 = vmatpush1.msra.mxu0 0.0
        %1057 = vmatprep.subr.mxu0 0.0
        %1058 = vmatpush1.msra.mxu0 0.0
        %1059 = vmatprep.mubr.f32.mxu0 0.0
        %1060 = vmatmul.mubr.f32.gmra.mrb[0].mxu0 %v531
        %v1061 = vpop.f32.mrb[0].mxu0
        %v1062 = vadd.f32 %v993, %v1061
        %v1063 = vpop.f32.mrb[0].mxu0
        %1064 = vmatprep.mubr.f32.mxu0 0.0
        %1065 = vmatmul.mubr.f32.gmra.mrb[0].mxu0 %v534
        %v1066 = vpop.f32.mrb[0].mxu0
        %v1067 = vadd.f32 %v993, %v1066
        %v1068 = vpop.f32.mrb[0].mxu0
        %1069 = vdwg.mxu0
        %s1070 = scalar_lea.vmem %s3, 160
        %v1071 = vld [vmem:[%s1070] sm:$0xff]
        %v1072 = vld [vmem:[%s1070 + $0x8] sm:$0xff]
        %v1073 = vld [vmem:[%s1070 + $0x10] sm:$0xff]
        %v1074 = vld [vmem:[%s1070 + $0x18] sm:$0xff]
        %s1075 = scalar_lea.vmem %s4, 5
        %v1076 = vld [vmem:[%s1075] sm:$0x1]
        %v1078 = vlaneseq
        %v1079 = vshrl.u32 %v1078, 7
        %v1080 = vsub.s32 0, %v1079
        %v1081 = vrot.slane %v1076, %v1080
        %1083 = vmatprep.subr.mxu0 0.0
        %1084 = vmatpush1.msra.mxu0 %v1071
        %1085 = vmatprep.subr.mxu0 0.0
        %1086 = vmatpush1.msra.mxu0 %v1072
        %1087 = vmatprep.subr.mxu0 0.0
        %1088 = vmatpush1.msra.mxu0 %v1073
        %1089 = vmatprep.subr.mxu0 0.0
        %1090 = vmatpush1.msra.mxu0 %v1074
        %1091 = vmatprep.subr.mxu0 0.0
        %1092 = vmatpush1.msra.mxu0 0.0
        %1093 = vmatprep.subr.mxu0 0.0
        %1094 = vmatpush1.msra.mxu0 0.0
        %1095 = vmatprep.subr.mxu0 0.0
        %1096 = vmatpush1.msra.mxu0 0.0
        %1097 = vmatprep.subr.mxu0 0.0
        %1098 = vmatpush1.msra.mxu0 0.0
        %1099 = vmatprep.subr.mxu0 0.0
        %1100 = vmatpush1.msra.mxu0 0.0
        %1101 = vmatprep.subr.mxu0 0.0
        %1102 = vmatpush1.msra.mxu0 0.0
        %1103 = vmatprep.subr.mxu0 0.0
        %1104 = vmatpush1.msra.mxu0 0.0
        %1105 = vmatprep.subr.mxu0 0.0
        %1106 = vmatpush1.msra.mxu0 0.0
        %1107 = vmatprep.subr.mxu0 0.0
        %1108 = vmatpush1.msra.mxu0 0.0
        %1109 = vmatprep.subr.mxu0 0.0
        %1110 = vmatpush1.msra.mxu0 0.0
        %1111 = vmatprep.subr.mxu0 0.0
        %1112 = vmatpush1.msra.mxu0 0.0
        %1113 = vmatprep.subr.mxu0 0.0
        %1114 = vmatpush1.msra.mxu0 0.0
        %1115 = vmatprep.subr.mxu0 0.0
        %1116 = vmatpush1.msra.mxu0 0.0
        %1117 = vmatprep.subr.mxu0 0.0
        %1118 = vmatpush1.msra.mxu0 0.0
        %1119 = vmatprep.subr.mxu0 0.0
        %1120 = vmatpush1.msra.mxu0 0.0
        %1121 = vmatprep.subr.mxu0 0.0
        %1122 = vmatpush1.msra.mxu0 0.0
        %1123 = vmatprep.subr.mxu0 0.0
        %1124 = vmatpush1.msra.mxu0 0.0
        %1125 = vmatprep.subr.mxu0 0.0
        %1126 = vmatpush1.msra.mxu0 0.0
        %1127 = vmatprep.subr.mxu0 0.0
        %1128 = vmatpush1.msra.mxu0 0.0
        %1129 = vmatprep.subr.mxu0 0.0
        %1130 = vmatpush1.msra.mxu0 0.0
        %1131 = vmatprep.subr.mxu0 0.0
        %1132 = vmatpush1.msra.mxu0 0.0
        %1133 = vmatprep.subr.mxu0 0.0
        %1134 = vmatpush1.msra.mxu0 0.0
        %1135 = vmatprep.subr.mxu0 0.0
        %1136 = vmatpush1.msra.mxu0 0.0
        %1137 = vmatprep.subr.mxu0 0.0
        %1138 = vmatpush1.msra.mxu0 0.0
        %1139 = vmatprep.subr.mxu0 0.0
        %1140 = vmatpush1.msra.mxu0 0.0
        %1141 = vmatprep.subr.mxu0 0.0
        %1142 = vmatpush1.msra.mxu0 0.0
        %1143 = vmatprep.subr.mxu0 0.0
        %1144 = vmatpush1.msra.mxu0 0.0
        %1145 = vmatprep.subr.mxu0 0.0
        %1146 = vmatpush1.msra.mxu0 0.0
        %1147 = vmatprep.mubr.f32.mxu0 0.0
        %1148 = vmatmul.mubr.f32.gmra.mrb[0].mxu0 %v531
        %v1149 = vpop.f32.mrb[0].mxu0
        %v1150 = vadd.f32 %v1081, %v1149
        %v1151 = vpop.f32.mrb[0].mxu0
        %1152 = vmatprep.mubr.f32.mxu0 0.0
        %1153 = vmatmul.mubr.f32.gmra.mrb[0].mxu0 %v534
        %v1154 = vpop.f32.mrb[0].mxu0
        %v1155 = vadd.f32 %v1081, %v1154
        %v1156 = vpop.f32.mrb[0].mxu0
        %1157 = vdwg.mxu0
        %s1158 = scalar_lea.vmem %s3, 288
        %v1159 = vld [vmem:[%s1158] sm:$0xff]
        %v1160 = vld [vmem:[%s1158 + $0x8] sm:$0xff]
        %v1161 = vld [vmem:[%s1158 + $0x10] sm:$0xff]
        %v1162 = vld [vmem:[%s1158 + $0x18] sm:$0xff]
        %s1163 = scalar_lea.vmem %s4, 9
        %v1164 = vld [vmem:[%s1163] sm:$0x1]
        %v1166 = vlaneseq
        %v1167 = vshrl.u32 %v1166, 7
        %v1168 = vsub.s32 0, %v1167
        %v1169 = vrot.slane %v1164, %v1168
        %1171 = vmatprep.subr.mxu0 0.0
        %1172 = vmatpush1.msra.mxu0 %v1159
        %1173 = vmatprep.subr.mxu0 0.0
        %1174 = vmatpush1.msra.mxu0 %v1160
        %1175 = vmatprep.subr.mxu0 0.0
        %1176 = vmatpush1.msra.mxu0 %v1161
        %1177 = vmatprep.subr.mxu0 0.0
        %1178 = vmatpush1.msra.mxu0 %v1162
        %1179 = vmatprep.subr.mxu0 0.0
        %1180 = vmatpush1.msra.mxu0 0.0
        %1181 = vmatprep.subr.mxu0 0.0
        %1182 = vmatpush1.msra.mxu0 0.0
        %1183 = vmatprep.subr.mxu0 0.0
        %1184 = vmatpush1.msra.mxu0 0.0
        %1185 = vmatprep.subr.mxu0 0.0
        %1186 = vmatpush1.msra.mxu0 0.0
        %1187 = vmatprep.subr.mxu0 0.0
        %1188 = vmatpush1.msra.mxu0 0.0
        %1189 = vmatprep.subr.mxu0 0.0
        %1190 = vmatpush1.msra.mxu0 0.0
        %1191 = vmatprep.subr.mxu0 0.0
        %1192 = vmatpush1.msra.mxu0 0.0
        %1193 = vmatprep.subr.mxu0 0.0
        %1194 = vmatpush1.msra.mxu0 0.0
        %1195 = vmatprep.subr.mxu0 0.0
        %1196 = vmatpush1.msra.mxu0 0.0
        %1197 = vmatprep.subr.mxu0 0.0
        %1198 = vmatpush1.msra.mxu0 0.0
        %1199 = vmatprep.subr.mxu0 0.0
        %1200 = vmatpush1.msra.mxu0 0.0
        %1201 = vmatprep.subr.mxu0 0.0
        %1202 = vmatpush1.msra.mxu0 0.0
        %1203 = vmatprep.subr.mxu0 0.0
        %1204 = vmatpush1.msra.mxu0 0.0
        %1205 = vmatprep.subr.mxu0 0.0
        %1206 = vmatpush1.msra.mxu0 0.0
        %1207 = vmatprep.subr.mxu0 0.0
        %1208 = vmatpush1.msra.mxu0 0.0
        %1209 = vmatprep.subr.mxu0 0.0
        %1210 = vmatpush1.msra.mxu0 0.0
        %1211 = vmatprep.subr.mxu0 0.0
        %1212 = vmatpush1.msra.mxu0 0.0
        %1213 = vmatprep.subr.mxu0 0.0
        %1214 = vmatpush1.msra.mxu0 0.0
        %1215 = vmatprep.subr.mxu0 0.0
        %1216 = vmatpush1.msra.mxu0 0.0
        %1217 = vmatprep.subr.mxu0 0.0
        %1218 = vmatpush1.msra.mxu0 0.0
        %1219 = vmatprep.subr.mxu0 0.0
        %1220 = vmatpush1.msra.mxu0 0.0
        %1221 = vmatprep.subr.mxu0 0.0
        %1222 = vmatpush1.msra.mxu0 0.0
        %1223 = vmatprep.subr.mxu0 0.0
        %1224 = vmatpush1.msra.mxu0 0.0
        %1225 = vmatprep.subr.mxu0 0.0
        %1226 = vmatpush1.msra.mxu0 0.0
        %1227 = vmatprep.subr.mxu0 0.0
        %1228 = vmatpush1.msra.mxu0 0.0
        %1229 = vmatprep.subr.mxu0 0.0
        %1230 = vmatpush1.msra.mxu0 0.0
        %1231 = vmatprep.subr.mxu0 0.0
        %1232 = vmatpush1.msra.mxu0 0.0
        %1233 = vmatprep.subr.mxu0 0.0
        %1234 = vmatpush1.msra.mxu0 0.0
        %1235 = vmatprep.mubr.f32.mxu0 0.0
        %1236 = vmatmul.mubr.f32.gmra.mrb[0].mxu0 %v531
        %v1237 = vpop.f32.mrb[0].mxu0
        %v1238 = vadd.f32 %v1169, %v1237
        %v1239 = vpop.f32.mrb[0].mxu0
        %1240 = vmatprep.mubr.f32.mxu0 0.0
        %1241 = vmatmul.mubr.f32.gmra.mrb[0].mxu0 %v534
        %v1242 = vpop.f32.mrb[0].mxu0
        %v1243 = vadd.f32 %v1169, %v1242
        %v1244 = vpop.f32.mrb[0].mxu0
        %1245 = vdwg.mxu0
        %v1247 = vsel %vm787, %v1062, 0
        %v1250 = vsel %vm787, %v1067, 0
        %v1253 = vsel %vm787, %v1150, 0
        %v1256 = vsel %vm787, %v1155, 0
        %1258 = vmatprep.subr.mxu0 0.0
        %1259 = vmatpush1.xpose.msra.mxu0 %v1253
        %1260 = vmatprep.subr.mxu0 0.0
        %1261 = vmatpush1.xpose.msra.mxu0 %v1256
        %1262 = vmatprep.subr.mxu0 0.0
        %1263 = vmatpush1.xpose.msra.mxu0 0.0
        %1264 = vmatprep.subr.mxu0 0.0
        %1265 = vmatpush1.xpose.msra.mxu0 0.0
        %1266 = vmatprep.subr.mxu0 0.0
        %1267 = vmatpush1.xpose.msra.mxu0 0.0
        %1268 = vmatprep.subr.mxu0 0.0
        %1269 = vmatpush1.xpose.msra.mxu0 0.0
        %1270 = vmatprep.subr.mxu0 0.0
        %1271 = vmatpush1.xpose.msra.mxu0 0.0
        %1272 = vmatprep.subr.mxu0 0.0
        %1273 = vmatpush1.xpose.msra.mxu0 0.0
        %1274 = vmatprep.subr.mxu0 0.0
        %1275 = vmatpush1.xpose.msra.mxu0 0.0
        %1276 = vmatprep.subr.mxu0 0.0
        %1277 = vmatpush1.xpose.msra.mxu0 0.0
        %1278 = vmatprep.subr.mxu0 0.0
        %1279 = vmatpush1.xpose.msra.mxu0 0.0
        %1280 = vmatprep.subr.mxu0 0.0
        %1281 = vmatpush1.xpose.msra.mxu0 0.0
        %1282 = vmatprep.subr.mxu0 0.0
        %1283 = vmatpush1.xpose.msra.mxu0 0.0
        %1284 = vmatprep.subr.mxu0 0.0
        %1285 = vmatpush1.xpose.msra.mxu0 0.0
        %1286 = vmatprep.subr.mxu0 0.0
        %1287 = vmatpush1.xpose.msra.mxu0 0.0
        %1288 = vmatprep.subr.mxu0 0.0
        %1289 = vmatpush1.xpose.msra.mxu0 0.0
        %1290 = vmatprep.subr.mxu0 0.0
        %1291 = vmatpush1.xpose.msra.mxu0 0.0
        %1292 = vmatprep.subr.mxu0 0.0
        %1293 = vmatpush1.xpose.msra.mxu0 0.0
        %1294 = vmatprep.subr.mxu0 0.0
        %1295 = vmatpush1.xpose.msra.mxu0 0.0
        %1296 = vmatprep.subr.mxu0 0.0
        %1297 = vmatpush1.xpose.msra.mxu0 0.0
        %1298 = vmatprep.subr.mxu0 0.0
        %1299 = vmatpush1.xpose.msra.mxu0 0.0
        %1300 = vmatprep.subr.mxu0 0.0
        %1301 = vmatpush1.xpose.msra.mxu0 0.0
        %1302 = vmatprep.subr.mxu0 0.0
        %1303 = vmatpush1.xpose.msra.mxu0 0.0
        %1304 = vmatprep.subr.mxu0 0.0
        %1305 = vmatpush1.xpose.msra.mxu0 0.0
        %1306 = vmatprep.subr.mxu0 0.0
        %1307 = vmatpush1.xpose.msra.mxu0 0.0
        %1308 = vmatprep.subr.mxu0 0.0
        %1309 = vmatpush1.xpose.msra.mxu0 0.0
        %1310 = vmatprep.subr.mxu0 0.0
        %1311 = vmatpush1.xpose.msra.mxu0 0.0
        %1312 = vmatprep.subr.mxu0 0.0
        %1313 = vmatpush1.xpose.msra.mxu0 0.0
        %1314 = vmatprep.subr.mxu0 0.0
        %1315 = vmatpush1.xpose.msra.mxu0 0.0
        %1316 = vmatprep.subr.mxu0 0.0
        %1317 = vmatpush1.xpose.msra.mxu0 0.0
        %1318 = vmatprep.subr.mxu0 0.0
        %1319 = vmatpush1.xpose.msra.mxu0 0.0
        %1320 = vmatprep.subr.mxu0 0.0
        %1321 = vmatpush1.xpose.msra.mxu0 0.0
        %1322 = vmatprep.mubr.f32.mxu0 0.0
        %1323 = vmatmul.mubr.f32.gmra.mrb[0].mxu0 %v1247
        %v1324 = vpop.f32.mrb[0].mxu0
        %v1325 = vadd.f32 0.0, %v1324
        %v1326 = vpop.f32.mrb[0].mxu0
        %1327 = vmatprep.mubr.f32.mxu0 0.0
        %1328 = vmatmul.mubr.f32.gmra.mrb[0].mxu0 %v1250
        %v1329 = vpop.f32.mrb[0].mxu0
        %v1330 = vadd.f32 0.0, %v1329
        %v1331 = vpop.f32.mrb[0].mxu0
        %1332 = vdwg.mxu0
        %v1333 = vmul.f32 %v1325, 0.35355338
        %v1334 = vmul.f32 %v1330, 0.35355338
        %v1335 = vsel %vm877, %v1333, -inf
        %1336 = vmax.xlane.f32.xlu0 %v1335
        %v1337 = vpop.xlane.xlu0 %1336
        %v1338 = vsel %vm877, %v1334, -inf
        %1339 = vmax.xlane.f32.xlu0 %v1338
        %v1340 = vpop.xlane.xlu0 %1339
        %v1341 = vsub.f32 %v1333, %v1337
        %v1342 = vsub.f32 %v1334, %v1340
        %v1343 = vmul.f32 %v1341, 1.442695
        %v1344 = vpow.pop %v1343
        %v1345 = vmul.f32 %v1342, 1.442695
        %v1346 = vpow.pop %v1345
        %v1347 = vsel %vm877, %v1344, 0.0
        %1348 = vadd.xlane.f32.xlu0 %v1347
        %v1349 = vpop.xlane.xlu0 %1348
        %v1350 = vsel %vm877, %v1346, 0.0
        %1351 = vadd.xlane.f32.xlu0 %v1350
        %v1352 = vpop.xlane.xlu0 %1351
        %v1353 = vrcp.pop %v1349
        %v1354 = vrcp.pop %v1352
        %v1355 = vmul.f32 %v1344, %v1353
        %v1356 = vmul.f32 %v1346, %v1354
        %v1358 = vsel %vm877, %v1355, 0
        %v1361 = vsel %vm877, %v1356, 0
        %1363 = vmatprep.subr.mxu0 0.0
        %1364 = vmatpush1.msra.mxu0 %v1238
        %1365 = vmatprep.subr.mxu0 0.0
        %1366 = vmatpush1.msra.mxu0 %v1243
        %1367 = vmatprep.subr.mxu0 0.0
        %1368 = vmatpush1.msra.mxu0 0.0
        %1369 = vmatprep.subr.mxu0 0.0
        %1370 = vmatpush1.msra.mxu0 0.0
        %1371 = vmatprep.subr.mxu0 0.0
        %1372 = vmatpush1.msra.mxu0 0.0
        %1373 = vmatprep.subr.mxu0 0.0
        %1374 = vmatpush1.msra.mxu0 0.0
        %1375 = vmatprep.subr.mxu0 0.0
        %1376 = vmatpush1.msra.mxu0 0.0
        %1377 = vmatprep.subr.mxu0 0.0
        %1378 = vmatpush1.msra.mxu0 0.0
        %1379 = vmatprep.subr.mxu0 0.0
        %1380 = vmatpush1.msra.mxu0 0.0
        %1381 = vmatprep.subr.mxu0 0.0
        %1382 = vmatpush1.msra.mxu0 0.0
        %1383 = vmatprep.subr.mxu0 0.0
        %1384 = vmatpush1.msra.mxu0 0.0
        %1385 = vmatprep.subr.mxu0 0.0
        %1386 = vmatpush1.msra.mxu0 0.0
        %1387 = vmatprep.subr.mxu0 0.0
        %1388 = vmatpush1.msra.mxu0 0.0
        %1389 = vmatprep.subr.mxu0 0.0
        %1390 = vmatpush1.msra.mxu0 0.0
        %1391 = vmatprep.subr.mxu0 0.0
        %1392 = vmatpush1.msra.mxu0 0.0
        %1393 = vmatprep.subr.mxu0 0.0
        %1394 = vmatpush1.msra.mxu0 0.0
        %1395 = vmatprep.subr.mxu0 0.0
        %1396 = vmatpush1.msra.mxu0 0.0
        %1397 = vmatprep.subr.mxu0 0.0
        %1398 = vmatpush1.msra.mxu0 0.0
        %1399 = vmatprep.subr.mxu0 0.0
        %1400 = vmatpush1.msra.mxu0 0.0
        %1401 = vmatprep.subr.mxu0 0.0
        %1402 = vmatpush1.msra.mxu0 0.0
        %1403 = vmatprep.subr.mxu0 0.0
        %1404 = vmatpush1.msra.mxu0 0.0
        %1405 = vmatprep.subr.mxu0 0.0
        %1406 = vmatpush1.msra.mxu0 0.0
        %1407 = vmatprep.subr.mxu0 0.0
        %1408 = vmatpush1.msra.mxu0 0.0
        %1409 = vmatprep.subr.mxu0 0.0
        %1410 = vmatpush1.msra.mxu0 0.0
        %1411 = vmatprep.subr.mxu0 0.0
        %1412 = vmatpush1.msra.mxu0 0.0
        %1413 = vmatprep.subr.mxu0 0.0
        %1414 = vmatpush1.msra.mxu0 0.0
        %1415 = vmatprep.subr.mxu0 0.0
        %1416 = vmatpush1.msra.mxu0 0.0
        %1417 = vmatprep.subr.mxu0 0.0
        %1418 = vmatpush1.msra.mxu0 0.0
        %1419 = vmatprep.subr.mxu0 0.0
        %1420 = vmatpush1.msra.mxu0 0.0
        %1421 = vmatprep.subr.mxu0 0.0
        %1422 = vmatpush1.msra.mxu0 0.0
        %1423 = vmatprep.subr.mxu0 0.0
        %1424 = vmatpush1.msra.mxu0 0.0
        %1425 = vmatprep.subr.mxu0 0.0
        %1426 = vmatpush1.msra.mxu0 0.0
        %1427 = vmatprep.mubr.f32.mxu0 0.0
        %1428 = vmatmul.mubr.f32.gmra.mrb[0].mxu0 %v1358
        %v1429 = vpop.f32.mrb[0].mxu0
        %v1430 = vadd.f32 0.0, %v1429
        %v1431 = vpop.f32.mrb[0].mxu0
        %1432 = vmatprep.mubr.f32.mxu0 0.0
        %1433 = vmatmul.mubr.f32.gmra.mrb[0].mxu0 %v1361
        %v1434 = vpop.f32.mrb[0].mxu0
        %v1435 = vadd.f32 0.0, %v1434
        %v1436 = vpop.f32.mrb[0].mxu0
        %1437 = vdwg.mxu0
        %s1438 = scalar_lea.vmem %s5, 8
        %v1439 = vld [vmem:[%s1438] sm:$0xff]
        %v1441 = vsel %vm787, %v1430, 0
        %v1444 = vsel %vm787, %v1435, 0
        %1446 = vmatprep.subr.mxu0 0.0
        %1447 = vmatpush1.msra.mxu0 %v1439
        %1448 = vmatprep.subr.mxu0 0.0
        %1449 = vmatpush1.msra.mxu0 0.0
        %1450 = vmatprep.subr.mxu0 0.0
        %1451 = vmatpush1.msra.mxu0 0.0
        %1452 = vmatprep.subr.mxu0 0.0
        %1453 = vmatpush1.msra.mxu0 0.0
        %1454 = vmatprep.subr.mxu0 0.0
        %1455 = vmatpush1.msra.mxu0 0.0
        %1456 = vmatprep.subr.mxu0 0.0
        %1457 = vmatpush1.msra.mxu0 0.0
        %1458 = vmatprep.subr.mxu0 0.0
        %1459 = vmatpush1.msra.mxu0 0.0
        %1460 = vmatprep.subr.mxu0 0.0
        %1461 = vmatpush1.msra.mxu0 0.0
        %1462 = vmatprep.subr.mxu0 0.0
        %1463 = vmatpush1.msra.mxu0 0.0
        %1464 = vmatprep.subr.mxu0 0.0
        %1465 = vmatpush1.msra.mxu0 0.0
        %1466 = vmatprep.subr.mxu0 0.0
        %1467 = vmatpush1.msra.mxu0 0.0
        %1468 = vmatprep.subr.mxu0 0.0
        %1469 = vmatpush1.msra.mxu0 0.0
        %1470 = vmatprep.subr.mxu0 0.0
        %1471 = vmatpush1.msra.mxu0 0.0
        %1472 = vmatprep.subr.mxu0 0.0
        %1473 = vmatpush1.msra.mxu0 0.0
        %1474 = vmatprep.subr.mxu0 0.0
        %1475 = vmatpush1.msra.mxu0 0.0
        %1476 = vmatprep.subr.mxu0 0.0
        %1477 = vmatpush1.msra.mxu0 0.0
        %1478 = vmatprep.subr.mxu0 0.0
        %1479 = vmatpush1.msra.mxu0 0.0
        %1480 = vmatprep.subr.mxu0 0.0
        %1481 = vmatpush1.msra.mxu0 0.0
        %1482 = vmatprep.subr.mxu0 0.0
        %1483 = vmatpush1.msra.mxu0 0.0
        %1484 = vmatprep.subr.mxu0 0.0
        %1485 = vmatpush1.msra.mxu0 0.0
        %1486 = vmatprep.subr.mxu0 0.0
        %1487 = vmatpush1.msra.mxu0 0.0
        %1488 = vmatprep.subr.mxu0 0.0
        %1489 = vmatpush1.msra.mxu0 0.0
        %1490 = vmatprep.subr.mxu0 0.0
        %1491 = vmatpush1.msra.mxu0 0.0
        %1492 = vmatprep.subr.mxu0 0.0
        %1493 = vmatpush1.msra.mxu0 0.0
        %1494 = vmatprep.subr.mxu0 0.0
        %1495 = vmatpush1.msra.mxu0 0.0
        %1496 = vmatprep.subr.mxu0 0.0
        %1497 = vmatpush1.msra.mxu0 0.0
        %1498 = vmatprep.subr.mxu0 0.0
        %1499 = vmatpush1.msra.mxu0 0.0
        %1500 = vmatprep.subr.mxu0 0.0
        %1501 = vmatpush1.msra.mxu0 0.0
        %1502 = vmatprep.subr.mxu0 0.0
        %1503 = vmatpush1.msra.mxu0 0.0
        %1504 = vmatprep.subr.mxu0 0.0
        %1505 = vmatpush1.msra.mxu0 0.0
        %1506 = vmatprep.subr.mxu0 0.0
        %1507 = vmatpush1.msra.mxu0 0.0
        %1508 = vmatprep.subr.mxu0 0.0
        %1509 = vmatpush1.msra.mxu0 0.0
        %1510 = vmatprep.mubr.f32.mxu0 0.0
        %1511 = vmatmul.mubr.f32.gmra.mrb[0].mxu0 %v1441
        %v1512 = vpop.f32.mrb[0].mxu0
        %v1513 = vadd.f32 0.0, %v1512
        %v1514 = vpop.f32.mrb[0].mxu0
        %1515 = vmatprep.mubr.f32.mxu0 0.0
        %1516 = vmatmul.mubr.f32.gmra.mrb[0].mxu0 %v1444
        %v1517 = vpop.f32.mrb[0].mxu0
        %v1518 = vadd.f32 0.0, %v1517
        %v1519 = vpop.f32.mrb[0].mxu0
        %1520 = vdwg.mxu0
        %v1522 = vsel %vm787, %v973, 0
        %v1525 = vsel %vm787, %v978, 0
        %1527 = vmatprep.subr.mxu0 0.0
        %1528 = vmatpush1.msra.mxu0 %v981
        %1529 = vmatprep.subr.mxu0 0.0
        %1530 = vmatpush1.msra.mxu0 0.0
        %1531 = vmatprep.subr.mxu0 0.0
        %1532 = vmatpush1.msra.mxu0 0.0
        %1533 = vmatprep.subr.mxu0 0.0
        %1534 = vmatpush1.msra.mxu0 0.0
        %1535 = vmatprep.subr.mxu0 0.0
        %1536 = vmatpush1.msra.mxu0 0.0
        %1537 = vmatprep.subr.mxu0 0.0
        %1538 = vmatpush1.msra.mxu0 0.0
        %1539 = vmatprep.subr.mxu0 0.0
        %1540 = vmatpush1.msra.mxu0 0.0
        %1541 = vmatprep.subr.mxu0 0.0
        %1542 = vmatpush1.msra.mxu0 0.0
        %1543 = vmatprep.subr.mxu0 0.0
        %1544 = vmatpush1.msra.mxu0 0.0
        %1545 = vmatprep.subr.mxu0 0.0
        %1546 = vmatpush1.msra.mxu0 0.0
        %1547 = vmatprep.subr.mxu0 0.0
        %1548 = vmatpush1.msra.mxu0 0.0
        %1549 = vmatprep.subr.mxu0 0.0
        %1550 = vmatpush1.msra.mxu0 0.0
        %1551 = vmatprep.subr.mxu0 0.0
        %1552 = vmatpush1.msra.mxu0 0.0
        %1553 = vmatprep.subr.mxu0 0.0
        %1554 = vmatpush1.msra.mxu0 0.0
        %1555 = vmatprep.subr.mxu0 0.0
        %1556 = vmatpush1.msra.mxu0 0.0
        %1557 = vmatprep.subr.mxu0 0.0
        %1558 = vmatpush1.msra.mxu0 0.0
        %1559 = vmatprep.subr.mxu0 0.0
        %1560 = vmatpush1.msra.mxu0 0.0
        %1561 = vmatprep.subr.mxu0 0.0
        %1562 = vmatpush1.msra.mxu0 0.0
        %1563 = vmatprep.subr.mxu0 0.0
        %1564 = vmatpush1.msra.mxu0 0.0
        %1565 = vmatprep.subr.mxu0 0.0
        %1566 = vmatpush1.msra.mxu0 0.0
        %1567 = vmatprep.subr.mxu0 0.0
        %1568 = vmatpush1.msra.mxu0 0.0
        %1569 = vmatprep.subr.mxu0 0.0
        %1570 = vmatpush1.msra.mxu0 0.0
        %1571 = vmatprep.subr.mxu0 0.0
        %1572 = vmatpush1.msra.mxu0 0.0
        %1573 = vmatprep.subr.mxu0 0.0
        %1574 = vmatpush1.msra.mxu0 0.0
        %1575 = vmatprep.subr.mxu0 0.0
        %1576 = vmatpush1.msra.mxu0 0.0
        %1577 = vmatprep.subr.mxu0 0.0
        %1578 = vmatpush1.msra.mxu0 0.0
        %1579 = vmatprep.subr.mxu0 0.0
        %1580 = vmatpush1.msra.mxu0 0.0
        %1581 = vmatprep.subr.mxu0 0.0
        %1582 = vmatpush1.msra.mxu0 0.0
        %1583 = vmatprep.subr.mxu0 0.0
        %1584 = vmatpush1.msra.mxu0 0.0
        %1585 = vmatprep.subr.mxu0 0.0
        %1586 = vmatpush1.msra.mxu0 0.0
        %1587 = vmatprep.subr.mxu0 0.0
        %1588 = vmatpush1.msra.mxu0 0.0
        %1589 = vmatprep.subr.mxu0 0.0
        %1590 = vmatpush1.msra.mxu0 0.0
        %1591 = vmatprep.mubr.f32.mxu0 0.0
        %1592 = vmatmul.mubr.f32.gmra.mrb[0].mxu0 %v1522
        %v1593 = vpop.f32.mrb[0].mxu0
        %v1594 = vadd.f32 %v1513, %v1593
        %v1595 = vpop.f32.mrb[0].mxu0
        %1596 = vmatprep.mubr.f32.mxu0 0.0
        %1597 = vmatmul.mubr.f32.gmra.mrb[0].mxu0 %v1525
        %v1598 = vpop.f32.mrb[0].mxu0
        %v1599 = vadd.f32 %v1518, %v1598
        %v1600 = vpop.f32.mrb[0].mxu0
        %1601 = vdwg.mxu0
        %s1602 = scalar_lea.vmem %s3, 64
        %v1603 = vld [vmem:[%s1602] sm:$0xff]
        %v1604 = vld [vmem:[%s1602 + $0x8] sm:$0xff]
        %v1605 = vld [vmem:[%s1602 + $0x10] sm:$0xff]
        %v1606 = vld [vmem:[%s1602 + $0x18] sm:$0xff]
        %s1607 = scalar_lea.vmem %s4, 2
        %v1608 = vld [vmem:[%s1607] sm:$0x1]
        %v1610 = vlaneseq
        %v1611 = vshrl.u32 %v1610, 7
        %v1612 = vsub.s32 0, %v1611
        %v1613 = vrot.slane %v1608, %v1612
        %1615 = vmatprep.subr.mxu0 0.0
        %1616 = vmatpush1.msra.mxu0 %v1603
        %1617 = vmatprep.subr.mxu0 0.0
        %1618 = vmatpush1.msra.mxu0 %v1604
        %1619 = vmatprep.subr.mxu0 0.0
        %1620 = vmatpush1.msra.mxu0 %v1605
        %1621 = vmatprep.subr.mxu0 0.0
        %1622 = vmatpush1.msra.mxu0 %v1606
        %1623 = vmatprep.subr.mxu0 0.0
        %1624 = vmatpush1.msra.mxu0 0.0
        %1625 = vmatprep.subr.mxu0 0.0
        %1626 = vmatpush1.msra.mxu0 0.0
        %1627 = vmatprep.subr.mxu0 0.0
        %1628 = vmatpush1.msra.mxu0 0.0
        %1629 = vmatprep.subr.mxu0 0.0
        %1630 = vmatpush1.msra.mxu0 0.0
        %1631 = vmatprep.subr.mxu0 0.0
        %1632 = vmatpush1.msra.mxu0 0.0
        %1633 = vmatprep.subr.mxu0 0.0
        %1634 = vmatpush1.msra.mxu0 0.0
        %1635 = vmatprep.subr.mxu0 0.0
        %1636 = vmatpush1.msra.mxu0 0.0
        %1637 = vmatprep.subr.mxu0 0.0
        %1638 = vmatpush1.msra.mxu0 0.0
        %1639 = vmatprep.subr.mxu0 0.0
        %1640 = vmatpush1.msra.mxu0 0.0
        %1641 = vmatprep.subr.mxu0 0.0
        %1642 = vmatpush1.msra.mxu0 0.0
        %1643 = vmatprep.subr.mxu0 0.0
        %1644 = vmatpush1.msra.mxu0 0.0
        %1645 = vmatprep.subr.mxu0 0.0
        %1646 = vmatpush1.msra.mxu0 0.0
        %1647 = vmatprep.subr.mxu0 0.0
        %1648 = vmatpush1.msra.mxu0 0.0
        %1649 = vmatprep.subr.mxu0 0.0
        %1650 = vmatpush1.msra.mxu0 0.0
        %1651 = vmatprep.subr.mxu0 0.0
        %1652 = vmatpush1.msra.mxu0 0.0
        %1653 = vmatprep.subr.mxu0 0.0
        %1654 = vmatpush1.msra.mxu0 0.0
        %1655 = vmatprep.subr.mxu0 0.0
        %1656 = vmatpush1.msra.mxu0 0.0
        %1657 = vmatprep.subr.mxu0 0.0
        %1658 = vmatpush1.msra.mxu0 0.0
        %1659 = vmatprep.subr.mxu0 0.0
        %1660 = vmatpush1.msra.mxu0 0.0
        %1661 = vmatprep.subr.mxu0 0.0
        %1662 = vmatpush1.msra.mxu0 0.0
        %1663 = vmatprep.subr.mxu0 0.0
        %1664 = vmatpush1.msra.mxu0 0.0
        %1665 = vmatprep.subr.mxu0 0.0
        %1666 = vmatpush1.msra.mxu0 0.0
        %1667 = vmatprep.subr.mxu0 0.0
        %1668 = vmatpush1.msra.mxu0 0.0
        %1669 = vmatprep.subr.mxu0 0.0
        %1670 = vmatpush1.msra.mxu0 0.0
        %1671 = vmatprep.subr.mxu0 0.0
        %1672 = vmatpush1.msra.mxu0 0.0
        %1673 = vmatprep.subr.mxu0 0.0
        %1674 = vmatpush1.msra.mxu0 0.0
        %1675 = vmatprep.subr.mxu0 0.0
        %1676 = vmatpush1.msra.mxu0 0.0
        %1677 = vmatprep.subr.mxu0 0.0
        %1678 = vmatpush1.msra.mxu0 0.0
        %1679 = vmatprep.mubr.f32.mxu0 0.0
        %1680 = vmatmul.mubr.f32.gmra.mrb[0].mxu0 %v531
        %v1681 = vpop.f32.mrb[0].mxu0
        %v1682 = vadd.f32 %v1613, %v1681
        %v1683 = vpop.f32.mrb[0].mxu0
        %1684 = vmatprep.mubr.f32.mxu0 0.0
        %1685 = vmatmul.mubr.f32.gmra.mrb[0].mxu0 %v534
        %v1686 = vpop.f32.mrb[0].mxu0
        %v1687 = vadd.f32 %v1613, %v1686
        %v1688 = vpop.f32.mrb[0].mxu0
        %1689 = vdwg.mxu0
        %s1690 = scalar_lea.vmem %s3, 192
        %v1691 = vld [vmem:[%s1690] sm:$0xff]
        %v1692 = vld [vmem:[%s1690 + $0x8] sm:$0xff]
        %v1693 = vld [vmem:[%s1690 + $0x10] sm:$0xff]
        %v1694 = vld [vmem:[%s1690 + $0x18] sm:$0xff]
        %s1695 = scalar_lea.vmem %s4, 6
        %v1696 = vld [vmem:[%s1695] sm:$0x1]
        %v1698 = vlaneseq
        %v1699 = vshrl.u32 %v1698, 7
        %v1700 = vsub.s32 0, %v1699
        %v1701 = vrot.slane %v1696, %v1700
        %1703 = vmatprep.subr.mxu0 0.0
        %1704 = vmatpush1.msra.mxu0 %v1691
        %1705 = vmatprep.subr.mxu0 0.0
        %1706 = vmatpush1.msra.mxu0 %v1692
        %1707 = vmatprep.subr.mxu0 0.0
        %1708 = vmatpush1.msra.mxu0 %v1693
        %1709 = vmatprep.subr.mxu0 0.0
        %1710 = vmatpush1.msra.mxu0 %v1694
        %1711 = vmatprep.subr.mxu0 0.0
        %1712 = vmatpush1.msra.mxu0 0.0
        %1713 = vmatprep.subr.mxu0 0.0
        %1714 = vmatpush1.msra.mxu0 0.0
        %1715 = vmatprep.subr.mxu0 0.0
        %1716 = vmatpush1.msra.mxu0 0.0
        %1717 = vmatprep.subr.mxu0 0.0
        %1718 = vmatpush1.msra.mxu0 0.0
        %1719 = vmatprep.subr.mxu0 0.0
        %1720 = vmatpush1.msra.mxu0 0.0
        %1721 = vmatprep.subr.mxu0 0.0
        %1722 = vmatpush1.msra.mxu0 0.0
        %1723 = vmatprep.subr.mxu0 0.0
        %1724 = vmatpush1.msra.mxu0 0.0
        %1725 = vmatprep.subr.mxu0 0.0
        %1726 = vmatpush1.msra.mxu0 0.0
        %1727 = vmatprep.subr.mxu0 0.0
        %1728 = vmatpush1.msra.mxu0 0.0
        %1729 = vmatprep.subr.mxu0 0.0
        %1730 = vmatpush1.msra.mxu0 0.0
        %1731 = vmatprep.subr.mxu0 0.0
        %1732 = vmatpush1.msra.mxu0 0.0
        %1733 = vmatprep.subr.mxu0 0.0
        %1734 = vmatpush1.msra.mxu0 0.0
        %1735 = vmatprep.subr.mxu0 0.0
        %1736 = vmatpush1.msra.mxu0 0.0
        %1737 = vmatprep.subr.mxu0 0.0
        %1738 = vmatpush1.msra.mxu0 0.0
        %1739 = vmatprep.subr.mxu0 0.0
        %1740 = vmatpush1.msra.mxu0 0.0
        %1741 = vmatprep.subr.mxu0 0.0
        %1742 = vmatpush1.msra.mxu0 0.0
        %1743 = vmatprep.subr.mxu0 0.0
        %1744 = vmatpush1.msra.mxu0 0.0
        %1745 = vmatprep.subr.mxu0 0.0
        %1746 = vmatpush1.msra.mxu0 0.0
        %1747 = vmatprep.subr.mxu0 0.0
        %1748 = vmatpush1.msra.mxu0 0.0
        %1749 = vmatprep.subr.mxu0 0.0
        %1750 = vmatpush1.msra.mxu0 0.0
        %1751 = vmatprep.subr.mxu0 0.0
        %1752 = vmatpush1.msra.mxu0 0.0
        %1753 = vmatprep.subr.mxu0 0.0
        %1754 = vmatpush1.msra.mxu0 0.0
        %1755 = vmatprep.subr.mxu0 0.0
        %1756 = vmatpush1.msra.mxu0 0.0
        %1757 = vmatprep.subr.mxu0 0.0
        %1758 = vmatpush1.msra.mxu0 0.0
        %1759 = vmatprep.subr.mxu0 0.0
        %1760 = vmatpush1.msra.mxu0 0.0
        %1761 = vmatprep.subr.mxu0 0.0
        %1762 = vmatpush1.msra.mxu0 0.0
        %1763 = vmatprep.subr.mxu0 0.0
        %1764 = vmatpush1.msra.mxu0 0.0
        %1765 = vmatprep.subr.mxu0 0.0
        %1766 = vmatpush1.msra.mxu0 0.0
        %1767 = vmatprep.mubr.f32.mxu0 0.0
        %1768 = vmatmul.mubr.f32.gmra.mrb[0].mxu0 %v531
        %v1769 = vpop.f32.mrb[0].mxu0
        %v1770 = vadd.f32 %v1701, %v1769
        %v1771 = vpop.f32.mrb[0].mxu0
        %1772 = vmatprep.mubr.f32.mxu0 0.0
        %1773 = vmatmul.mubr.f32.gmra.mrb[0].mxu0 %v534
        %v1774 = vpop.f32.mrb[0].mxu0
        %v1775 = vadd.f32 %v1701, %v1774
        %v1776 = vpop.f32.mrb[0].mxu0
        %1777 = vdwg.mxu0
        %s1778 = scalar_lea.vmem %s3, 320
        %v1779 = vld [vmem:[%s1778] sm:$0xff]
        %v1780 = vld [vmem:[%s1778 + $0x8] sm:$0xff]
        %v1781 = vld [vmem:[%s1778 + $0x10] sm:$0xff]
        %v1782 = vld [vmem:[%s1778 + $0x18] sm:$0xff]
        %s1783 = scalar_lea.vmem %s4, 10
        %v1784 = vld [vmem:[%s1783] sm:$0x1]
        %v1786 = vlaneseq
        %v1787 = vshrl.u32 %v1786, 7
        %v1788 = vsub.s32 0, %v1787
        %v1789 = vrot.slane %v1784, %v1788
        %1791 = vmatprep.subr.mxu0 0.0
        %1792 = vmatpush1.msra.mxu0 %v1779
        %1793 = vmatprep.subr.mxu0 0.0
        %1794 = vmatpush1.msra.mxu0 %v1780
        %1795 = vmatprep.subr.mxu0 0.0
        %1796 = vmatpush1.msra.mxu0 %v1781
        %1797 = vmatprep.subr.mxu0 0.0
        %1798 = vmatpush1.msra.mxu0 %v1782
        %1799 = vmatprep.subr.mxu0 0.0
        %1800 = vmatpush1.msra.mxu0 0.0
        %1801 = vmatprep.subr.mxu0 0.0
        %1802 = vmatpush1.msra.mxu0 0.0
        %1803 = vmatprep.subr.mxu0 0.0
        %1804 = vmatpush1.msra.mxu0 0.0
        %1805 = vmatprep.subr.mxu0 0.0
        %1806 = vmatpush1.msra.mxu0 0.0
        %1807 = vmatprep.subr.mxu0 0.0
        %1808 = vmatpush1.msra.mxu0 0.0
        %1809 = vmatprep.subr.mxu0 0.0
        %1810 = vmatpush1.msra.mxu0 0.0
        %1811 = vmatprep.subr.mxu0 0.0
        %1812 = vmatpush1.msra.mxu0 0.0
        %1813 = vmatprep.subr.mxu0 0.0
        %1814 = vmatpush1.msra.mxu0 0.0
        %1815 = vmatprep.subr.mxu0 0.0
        %1816 = vmatpush1.msra.mxu0 0.0
        %1817 = vmatprep.subr.mxu0 0.0
        %1818 = vmatpush1.msra.mxu0 0.0
        %1819 = vmatprep.subr.mxu0 0.0
        %1820 = vmatpush1.msra.mxu0 0.0
        %1821 = vmatprep.subr.mxu0 0.0
        %1822 = vmatpush1.msra.mxu0 0.0
        %1823 = vmatprep.subr.mxu0 0.0
        %1824 = vmatpush1.msra.mxu0 0.0
        %1825 = vmatprep.subr.mxu0 0.0
        %1826 = vmatpush1.msra.mxu0 0.0
        %1827 = vmatprep.subr.mxu0 0.0
        %1828 = vmatpush1.msra.mxu0 0.0
        %1829 = vmatprep.subr.mxu0 0.0
        %1830 = vmatpush1.msra.mxu0 0.0
        %1831 = vmatprep.subr.mxu0 0.0
        %1832 = vmatpush1.msra.mxu0 0.0
        %1833 = vmatprep.subr.mxu0 0.0
        %1834 = vmatpush1.msra.mxu0 0.0
        %1835 = vmatprep.subr.mxu0 0.0
        %1836 = vmatpush1.msra.mxu0 0.0
        %1837 = vmatprep.subr.mxu0 0.0
        %1838 = vmatpush1.msra.mxu0 0.0
        %1839 = vmatprep.subr.mxu0 0.0
        %1840 = vmatpush1.msra.mxu0 0.0
        %1841 = vmatprep.subr.mxu0 0.0
        %1842 = vmatpush1.msra.mxu0 0.0
        %1843 = vmatprep.subr.mxu0 0.0
        %1844 = vmatpush1.msra.mxu0 0.0
        %1845 = vmatprep.subr.mxu0 0.0
        %1846 = vmatpush1.msra.mxu0 0.0
        %1847 = vmatprep.subr.mxu0 0.0
        %1848 = vmatpush1.msra.mxu0 0.0
        %1849 = vmatprep.subr.mxu0 0.0
        %1850 = vmatpush1.msra.mxu0 0.0
        %1851 = vmatprep.subr.mxu0 0.0
        %1852 = vmatpush1.msra.mxu0 0.0
        %1853 = vmatprep.subr.mxu0 0.0
        %1854 = vmatpush1.msra.mxu0 0.0
        %1855 = vmatprep.mubr.f32.mxu0 0.0
        %1856 = vmatmul.mubr.f32.gmra.mrb[0].mxu0 %v531
        %v1857 = vpop.f32.mrb[0].mxu0
        %v1858 = vadd.f32 %v1789, %v1857
        %v1859 = vpop.f32.mrb[0].mxu0
        %1860 = vmatprep.mubr.f32.mxu0 0.0
        %1861 = vmatmul.mubr.f32.gmra.mrb[0].mxu0 %v534
        %v1862 = vpop.f32.mrb[0].mxu0
        %v1863 = vadd.f32 %v1789, %v1862
        %v1864 = vpop.f32.mrb[0].mxu0
        %1865 = vdwg.mxu0
        %v1867 = vsel %vm787, %v1682, 0
        %v1870 = vsel %vm787, %v1687, 0
        %v1873 = vsel %vm787, %v1770, 0
        %v1876 = vsel %vm787, %v1775, 0
        %1878 = vmatprep.subr.mxu0 0.0
        %1879 = vmatpush1.xpose.msra.mxu0 %v1873
        %1880 = vmatprep.subr.mxu0 0.0
        %1881 = vmatpush1.xpose.msra.mxu0 %v1876
        %1882 = vmatprep.subr.mxu0 0.0
        %1883 = vmatpush1.xpose.msra.mxu0 0.0
        %1884 = vmatprep.subr.mxu0 0.0
        %1885 = vmatpush1.xpose.msra.mxu0 0.0
        %1886 = vmatprep.subr.mxu0 0.0
        %1887 = vmatpush1.xpose.msra.mxu0 0.0
        %1888 = vmatprep.subr.mxu0 0.0
        %1889 = vmatpush1.xpose.msra.mxu0 0.0
        %1890 = vmatprep.subr.mxu0 0.0
        %1891 = vmatpush1.xpose.msra.mxu0 0.0
        %1892 = vmatprep.subr.mxu0 0.0
        %1893 = vmatpush1.xpose.msra.mxu0 0.0
        %1894 = vmatprep.subr.mxu0 0.0
        %1895 = vmatpush1.xpose.msra.mxu0 0.0
        %1896 = vmatprep.subr.mxu0 0.0
        %1897 = vmatpush1.xpose.msra.mxu0 0.0
        %1898 = vmatprep.subr.mxu0 0.0
        %1899 = vmatpush1.xpose.msra.mxu0 0.0
        %1900 = vmatprep.subr.mxu0 0.0
        %1901 = vmatpush1.xpose.msra.mxu0 0.0
        %1902 = vmatprep.subr.mxu0 0.0
        %1903 = vmatpush1.xpose.msra.mxu0 0.0
        %1904 = vmatprep.subr.mxu0 0.0
        %1905 = vmatpush1.xpose.msra.mxu0 0.0
        %1906 = vmatprep.subr.mxu0 0.0
        %1907 = vmatpush1.xpose.msra.mxu0 0.0
        %1908 = vmatprep.subr.mxu0 0.0
        %1909 = vmatpush1.xpose.msra.mxu0 0.0
        %1910 = vmatprep.subr.mxu0 0.0
        %1911 = vmatpush1.xpose.msra.mxu0 0.0
        %1912 = vmatprep.subr.mxu0 0.0
        %1913 = vmatpush1.xpose.msra.mxu0 0.0
        %1914 = vmatprep.subr.mxu0 0.0
        %1915 = vmatpush1.xpose.msra.mxu0 0.0
        %1916 = vmatprep.subr.mxu0 0.0
        %1917 = vmatpush1.xpose.msra.mxu0 0.0
        %1918 = vmatprep.subr.mxu0 0.0
        %1919 = vmatpush1.xpose.msra.mxu0 0.0
        %1920 = vmatprep.subr.mxu0 0.0
        %1921 = vmatpush1.xpose.msra.mxu0 0.0
        %1922 = vmatprep.subr.mxu0 0.0
        %1923 = vmatpush1.xpose.msra.mxu0 0.0
        %1924 = vmatprep.subr.mxu0 0.0
        %1925 = vmatpush1.xpose.msra.mxu0 0.0
        %1926 = vmatprep.subr.mxu0 0.0
        %1927 = vmatpush1.xpose.msra.mxu0 0.0
        %1928 = vmatprep.subr.mxu0 0.0
        %1929 = vmatpush1.xpose.msra.mxu0 0.0
        %1930 = vmatprep.subr.mxu0 0.0
        %1931 = vmatpush1.xpose.msra.mxu0 0.0
        %1932 = vmatprep.subr.mxu0 0.0
        %1933 = vmatpush1.xpose.msra.mxu0 0.0
        %1934 = vmatprep.subr.mxu0 0.0
        %1935 = vmatpush1.xpose.msra.mxu0 0.0
        %1936 = vmatprep.subr.mxu0 0.0
        %1937 = vmatpush1.xpose.msra.mxu0 0.0
        %1938 = vmatprep.subr.mxu0 0.0
        %1939 = vmatpush1.xpose.msra.mxu0 0.0
        %1940 = vmatprep.subr.mxu0 0.0
        %1941 = vmatpush1.xpose.msra.mxu0 0.0
        %1942 = vmatprep.mubr.f32.mxu0 0.0
        %1943 = vmatmul.mubr.f32.gmra.mrb[0].mxu0 %v1867
        %v1944 = vpop.f32.mrb[0].mxu0
        %v1945 = vadd.f32 0.0, %v1944
        %v1946 = vpop.f32.mrb[0].mxu0
        %1947 = vmatprep.mubr.f32.mxu0 0.0
        %1948 = vmatmul.mubr.f32.gmra.mrb[0].mxu0 %v1870
        %v1949 = vpop.f32.mrb[0].mxu0
        %v1950 = vadd.f32 0.0, %v1949
        %v1951 = vpop.f32.mrb[0].mxu0
        %1952 = vdwg.mxu0
        %v1953 = vmul.f32 %v1945, 0.35355338
        %v1954 = vmul.f32 %v1950, 0.35355338
        %v1955 = vsel %vm877, %v1953, -inf
        %1956 = vmax.xlane.f32.xlu0 %v1955
        %v1957 = vpop.xlane.xlu0 %1956
        %v1958 = vsel %vm877, %v1954, -inf
        %1959 = vmax.xlane.f32.xlu0 %v1958
        %v1960 = vpop.xlane.xlu0 %1959
        %v1961 = vsub.f32 %v1953, %v1957
        %v1962 = vsub.f32 %v1954, %v1960
        %v1963 = vmul.f32 %v1961, 1.442695
        %v1964 = vpow.pop %v1963
        %v1965 = vmul.f32 %v1962, 1.442695
        %v1966 = vpow.pop %v1965
        %v1967 = vsel %vm877, %v1964, 0.0
        %1968 = vadd.xlane.f32.xlu0 %v1967
        %v1969 = vpop.xlane.xlu0 %1968
        %v1970 = vsel %vm877, %v1966, 0.0
        %1971 = vadd.xlane.f32.xlu0 %v1970
        %v1972 = vpop.xlane.xlu0 %1971
        %v1973 = vrcp.pop %v1969
        %v1974 = vrcp.pop %v1972
        %v1975 = vmul.f32 %v1964, %v1973
        %v1976 = vmul.f32 %v1966, %v1974
        %v1978 = vsel %vm877, %v1975, 0
        %v1981 = vsel %vm877, %v1976, 0
        %1983 = vmatprep.subr.mxu0 0.0
        %1984 = vmatpush1.msra.mxu0 %v1858
        %1985 = vmatprep.subr.mxu0 0.0
        %1986 = vmatpush1.msra.mxu0 %v1863
        %1987 = vmatprep.subr.mxu0 0.0
        %1988 = vmatpush1.msra.mxu0 0.0
        %1989 = vmatprep.subr.mxu0 0.0
        %1990 = vmatpush1.msra.mxu0 0.0
        %1991 = vmatprep.subr.mxu0 0.0
        %1992 = vmatpush1.msra.mxu0 0.0
        %1993 = vmatprep.subr.mxu0 0.0
        %1994 = vmatpush1.msra.mxu0 0.0
        %1995 = vmatprep.subr.mxu0 0.0
        %1996 = vmatpush1.msra.mxu0 0.0
        %1997 = vmatprep.subr.mxu0 0.0
        %1998 = vmatpush1.msra.mxu0 0.0
        %1999 = vmatprep.subr.mxu0 0.0
        %2000 = vmatpush1.msra.mxu0 0.0
        %2001 = vmatprep.subr.mxu0 0.0
        %2002 = vmatpush1.msra.mxu0 0.0
        %2003 = vmatprep.subr.mxu0 0.0
        %2004 = vmatpush1.msra.mxu0 0.0
        %2005 = vmatprep.subr.mxu0 0.0
        %2006 = vmatpush1.msra.mxu0 0.0
        %2007 = vmatprep.subr.mxu0 0.0
        %2008 = vmatpush1.msra.mxu0 0.0
        %2009 = vmatprep.subr.mxu0 0.0
        %2010 = vmatpush1.msra.mxu0 0.0
        %2011 = vmatprep.subr.mxu0 0.0
        %2012 = vmatpush1.msra.mxu0 0.0
        %2013 = vmatprep.subr.mxu0 0.0
        %2014 = vmatpush1.msra.mxu0 0.0
        %2015 = vmatprep.subr.mxu0 0.0
        %2016 = vmatpush1.msra.mxu0 0.0
        %2017 = vmatprep.subr.mxu0 0.0
        %2018 = vmatpush1.msra.mxu0 0.0
        %2019 = vmatprep.subr.mxu0 0.0
        %2020 = vmatpush1.msra.mxu0 0.0
        %2021 = vmatprep.subr.mxu0 0.0
        %2022 = vmatpush1.msra.mxu0 0.0
        %2023 = vmatprep.subr.mxu0 0.0
        %2024 = vmatpush1.msra.mxu0 0.0
        %2025 = vmatprep.subr.mxu0 0.0
        %2026 = vmatpush1.msra.mxu0 0.0
        %2027 = vmatprep.subr.mxu0 0.0
        %2028 = vmatpush1.msra.mxu0 0.0
        %2029 = vmatprep.subr.mxu0 0.0
        %2030 = vmatpush1.msra.mxu0 0.0
        %2031 = vmatprep.subr.mxu0 0.0
        %2032 = vmatpush1.msra.mxu0 0.0
        %2033 = vmatprep.subr.mxu0 0.0
        %2034 = vmatpush1.msra.mxu0 0.0
        %2035 = vmatprep.subr.mxu0 0.0
        %2036 = vmatpush1.msra.mxu0 0.0
        %2037 = vmatprep.subr.mxu0 0.0
        %2038 = vmatpush1.msra.mxu0 0.0
        %2039 = vmatprep.subr.mxu0 0.0
        %2040 = vmatpush1.msra.mxu0 0.0
        %2041 = vmatprep.subr.mxu0 0.0
        %2042 = vmatpush1.msra.mxu0 0.0
        %2043 = vmatprep.subr.mxu0 0.0
        %2044 = vmatpush1.msra.mxu0 0.0
        %2045 = vmatprep.subr.mxu0 0.0
        %2046 = vmatpush1.msra.mxu0 0.0
        %2047 = vmatprep.mubr.f32.mxu0 0.0
        %2048 = vmatmul.mubr.f32.gmra.mrb[0].mxu0 %v1978
        %v2049 = vpop.f32.mrb[0].mxu0
        %v2050 = vadd.f32 0.0, %v2049
        %v2051 = vpop.f32.mrb[0].mxu0
        %2052 = vmatprep.mubr.f32.mxu0 0.0
        %2053 = vmatmul.mubr.f32.gmra.mrb[0].mxu0 %v1981
        %v2054 = vpop.f32.mrb[0].mxu0
        %v2055 = vadd.f32 0.0, %v2054
        %v2056 = vpop.f32.mrb[0].mxu0
        %2057 = vdwg.mxu0
        %s2058 = scalar_lea.vmem %s5, 16
        %v2059 = vld [vmem:[%s2058] sm:$0xff]
        %v2061 = vsel %vm787, %v2050, 0
        %v2064 = vsel %vm787, %v2055, 0
        %2066 = vmatprep.subr.mxu0 0.0
        %2067 = vmatpush1.msra.mxu0 %v2059
        %2068 = vmatprep.subr.mxu0 0.0
        %2069 = vmatpush1.msra.mxu0 0.0
        %2070 = vmatprep.subr.mxu0 0.0
        %2071 = vmatpush1.msra.mxu0 0.0
        %2072 = vmatprep.subr.mxu0 0.0
        %2073 = vmatpush1.msra.mxu0 0.0
        %2074 = vmatprep.subr.mxu0 0.0
        %2075 = vmatpush1.msra.mxu0 0.0
        %2076 = vmatprep.subr.mxu0 0.0
        %2077 = vmatpush1.msra.mxu0 0.0
        %2078 = vmatprep.subr.mxu0 0.0
        %2079 = vmatpush1.msra.mxu0 0.0
        %2080 = vmatprep.subr.mxu0 0.0
        %2081 = vmatpush1.msra.mxu0 0.0
        %2082 = vmatprep.subr.mxu0 0.0
        %2083 = vmatpush1.msra.mxu0 0.0
        %2084 = vmatprep.subr.mxu0 0.0
        %2085 = vmatpush1.msra.mxu0 0.0
        %2086 = vmatprep.subr.mxu0 0.0
        %2087 = vmatpush1.msra.mxu0 0.0
        %2088 = vmatprep.subr.mxu0 0.0
        %2089 = vmatpush1.msra.mxu0 0.0
        %2090 = vmatprep.subr.mxu0 0.0
        %2091 = vmatpush1.msra.mxu0 0.0
        %2092 = vmatprep.subr.mxu0 0.0
        %2093 = vmatpush1.msra.mxu0 0.0
        %2094 = vmatprep.subr.mxu0 0.0
        %2095 = vmatpush1.msra.mxu0 0.0
        %2096 = vmatprep.subr.mxu0 0.0
        %2097 = vmatpush1.msra.mxu0 0.0
        %2098 = vmatprep.subr.mxu0 0.0
        %2099 = vmatpush1.msra.mxu0 0.0
        %2100 = vmatprep.subr.mxu0 0.0
        %2101 = vmatpush1.msra.mxu0 0.0
        %2102 = vmatprep.subr.mxu0 0.0
        %2103 = vmatpush1.msra.mxu0 0.0
        %2104 = vmatprep.subr.mxu0 0.0
        %2105 = vmatpush1.msra.mxu0 0.0
        %2106 = vmatprep.subr.mxu0 0.0
        %2107 = vmatpush1.msra.mxu0 0.0
        %2108 = vmatprep.subr.mxu0 0.0
        %2109 = vmatpush1.msra.mxu0 0.0
        %2110 = vmatprep.subr.mxu0 0.0
        %2111 = vmatpush1.msra.mxu0 0.0
        %2112 = vmatprep.subr.mxu0 0.0
        %2113 = vmatpush1.msra.mxu0 0.0
        %2114 = vmatprep.subr.mxu0 0.0
        %2115 = vmatpush1.msra.mxu0 0.0
        %2116 = vmatprep.subr.mxu0 0.0
        %2117 = vmatpush1.msra.mxu0 0.0
        %2118 = vmatprep.subr.mxu0 0.0
        %2119 = vmatpush1.msra.mxu0 0.0
        %2120 = vmatprep.subr.mxu0 0.0
        %2121 = vmatpush1.msra.mxu0 0.0
        %2122 = vmatprep.subr.mxu0 0.0
        %2123 = vmatpush1.msra.mxu0 0.0
        %2124 = vmatprep.subr.mxu0 0.0
        %2125 = vmatpush1.msra.mxu0 0.0
        %2126 = vmatprep.subr.mxu0 0.0
        %2127 = vmatpush1.msra.mxu0 0.0
        %2128 = vmatprep.subr.mxu0 0.0
        %2129 = vmatpush1.msra.mxu0 0.0
        %2130 = vmatprep.mubr.f32.mxu0 0.0
        %2131 = vmatmul.mubr.f32.gmra.mrb[0].mxu0 %v2061
        %v2132 = vpop.f32.mrb[0].mxu0
        %v2133 = vadd.f32 0.0, %v2132
        %v2134 = vpop.f32.mrb[0].mxu0
        %2135 = vmatprep.mubr.f32.mxu0 0.0
        %2136 = vmatmul.mubr.f32.gmra.mrb[0].mxu0 %v2064
        %v2137 = vpop.f32.mrb[0].mxu0
        %v2138 = vadd.f32 0.0, %v2137
        %v2139 = vpop.f32.mrb[0].mxu0
        %2140 = vdwg.mxu0
        %v2141 = vadd.f32 %v1594, %v2133
        %v2142 = vadd.f32 %v1599, %v2138
        %s2143 = scalar_lea.vmem %s3, 96
        %v2144 = vld [vmem:[%s2143] sm:$0xff]
        %v2145 = vld [vmem:[%s2143 + $0x8] sm:$0xff]
        %v2146 = vld [vmem:[%s2143 + $0x10] sm:$0xff]
        %v2147 = vld [vmem:[%s2143 + $0x18] sm:$0xff]
        %s2148 = scalar_lea.vmem %s4, 3
        %v2149 = vld [vmem:[%s2148] sm:$0x1]
        %v2151 = vlaneseq
        %v2152 = vshrl.u32 %v2151, 7
        %v2153 = vsub.s32 0, %v2152
        %v2154 = vrot.slane %v2149, %v2153
        %2156 = vmatprep.subr.mxu0 0.0
        %2157 = vmatpush1.msra.mxu0 %v2144
        %2158 = vmatprep.subr.mxu0 0.0
        %2159 = vmatpush1.msra.mxu0 %v2145
        %2160 = vmatprep.subr.mxu0 0.0
        %2161 = vmatpush1.msra.mxu0 %v2146
        %2162 = vmatprep.subr.mxu0 0.0
        %2163 = vmatpush1.msra.mxu0 %v2147
        %2164 = vmatprep.subr.mxu0 0.0
        %2165 = vmatpush1.msra.mxu0 0.0
        %2166 = vmatprep.subr.mxu0 0.0
        %2167 = vmatpush1.msra.mxu0 0.0
        %2168 = vmatprep.subr.mxu0 0.0
        %2169 = vmatpush1.msra.mxu0 0.0
        %2170 = vmatprep.subr.mxu0 0.0
        %2171 = vmatpush1.msra.mxu0 0.0
        %2172 = vmatprep.subr.mxu0 0.0
        %2173 = vmatpush1.msra.mxu0 0.0
        %2174 = vmatprep.subr.mxu0 0.0
        %2175 = vmatpush1.msra.mxu0 0.0
        %2176 = vmatprep.subr.mxu0 0.0
        %2177 = vmatpush1.msra.mxu0 0.0
        %2178 = vmatprep.subr.mxu0 0.0
        %2179 = vmatpush1.msra.mxu0 0.0
        %2180 = vmatprep.subr.mxu0 0.0
        %2181 = vmatpush1.msra.mxu0 0.0
        %2182 = vmatprep.subr.mxu0 0.0
        %2183 = vmatpush1.msra.mxu0 0.0
        %2184 = vmatprep.subr.mxu0 0.0
        %2185 = vmatpush1.msra.mxu0 0.0
        %2186 = vmatprep.subr.mxu0 0.0
        %2187 = vmatpush1.msra.mxu0 0.0
        %2188 = vmatprep.subr.mxu0 0.0
        %2189 = vmatpush1.msra.mxu0 0.0
        %2190 = vmatprep.subr.mxu0 0.0
        %2191 = vmatpush1.msra.mxu0 0.0
        %2192 = vmatprep.subr.mxu0 0.0
        %2193 = vmatpush1.msra.mxu0 0.0
        %2194 = vmatprep.subr.mxu0 0.0
        %2195 = vmatpush1.msra.mxu0 0.0
        %2196 = vmatprep.subr.mxu0 0.0
        %2197 = vmatpush1.msra.mxu0 0.0
        %2198 = vmatprep.subr.mxu0 0.0
        %2199 = vmatpush1.msra.mxu0 0.0
        %2200 = vmatprep.subr.mxu0 0.0
        %2201 = vmatpush1.msra.mxu0 0.0
        %2202 = vmatprep.subr.mxu0 0.0
        %2203 = vmatpush1.msra.mxu0 0.0
        %2204 = vmatprep.subr.mxu0 0.0
        %2205 = vmatpush1.msra.mxu0 0.0
        %2206 = vmatprep.subr.mxu0 0.0
        %2207 = vmatpush1.msra.mxu0 0.0
        %2208 = vmatprep.subr.mxu0 0.0
        %2209 = vmatpush1.msra.mxu0 0.0
        %2210 = vmatprep.subr.mxu0 0.0
        %2211 = vmatpush1.msra.mxu0 0.0
        %2212 = vmatprep.subr.mxu0 0.0
        %2213 = vmatpush1.msra.mxu0 0.0
        %2214 = vmatprep.subr.mxu0 0.0
        %2215 = vmatpush1.msra.mxu0 0.0
        %2216 = vmatprep.subr.mxu0 0.0
        %2217 = vmatpush1.msra.mxu0 0.0
        %2218 = vmatprep.subr.mxu0 0.0
        %2219 = vmatpush1.msra.mxu0 0.0
        %2220 = vmatprep.mubr.f32.mxu0 0.0
        %2221 = vmatmul.mubr.f32.gmra.mrb[0].mxu0 %v531
        %v2222 = vpop.f32.mrb[0].mxu0
        %v2223 = vadd.f32 %v2154, %v2222
        %v2224 = vpop.f32.mrb[0].mxu0
        %2225 = vmatprep.mubr.f32.mxu0 0.0
        %2226 = vmatmul.mubr.f32.gmra.mrb[0].mxu0 %v534
        %v2227 = vpop.f32.mrb[0].mxu0
        %v2228 = vadd.f32 %v2154, %v2227
        %v2229 = vpop.f32.mrb[0].mxu0
        %2230 = vdwg.mxu0
        %s2231 = scalar_lea.vmem %s3, 224
        %v2232 = vld [vmem:[%s2231] sm:$0xff]
        %v2233 = vld [vmem:[%s2231 + $0x8] sm:$0xff]
        %v2234 = vld [vmem:[%s2231 + $0x10] sm:$0xff]
        %v2235 = vld [vmem:[%s2231 + $0x18] sm:$0xff]
        %s2236 = scalar_lea.vmem %s4, 7
        %v2237 = vld [vmem:[%s2236] sm:$0x1]
        %v2239 = vlaneseq
        %v2240 = vshrl.u32 %v2239, 7
        %v2241 = vsub.s32 0, %v2240
        %v2242 = vrot.slane %v2237, %v2241
        %2244 = vmatprep.subr.mxu0 0.0
        %2245 = vmatpush1.msra.mxu0 %v2232
        %2246 = vmatprep.subr.mxu0 0.0
        %2247 = vmatpush1.msra.mxu0 %v2233
        %2248 = vmatprep.subr.mxu0 0.0
        %2249 = vmatpush1.msra.mxu0 %v2234
        %2250 = vmatprep.subr.mxu0 0.0
        %2251 = vmatpush1.msra.mxu0 %v2235
        %2252 = vmatprep.subr.mxu0 0.0
        %2253 = vmatpush1.msra.mxu0 0.0
        %2254 = vmatprep.subr.mxu0 0.0
        %2255 = vmatpush1.msra.mxu0 0.0
        %2256 = vmatprep.subr.mxu0 0.0
        %2257 = vmatpush1.msra.mxu0 0.0
        %2258 = vmatprep.subr.mxu0 0.0
        %2259 = vmatpush1.msra.mxu0 0.0
        %2260 = vmatprep.subr.mxu0 0.0
        %2261 = vmatpush1.msra.mxu0 0.0
        %2262 = vmatprep.subr.mxu0 0.0
        %2263 = vmatpush1.msra.mxu0 0.0
        %2264 = vmatprep.subr.mxu0 0.0
        %2265 = vmatpush1.msra.mxu0 0.0
        %2266 = vmatprep.subr.mxu0 0.0
        %2267 = vmatpush1.msra.mxu0 0.0
        %2268 = vmatprep.subr.mxu0 0.0
        %2269 = vmatpush1.msra.mxu0 0.0
        %2270 = vmatprep.subr.mxu0 0.0
        %2271 = vmatpush1.msra.mxu0 0.0
        %2272 = vmatprep.subr.mxu0 0.0
        %2273 = vmatpush1.msra.mxu0 0.0
        %2274 = vmatprep.subr.mxu0 0.0
        %2275 = vmatpush1.msra.mxu0 0.0
        %2276 = vmatprep.subr.mxu0 0.0
        %2277 = vmatpush1.msra.mxu0 0.0
        %2278 = vmatprep.subr.mxu0 0.0
        %2279 = vmatpush1.msra.mxu0 0.0
        %2280 = vmatprep.subr.mxu0 0.0
        %2281 = vmatpush1.msra.mxu0 0.0
        %2282 = vmatprep.subr.mxu0 0.0
        %2283 = vmatpush1.msra.mxu0 0.0
        %2284 = vmatprep.subr.mxu0 0.0
        %2285 = vmatpush1.msra.mxu0 0.0
        %2286 = vmatprep.subr.mxu0 0.0
        %2287 = vmatpush1.msra.mxu0 0.0
        %2288 = vmatprep.subr.mxu0 0.0
        %2289 = vmatpush1.msra.mxu0 0.0
        %2290 = vmatprep.subr.mxu0 0.0
        %2291 = vmatpush1.msra.mxu0 0.0
        %2292 = vmatprep.subr.mxu0 0.0
        %2293 = vmatpush1.msra.mxu0 0.0
        %2294 = vmatprep.subr.mxu0 0.0
        %2295 = vmatpush1.msra.mxu0 0.0
        %2296 = vmatprep.subr.mxu0 0.0
        %2297 = vmatpush1.msra.mxu0 0.0
        %2298 = vmatprep.subr.mxu0 0.0
        %2299 = vmatpush1.msra.mxu0 0.0
        %2300 = vmatprep.subr.mxu0 0.0
        %2301 = vmatpush1.msra.mxu0 0.0
        %2302 = vmatprep.subr.mxu0 0.0
        %2303 = vmatpush1.msra.mxu0 0.0
        %2304 = vmatprep.subr.mxu0 0.0
        %2305 = vmatpush1.msra.mxu0 0.0
        %2306 = vmatprep.subr.mxu0 0.0
        %2307 = vmatpush1.msra.mxu0 0.0
        %2308 = vmatprep.mubr.f32.mxu0 0.0
        %2309 = vmatmul.mubr.f32.gmra.mrb[0].mxu0 %v531
        %v2310 = vpop.f32.mrb[0].mxu0
        %v2311 = vadd.f32 %v2242, %v2310
        %v2312 = vpop.f32.mrb[0].mxu0
        %2313 = vmatprep.mubr.f32.mxu0 0.0
        %2314 = vmatmul.mubr.f32.gmra.mrb[0].mxu0 %v534
        %v2315 = vpop.f32.mrb[0].mxu0
        %v2316 = vadd.f32 %v2242, %v2315
        %v2317 = vpop.f32.mrb[0].mxu0
        %2318 = vdwg.mxu0
        %s2319 = scalar_lea.vmem %s3, 352
        %v2320 = vld [vmem:[%s2319] sm:$0xff]
        %v2321 = vld [vmem:[%s2319 + $0x8] sm:$0xff]
        %v2322 = vld [vmem:[%s2319 + $0x10] sm:$0xff]
        %v2323 = vld [vmem:[%s2319 + $0x18] sm:$0xff]
        %s2324 = scalar_lea.vmem %s4, 11
        %v2325 = vld [vmem:[%s2324] sm:$0x1]
        %v2327 = vlaneseq
        %v2328 = vshrl.u32 %v2327, 7
        %v2329 = vsub.s32 0, %v2328
        %v2330 = vrot.slane %v2325, %v2329
        %2332 = vmatprep.subr.mxu0 0.0
        %2333 = vmatpush1.msra.mxu0 %v2320
        %2334 = vmatprep.subr.mxu0 0.0
        %2335 = vmatpush1.msra.mxu0 %v2321
        %2336 = vmatprep.subr.mxu0 0.0
        %2337 = vmatpush1.msra.mxu0 %v2322
        %2338 = vmatprep.subr.mxu0 0.0
        %2339 = vmatpush1.msra.mxu0 %v2323
        %2340 = vmatprep.subr.mxu0 0.0
        %2341 = vmatpush1.msra.mxu0 0.0
        %2342 = vmatprep.subr.mxu0 0.0
        %2343 = vmatpush1.msra.mxu0 0.0
        %2344 = vmatprep.subr.mxu0 0.0
        %2345 = vmatpush1.msra.mxu0 0.0
        %2346 = vmatprep.subr.mxu0 0.0
        %2347 = vmatpush1.msra.mxu0 0.0
        %2348 = vmatprep.subr.mxu0 0.0
        %2349 = vmatpush1.msra.mxu0 0.0
        %2350 = vmatprep.subr.mxu0 0.0
        %2351 = vmatpush1.msra.mxu0 0.0
        %2352 = vmatprep.subr.mxu0 0.0
        %2353 = vmatpush1.msra.mxu0 0.0
        %2354 = vmatprep.subr.mxu0 0.0
        %2355 = vmatpush1.msra.mxu0 0.0
        %2356 = vmatprep.subr.mxu0 0.0
        %2357 = vmatpush1.msra.mxu0 0.0
        %2358 = vmatprep.subr.mxu0 0.0
        %2359 = vmatpush1.msra.mxu0 0.0
        %2360 = vmatprep.subr.mxu0 0.0
        %2361 = vmatpush1.msra.mxu0 0.0
        %2362 = vmatprep.subr.mxu0 0.0
        %2363 = vmatpush1.msra.mxu0 0.0
        %2364 = vmatprep.subr.mxu0 0.0
        %2365 = vmatpush1.msra.mxu0 0.0
        %2366 = vmatprep.subr.mxu0 0.0
        %2367 = vmatpush1.msra.mxu0 0.0
        %2368 = vmatprep.subr.mxu0 0.0
        %2369 = vmatpush1.msra.mxu0 0.0
        %2370 = vmatprep.subr.mxu0 0.0
        %2371 = vmatpush1.msra.mxu0 0.0
        %2372 = vmatprep.subr.mxu0 0.0
        %2373 = vmatpush1.msra.mxu0 0.0
        %2374 = vmatprep.subr.mxu0 0.0
        %2375 = vmatpush1.msra.mxu0 0.0
        %2376 = vmatprep.subr.mxu0 0.0
        %2377 = vmatpush1.msra.mxu0 0.0
        %2378 = vmatprep.subr.mxu0 0.0
        %2379 = vmatpush1.msra.mxu0 0.0
        %2380 = vmatprep.subr.mxu0 0.0
        %2381 = vmatpush1.msra.mxu0 0.0
        %2382 = vmatprep.subr.mxu0 0.0
        %2383 = vmatpush1.msra.mxu0 0.0
        %2384 = vmatprep.subr.mxu0 0.0
        %2385 = vmatpush1.msra.mxu0 0.0
        %2386 = vmatprep.subr.mxu0 0.0
        %2387 = vmatpush1.msra.mxu0 0.0
        %2388 = vmatprep.subr.mxu0 0.0
        %2389 = vmatpush1.msra.mxu0 0.0
        %2390 = vmatprep.subr.mxu0 0.0
        %2391 = vmatpush1.msra.mxu0 0.0
        %2392 = vmatprep.subr.mxu0 0.0
        %2393 = vmatpush1.msra.mxu0 0.0
        %2394 = vmatprep.subr.mxu0 0.0
        %2395 = vmatpush1.msra.mxu0 0.0
        %2396 = vmatprep.mubr.f32.mxu0 0.0
        %2397 = vmatmul.mubr.f32.gmra.mrb[0].mxu0 %v531
        %v2398 = vpop.f32.mrb[0].mxu0
        %v2399 = vadd.f32 %v2330, %v2398
        %v2400 = vpop.f32.mrb[0].mxu0
        %2401 = vmatprep.mubr.f32.mxu0 0.0
        %2402 = vmatmul.mubr.f32.gmra.mrb[0].mxu0 %v534
        %v2403 = vpop.f32.mrb[0].mxu0
        %v2404 = vadd.f32 %v2330, %v2403
        %v2405 = vpop.f32.mrb[0].mxu0
        %2406 = vdwg.mxu0
        %v2408 = vsel %vm787, %v2223, 0
        %v2411 = vsel %vm787, %v2228, 0
        %v2414 = vsel %vm787, %v2311, 0
        %v2417 = vsel %vm787, %v2316, 0
        %2419 = vmatprep.subr.mxu0 0.0
        %2420 = vmatpush1.xpose.msra.mxu0 %v2414
        %2421 = vmatprep.subr.mxu0 0.0
        %2422 = vmatpush1.xpose.msra.mxu0 %v2417
        %2423 = vmatprep.subr.mxu0 0.0
        %2424 = vmatpush1.xpose.msra.mxu0 0.0
        %2425 = vmatprep.subr.mxu0 0.0
        %2426 = vmatpush1.xpose.msra.mxu0 0.0
        %2427 = vmatprep.subr.mxu0 0.0
        %2428 = vmatpush1.xpose.msra.mxu0 0.0
        %2429 = vmatprep.subr.mxu0 0.0
        %2430 = vmatpush1.xpose.msra.mxu0 0.0
        %2431 = vmatprep.subr.mxu0 0.0
        %2432 = vmatpush1.xpose.msra.mxu0 0.0
        %2433 = vmatprep.subr.mxu0 0.0
        %2434 = vmatpush1.xpose.msra.mxu0 0.0
        %2435 = vmatprep.subr.mxu0 0.0
        %2436 = vmatpush1.xpose.msra.mxu0 0.0
        %2437 = vmatprep.subr.mxu0 0.0
        %2438 = vmatpush1.xpose.msra.mxu0 0.0
        %2439 = vmatprep.subr.mxu0 0.0
        %2440 = vmatpush1.xpose.msra.mxu0 0.0
        %2441 = vmatprep.subr.mxu0 0.0
        %2442 = vmatpush1.xpose.msra.mxu0 0.0
        %2443 = vmatprep.subr.mxu0 0.0
        %2444 = vmatpush1.xpose.msra.mxu0 0.0
        %2445 = vmatprep.subr.mxu0 0.0
        %2446 = vmatpush1.xpose.msra.mxu0 0.0
        %2447 = vmatprep.subr.mxu0 0.0
        %2448 = vmatpush1.xpose.msra.mxu0 0.0
        %2449 = vmatprep.subr.mxu0 0.0
        %2450 = vmatpush1.xpose.msra.mxu0 0.0
        %2451 = vmatprep.subr.mxu0 0.0
        %2452 = vmatpush1.xpose.msra.mxu0 0.0
        %2453 = vmatprep.subr.mxu0 0.0
        %2454 = vmatpush1.xpose.msra.mxu0 0.0
        %2455 = vmatprep.subr.mxu0 0.0
        %2456 = vmatpush1.xpose.msra.mxu0 0.0
        %2457 = vmatprep.subr.mxu0 0.0
        %2458 = vmatpush1.xpose.msra.mxu0 0.0
        %2459 = vmatprep.subr.mxu0 0.0
        %2460 = vmatpush1.xpose.msra.mxu0 0.0
        %2461 = vmatprep.subr.mxu0 0.0
        %2462 = vmatpush1.xpose.msra.mxu0 0.0
        %2463 = vmatprep.subr.mxu0 0.0
        %2464 = vmatpush1.xpose.msra.mxu0 0.0
        %2465 = vmatprep.subr.mxu0 0.0
        %2466 = vmatpush1.xpose.msra.mxu0 0.0
        %2467 = vmatprep.subr.mxu0 0.0
        %2468 = vmatpush1.xpose.msra.mxu0 0.0
        %2469 = vmatprep.subr.mxu0 0.0
        %2470 = vmatpush1.xpose.msra.mxu0 0.0
        %2471 = vmatprep.subr.mxu0 0.0
        %2472 = vmatpush1.xpose.msra.mxu0 0.0
        %2473 = vmatprep.subr.mxu0 0.0
        %2474 = vmatpush1.xpose.msra.mxu0 0.0
        %2475 = vmatprep.subr.mxu0 0.0
        %2476 = vmatpush1.xpose.msra.mxu0 0.0
        %2477 = vmatprep.subr.mxu0 0.0
        %2478 = vmatpush1.xpose.msra.mxu0 0.0
        %2479 = vmatprep.subr.mxu0 0.0
        %2480 = vmatpush1.xpose.msra.mxu0 0.0
        %2481 = vmatprep.subr.mxu0 0.0
        %2482 = vmatpush1.xpose.msra.mxu0 0.0
        %2483 = vmatprep.mubr.f32.mxu0 0.0
        %2484 = vmatmul.mubr.f32.gmra.mrb[0].mxu0 %v2408
        %v2485 = vpop.f32.mrb[0].mxu0
        %v2486 = vadd.f32 0.0, %v2485
        %v2487 = vpop.f32.mrb[0].mxu0
        %2488 = vmatprep.mubr.f32.mxu0 0.0
        %2489 = vmatmul.mubr.f32.gmra.mrb[0].mxu0 %v2411
        %v2490 = vpop.f32.mrb[0].mxu0
        %v2491 = vadd.f32 0.0, %v2490
        %v2492 = vpop.f32.mrb[0].mxu0
        %2493 = vdwg.mxu0
        %v2494 = vmul.f32 %v2486, 0.35355338
        %v2495 = vmul.f32 %v2491, 0.35355338
        %v2496 = vsel %vm877, %v2494, -inf
        %2497 = vmax.xlane.f32.xlu0 %v2496
        %v2498 = vpop.xlane.xlu0 %2497
        %v2499 = vsel %vm877, %v2495, -inf
        %2500 = vmax.xlane.f32.xlu0 %v2499
        %v2501 = vpop.xlane.xlu0 %2500
        %v2502 = vsub.f32 %v2494, %v2498
        %v2503 = vsub.f32 %v2495, %v2501
        %v2504 = vmul.f32 %v2502, 1.442695
        %v2505 = vpow.pop %v2504
        %v2506 = vmul.f32 %v2503, 1.442695
        %v2507 = vpow.pop %v2506
        %v2508 = vsel %vm877, %v2505, 0.0
        %2509 = vadd.xlane.f32.xlu0 %v2508
        %v2510 = vpop.xlane.xlu0 %2509
        %v2511 = vsel %vm877, %v2507, 0.0
        %2512 = vadd.xlane.f32.xlu0 %v2511
        %v2513 = vpop.xlane.xlu0 %2512
        %v2514 = vrcp.pop %v2510
        %v2515 = vrcp.pop %v2513
        %v2516 = vmul.f32 %v2505, %v2514
        %v2517 = vmul.f32 %v2507, %v2515
        %v2519 = vsel %vm877, %v2516, 0
        %v2522 = vsel %vm877, %v2517, 0
        %2524 = vmatprep.subr.mxu0 0.0
        %2525 = vmatpush1.msra.mxu0 %v2399
        %2526 = vmatprep.subr.mxu0 0.0
        %2527 = vmatpush1.msra.mxu0 %v2404
        %2528 = vmatprep.subr.mxu0 0.0
        %2529 = vmatpush1.msra.mxu0 0.0
        %2530 = vmatprep.subr.mxu0 0.0
        %2531 = vmatpush1.msra.mxu0 0.0
        %2532 = vmatprep.subr.mxu0 0.0
        %2533 = vmatpush1.msra.mxu0 0.0
        %2534 = vmatprep.subr.mxu0 0.0
        %2535 = vmatpush1.msra.mxu0 0.0
        %2536 = vmatprep.subr.mxu0 0.0
        %2537 = vmatpush1.msra.mxu0 0.0
        %2538 = vmatprep.subr.mxu0 0.0
        %2539 = vmatpush1.msra.mxu0 0.0
        %2540 = vmatprep.subr.mxu0 0.0
        %2541 = vmatpush1.msra.mxu0 0.0
        %2542 = vmatprep.subr.mxu0 0.0
        %2543 = vmatpush1.msra.mxu0 0.0
        %2544 = vmatprep.subr.mxu0 0.0
        %2545 = vmatpush1.msra.mxu0 0.0
        %2546 = vmatprep.subr.mxu0 0.0
        %2547 = vmatpush1.msra.mxu0 0.0
        %2548 = vmatprep.subr.mxu0 0.0
        %2549 = vmatpush1.msra.mxu0 0.0
        %2550 = vmatprep.subr.mxu0 0.0
        %2551 = vmatpush1.msra.mxu0 0.0
        %2552 = vmatprep.subr.mxu0 0.0
        %2553 = vmatpush1.msra.mxu0 0.0
        %2554 = vmatprep.subr.mxu0 0.0
        %2555 = vmatpush1.msra.mxu0 0.0
        %2556 = vmatprep.subr.mxu0 0.0
        %2557 = vmatpush1.msra.mxu0 0.0
        %2558 = vmatprep.subr.mxu0 0.0
        %2559 = vmatpush1.msra.mxu0 0.0
        %2560 = vmatprep.subr.mxu0 0.0
        %2561 = vmatpush1.msra.mxu0 0.0
        %2562 = vmatprep.subr.mxu0 0.0
        %2563 = vmatpush1.msra.mxu0 0.0
        %2564 = vmatprep.subr.mxu0 0.0
        %2565 = vmatpush1.msra.mxu0 0.0
        %2566 = vmatprep.subr.mxu0 0.0
        %2567 = vmatpush1.msra.mxu0 0.0
        %2568 = vmatprep.subr.mxu0 0.0
        %2569 = vmatpush1.msra.mxu0 0.0
        %2570 = vmatprep.subr.mxu0 0.0
        %2571 = vmatpush1.msra.mxu0 0.0
        %2572 = vmatprep.subr.mxu0 0.0
        %2573 = vmatpush1.msra.mxu0 0.0
        %2574 = vmatprep.subr.mxu0 0.0
        %2575 = vmatpush1.msra.mxu0 0.0
        %2576 = vmatprep.subr.mxu0 0.0
        %2577 = vmatpush1.msra.mxu0 0.0
        %2578 = vmatprep.subr.mxu0 0.0
        %2579 = vmatpush1.msra.mxu0 0.0
        %2580 = vmatprep.subr.mxu0 0.0
        %2581 = vmatpush1.msra.mxu0 0.0
        %2582 = vmatprep.subr.mxu0 0.0
        %2583 = vmatpush1.msra.mxu0 0.0
        %2584 = vmatprep.subr.mxu0 0.0
        %2585 = vmatpush1.msra.mxu0 0.0
        %2586 = vmatprep.subr.mxu0 0.0
        %2587 = vmatpush1.msra.mxu0 0.0
        %2588 = vmatprep.mubr.f32.mxu0 0.0
        %2589 = vmatmul.mubr.f32.gmra.mrb[0].mxu0 %v2519
        %v2590 = vpop.f32.mrb[0].mxu0
        %v2591 = vadd.f32 0.0, %v2590
        %v2592 = vpop.f32.mrb[0].mxu0
        %2593 = vmatprep.mubr.f32.mxu0 0.0
        %2594 = vmatmul.mubr.f32.gmra.mrb[0].mxu0 %v2522
        %v2595 = vpop.f32.mrb[0].mxu0
        %v2596 = vadd.f32 0.0, %v2595
        %v2597 = vpop.f32.mrb[0].mxu0
        %2598 = vdwg.mxu0
        %s2599 = scalar_lea.vmem %s5, 24
        %v2600 = vld [vmem:[%s2599] sm:$0xff]
        %v2602 = vsel %vm787, %v2591, 0
        %v2605 = vsel %vm787, %v2596, 0
        %2607 = vmatprep.subr.mxu0 0.0
        %2608 = vmatpush1.msra.mxu0 %v2600
        %2609 = vmatprep.subr.mxu0 0.0
        %2610 = vmatpush1.msra.mxu0 0.0
        %2611 = vmatprep.subr.mxu0 0.0
        %2612 = vmatpush1.msra.mxu0 0.0
        %2613 = vmatprep.subr.mxu0 0.0
        %2614 = vmatpush1.msra.mxu0 0.0
        %2615 = vmatprep.subr.mxu0 0.0
        %2616 = vmatpush1.msra.mxu0 0.0
        %2617 = vmatprep.subr.mxu0 0.0
        %2618 = vmatpush1.msra.mxu0 0.0
        %2619 = vmatprep.subr.mxu0 0.0
        %2620 = vmatpush1.msra.mxu0 0.0
        %2621 = vmatprep.subr.mxu0 0.0
        %2622 = vmatpush1.msra.mxu0 0.0
        %2623 = vmatprep.subr.mxu0 0.0
        %2624 = vmatpush1.msra.mxu0 0.0
        %2625 = vmatprep.subr.mxu0 0.0
        %2626 = vmatpush1.msra.mxu0 0.0
        %2627 = vmatprep.subr.mxu0 0.0
        %2628 = vmatpush1.msra.mxu0 0.0
        %2629 = vmatprep.subr.mxu0 0.0
        %2630 = vmatpush1.msra.mxu0 0.0
        %2631 = vmatprep.subr.mxu0 0.0
        %2632 = vmatpush1.msra.mxu0 0.0
        %2633 = vmatprep.subr.mxu0 0.0
        %2634 = vmatpush1.msra.mxu0 0.0
        %2635 = vmatprep.subr.mxu0 0.0
        %2636 = vmatpush1.msra.mxu0 0.0
        %2637 = vmatprep.subr.mxu0 0.0
        %2638 = vmatpush1.msra.mxu0 0.0
        %2639 = vmatprep.subr.mxu0 0.0
        %2640 = vmatpush1.msra.mxu0 0.0
        %2641 = vmatprep.subr.mxu0 0.0
        %2642 = vmatpush1.msra.mxu0 0.0
        %2643 = vmatprep.subr.mxu0 0.0
        %2644 = vmatpush1.msra.mxu0 0.0
        %2645 = vmatprep.subr.mxu0 0.0
        %2646 = vmatpush1.msra.mxu0 0.0
        %2647 = vmatprep.subr.mxu0 0.0
        %2648 = vmatpush1.msra.mxu0 0.0
        %2649 = vmatprep.subr.mxu0 0.0
        %2650 = vmatpush1.msra.mxu0 0.0
        %2651 = vmatprep.subr.mxu0 0.0
        %2652 = vmatpush1.msra.mxu0 0.0
        %2653 = vmatprep.subr.mxu0 0.0
        %2654 = vmatpush1.msra.mxu0 0.0
        %2655 = vmatprep.subr.mxu0 0.0
        %2656 = vmatpush1.msra.mxu0 0.0
        %2657 = vmatprep.subr.mxu0 0.0
        %2658 = vmatpush1.msra.mxu0 0.0
        %2659 = vmatprep.subr.mxu0 0.0
        %2660 = vmatpush1.msra.mxu0 0.0
        %2661 = vmatprep.subr.mxu0 0.0
        %2662 = vmatpush1.msra.mxu0 0.0
        %2663 = vmatprep.subr.mxu0 0.0
        %2664 = vmatpush1.msra.mxu0 0.0
        %2665 = vmatprep.subr.mxu0 0.0
        %2666 = vmatpush1.msra.mxu0 0.0
        %2667 = vmatprep.subr.mxu0 0.0
        %2668 = vmatpush1.msra.mxu0 0.0
        %2669 = vmatprep.subr.mxu0 0.0
        %2670 = vmatpush1.msra.mxu0 0.0
        %2671 = vmatprep.mubr.f32.mxu0 0.0
        %2672 = vmatmul.mubr.f32.gmra.mrb[0].mxu0 %v2602
        %v2673 = vpop.f32.mrb[0].mxu0
        %v2674 = vadd.f32 0.0, %v2673
        %v2675 = vpop.f32.mrb[0].mxu0
        %2676 = vmatprep.mubr.f32.mxu0 0.0
        %2677 = vmatmul.mubr.f32.gmra.mrb[0].mxu0 %v2605
        %v2678 = vpop.f32.mrb[0].mxu0
        %v2679 = vadd.f32 0.0, %v2678
        %v2680 = vpop.f32.mrb[0].mxu0
        %2681 = vdwg.mxu0
        %v2682 = vadd.f32 %v2141, %v2674
        %v2683 = vadd.f32 %v2142, %v2679
        %v2684 = vld [vmem:[%s6 + $0x4] sm:$0x1]
        %v2685 = vlaneseq
        %v2686 = vshrl.u32 %v2685, 7
        %v2687 = vsub.s32 0, %v2686
        %v2688 = vrot.slane %v2684, %v2687
        %v2689 = vadd.f32 %v2682, %v2688
        %v2690 = vadd.f32 %v2683, %v2688
        %v2691 = vadd.f32 %v2689, %v469
        %v2692 = vadd.f32 %v2690, %v474
        %v2693 = vld [vmem:[%s6 + $0x2] sm:$0x1]
        %v2694 = vld [vmem:[%s6 + $0x3] sm:$0x1]
        %v2695 = vsel %vm479, %v2691, 0.0
        %2696 = vadd.xlane.f32.xlu0 %v2695
        %v2697 = vpop.xlane.xlu0 %2696
        %v2698 = vsel %vm479, %v2692, 0.0
        %2699 = vadd.xlane.f32.xlu0 %v2698
        %v2700 = vpop.xlane.xlu0 %2699
        %v2701 = vmul.f32 %v2697, %v486
        %v2702 = vmul.f32 %v2700, %v486
        %v2703 = vsub.f32 %v2691, %v2701
        %v2704 = vsub.f32 %v2692, %v2702
        %v2705 = vmul.f32 %v2703, %v2703
        %v2706 = vmul.f32 %v2704, %v2704
        %v2707 = vsel %vm479, %v2705, 0.0
        %2708 = vadd.xlane.f32.xlu0 %v2707
        %v2709 = vpop.xlane.xlu0 %2708
        %v2710 = vsel %vm479, %v2706, 0.0
        %2711 = vadd.xlane.f32.xlu0 %v2710
        %v2712 = vpop.xlane.xlu0 %2711
        %v2713 = vmul.f32 %v2709, %v486
        %v2714 = vmul.f32 %v2712, %v486
        %v2715 = vadd.f32 %v2713, 1e-06
        %v2716 = vadd.f32 %v2714, 1e-06
        %v2717 = vrsqrt.pop %v2715
        %v2718 = vrsqrt.pop %v2716
        %v2719 = vmul.f32 %v2703, %v2717
        %v2720 = vmul.f32 %v2704, %v2718
        %v2721 = vlaneseq
        %v2722 = vshrl.u32 %v2721, 7
        %v2723 = vsub.s32 0, %v2722
        %v2724 = vrot.slane %v2693, %v2723
        %v2725 = vmul.f32 %v2719, %v2724
        %v2726 = vmul.f32 %v2720, %v2724
        %v2727 = vlaneseq
        %v2728 = vshrl.u32 %v2727, 7
        %v2729 = vsub.s32 0, %v2728
        %v2730 = vrot.slane %v2694, %v2729
        %v2731 = vadd.f32 %v2725, %v2730
        %v2732 = vadd.f32 %v2726, %v2730
        %v2733 = vld [vmem:[%s7] sm:$0xff]
        %v2734 = vld [vmem:[%s7 + $0x8] sm:$0xff]
        %v2735 = vld [vmem:[%s7 + $0x10] sm:$0xff]
        %v2736 = vld [vmem:[%s7 + $0x18] sm:$0xff]
        %v2737 = vld [vmem:[%s8] sm:$0x1]
        %v2739 = vlaneseq
        %v2740 = vshrl.u32 %v2739, 7
        %v2741 = vsub.s32 0, %v2740
        %v2742 = vrot.slane %v2737, %v2741
        %v2745 = vsel %vm479, %v2731, 0
        %v2748 = vsel %vm479, %v2732, 0
        %2750 = vmatprep.subr.mxu0 0.0
        %2751 = vmatpush1.msra.mxu0 %v2733
        %2752 = vmatprep.subr.mxu0 0.0
        %2753 = vmatpush1.msra.mxu0 %v2734
        %2754 = vmatprep.subr.mxu0 0.0
        %2755 = vmatpush1.msra.mxu0 %v2735
        %2756 = vmatprep.subr.mxu0 0.0
        %2757 = vmatpush1.msra.mxu0 %v2736
        %2758 = vmatprep.subr.mxu0 0.0
        %2759 = vmatpush1.msra.mxu0 0.0
        %2760 = vmatprep.subr.mxu0 0.0
        %2761 = vmatpush1.msra.mxu0 0.0
        %2762 = vmatprep.subr.mxu0 0.0
        %2763 = vmatpush1.msra.mxu0 0.0
        %2764 = vmatprep.subr.mxu0 0.0
        %2765 = vmatpush1.msra.mxu0 0.0
        %2766 = vmatprep.subr.mxu0 0.0
        %2767 = vmatpush1.msra.mxu0 0.0
        %2768 = vmatprep.subr.mxu0 0.0
        %2769 = vmatpush1.msra.mxu0 0.0
        %2770 = vmatprep.subr.mxu0 0.0
        %2771 = vmatpush1.msra.mxu0 0.0
        %2772 = vmatprep.subr.mxu0 0.0
        %2773 = vmatpush1.msra.mxu0 0.0
        %2774 = vmatprep.subr.mxu0 0.0
        %2775 = vmatpush1.msra.mxu0 0.0
        %2776 = vmatprep.subr.mxu0 0.0
        %2777 = vmatpush1.msra.mxu0 0.0
        %2778 = vmatprep.subr.mxu0 0.0
        %2779 = vmatpush1.msra.mxu0 0.0
        %2780 = vmatprep.subr.mxu0 0.0
        %2781 = vmatpush1.msra.mxu0 0.0
        %2782 = vmatprep.subr.mxu0 0.0
        %2783 = vmatpush1.msra.mxu0 0.0
        %2784 = vmatprep.subr.mxu0 0.0
        %2785 = vmatpush1.msra.mxu0 0.0
        %2786 = vmatprep.subr.mxu0 0.0
        %2787 = vmatpush1.msra.mxu0 0.0
        %2788 = vmatprep.subr.mxu0 0.0
        %2789 = vmatpush1.msra.mxu0 0.0
        %2790 = vmatprep.subr.mxu0 0.0
        %2791 = vmatpush1.msra.mxu0 0.0
        %2792 = vmatprep.subr.mxu0 0.0
        %2793 = vmatpush1.msra.mxu0 0.0
        %2794 = vmatprep.subr.mxu0 0.0
        %2795 = vmatpush1.msra.mxu0 0.0
        %2796 = vmatprep.subr.mxu0 0.0
        %2797 = vmatpush1.msra.mxu0 0.0
        %2798 = vmatprep.subr.mxu0 0.0
        %2799 = vmatpush1.msra.mxu0 0.0
        %2800 = vmatprep.subr.mxu0 0.0
        %2801 = vmatpush1.msra.mxu0 0.0
        %2802 = vmatprep.subr.mxu0 0.0
        %2803 = vmatpush1.msra.mxu0 0.0
        %2804 = vmatprep.subr.mxu0 0.0
        %2805 = vmatpush1.msra.mxu0 0.0
        %2806 = vmatprep.subr.mxu0 0.0
        %2807 = vmatpush1.msra.mxu0 0.0
        %2808 = vmatprep.subr.mxu0 0.0
        %2809 = vmatpush1.msra.mxu0 0.0
        %2810 = vmatprep.subr.mxu0 0.0
        %2811 = vmatpush1.msra.mxu0 0.0
        %2812 = vmatprep.subr.mxu0 0.0
        %2813 = vmatpush1.msra.mxu0 0.0
        %2814 = vmatprep.mubr.f32.mxu0 0.0
        %2815 = vmatmul.mubr.f32.gmra.mrb[0].mxu0 %v2745
        %v2816 = vpop.f32.mrb[0].mxu0
        %v2817 = vadd.f32 %v2742, %v2816
        %v2818 = vpop.f32.mrb[0].mxu0
        %2819 = vmatprep.mubr.f32.mxu0 0.0
        %2820 = vmatmul.mubr.f32.gmra.mrb[0].mxu0 %v2748
        %v2821 = vpop.f32.mrb[0].mxu0
        %v2822 = vadd.f32 %v2742, %v2821
        %v2823 = vpop.f32.mrb[0].mxu0
        %2824 = vdwg.mxu0
        %v2825 = vmul.f32 %v2817, 0.5
        %v2826 = vmul.f32 %v2822, 0.5
        %v2827 = vmul.f32 %v2817, 0.70710677
        %v2828 = vmul.f32 %v2822, 0.70710677
        %v2829 = verf.f32.pop %v2827
        %v2830 = verf.f32.pop %v2828
        %v2831 = vadd.f32 %v2829, 1.0
        %v2832 = vadd.f32 %v2830, 1.0
        %v2833 = vmul.f32 %v2825, %v2831
        %v2834 = vmul.f32 %v2826, %v2832
        %v2835 = vld [vmem:[%s9] sm:$0xff]
        %v2836 = vld [vmem:[%s9 + $0x8] sm:$0xff]
        %v2837 = vld [vmem:[%s9 + $0x10] sm:$0xff]
        %v2838 = vld [vmem:[%s9 + $0x18] sm:$0xff]
        %v2839 = vld [vmem:[%s9 + $0x20] sm:$0xff]
        %v2840 = vld [vmem:[%s9 + $0x28] sm:$0xff]
        %v2841 = vld [vmem:[%s9 + $0x30] sm:$0xff]
        %v2842 = vld [vmem:[%s9 + $0x38] sm:$0xff]
        %v2843 = vld [vmem:[%s6 + $0x5] sm:$0x1]
        %v2844 = vlaneseq
        %v2845 = vshrl.u32 %v2844, 7
        %v2846 = vsub.s32 0, %v2845
        %v2847 = vrot.slane %v2843, %v2846
        %vm2848 = vcmask 523264
        %v2850 = vsel %vm2848, %v2833, 0
        %v2853 = vsel %vm2848, %v2834, 0
        %2855 = vmatprep.subr.mxu0 0.0
        %2856 = vmatpush1.msra.mxu0 %v2835
        %2857 = vmatprep.subr.mxu0 0.0
        %2858 = vmatpush1.msra.mxu0 %v2836
        %2859 = vmatprep.subr.mxu0 0.0
        %2860 = vmatpush1.msra.mxu0 %v2837
        %2861 = vmatprep.subr.mxu0 0.0
        %2862 = vmatpush1.msra.mxu0 %v2838
        %2863 = vmatprep.subr.mxu0 0.0
        %2864 = vmatpush1.msra.mxu0 %v2839
        %2865 = vmatprep.subr.mxu0 0.0
        %2866 = vmatpush1.msra.mxu0 %v2840
        %2867 = vmatprep.subr.mxu0 0.0
        %2868 = vmatpush1.msra.mxu0 %v2841
        %2869 = vmatprep.subr.mxu0 0.0
        %2870 = vmatpush1.msra.mxu0 %v2842
        %2871 = vmatprep.subr.mxu0 0.0
        %2872 = vmatpush1.msra.mxu0 0.0
        %2873 = vmatprep.subr.mxu0 0.0
        %2874 = vmatpush1.msra.mxu0 0.0
        %2875 = vmatprep.subr.mxu0 0.0
        %2876 = vmatpush1.msra.mxu0 0.0
        %2877 = vmatprep.subr.mxu0 0.0
        %2878 = vmatpush1.msra.mxu0 0.0
        %2879 = vmatprep.subr.mxu0 0.0
        %2880 = vmatpush1.msra.mxu0 0.0
        %2881 = vmatprep.subr.mxu0 0.0
        %2882 = vmatpush1.msra.mxu0 0.0
        %2883 = vmatprep.subr.mxu0 0.0
        %2884 = vmatpush1.msra.mxu0 0.0
        %2885 = vmatprep.subr.mxu0 0.0
        %2886 = vmatpush1.msra.mxu0 0.0
        %2887 = vmatprep.subr.mxu0 0.0
        %2888 = vmatpush1.msra.mxu0 0.0
        %2889 = vmatprep.subr.mxu0 0.0
        %2890 = vmatpush1.msra.mxu0 0.0
        %2891 = vmatprep.subr.mxu0 0.0
        %2892 = vmatpush1.msra.mxu0 0.0
        %2893 = vmatprep.subr.mxu0 0.0
        %2894 = vmatpush1.msra.mxu0 0.0
        %2895 = vmatprep.subr.mxu0 0.0
        %2896 = vmatpush1.msra.mxu0 0.0
        %2897 = vmatprep.subr.mxu0 0.0
        %2898 = vmatpush1.msra.mxu0 0.0
        %2899 = vmatprep.subr.mxu0 0.0
        %2900 = vmatpush1.msra.mxu0 0.0
        %2901 = vmatprep.subr.mxu0 0.0
        %2902 = vmatpush1.msra.mxu0 0.0
        %2903 = vmatprep.subr.mxu0 0.0
        %2904 = vmatpush1.msra.mxu0 0.0
        %2905 = vmatprep.subr.mxu0 0.0
        %2906 = vmatpush1.msra.mxu0 0.0
        %2907 = vmatprep.subr.mxu0 0.0
        %2908 = vmatpush1.msra.mxu0 0.0
        %2909 = vmatprep.subr.mxu0 0.0
        %2910 = vmatpush1.msra.mxu0 0.0
        %2911 = vmatprep.subr.mxu0 0.0
        %2912 = vmatpush1.msra.mxu0 0.0
        %2913 = vmatprep.subr.mxu0 0.0
        %2914 = vmatpush1.msra.mxu0 0.0
        %2915 = vmatprep.subr.mxu0 0.0
        %2916 = vmatpush1.msra.mxu0 0.0
        %2917 = vmatprep.subr.mxu0 0.0
        %2918 = vmatpush1.msra.mxu0 0.0
        %2919 = vmatprep.mubr.f32.mxu0 0.0
        %2920 = vmatmul.mubr.f32.gmra.mrb[0].mxu0 %v2850
        %v2921 = vpop.f32.mrb[0].mxu0
        %v2922 = vadd.f32 %v2847, %v2921
        %v2923 = vpop.f32.mrb[0].mxu0
        %2924 = vmatprep.mubr.f32.mxu0 0.0
        %2925 = vmatmul.mubr.f32.gmra.mrb[0].mxu0 %v2853
        %v2926 = vpop.f32.mrb[0].mxu0
        %v2927 = vadd.f32 %v2847, %v2926
        %v2928 = vpop.f32.mrb[0].mxu0
        %2929 = vdwg.mxu0
        %v2930 = vadd.f32 %v2922, %v2691
        %v2931 = vadd.f32 %v2927, %v2692
        %s2932 = scalar_lea.vmem %s6, 8
        %v2933 = vld [vmem:[%s2932] sm:$0x1]
        %v2934 = vld [vmem:[%s2932 + $0x1] sm:$0x1]
        %v2935 = vsel %vm479, %v2930, 0.0
        %2936 = vadd.xlane.f32.xlu0 %v2935
        %v2937 = vpop.xlane.xlu0 %2936
        %v2938 = vsel %vm479, %v2931, 0.0
        %2939 = vadd.xlane.f32.xlu0 %v2938
        %v2940 = vpop.xlane.xlu0 %2939
        %v2941 = vmul.f32 %v2937, %v486
        %v2942 = vmul.f32 %v2940, %v486
        %v2943 = vsub.f32 %v2930, %v2941
        %v2944 = vsub.f32 %v2931, %v2942
        %v2945 = vmul.f32 %v2943, %v2943
        %v2946 = vmul.f32 %v2944, %v2944
        %v2947 = vsel %vm479, %v2945, 0.0
        %2948 = vadd.xlane.f32.xlu0 %v2947
        %v2949 = vpop.xlane.xlu0 %2948
        %v2950 = vsel %vm479, %v2946, 0.0
        %2951 = vadd.xlane.f32.xlu0 %v2950
        %v2952 = vpop.xlane.xlu0 %2951
        %v2953 = vmul.f32 %v2949, %v486
        %v2954 = vmul.f32 %v2952, %v486
        %v2955 = vadd.f32 %v2953, 1e-06
        %v2956 = vadd.f32 %v2954, 1e-06
        %v2957 = vrsqrt.pop %v2955
        %v2958 = vrsqrt.pop %v2956
        %v2959 = vmul.f32 %v2943, %v2957
        %v2960 = vmul.f32 %v2944, %v2958
        %v2961 = vlaneseq
        %v2962 = vshrl.u32 %v2961, 7
        %v2963 = vsub.s32 0, %v2962
        %v2964 = vrot.slane %v2933, %v2963
        %v2965 = vmul.f32 %v2959, %v2964
        %v2966 = vmul.f32 %v2960, %v2964
        %v2967 = vlaneseq
        %v2968 = vshrl.u32 %v2967, 7
        %v2969 = vsub.s32 0, %v2968
        %v2970 = vrot.slane %v2934, %v2969
        %v2971 = vadd.f32 %v2965, %v2970
        %v2972 = vadd.f32 %v2966, %v2970
        %s2973 = scalar_lea.vmem %s3, 384
        %v2974 = vld [vmem:[%s2973] sm:$0xff]
        %v2975 = vld [vmem:[%s2973 + $0x8] sm:$0xff]
        %v2976 = vld [vmem:[%s2973 + $0x10] sm:$0xff]
        %v2977 = vld [vmem:[%s2973 + $0x18] sm:$0xff]
        %s2978 = scalar_lea.vmem %s4, 12
        %v2979 = vld [vmem:[%s2978] sm:$0x1]
        %v2981 = vlaneseq
        %v2982 = vshrl.u32 %v2981, 7
        %v2983 = vsub.s32 0, %v2982
        %v2984 = vrot.slane %v2979, %v2983
        %v2987 = vsel %vm479, %v2971, 0
        %v2990 = vsel %vm479, %v2972, 0
        %2992 = vmatprep.subr.mxu0 0.0
        %2993 = vmatpush1.msra.mxu0 %v2974
        %2994 = vmatprep.subr.mxu0 0.0
        %2995 = vmatpush1.msra.mxu0 %v2975
        %2996 = vmatprep.subr.mxu0 0.0
        %2997 = vmatpush1.msra.mxu0 %v2976
        %2998 = vmatprep.subr.mxu0 0.0
        %2999 = vmatpush1.msra.mxu0 %v2977
        %3000 = vmatprep.subr.mxu0 0.0
        %3001 = vmatpush1.msra.mxu0 0.0
        %3002 = vmatprep.subr.mxu0 0.0
        %3003 = vmatpush1.msra.mxu0 0.0
        %3004 = vmatprep.subr.mxu0 0.0
        %3005 = vmatpush1.msra.mxu0 0.0
        %3006 = vmatprep.subr.mxu0 0.0
        %3007 = vmatpush1.msra.mxu0 0.0
        %3008 = vmatprep.subr.mxu0 0.0
        %3009 = vmatpush1.msra.mxu0 0.0
        %3010 = vmatprep.subr.mxu0 0.0
        %3011 = vmatpush1.msra.mxu0 0.0
        %3012 = vmatprep.subr.mxu0 0.0
        %3013 = vmatpush1.msra.mxu0 0.0
        %3014 = vmatprep.subr.mxu0 0.0
        %3015 = vmatpush1.msra.mxu0 0.0
        %3016 = vmatprep.subr.mxu0 0.0
        %3017 = vmatpush1.msra.mxu0 0.0
        %3018 = vmatprep.subr.mxu0 0.0
        %3019 = vmatpush1.msra.mxu0 0.0
        %3020 = vmatprep.subr.mxu0 0.0
        %3021 = vmatpush1.msra.mxu0 0.0
        %3022 = vmatprep.subr.mxu0 0.0
        %3023 = vmatpush1.msra.mxu0 0.0
        %3024 = vmatprep.subr.mxu0 0.0
        %3025 = vmatpush1.msra.mxu0 0.0
        %3026 = vmatprep.subr.mxu0 0.0
        %3027 = vmatpush1.msra.mxu0 0.0
        %3028 = vmatprep.subr.mxu0 0.0
        %3029 = vmatpush1.msra.mxu0 0.0
        %3030 = vmatprep.subr.mxu0 0.0
        %3031 = vmatpush1.msra.mxu0 0.0
        %3032 = vmatprep.subr.mxu0 0.0
        %3033 = vmatpush1.msra.mxu0 0.0
        %3034 = vmatprep.subr.mxu0 0.0
        %3035 = vmatpush1.msra.mxu0 0.0
        %3036 = vmatprep.subr.mxu0 0.0
        %3037 = vmatpush1.msra.mxu0 0.0
        %3038 = vmatprep.subr.mxu0 0.0
        %3039 = vmatpush1.msra.mxu0 0.0
        %3040 = vmatprep.subr.mxu0 0.0
        %3041 = vmatpush1.msra.mxu0 0.0
        %3042 = vmatprep.subr.mxu0 0.0
        %3043 = vmatpush1.msra.mxu0 0.0
        %3044 = vmatprep.subr.mxu0 0.0
        %3045 = vmatpush1.msra.mxu0 0.0
        %3046 = vmatprep.subr.mxu0 0.0
        %3047 = vmatpush1.msra.mxu0 0.0
        %3048 = vmatprep.subr.mxu0 0.0
        %3049 = vmatpush1.msra.mxu0 0.0
        %3050 = vmatprep.subr.mxu0 0.0
        %3051 = vmatpush1.msra.mxu0 0.0
        %3052 = vmatprep.subr.mxu0 0.0
        %3053 = vmatpush1.msra.mxu0 0.0
        %3054 = vmatprep.subr.mxu0 0.0
        %3055 = vmatpush1.msra.mxu0 0.0
        %3056 = vmatprep.mubr.f32.mxu0 0.0
        %3057 = vmatmul.mubr.f32.gmra.mrb[0].mxu0 %v2987
        %v3058 = vpop.f32.mrb[0].mxu0
        %v3059 = vadd.f32 %v2984, %v3058
        %v3060 = vpop.f32.mrb[0].mxu0
        %3061 = vmatprep.mubr.f32.mxu0 0.0
        %3062 = vmatmul.mubr.f32.gmra.mrb[0].mxu0 %v2990
        %v3063 = vpop.f32.mrb[0].mxu0
        %v3064 = vadd.f32 %v2984, %v3063
        %v3065 = vpop.f32.mrb[0].mxu0
        %3066 = vdwg.mxu0
        %s3067 = scalar_lea.vmem %s3, 512
        %v3068 = vld [vmem:[%s3067] sm:$0xff]
        %v3069 = vld [vmem:[%s3067 + $0x8] sm:$0xff]
        %v3070 = vld [vmem:[%s3067 + $0x10] sm:$0xff]
        %v3071 = vld [vmem:[%s3067 + $0x18] sm:$0xff]
        %s3072 = scalar_lea.vmem %s4, 16
        %v3073 = vld [vmem:[%s3072] sm:$0x1]
        %v3075 = vlaneseq
        %v3076 = vshrl.u32 %v3075, 7
        %v3077 = vsub.s32 0, %v3076
        %v3078 = vrot.slane %v3073, %v3077
        %3080 = vmatprep.subr.mxu0 0.0
        %3081 = vmatpush1.msra.mxu0 %v3068
        %3082 = vmatprep.subr.mxu0 0.0
        %3083 = vmatpush1.msra.mxu0 %v3069
        %3084 = vmatprep.subr.mxu0 0.0
        %3085 = vmatpush1.msra.mxu0 %v3070
        %3086 = vmatprep.subr.mxu0 0.0
        %3087 = vmatpush1.msra.mxu0 %v3071
        %3088 = vmatprep.subr.mxu0 0.0
        %3089 = vmatpush1.msra.mxu0 0.0
        %3090 = vmatprep.subr.mxu0 0.0
        %3091 = vmatpush1.msra.mxu0 0.0
        %3092 = vmatprep.subr.mxu0 0.0
        %3093 = vmatpush1.msra.mxu0 0.0
        %3094 = vmatprep.subr.mxu0 0.0
        %3095 = vmatpush1.msra.mxu0 0.0
        %3096 = vmatprep.subr.mxu0 0.0
        %3097 = vmatpush1.msra.mxu0 0.0
        %3098 = vmatprep.subr.mxu0 0.0
        %3099 = vmatpush1.msra.mxu0 0.0
        %3100 = vmatprep.subr.mxu0 0.0
        %3101 = vmatpush1.msra.mxu0 0.0
        %3102 = vmatprep.subr.mxu0 0.0
        %3103 = vmatpush1.msra.mxu0 0.0
        %3104 = vmatprep.subr.mxu0 0.0
        %3105 = vmatpush1.msra.mxu0 0.0
        %3106 = vmatprep.subr.mxu0 0.0
        %3107 = vmatpush1.msra.mxu0 0.0
        %3108 = vmatprep.subr.mxu0 0.0
        %3109 = vmatpush1.msra.mxu0 0.0
        %3110 = vmatprep.subr.mxu0 0.0
        %3111 = vmatpush1.msra.mxu0 0.0
        %3112 = vmatprep.subr.mxu0 0.0
        %3113 = vmatpush1.msra.mxu0 0.0
        %3114 = vmatprep.subr.mxu0 0.0
        %3115 = vmatpush1.msra.mxu0 0.0
        %3116 = vmatprep.subr.mxu0 0.0
        %3117 = vmatpush1.msra.mxu0 0.0
        %3118 = vmatprep.subr.mxu0 0.0
        %3119 = vmatpush1.msra.mxu0 0.0
        %3120 = vmatprep.subr.mxu0 0.0
        %3121 = vmatpush1.msra.mxu0 0.0
        %3122 = vmatprep.subr.mxu0 0.0
        %3123 = vmatpush1.msra.mxu0 0.0
        %3124 = vmatprep.subr.mxu0 0.0
        %3125 = vmatpush1.msra.mxu0 0.0
        %3126 = vmatprep.subr.mxu0 0.0
        %3127 = vmatpush1.msra.mxu0 0.0
        %3128 = vmatprep.subr.mxu0 0.0
        %3129 = vmatpush1.msra.mxu0 0.0
        %3130 = vmatprep.subr.mxu0 0.0
        %3131 = vmatpush1.msra.mxu0 0.0
        %3132 = vmatprep.subr.mxu0 0.0
        %3133 = vmatpush1.msra.mxu0 0.0
        %3134 = vmatprep.subr.mxu0 0.0
        %3135 = vmatpush1.msra.mxu0 0.0
        %3136 = vmatprep.subr.mxu0 0.0
        %3137 = vmatpush1.msra.mxu0 0.0
        %3138 = vmatprep.subr.mxu0 0.0
        %3139 = vmatpush1.msra.mxu0 0.0
        %3140 = vmatprep.subr.mxu0 0.0
        %3141 = vmatpush1.msra.mxu0 0.0
        %3142 = vmatprep.subr.mxu0 0.0
        %3143 = vmatpush1.msra.mxu0 0.0
        %3144 = vmatprep.mubr.f32.mxu0 0.0
        %3145 = vmatmul.mubr.f32.gmra.mrb[0].mxu0 %v2987
        %v3146 = vpop.f32.mrb[0].mxu0
        %v3147 = vadd.f32 %v3078, %v3146
        %v3148 = vpop.f32.mrb[0].mxu0
        %3149 = vmatprep.mubr.f32.mxu0 0.0
        %3150 = vmatmul.mubr.f32.gmra.mrb[0].mxu0 %v2990
        %v3151 = vpop.f32.mrb[0].mxu0
        %v3152 = vadd.f32 %v3078, %v3151
        %v3153 = vpop.f32.mrb[0].mxu0
        %3154 = vdwg.mxu0
        %s3155 = scalar_lea.vmem %s3, 640
        %v3156 = vld [vmem:[%s3155] sm:$0xff]
        %v3157 = vld [vmem:[%s3155 + $0x8] sm:$0xff]
        %v3158 = vld [vmem:[%s3155 + $0x10] sm:$0xff]
        %v3159 = vld [vmem:[%s3155 + $0x18] sm:$0xff]
        %s3160 = scalar_lea.vmem %s4, 20
        %v3161 = vld [vmem:[%s3160] sm:$0x1]
        %v3163 = vlaneseq
        %v3164 = vshrl.u32 %v3163, 7
        %v3165 = vsub.s32 0, %v3164
        %v3166 = vrot.slane %v3161, %v3165
        %3168 = vmatprep.subr.mxu0 0.0
        %3169 = vmatpush1.msra.mxu0 %v3156
        %3170 = vmatprep.subr.mxu0 0.0
        %3171 = vmatpush1.msra.mxu0 %v3157
        %3172 = vmatprep.subr.mxu0 0.0
        %3173 = vmatpush1.msra.mxu0 %v3158
        %3174 = vmatprep.subr.mxu0 0.0
        %3175 = vmatpush1.msra.mxu0 %v3159
        %3176 = vmatprep.subr.mxu0 0.0
        %3177 = vmatpush1.msra.mxu0 0.0
        %3178 = vmatprep.subr.mxu0 0.0
        %3179 = vmatpush1.msra.mxu0 0.0
        %3180 = vmatprep.subr.mxu0 0.0
        %3181 = vmatpush1.msra.mxu0 0.0
        %3182 = vmatprep.subr.mxu0 0.0
        %3183 = vmatpush1.msra.mxu0 0.0
        %3184 = vmatprep.subr.mxu0 0.0
        %3185 = vmatpush1.msra.mxu0 0.0
        %3186 = vmatprep.subr.mxu0 0.0
        %3187 = vmatpush1.msra.mxu0 0.0
        %3188 = vmatprep.subr.mxu0 0.0
        %3189 = vmatpush1.msra.mxu0 0.0
        %3190 = vmatprep.subr.mxu0 0.0
        %3191 = vmatpush1.msra.mxu0 0.0
        %3192 = vmatprep.subr.mxu0 0.0
        %3193 = vmatpush1.msra.mxu0 0.0
        %3194 = vmatprep.subr.mxu0 0.0
        %3195 = vmatpush1.msra.mxu0 0.0
        %3196 = vmatprep.subr.mxu0 0.0
        %3197 = vmatpush1.msra.mxu0 0.0
        %3198 = vmatprep.subr.mxu0 0.0
        %3199 = vmatpush1.msra.mxu0 0.0
        %3200 = vmatprep.subr.mxu0 0.0
        %3201 = vmatpush1.msra.mxu0 0.0
        %3202 = vmatprep.subr.mxu0 0.0
        %3203 = vmatpush1.msra.mxu0 0.0
        %3204 = vmatprep.subr.mxu0 0.0
        %3205 = vmatpush1.msra.mxu0 0.0
        %3206 = vmatprep.subr.mxu0 0.0
        %3207 = vmatpush1.msra.mxu0 0.0
        %3208 = vmatprep.subr.mxu0 0.0
        %3209 = vmatpush1.msra.mxu0 0.0
        %3210 = vmatprep.subr.mxu0 0.0
        %3211 = vmatpush1.msra.mxu0 0.0
        %3212 = vmatprep.subr.mxu0 0.0
        %3213 = vmatpush1.msra.mxu0 0.0
        %3214 = vmatprep.subr.mxu0 0.0
        %3215 = vmatpush1.msra.mxu0 0.0
        %3216 = vmatprep.subr.mxu0 0.0
        %3217 = vmatpush1.msra.mxu0 0.0
        %3218 = vmatprep.subr.mxu0 0.0
        %3219 = vmatpush1.msra.mxu0 0.0
        %3220 = vmatprep.subr.mxu0 0.0
        %3221 = vmatpush1.msra.mxu0 0.0
        %3222 = vmatprep.subr.mxu0 0.0
        %3223 = vmatpush1.msra.mxu0 0.0
        %3224 = vmatprep.subr.mxu0 0.0
        %3225 = vmatpush1.msra.mxu0 0.0
        %3226 = vmatprep.subr.mxu0 0.0
        %3227 = vmatpush1.msra.mxu0 0.0
        %3228 = vmatprep.subr.mxu0 0.0
        %3229 = vmatpush1.msra.mxu0 0.0
        %3230 = vmatprep.subr.mxu0 0.0
        %3231 = vmatpush1.msra.mxu0 0.0
        %3232 = vmatprep.mubr.f32.mxu0 0.0
        %3233 = vmatmul.mubr.f32.gmra.mrb[0].mxu0 %v2987
        %v3234 = vpop.f32.mrb[0].mxu0
        %v3235 = vadd.f32 %v3166, %v3234
        %v3236 = vpop.f32.mrb[0].mxu0
        %3237 = vmatprep.mubr.f32.mxu0 0.0
        %3238 = vmatmul.mubr.f32.gmra.mrb[0].mxu0 %v2990
        %v3239 = vpop.f32.mrb[0].mxu0
        %v3240 = vadd.f32 %v3166, %v3239
        %v3241 = vpop.f32.mrb[0].mxu0
        %3242 = vdwg.mxu0
        %v3244 = vsel %vm787, %v3059, 0
        %v3247 = vsel %vm787, %v3064, 0
        %v3250 = vsel %vm787, %v3147, 0
        %v3253 = vsel %vm787, %v3152, 0
        %3255 = vmatprep.subr.mxu0 0.0
        %3256 = vmatpush1.xpose.msra.mxu0 %v3250
        %3257 = vmatprep.subr.mxu0 0.0
        %3258 = vmatpush1.xpose.msra.mxu0 %v3253
        %3259 = vmatprep.subr.mxu0 0.0
        %3260 = vmatpush1.xpose.msra.mxu0 0.0
        %3261 = vmatprep.subr.mxu0 0.0
        %3262 = vmatpush1.xpose.msra.mxu0 0.0
        %3263 = vmatprep.subr.mxu0 0.0
        %3264 = vmatpush1.xpose.msra.mxu0 0.0
        %3265 = vmatprep.subr.mxu0 0.0
        %3266 = vmatpush1.xpose.msra.mxu0 0.0
        %3267 = vmatprep.subr.mxu0 0.0
        %3268 = vmatpush1.xpose.msra.mxu0 0.0
        %3269 = vmatprep.subr.mxu0 0.0
        %3270 = vmatpush1.xpose.msra.mxu0 0.0
        %3271 = vmatprep.subr.mxu0 0.0
        %3272 = vmatpush1.xpose.msra.mxu0 0.0
        %3273 = vmatprep.subr.mxu0 0.0
        %3274 = vmatpush1.xpose.msra.mxu0 0.0
        %3275 = vmatprep.subr.mxu0 0.0
        %3276 = vmatpush1.xpose.msra.mxu0 0.0
        %3277 = vmatprep.subr.mxu0 0.0
        %3278 = vmatpush1.xpose.msra.mxu0 0.0
        %3279 = vmatprep.subr.mxu0 0.0
        %3280 = vmatpush1.xpose.msra.mxu0 0.0
        %3281 = vmatprep.subr.mxu0 0.0
        %3282 = vmatpush1.xpose.msra.mxu0 0.0
        %3283 = vmatprep.subr.mxu0 0.0
        %3284 = vmatpush1.xpose.msra.mxu0 0.0
        %3285 = vmatprep.subr.mxu0 0.0
        %3286 = vmatpush1.xpose.msra.mxu0 0.0
        %3287 = vmatprep.subr.mxu0 0.0
        %3288 = vmatpush1.xpose.msra.mxu0 0.0
        %3289 = vmatprep.subr.mxu0 0.0
        %3290 = vmatpush1.xpose.msra.mxu0 0.0
        %3291 = vmatprep.subr.mxu0 0.0
        %3292 = vmatpush1.xpose.msra.mxu0 0.0
        %3293 = vmatprep.subr.mxu0 0.0
        %3294 = vmatpush1.xpose.msra.mxu0 0.0
        %3295 = vmatprep.subr.mxu0 0.0
        %3296 = vmatpush1.xpose.msra.mxu0 0.0
        %3297 = vmatprep.subr.mxu0 0.0
        %3298 = vmatpush1.xpose.msra.mxu0 0.0
        %3299 = vmatprep.subr.mxu0 0.0
        %3300 = vmatpush1.xpose.msra.mxu0 0.0
        %3301 = vmatprep.subr.mxu0 0.0
        %3302 = vmatpush1.xpose.msra.mxu0 0.0
        %3303 = vmatprep.subr.mxu0 0.0
        %3304 = vmatpush1.xpose.msra.mxu0 0.0
        %3305 = vmatprep.subr.mxu0 0.0
        %3306 = vmatpush1.xpose.msra.mxu0 0.0
        %3307 = vmatprep.subr.mxu0 0.0
        %3308 = vmatpush1.xpose.msra.mxu0 0.0
        %3309 = vmatprep.subr.mxu0 0.0
        %3310 = vmatpush1.xpose.msra.mxu0 0.0
        %3311 = vmatprep.subr.mxu0 0.0
        %3312 = vmatpush1.xpose.msra.mxu0 0.0
        %3313 = vmatprep.subr.mxu0 0.0
        %3314 = vmatpush1.xpose.msra.mxu0 0.0
        %3315 = vmatprep.subr.mxu0 0.0
        %3316 = vmatpush1.xpose.msra.mxu0 0.0
        %3317 = vmatprep.subr.mxu0 0.0
        %3318 = vmatpush1.xpose.msra.mxu0 0.0
        %3319 = vmatprep.mubr.f32.mxu0 0.0
        %3320 = vmatmul.mubr.f32.gmra.mrb[0].mxu0 %v3244
        %v3321 = vpop.f32.mrb[0].mxu0
        %v3322 = vadd.f32 0.0, %v3321
        %v3323 = vpop.f32.mrb[0].mxu0
        %3324 = vmatprep.mubr.f32.mxu0 0.0
        %3325 = vmatmul.mubr.f32.gmra.mrb[0].mxu0 %v3247
        %v3326 = vpop.f32.mrb[0].mxu0
        %v3327 = vadd.f32 0.0, %v3326
        %v3328 = vpop.f32.mrb[0].mxu0
        %3329 = vdwg.mxu0
        %v3330 = vmul.f32 %v3322, 0.35355338
        %v3331 = vmul.f32 %v3327, 0.35355338
        %v3332 = vsel %vm877, %v3330, -inf
        %3333 = vmax.xlane.f32.xlu0 %v3332
        %v3334 = vpop.xlane.xlu0 %3333
        %v3335 = vsel %vm877, %v3331, -inf
        %3336 = vmax.xlane.f32.xlu0 %v3335
        %v3337 = vpop.xlane.xlu0 %3336
        %v3338 = vsub.f32 %v3330, %v3334
        %v3339 = vsub.f32 %v3331, %v3337
        %v3340 = vmul.f32 %v3338, 1.442695
        %v3341 = vpow.pop %v3340
        %v3342 = vmul.f32 %v3339, 1.442695
        %v3343 = vpow.pop %v3342
        %v3344 = vsel %vm877, %v3341, 0.0
        %3345 = vadd.xlane.f32.xlu0 %v3344
        %v3346 = vpop.xlane.xlu0 %3345
        %v3347 = vsel %vm877, %v3343, 0.0
        %3348 = vadd.xlane.f32.xlu0 %v3347
        %v3349 = vpop.xlane.xlu0 %3348
        %v3350 = vrcp.pop %v3346
        %v3351 = vrcp.pop %v3349
        %v3352 = vmul.f32 %v3341, %v3350
        %v3353 = vmul.f32 %v3343, %v3351
        %v3355 = vsel %vm877, %v3352, 0
        %v3358 = vsel %vm877, %v3353, 0
        %3360 = vmatprep.subr.mxu0 0.0
        %3361 = vmatpush1.msra.mxu0 %v3235
        %3362 = vmatprep.subr.mxu0 0.0
        %3363 = vmatpush1.msra.mxu0 %v3240
        %3364 = vmatprep.subr.mxu0 0.0
        %3365 = vmatpush1.msra.mxu0 0.0
        %3366 = vmatprep.subr.mxu0 0.0
        %3367 = vmatpush1.msra.mxu0 0.0
        %3368 = vmatprep.subr.mxu0 0.0
        %3369 = vmatpush1.msra.mxu0 0.0
        %3370 = vmatprep.subr.mxu0 0.0
        %3371 = vmatpush1.msra.mxu0 0.0
        %3372 = vmatprep.subr.mxu0 0.0
        %3373 = vmatpush1.msra.mxu0 0.0
        %3374 = vmatprep.subr.mxu0 0.0
        %3375 = vmatpush1.msra.mxu0 0.0
        %3376 = vmatprep.subr.mxu0 0.0
        %3377 = vmatpush1.msra.mxu0 0.0
        %3378 = vmatprep.subr.mxu0 0.0
        %3379 = vmatpush1.msra.mxu0 0.0
        %3380 = vmatprep.subr.mxu0 0.0
        %3381 = vmatpush1.msra.mxu0 0.0
        %3382 = vmatprep.subr.mxu0 0.0
        %3383 = vmatpush1.msra.mxu0 0.0
        %3384 = vmatprep.subr.mxu0 0.0
        %3385 = vmatpush1.msra.mxu0 0.0
        %3386 = vmatprep.subr.mxu0 0.0
        %3387 = vmatpush1.msra.mxu0 0.0
        %3388 = vmatprep.subr.mxu0 0.0
        %3389 = vmatpush1.msra.mxu0 0.0
        %3390 = vmatprep.subr.mxu0 0.0
        %3391 = vmatpush1.msra.mxu0 0.0
        %3392 = vmatprep.subr.mxu0 0.0
        %3393 = vmatpush1.msra.mxu0 0.0
        %3394 = vmatprep.subr.mxu0 0.0
        %3395 = vmatpush1.msra.mxu0 0.0
        %3396 = vmatprep.subr.mxu0 0.0
        %3397 = vmatpush1.msra.mxu0 0.0
        %3398 = vmatprep.subr.mxu0 0.0
        %3399 = vmatpush1.msra.mxu0 0.0
        %3400 = vmatprep.subr.mxu0 0.0
        %3401 = vmatpush1.msra.mxu0 0.0
        %3402 = vmatprep.subr.mxu0 0.0
        %3403 = vmatpush1.msra.mxu0 0.0
        %3404 = vmatprep.subr.mxu0 0.0
        %3405 = vmatpush1.msra.mxu0 0.0
        %3406 = vmatprep.subr.mxu0 0.0
        %3407 = vmatpush1.msra.mxu0 0.0
        %3408 = vmatprep.subr.mxu0 0.0
        %3409 = vmatpush1.msra.mxu0 0.0
        %3410 = vmatprep.subr.mxu0 0.0
        %3411 = vmatpush1.msra.mxu0 0.0
        %3412 = vmatprep.subr.mxu0 0.0
        %3413 = vmatpush1.msra.mxu0 0.0
        %3414 = vmatprep.subr.mxu0 0.0
        %3415 = vmatpush1.msra.mxu0 0.0
        %3416 = vmatprep.subr.mxu0 0.0
        %3417 = vmatpush1.msra.mxu0 0.0
        %3418 = vmatprep.subr.mxu0 0.0
        %3419 = vmatpush1.msra.mxu0 0.0
        %3420 = vmatprep.subr.mxu0 0.0
        %3421 = vmatpush1.msra.mxu0 0.0
        %3422 = vmatprep.subr.mxu0 0.0
        %3423 = vmatpush1.msra.mxu0 0.0
        %3424 = vmatprep.mubr.f32.mxu0 0.0
        %3425 = vmatmul.mubr.f32.gmra.mrb[0].mxu0 %v3355
        %v3426 = vpop.f32.mrb[0].mxu0
        %v3427 = vadd.f32 0.0, %v3426
        %v3428 = vpop.f32.mrb[0].mxu0
        %3429 = vmatprep.mubr.f32.mxu0 0.0
        %3430 = vmatmul.mubr.f32.gmra.mrb[0].mxu0 %v3358
        %v3431 = vpop.f32.mrb[0].mxu0
        %v3432 = vadd.f32 0.0, %v3431
        %v3433 = vpop.f32.mrb[0].mxu0
        %3434 = vdwg.mxu0
        %s3435 = scalar_lea.vmem %s5, 32
        %v3436 = vld [vmem:[%s3435] sm:$0xff]
        %s3437 = scalar_lea.vmem %s3, 416
        %v3438 = vld [vmem:[%s3437] sm:$0xff]
        %v3439 = vld [vmem:[%s3437 + $0x8] sm:$0xff]
        %v3440 = vld [vmem:[%s3437 + $0x10] sm:$0xff]
        %v3441 = vld [vmem:[%s3437 + $0x18] sm:$0xff]
        %s3442 = scalar_lea.vmem %s4, 13
        %v3443 = vld [vmem:[%s3442] sm:$0x1]
        %v3445 = vlaneseq
        %v3446 = vshrl.u32 %v3445, 7
        %v3447 = vsub.s32 0, %v3446
        %v3448 = vrot.slane %v3443, %v3447
        %3450 = vmatprep.subr.mxu0 0.0
        %3451 = vmatpush1.msra.mxu0 %v3438
        %3452 = vmatprep.subr.mxu0 0.0
        %3453 = vmatpush1.msra.mxu0 %v3439
        %3454 = vmatprep.subr.mxu0 0.0
        %3455 = vmatpush1.msra.mxu0 %v3440
        %3456 = vmatprep.subr.mxu0 0.0
        %3457 = vmatpush1.msra.mxu0 %v3441
        %3458 = vmatprep.subr.mxu0 0.0
        %3459 = vmatpush1.msra.mxu0 0.0
        %3460 = vmatprep.subr.mxu0 0.0
        %3461 = vmatpush1.msra.mxu0 0.0
        %3462 = vmatprep.subr.mxu0 0.0
        %3463 = vmatpush1.msra.mxu0 0.0
        %3464 = vmatprep.subr.mxu0 0.0
        %3465 = vmatpush1.msra.mxu0 0.0
        %3466 = vmatprep.subr.mxu0 0.0
        %3467 = vmatpush1.msra.mxu0 0.0
        %3468 = vmatprep.subr.mxu0 0.0
        %3469 = vmatpush1.msra.mxu0 0.0
        %3470 = vmatprep.subr.mxu0 0.0
        %3471 = vmatpush1.msra.mxu0 0.0
        %3472 = vmatprep.subr.mxu0 0.0
        %3473 = vmatpush1.msra.mxu0 0.0
        %3474 = vmatprep.subr.mxu0 0.0
        %3475 = vmatpush1.msra.mxu0 0.0
        %3476 = vmatprep.subr.mxu0 0.0
        %3477 = vmatpush1.msra.mxu0 0.0
        %3478 = vmatprep.subr.mxu0 0.0
        %3479 = vmatpush1.msra.mxu0 0.0
        %3480 = vmatprep.subr.mxu0 0.0
        %3481 = vmatpush1.msra.mxu0 0.0
        %3482 = vmatprep.subr.mxu0 0.0
        %3483 = vmatpush1.msra.mxu0 0.0
        %3484 = vmatprep.subr.mxu0 0.0
        %3485 = vmatpush1.msra.mxu0 0.0
        %3486 = vmatprep.subr.mxu0 0.0
        %3487 = vmatpush1.msra.mxu0 0.0
        %3488 = vmatprep.subr.mxu0 0.0
        %3489 = vmatpush1.msra.mxu0 0.0
        %3490 = vmatprep.subr.mxu0 0.0
        %3491 = vmatpush1.msra.mxu0 0.0
        %3492 = vmatprep.subr.mxu0 0.0
        %3493 = vmatpush1.msra.mxu0 0.0
        %3494 = vmatprep.subr.mxu0 0.0
        %3495 = vmatpush1.msra.mxu0 0.0
        %3496 = vmatprep.subr.mxu0 0.0
        %3497 = vmatpush1.msra.mxu0 0.0
        %3498 = vmatprep.subr.mxu0 0.0
        %3499 = vmatpush1.msra.mxu0 0.0
        %3500 = vmatprep.subr.mxu0 0.0
        %3501 = vmatpush1.msra.mxu0 0.0
        %3502 = vmatprep.subr.mxu0 0.0
        %3503 = vmatpush1.msra.mxu0 0.0
        %3504 = vmatprep.subr.mxu0 0.0
        %3505 = vmatpush1.msra.mxu0 0.0
        %3506 = vmatprep.subr.mxu0 0.0
        %3507 = vmatpush1.msra.mxu0 0.0
        %3508 = vmatprep.subr.mxu0 0.0
        %3509 = vmatpush1.msra.mxu0 0.0
        %3510 = vmatprep.subr.mxu0 0.0
        %3511 = vmatpush1.msra.mxu0 0.0
        %3512 = vmatprep.subr.mxu0 0.0
        %3513 = vmatpush1.msra.mxu0 0.0
        %3514 = vmatprep.mubr.f32.mxu0 0.0
        %3515 = vmatmul.mubr.f32.gmra.mrb[0].mxu0 %v2987
        %v3516 = vpop.f32.mrb[0].mxu0
        %v3517 = vadd.f32 %v3448, %v3516
        %v3518 = vpop.f32.mrb[0].mxu0
        %3519 = vmatprep.mubr.f32.mxu0 0.0
        %3520 = vmatmul.mubr.f32.gmra.mrb[0].mxu0 %v2990
        %v3521 = vpop.f32.mrb[0].mxu0
        %v3522 = vadd.f32 %v3448, %v3521
        %v3523 = vpop.f32.mrb[0].mxu0
        %3524 = vdwg.mxu0
        %s3525 = scalar_lea.vmem %s3, 544
        %v3526 = vld [vmem:[%s3525] sm:$0xff]
        %v3527 = vld [vmem:[%s3525 + $0x8] sm:$0xff]
        %v3528 = vld [vmem:[%s3525 + $0x10] sm:$0xff]
        %v3529 = vld [vmem:[%s3525 + $0x18] sm:$0xff]
        %s3530 = scalar_lea.vmem %s4, 17
        %v3531 = vld [vmem:[%s3530] sm:$0x1]
        %v3533 = vlaneseq
        %v3534 = vshrl.u32 %v3533, 7
        %v3535 = vsub.s32 0, %v3534
        %v3536 = vrot.slane %v3531, %v3535
        %3538 = vmatprep.subr.mxu0 0.0
        %3539 = vmatpush1.msra.mxu0 %v3526
        %3540 = vmatprep.subr.mxu0 0.0
        %3541 = vmatpush1.msra.mxu0 %v3527
        %3542 = vmatprep.subr.mxu0 0.0
        %3543 = vmatpush1.msra.mxu0 %v3528
        %3544 = vmatprep.subr.mxu0 0.0
        %3545 = vmatpush1.msra.mxu0 %v3529
        %3546 = vmatprep.subr.mxu0 0.0
        %3547 = vmatpush1.msra.mxu0 0.0
        %3548 = vmatprep.subr.mxu0 0.0
        %3549 = vmatpush1.msra.mxu0 0.0
        %3550 = vmatprep.subr.mxu0 0.0
        %3551 = vmatpush1.msra.mxu0 0.0
        %3552 = vmatprep.subr.mxu0 0.0
        %3553 = vmatpush1.msra.mxu0 0.0
        %3554 = vmatprep.subr.mxu0 0.0
        %3555 = vmatpush1.msra.mxu0 0.0
        %3556 = vmatprep.subr.mxu0 0.0
        %3557 = vmatpush1.msra.mxu0 0.0
        %3558 = vmatprep.subr.mxu0 0.0
        %3559 = vmatpush1.msra.mxu0 0.0
        %3560 = vmatprep.subr.mxu0 0.0
        %3561 = vmatpush1.msra.mxu0 0.0
        %3562 = vmatprep.subr.mxu0 0.0
        %3563 = vmatpush1.msra.mxu0 0.0
        %3564 = vmatprep.subr.mxu0 0.0
        %3565 = vmatpush1.msra.mxu0 0.0
        %3566 = vmatprep.subr.mxu0 0.0
        %3567 = vmatpush1.msra.mxu0 0.0
        %3568 = vmatprep.subr.mxu0 0.0
        %3569 = vmatpush1.msra.mxu0 0.0
        %3570 = vmatprep.subr.mxu0 0.0
        %3571 = vmatpush1.msra.mxu0 0.0
        %3572 = vmatprep.subr.mxu0 0.0
        %3573 = vmatpush1.msra.mxu0 0.0
        %3574 = vmatprep.subr.mxu0 0.0
        %3575 = vmatpush1.msra.mxu0 0.0
        %3576 = vmatprep.subr.mxu0 0.0
        %3577 = vmatpush1.msra.mxu0 0.0
        %3578 = vmatprep.subr.mxu0 0.0
        %3579 = vmatpush1.msra.mxu0 0.0
        %3580 = vmatprep.subr.mxu0 0.0
        %3581 = vmatpush1.msra.mxu0 0.0
        %3582 = vmatprep.subr.mxu0 0.0
        %3583 = vmatpush1.msra.mxu0 0.0
        %3584 = vmatprep.subr.mxu0 0.0
        %3585 = vmatpush1.msra.mxu0 0.0
        %3586 = vmatprep.subr.mxu0 0.0
        %3587 = vmatpush1.msra.mxu0 0.0
        %3588 = vmatprep.subr.mxu0 0.0
        %3589 = vmatpush1.msra.mxu0 0.0
        %3590 = vmatprep.subr.mxu0 0.0
        %3591 = vmatpush1.msra.mxu0 0.0
        %3592 = vmatprep.subr.mxu0 0.0
        %3593 = vmatpush1.msra.mxu0 0.0
        %3594 = vmatprep.subr.mxu0 0.0
        %3595 = vmatpush1.msra.mxu0 0.0
        %3596 = vmatprep.subr.mxu0 0.0
        %3597 = vmatpush1.msra.mxu0 0.0
        %3598 = vmatprep.subr.mxu0 0.0
        %3599 = vmatpush1.msra.mxu0 0.0
        %3600 = vmatprep.subr.mxu0 0.0
        %3601 = vmatpush1.msra.mxu0 0.0
        %3602 = vmatprep.mubr.f32.mxu0 0.0
        %3603 = vmatmul.mubr.f32.gmra.mrb[0].mxu0 %v2987
        %v3604 = vpop.f32.mrb[0].mxu0
        %v3605 = vadd.f32 %v3536, %v3604
        %v3606 = vpop.f32.mrb[0].mxu0
        %3607 = vmatprep.mubr.f32.mxu0 0.0
        %3608 = vmatmul.mubr.f32.gmra.mrb[0].mxu0 %v2990
        %v3609 = vpop.f32.mrb[0].mxu0
        %v3610 = vadd.f32 %v3536, %v3609
        %v3611 = vpop.f32.mrb[0].mxu0
        %3612 = vdwg.mxu0
        %s3613 = scalar_lea.vmem %s3, 672
        %v3614 = vld [vmem:[%s3613] sm:$0xff]
        %v3615 = vld [vmem:[%s3613 + $0x8] sm:$0xff]
        %v3616 = vld [vmem:[%s3613 + $0x10] sm:$0xff]
        %v3617 = vld [vmem:[%s3613 + $0x18] sm:$0xff]
        %s3618 = scalar_lea.vmem %s4, 21
        %v3619 = vld [vmem:[%s3618] sm:$0x1]
        %v3621 = vlaneseq
        %v3622 = vshrl.u32 %v3621, 7
        %v3623 = vsub.s32 0, %v3622
        %v3624 = vrot.slane %v3619, %v3623
        %3626 = vmatprep.subr.mxu0 0.0
        %3627 = vmatpush1.msra.mxu0 %v3614
        %3628 = vmatprep.subr.mxu0 0.0
        %3629 = vmatpush1.msra.mxu0 %v3615
        %3630 = vmatprep.subr.mxu0 0.0
        %3631 = vmatpush1.msra.mxu0 %v3616
        %3632 = vmatprep.subr.mxu0 0.0
        %3633 = vmatpush1.msra.mxu0 %v3617
        %3634 = vmatprep.subr.mxu0 0.0
        %3635 = vmatpush1.msra.mxu0 0.0
        %3636 = vmatprep.subr.mxu0 0.0
        %3637 = vmatpush1.msra.mxu0 0.0
        %3638 = vmatprep.subr.mxu0 0.0
        %3639 = vmatpush1.msra.mxu0 0.0
        %3640 = vmatprep.subr.mxu0 0.0
        %3641 = vmatpush1.msra.mxu0 0.0
        %3642 = vmatprep.subr.mxu0 0.0
        %3643 = vmatpush1.msra.mxu0 0.0
        %3644 = vmatprep.subr.mxu0 0.0
        %3645 = vmatpush1.msra.mxu0 0.0
        %3646 = vmatprep.subr.mxu0 0.0
        %3647 = vmatpush1.msra.mxu0 0.0
        %3648 = vmatprep.subr.mxu0 0.0
        %3649 = vmatpush1.msra.mxu0 0.0
        %3650 = vmatprep.subr.mxu0 0.0
        %3651 = vmatpush1.msra.mxu0 0.0
        %3652 = vmatprep.subr.mxu0 0.0
        %3653 = vmatpush1.msra.mxu0 0.0
        %3654 = vmatprep.subr.mxu0 0.0
        %3655 = vmatpush1.msra.mxu0 0.0
        %3656 = vmatprep.subr.mxu0 0.0
        %3657 = vmatpush1.msra.mxu0 0.0
        %3658 = vmatprep.subr.mxu0 0.0
        %3659 = vmatpush1.msra.mxu0 0.0
        %3660 = vmatprep.subr.mxu0 0.0
        %3661 = vmatpush1.msra.mxu0 0.0
        %3662 = vmatprep.subr.mxu0 0.0
        %3663 = vmatpush1.msra.mxu0 0.0
        %3664 = vmatprep.subr.mxu0 0.0
        %3665 = vmatpush1.msra.mxu0 0.0
        %3666 = vmatprep.subr.mxu0 0.0
        %3667 = vmatpush1.msra.mxu0 0.0
        %3668 = vmatprep.subr.mxu0 0.0
        %3669 = vmatpush1.msra.mxu0 0.0
        %3670 = vmatprep.subr.mxu0 0.0
        %3671 = vmatpush1.msra.mxu0 0.0
        %3672 = vmatprep.subr.mxu0 0.0
        %3673 = vmatpush1.msra.mxu0 0.0
        %3674 = vmatprep.subr.mxu0 0.0
        %3675 = vmatpush1.msra.mxu0 0.0
        %3676 = vmatprep.subr.mxu0 0.0
        %3677 = vmatpush1.msra.mxu0 0.0
        %3678 = vmatprep.subr.mxu0 0.0
        %3679 = vmatpush1.msra.mxu0 0.0
        %3680 = vmatprep.subr.mxu0 0.0
        %3681 = vmatpush1.msra.mxu0 0.0
        %3682 = vmatprep.subr.mxu0 0.0
        %3683 = vmatpush1.msra.mxu0 0.0
        %3684 = vmatprep.subr.mxu0 0.0
        %3685 = vmatpush1.msra.mxu0 0.0
        %3686 = vmatprep.subr.mxu0 0.0
        %3687 = vmatpush1.msra.mxu0 0.0
        %3688 = vmatprep.subr.mxu0 0.0
        %3689 = vmatpush1.msra.mxu0 0.0
        %3690 = vmatprep.mubr.f32.mxu0 0.0
        %3691 = vmatmul.mubr.f32.gmra.mrb[0].mxu0 %v2987
        %v3692 = vpop.f32.mrb[0].mxu0
        %v3693 = vadd.f32 %v3624, %v3692
        %v3694 = vpop.f32.mrb[0].mxu0
        %3695 = vmatprep.mubr.f32.mxu0 0.0
        %3696 = vmatmul.mubr.f32.gmra.mrb[0].mxu0 %v2990
        %v3697 = vpop.f32.mrb[0].mxu0
        %v3698 = vadd.f32 %v3624, %v3697
        %v3699 = vpop.f32.mrb[0].mxu0
        %3700 = vdwg.mxu0
        %v3702 = vsel %vm787, %v3517, 0
        %v3705 = vsel %vm787, %v3522, 0
        %v3708 = vsel %vm787, %v3605, 0
        %v3711 = vsel %vm787, %v3610, 0
        %3713 = vmatprep.subr.mxu0 0.0
        %3714 = vmatpush1.xpose.msra.mxu0 %v3708
        %3715 = vmatprep.subr.mxu0 0.0
        %3716 = vmatpush1.xpose.msra.mxu0 %v3711
        %3717 = vmatprep.subr.mxu0 0.0
        %3718 = vmatpush1.xpose.msra.mxu0 0.0
        %3719 = vmatprep.subr.mxu0 0.0
        %3720 = vmatpush1.xpose.msra.mxu0 0.0
        %3721 = vmatprep.subr.mxu0 0.0
        %3722 = vmatpush1.xpose.msra.mxu0 0.0
        %3723 = vmatprep.subr.mxu0 0.0
        %3724 = vmatpush1.xpose.msra.mxu0 0.0
        %3725 = vmatprep.subr.mxu0 0.0
        %3726 = vmatpush1.xpose.msra.mxu0 0.0
        %3727 = vmatprep.subr.mxu0 0.0
        %3728 = vmatpush1.xpose.msra.mxu0 0.0
        %3729 = vmatprep.subr.mxu0 0.0
        %3730 = vmatpush1.xpose.msra.mxu0 0.0
        %3731 = vmatprep.subr.mxu0 0.0
        %3732 = vmatpush1.xpose.msra.mxu0 0.0
        %3733 = vmatprep.subr.mxu0 0.0
        %3734 = vmatpush1.xpose.msra.mxu0 0.0
        %3735 = vmatprep.subr.mxu0 0.0
        %3736 = vmatpush1.xpose.msra.mxu0 0.0
        %3737 = vmatprep.subr.mxu0 0.0
        %3738 = vmatpush1.xpose.msra.mxu0 0.0
        %3739 = vmatprep.subr.mxu0 0.0
        %3740 = vmatpush1.xpose.msra.mxu0 0.0
        %3741 = vmatprep.subr.mxu0 0.0
        %3742 = vmatpush1.xpose.msra.mxu0 0.0
        %3743 = vmatprep.subr.mxu0 0.0
        %3744 = vmatpush1.xpose.msra.mxu0 0.0
        %3745 = vmatprep.subr.mxu0 0.0
        %3746 = vmatpush1.xpose.msra.mxu0 0.0
        %3747 = vmatprep.subr.mxu0 0.0
        %3748 = vmatpush1.xpose.msra.mxu0 0.0
        %3749 = vmatprep.subr.mxu0 0.0
        %3750 = vmatpush1.xpose.msra.mxu0 0.0
        %3751 = vmatprep.subr.mxu0 0.0
        %3752 = vmatpush1.xpose.msra.mxu0 0.0
        %3753 = vmatprep.subr.mxu0 0.0
        %3754 = vmatpush1.xpose.msra.mxu0 0.0
        %3755 = vmatprep.subr.mxu0 0.0
        %3756 = vmatpush1.xpose.msra.mxu0 0.0
        %3757 = vmatprep.subr.mxu0 0.0
        %3758 = vmatpush1.xpose.msra.mxu0 0.0
        %3759 = vmatprep.subr.mxu0 0.0
        %3760 = vmatpush1.xpose.msra.mxu0 0.0
        %3761 = vmatprep.subr.mxu0 0.0
        %3762 = vmatpush1.xpose.msra.mxu0 0.0
        %3763 = vmatprep.subr.mxu0 0.0
        %3764 = vmatpush1.xpose.msra.mxu0 0.0
        %3765 = vmatprep.subr.mxu0 0.0
        %3766 = vmatpush1.xpose.msra.mxu0 0.0
        %3767 = vmatprep.subr.mxu0 0.0
        %3768 = vmatpush1.xpose.msra.mxu0 0.0
        %3769 = vmatprep.subr.mxu0 0.0
        %3770 = vmatpush1.xpose.msra.mxu0 0.0
        %3771 = vmatprep.subr.mxu0 0.0
        %3772 = vmatpush1.xpose.msra.mxu0 0.0
        %3773 = vmatprep.subr.mxu0 0.0
        %3774 = vmatpush1.xpose.msra.mxu0 0.0
        %3775 = vmatprep.subr.mxu0 0.0
        %3776 = vmatpush1.xpose.msra.mxu0 0.0
        %3777 = vmatprep.mubr.f32.mxu0 0.0
        %3778 = vmatmul.mubr.f32.gmra.mrb[0].mxu0 %v3702
        %v3779 = vpop.f32.mrb[0].mxu0
        %v3780 = vadd.f32 0.0, %v3779
        %v3781 = vpop.f32.mrb[0].mxu0
        %3782 = vmatprep.mubr.f32.mxu0 0.0
        %3783 = vmatmul.mubr.f32.gmra.mrb[0].mxu0 %v3705
        %v3784 = vpop.f32.mrb[0].mxu0
        %v3785 = vadd.f32 0.0, %v3784
        %v3786 = vpop.f32.mrb[0].mxu0
        %3787 = vdwg.mxu0
        %v3788 = vmul.f32 %v3780, 0.35355338
        %v3789 = vmul.f32 %v3785, 0.35355338
        %v3790 = vsel %vm877, %v3788, -inf
        %3791 = vmax.xlane.f32.xlu0 %v3790
        %v3792 = vpop.xlane.xlu0 %3791
        %v3793 = vsel %vm877, %v3789, -inf
        %3794 = vmax.xlane.f32.xlu0 %v3793
        %v3795 = vpop.xlane.xlu0 %3794
        %v3796 = vsub.f32 %v3788, %v3792
        %v3797 = vsub.f32 %v3789, %v3795
        %v3798 = vmul.f32 %v3796, 1.442695
        %v3799 = vpow.pop %v3798
        %v3800 = vmul.f32 %v3797, 1.442695
        %v3801 = vpow.pop %v3800
        %v3802 = vsel %vm877, %v3799, 0.0
        %3803 = vadd.xlane.f32.xlu0 %v3802
        %v3804 = vpop.xlane.xlu0 %3803
        %v3805 = vsel %vm877, %v3801, 0.0
        %3806 = vadd.xlane.f32.xlu0 %v3805
        %v3807 = vpop.xlane.xlu0 %3806
        %v3808 = vrcp.pop %v3804
        %v3809 = vrcp.pop %v3807
        %v3810 = vmul.f32 %v3799, %v3808
        %v3811 = vmul.f32 %v3801, %v3809
        %v3813 = vsel %vm877, %v3810, 0
        %v3816 = vsel %vm877, %v3811, 0
        %3818 = vmatprep.subr.mxu0 0.0
        %3819 = vmatpush1.msra.mxu0 %v3693
        %3820 = vmatprep.subr.mxu0 0.0
        %3821 = vmatpush1.msra.mxu0 %v3698
        %3822 = vmatprep.subr.mxu0 0.0
        %3823 = vmatpush1.msra.mxu0 0.0
        %3824 = vmatprep.subr.mxu0 0.0
        %3825 = vmatpush1.msra.mxu0 0.0
        %3826 = vmatprep.subr.mxu0 0.0
        %3827 = vmatpush1.msra.mxu0 0.0
        %3828 = vmatprep.subr.mxu0 0.0
        %3829 = vmatpush1.msra.mxu0 0.0
        %3830 = vmatprep.subr.mxu0 0.0
        %3831 = vmatpush1.msra.mxu0 0.0
        %3832 = vmatprep.subr.mxu0 0.0
        %3833 = vmatpush1.msra.mxu0 0.0
        %3834 = vmatprep.subr.mxu0 0.0
        %3835 = vmatpush1.msra.mxu0 0.0
        %3836 = vmatprep.subr.mxu0 0.0
        %3837 = vmatpush1.msra.mxu0 0.0
        %3838 = vmatprep.subr.mxu0 0.0
        %3839 = vmatpush1.msra.mxu0 0.0
        %3840 = vmatprep.subr.mxu0 0.0
        %3841 = vmatpush1.msra.mxu0 0.0
        %3842 = vmatprep.subr.mxu0 0.0
        %3843 = vmatpush1.msra.mxu0 0.0
        %3844 = vmatprep.subr.mxu0 0.0
        %3845 = vmatpush1.msra.mxu0 0.0
        %3846 = vmatprep.subr.mxu0 0.0
        %3847 = vmatpush1.msra.mxu0 0.0
        %3848 = vmatprep.subr.mxu0 0.0
        %3849 = vmatpush1.msra.mxu0 0.0
        %3850 = vmatprep.subr.mxu0 0.0
        %3851 = vmatpush1.msra.mxu0 0.0
        %3852 = vmatprep.subr.mxu0 0.0
        %3853 = vmatpush1.msra.mxu0 0.0
        %3854 = vmatprep.subr.mxu0 0.0
        %3855 = vmatpush1.msra.mxu0 0.0
        %3856 = vmatprep.subr.mxu0 0.0
        %3857 = vmatpush1.msra.mxu0 0.0
        %3858 = vmatprep.subr.mxu0 0.0
        %3859 = vmatpush1.msra.mxu0 0.0
        %3860 = vmatprep.subr.mxu0 0.0
        %3861 = vmatpush1.msra.mxu0 0.0
        %3862 = vmatprep.subr.mxu0 0.0
        %3863 = vmatpush1.msra.mxu0 0.0
        %3864 = vmatprep.subr.mxu0 0.0
        %3865 = vmatpush1.msra.mxu0 0.0
        %3866 = vmatprep.subr.mxu0 0.0
        %3867 = vmatpush1.msra.mxu0 0.0
        %3868 = vmatprep.subr.mxu0 0.0
        %3869 = vmatpush1.msra.mxu0 0.0
        %3870 = vmatprep.subr.mxu0 0.0
        %3871 = vmatpush1.msra.mxu0 0.0
        %3872 = vmatprep.subr.mxu0 0.0
        %3873 = vmatpush1.msra.mxu0 0.0
        %3874 = vmatprep.subr.mxu0 0.0
        %3875 = vmatpush1.msra.mxu0 0.0
        %3876 = vmatprep.subr.mxu0 0.0
        %3877 = vmatpush1.msra.mxu0 0.0
        %3878 = vmatprep.subr.mxu0 0.0
        %3879 = vmatpush1.msra.mxu0 0.0
        %3880 = vmatprep.subr.mxu0 0.0
        %3881 = vmatpush1.msra.mxu0 0.0
        %3882 = vmatprep.mubr.f32.mxu0 0.0
        %3883 = vmatmul.mubr.f32.gmra.mrb[0].mxu0 %v3813
        %v3884 = vpop.f32.mrb[0].mxu0
        %v3885 = vadd.f32 0.0, %v3884
        %v3886 = vpop.f32.mrb[0].mxu0
        %3887 = vmatprep.mubr.f32.mxu0 0.0
        %3888 = vmatmul.mubr.f32.gmra.mrb[0].mxu0 %v3816
        %v3889 = vpop.f32.mrb[0].mxu0
        %v3890 = vadd.f32 0.0, %v3889
        %v3891 = vpop.f32.mrb[0].mxu0
        %3892 = vdwg.mxu0
        %s3893 = scalar_lea.vmem %s5, 40
        %v3894 = vld [vmem:[%s3893] sm:$0xff]
        %v3896 = vsel %vm787, %v3885, 0
        %v3899 = vsel %vm787, %v3890, 0
        %3901 = vmatprep.subr.mxu0 0.0
        %3902 = vmatpush1.msra.mxu0 %v3894
        %3903 = vmatprep.subr.mxu0 0.0
        %3904 = vmatpush1.msra.mxu0 0.0
        %3905 = vmatprep.subr.mxu0 0.0
        %3906 = vmatpush1.msra.mxu0 0.0
        %3907 = vmatprep.subr.mxu0 0.0
        %3908 = vmatpush1.msra.mxu0 0.0
        %3909 = vmatprep.subr.mxu0 0.0
        %3910 = vmatpush1.msra.mxu0 0.0
        %3911 = vmatprep.subr.mxu0 0.0
        %3912 = vmatpush1.msra.mxu0 0.0
        %3913 = vmatprep.subr.mxu0 0.0
        %3914 = vmatpush1.msra.mxu0 0.0
        %3915 = vmatprep.subr.mxu0 0.0
        %3916 = vmatpush1.msra.mxu0 0.0
        %3917 = vmatprep.subr.mxu0 0.0
        %3918 = vmatpush1.msra.mxu0 0.0
        %3919 = vmatprep.subr.mxu0 0.0
        %3920 = vmatpush1.msra.mxu0 0.0
        %3921 = vmatprep.subr.mxu0 0.0
        %3922 = vmatpush1.msra.mxu0 0.0
        %3923 = vmatprep.subr.mxu0 0.0
        %3924 = vmatpush1.msra.mxu0 0.0
        %3925 = vmatprep.subr.mxu0 0.0
        %3926 = vmatpush1.msra.mxu0 0.0
        %3927 = vmatprep.subr.mxu0 0.0
        %3928 = vmatpush1.msra.mxu0 0.0
        %3929 = vmatprep.subr.mxu0 0.0
        %3930 = vmatpush1.msra.mxu0 0.0
        %3931 = vmatprep.subr.mxu0 0.0
        %3932 = vmatpush1.msra.mxu0 0.0
        %3933 = vmatprep.subr.mxu0 0.0
        %3934 = vmatpush1.msra.mxu0 0.0
        %3935 = vmatprep.subr.mxu0 0.0
        %3936 = vmatpush1.msra.mxu0 0.0
        %3937 = vmatprep.subr.mxu0 0.0
        %3938 = vmatpush1.msra.mxu0 0.0
        %3939 = vmatprep.subr.mxu0 0.0
        %3940 = vmatpush1.msra.mxu0 0.0
        %3941 = vmatprep.subr.mxu0 0.0
        %3942 = vmatpush1.msra.mxu0 0.0
        %3943 = vmatprep.subr.mxu0 0.0
        %3944 = vmatpush1.msra.mxu0 0.0
        %3945 = vmatprep.subr.mxu0 0.0
        %3946 = vmatpush1.msra.mxu0 0.0
        %3947 = vmatprep.subr.mxu0 0.0
        %3948 = vmatpush1.msra.mxu0 0.0
        %3949 = vmatprep.subr.mxu0 0.0
        %3950 = vmatpush1.msra.mxu0 0.0
        %3951 = vmatprep.subr.mxu0 0.0
        %3952 = vmatpush1.msra.mxu0 0.0
        %3953 = vmatprep.subr.mxu0 0.0
        %3954 = vmatpush1.msra.mxu0 0.0
        %3955 = vmatprep.subr.mxu0 0.0
        %3956 = vmatpush1.msra.mxu0 0.0
        %3957 = vmatprep.subr.mxu0 0.0
        %3958 = vmatpush1.msra.mxu0 0.0
        %3959 = vmatprep.subr.mxu0 0.0
        %3960 = vmatpush1.msra.mxu0 0.0
        %3961 = vmatprep.subr.mxu0 0.0
        %3962 = vmatpush1.msra.mxu0 0.0
        %3963 = vmatprep.subr.mxu0 0.0
        %3964 = vmatpush1.msra.mxu0 0.0
        %3965 = vmatprep.mubr.f32.mxu0 0.0
        %3966 = vmatmul.mubr.f32.gmra.mrb[0].mxu0 %v3896
        %v3967 = vpop.f32.mrb[0].mxu0
        %v3968 = vadd.f32 0.0, %v3967
        %v3969 = vpop.f32.mrb[0].mxu0
        %3970 = vmatprep.mubr.f32.mxu0 0.0
        %3971 = vmatmul.mubr.f32.gmra.mrb[0].mxu0 %v3899
        %v3972 = vpop.f32.mrb[0].mxu0
        %v3973 = vadd.f32 0.0, %v3972
        %v3974 = vpop.f32.mrb[0].mxu0
        %3975 = vdwg.mxu0
        %v3977 = vsel %vm787, %v3427, 0
        %v3980 = vsel %vm787, %v3432, 0
        %3982 = vmatprep.subr.mxu0 0.0
        %3983 = vmatpush1.msra.mxu0 %v3436
        %3984 = vmatprep.subr.mxu0 0.0
        %3985 = vmatpush1.msra.mxu0 0.0
        %3986 = vmatprep.subr.mxu0 0.0
        %3987 = vmatpush1.msra.mxu0 0.0
        %3988 = vmatprep.subr.mxu0 0.0
        %3989 = vmatpush1.msra.mxu0 0.0
        %3990 = vmatprep.subr.mxu0 0.0
        %3991 = vmatpush1.msra.mxu0 0.0
        %3992 = vmatprep.subr.mxu0 0.0
        %3993 = vmatpush1.msra.mxu0 0.0
        %3994 = vmatprep.subr.mxu0 0.0
        %3995 = vmatpush1.msra.mxu0 0.0
        %3996 = vmatprep.subr.mxu0 0.0
        %3997 = vmatpush1.msra.mxu0 0.0
        %3998 = vmatprep.subr.mxu0 0.0
        %3999 = vmatpush1.msra.mxu0 0.0
        %4000 = vmatprep.subr.mxu0 0.0
        %4001 = vmatpush1.msra.mxu0 0.0
        %4002 = vmatprep.subr.mxu0 0.0
        %4003 = vmatpush1.msra.mxu0 0.0
        %4004 = vmatprep.subr.mxu0 0.0
        %4005 = vmatpush1.msra.mxu0 0.0
        %4006 = vmatprep.subr.mxu0 0.0
        %4007 = vmatpush1.msra.mxu0 0.0
        %4008 = vmatprep.subr.mxu0 0.0
        %4009 = vmatpush1.msra.mxu0 0.0
        %4010 = vmatprep.subr.mxu0 0.0
        %4011 = vmatpush1.msra.mxu0 0.0
        %4012 = vmatprep.subr.mxu0 0.0
        %4013 = vmatpush1.msra.mxu0 0.0
        %4014 = vmatprep.subr.mxu0 0.0
        %4015 = vmatpush1.msra.mxu0 0.0
        %4016 = vmatprep.subr.mxu0 0.0
        %4017 = vmatpush1.msra.mxu0 0.0
        %4018 = vmatprep.subr.mxu0 0.0
        %4019 = vmatpush1.msra.mxu0 0.0
        %4020 = vmatprep.subr.mxu0 0.0
        %4021 = vmatpush1.msra.mxu0 0.0
        %4022 = vmatprep.subr.mxu0 0.0
        %4023 = vmatpush1.msra.mxu0 0.0
        %4024 = vmatprep.subr.mxu0 0.0
        %4025 = vmatpush1.msra.mxu0 0.0
        %4026 = vmatprep.subr.mxu0 0.0
        %4027 = vmatpush1.msra.mxu0 0.0
        %4028 = vmatprep.subr.mxu0 0.0
        %4029 = vmatpush1.msra.mxu0 0.0
        %4030 = vmatprep.subr.mxu0 0.0
        %4031 = vmatpush1.msra.mxu0 0.0
        %4032 = vmatprep.subr.mxu0 0.0
        %4033 = vmatpush1.msra.mxu0 0.0
        %4034 = vmatprep.subr.mxu0 0.0
        %4035 = vmatpush1.msra.mxu0 0.0
        %4036 = vmatprep.subr.mxu0 0.0
        %4037 = vmatpush1.msra.mxu0 0.0
        %4038 = vmatprep.subr.mxu0 0.0
        %4039 = vmatpush1.msra.mxu0 0.0
        %4040 = vmatprep.subr.mxu0 0.0
        %4041 = vmatpush1.msra.mxu0 0.0
        %4042 = vmatprep.subr.mxu0 0.0
        %4043 = vmatpush1.msra.mxu0 0.0
        %4044 = vmatprep.subr.mxu0 0.0
        %4045 = vmatpush1.msra.mxu0 0.0
        %4046 = vmatprep.mubr.f32.mxu0 0.0
        %4047 = vmatmul.mubr.f32.gmra.mrb[0].mxu0 %v3977
        %v4048 = vpop.f32.mrb[0].mxu0
        %v4049 = vadd.f32 %v3968, %v4048
        %v4050 = vpop.f32.mrb[0].mxu0
        %4051 = vmatprep.mubr.f32.mxu0 0.0
        %4052 = vmatmul.mubr.f32.gmra.mrb[0].mxu0 %v3980
        %v4053 = vpop.f32.mrb[0].mxu0
        %v4054 = vadd.f32 %v3973, %v4053
        %v4055 = vpop.f32.mrb[0].mxu0
        %4056 = vdwg.mxu0
        %s4057 = scalar_lea.vmem %s3, 448
        %v4058 = vld [vmem:[%s4057] sm:$0xff]
        %v4059 = vld [vmem:[%s4057 + $0x8] sm:$0xff]
        %v4060 = vld [vmem:[%s4057 + $0x10] sm:$0xff]
        %v4061 = vld [vmem:[%s4057 + $0x18] sm:$0xff]
        %s4062 = scalar_lea.vmem %s4, 14
        %v4063 = vld [vmem:[%s4062] sm:$0x1]
        %v4065 = vlaneseq
        %v4066 = vshrl.u32 %v4065, 7
        %v4067 = vsub.s32 0, %v4066
        %v4068 = vrot.slane %v4063, %v4067
        %4070 = vmatprep.subr.mxu0 0.0
        %4071 = vmatpush1.msra.mxu0 %v4058
        %4072 = vmatprep.subr.mxu0 0.0
        %4073 = vmatpush1.msra.mxu0 %v4059
        %4074 = vmatprep.subr.mxu0 0.0
        %4075 = vmatpush1.msra.mxu0 %v4060
        %4076 = vmatprep.subr.mxu0 0.0
        %4077 = vmatpush1.msra.mxu0 %v4061
        %4078 = vmatprep.subr.mxu0 0.0
        %4079 = vmatpush1.msra.mxu0 0.0
        %4080 = vmatprep.subr.mxu0 0.0
        %4081 = vmatpush1.msra.mxu0 0.0
        %4082 = vmatprep.subr.mxu0 0.0
        %4083 = vmatpush1.msra.mxu0 0.0
        %4084 = vmatprep.subr.mxu0 0.0
        %4085 = vmatpush1.msra.mxu0 0.0
        %4086 = vmatprep.subr.mxu0 0.0
        %4087 = vmatpush1.msra.mxu0 0.0
        %4088 = vmatprep.subr.mxu0 0.0
        %4089 = vmatpush1.msra.mxu0 0.0
        %4090 = vmatprep.subr.mxu0 0.0
        %4091 = vmatpush1.msra.mxu0 0.0
        %4092 = vmatprep.subr.mxu0 0.0
        %4093 = vmatpush1.msra.mxu0 0.0
        %4094 = vmatprep.subr.mxu0 0.0
        %4095 = vmatpush1.msra.mxu0 0.0
        %4096 = vmatprep.subr.mxu0 0.0
        %4097 = vmatpush1.msra.mxu0 0.0
        %4098 = vmatprep.subr.mxu0 0.0
        %4099 = vmatpush1.msra.mxu0 0.0
        %4100 = vmatprep.subr.mxu0 0.0
        %4101 = vmatpush1.msra.mxu0 0.0
        %4102 = vmatprep.subr.mxu0 0.0
        %4103 = vmatpush1.msra.mxu0 0.0
        %4104 = vmatprep.subr.mxu0 0.0
        %4105 = vmatpush1.msra.mxu0 0.0
        %4106 = vmatprep.subr.mxu0 0.0
        %4107 = vmatpush1.msra.mxu0 0.0
        %4108 = vmatprep.subr.mxu0 0.0
        %4109 = vmatpush1.msra.mxu0 0.0
        %4110 = vmatprep.subr.mxu0 0.0
        %4111 = vmatpush1.msra.mxu0 0.0
        %4112 = vmatprep.subr.mxu0 0.0
        %4113 = vmatpush1.msra.mxu0 0.0
        %4114 = vmatprep.subr.mxu0 0.0
        %4115 = vmatpush1.msra.mxu0 0.0
        %4116 = vmatprep.subr.mxu0 0.0
        %4117 = vmatpush1.msra.mxu0 0.0
        %4118 = vmatprep.subr.mxu0 0.0
        %4119 = vmatpush1.msra.mxu0 0.0
        %4120 = vmatprep.subr.mxu0 0.0
        %4121 = vmatpush1.msra.mxu0 0.0
        %4122 = vmatprep.subr.mxu0 0.0
        %4123 = vmatpush1.msra.mxu0 0.0
        %4124 = vmatprep.subr.mxu0 0.0
        %4125 = vmatpush1.msra.mxu0 0.0
        %4126 = vmatprep.subr.mxu0 0.0
        %4127 = vmatpush1.msra.mxu0 0.0
        %4128 = vmatprep.subr.mxu0 0.0
        %4129 = vmatpush1.msra.mxu0 0.0
        %4130 = vmatprep.subr.mxu0 0.0
        %4131 = vmatpush1.msra.mxu0 0.0
        %4132 = vmatprep.subr.mxu0 0.0
        %4133 = vmatpush1.msra.mxu0 0.0
        %4134 = vmatprep.mubr.f32.mxu0 0.0
        %4135 = vmatmul.mubr.f32.gmra.mrb[0].mxu0 %v2987
        %v4136 = vpop.f32.mrb[0].mxu0
        %v4137 = vadd.f32 %v4068, %v4136
        %v4138 = vpop.f32.mrb[0].mxu0
        %4139 = vmatprep.mubr.f32.mxu0 0.0
        %4140 = vmatmul.mubr.f32.gmra.mrb[0].mxu0 %v2990
        %v4141 = vpop.f32.mrb[0].mxu0
        %v4142 = vadd.f32 %v4068, %v4141
        %v4143 = vpop.f32.mrb[0].mxu0
        %4144 = vdwg.mxu0
        %s4145 = scalar_lea.vmem %s3, 576
        %v4146 = vld [vmem:[%s4145] sm:$0xff]
        %v4147 = vld [vmem:[%s4145 + $0x8] sm:$0xff]
        %v4148 = vld [vmem:[%s4145 + $0x10] sm:$0xff]
        %v4149 = vld [vmem:[%s4145 + $0x18] sm:$0xff]
        %s4150 = scalar_lea.vmem %s4, 18
        %v4151 = vld [vmem:[%s4150] sm:$0x1]
        %v4153 = vlaneseq
        %v4154 = vshrl.u32 %v4153, 7
        %v4155 = vsub.s32 0, %v4154
        %v4156 = vrot.slane %v4151, %v4155
        %4158 = vmatprep.subr.mxu0 0.0
        %4159 = vmatpush1.msra.mxu0 %v4146
        %4160 = vmatprep.subr.mxu0 0.0
        %4161 = vmatpush1.msra.mxu0 %v4147
        %4162 = vmatprep.subr.mxu0 0.0
        %4163 = vmatpush1.msra.mxu0 %v4148
        %4164 = vmatprep.subr.mxu0 0.0
        %4165 = vmatpush1.msra.mxu0 %v4149
        %4166 = vmatprep.subr.mxu0 0.0
        %4167 = vmatpush1.msra.mxu0 0.0
        %4168 = vmatprep.subr.mxu0 0.0
        %4169 = vmatpush1.msra.mxu0 0.0
        %4170 = vmatprep.subr.mxu0 0.0
        %4171 = vmatpush1.msra.mxu0 0.0
        %4172 = vmatprep.subr.mxu0 0.0
        %4173 = vmatpush1.msra.mxu0 0.0
        %4174 = vmatprep.subr.mxu0 0.0
        %4175 = vmatpush1.msra.mxu0 0.0
        %4176 = vmatprep.subr.mxu0 0.0
        %4177 = vmatpush1.msra.mxu0 0.0
        %4178 = vmatprep.subr.mxu0 0.0
        %4179 = vmatpush1.msra.mxu0 0.0
        %4180 = vmatprep.subr.mxu0 0.0
        %4181 = vmatpush1.msra.mxu0 0.0
        %4182 = vmatprep.subr.mxu0 0.0
        %4183 = vmatpush1.msra.mxu0 0.0
        %4184 = vmatprep.subr.mxu0 0.0
        %4185 = vmatpush1.msra.mxu0 0.0
        %4186 = vmatprep.subr.mxu0 0.0
        %4187 = vmatpush1.msra.mxu0 0.0
        %4188 = vmatprep.subr.mxu0 0.0
        %4189 = vmatpush1.msra.mxu0 0.0
        %4190 = vmatprep.subr.mxu0 0.0
        %4191 = vmatpush1.msra.mxu0 0.0
        %4192 = vmatprep.subr.mxu0 0.0
        %4193 = vmatpush1.msra.mxu0 0.0
        %4194 = vmatprep.subr.mxu0 0.0
        %4195 = vmatpush1.msra.mxu0 0.0
        %4196 = vmatprep.subr.mxu0 0.0
        %4197 = vmatpush1.msra.mxu0 0.0
        %4198 = vmatprep.subr.mxu0 0.0
        %4199 = vmatpush1.msra.mxu0 0.0
        %4200 = vmatprep.subr.mxu0 0.0
        %4201 = vmatpush1.msra.mxu0 0.0
        %4202 = vmatprep.subr.mxu0 0.0
        %4203 = vmatpush1.msra.mxu0 0.0
        %4204 = vmatprep.subr.mxu0 0.0
        %4205 = vmatpush1.msra.mxu0 0.0
        %4206 = vmatprep.subr.mxu0 0.0
        %4207 = vmatpush1.msra.mxu0 0.0
        %4208 = vmatprep.subr.mxu0 0.0
        %4209 = vmatpush1.msra.mxu0 0.0
        %4210 = vmatprep.subr.mxu0 0.0
        %4211 = vmatpush1.msra.mxu0 0.0
        %4212 = vmatprep.subr.mxu0 0.0
        %4213 = vmatpush1.msra.mxu0 0.0
        %4214 = vmatprep.subr.mxu0 0.0
        %4215 = vmatpush1.msra.mxu0 0.0
        %4216 = vmatprep.subr.mxu0 0.0
        %4217 = vmatpush1.msra.mxu0 0.0
        %4218 = vmatprep.subr.mxu0 0.0
        %4219 = vmatpush1.msra.mxu0 0.0
        %4220 = vmatprep.subr.mxu0 0.0
        %4221 = vmatpush1.msra.mxu0 0.0
        %4222 = vmatprep.mubr.f32.mxu0 0.0
        %4223 = vmatmul.mubr.f32.gmra.mrb[0].mxu0 %v2987
        %v4224 = vpop.f32.mrb[0].mxu0
        %v4225 = vadd.f32 %v4156, %v4224
        %v4226 = vpop.f32.mrb[0].mxu0
        %4227 = vmatprep.mubr.f32.mxu0 0.0
        %4228 = vmatmul.mubr.f32.gmra.mrb[0].mxu0 %v2990
        %v4229 = vpop.f32.mrb[0].mxu0
        %v4230 = vadd.f32 %v4156, %v4229
        %v4231 = vpop.f32.mrb[0].mxu0
        %4232 = vdwg.mxu0
        %s4233 = scalar_lea.vmem %s3, 704
        %v4234 = vld [vmem:[%s4233] sm:$0xff]
        %v4235 = vld [vmem:[%s4233 + $0x8] sm:$0xff]
        %v4236 = vld [vmem:[%s4233 + $0x10] sm:$0xff]
        %v4237 = vld [vmem:[%s4233 + $0x18] sm:$0xff]
        %s4238 = scalar_lea.vmem %s4, 22
        %v4239 = vld [vmem:[%s4238] sm:$0x1]
        %v4241 = vlaneseq
        %v4242 = vshrl.u32 %v4241, 7
        %v4243 = vsub.s32 0, %v4242
        %v4244 = vrot.slane %v4239, %v4243
        %4246 = vmatprep.subr.mxu0 0.0
        %4247 = vmatpush1.msra.mxu0 %v4234
        %4248 = vmatprep.subr.mxu0 0.0
        %4249 = vmatpush1.msra.mxu0 %v4235
        %4250 = vmatprep.subr.mxu0 0.0
        %4251 = vmatpush1.msra.mxu0 %v4236
        %4252 = vmatprep.subr.mxu0 0.0
        %4253 = vmatpush1.msra.mxu0 %v4237
        %4254 = vmatprep.subr.mxu0 0.0
        %4255 = vmatpush1.msra.mxu0 0.0
        %4256 = vmatprep.subr.mxu0 0.0
        %4257 = vmatpush1.msra.mxu0 0.0
        %4258 = vmatprep.subr.mxu0 0.0
        %4259 = vmatpush1.msra.mxu0 0.0
        %4260 = vmatprep.subr.mxu0 0.0
        %4261 = vmatpush1.msra.mxu0 0.0
        %4262 = vmatprep.subr.mxu0 0.0
        %4263 = vmatpush1.msra.mxu0 0.0
        %4264 = vmatprep.subr.mxu0 0.0
        %4265 = vmatpush1.msra.mxu0 0.0
        %4266 = vmatprep.subr.mxu0 0.0
        %4267 = vmatpush1.msra.mxu0 0.0
        %4268 = vmatprep.subr.mxu0 0.0
        %4269 = vmatpush1.msra.mxu0 0.0
        %4270 = vmatprep.subr.mxu0 0.0
        %4271 = vmatpush1.msra.mxu0 0.0
        %4272 = vmatprep.subr.mxu0 0.0
        %4273 = vmatpush1.msra.mxu0 0.0
        %4274 = vmatprep.subr.mxu0 0.0
        %4275 = vmatpush1.msra.mxu0 0.0
        %4276 = vmatprep.subr.mxu0 0.0
        %4277 = vmatpush1.msra.mxu0 0.0
        %4278 = vmatprep.subr.mxu0 0.0
        %4279 = vmatpush1.msra.mxu0 0.0
        %4280 = vmatprep.subr.mxu0 0.0
        %4281 = vmatpush1.msra.mxu0 0.0
        %4282 = vmatprep.subr.mxu0 0.0
        %4283 = vmatpush1.msra.mxu0 0.0
        %4284 = vmatprep.subr.mxu0 0.0
        %4285 = vmatpush1.msra.mxu0 0.0
        %4286 = vmatprep.subr.mxu0 0.0
        %4287 = vmatpush1.msra.mxu0 0.0
        %4288 = vmatprep.subr.mxu0 0.0
        %4289 = vmatpush1.msra.mxu0 0.0
        %4290 = vmatprep.subr.mxu0 0.0
        %4291 = vmatpush1.msra.mxu0 0.0
        %4292 = vmatprep.subr.mxu0 0.0
        %4293 = vmatpush1.msra.mxu0 0.0
        %4294 = vmatprep.subr.mxu0 0.0
        %4295 = vmatpush1.msra.mxu0 0.0
        %4296 = vmatprep.subr.mxu0 0.0
        %4297 = vmatpush1.msra.mxu0 0.0
        %4298 = vmatprep.subr.mxu0 0.0
        %4299 = vmatpush1.msra.mxu0 0.0
        %4300 = vmatprep.subr.mxu0 0.0
        %4301 = vmatpush1.msra.mxu0 0.0
        %4302 = vmatprep.subr.mxu0 0.0
        %4303 = vmatpush1.msra.mxu0 0.0
        %4304 = vmatprep.subr.mxu0 0.0
        %4305 = vmatpush1.msra.mxu0 0.0
        %4306 = vmatprep.subr.mxu0 0.0
        %4307 = vmatpush1.msra.mxu0 0.0
        %4308 = vmatprep.subr.mxu0 0.0
        %4309 = vmatpush1.msra.mxu0 0.0
        %4310 = vmatprep.mubr.f32.mxu0 0.0
        %4311 = vmatmul.mubr.f32.gmra.mrb[0].mxu0 %v2987
        %v4312 = vpop.f32.mrb[0].mxu0
        %v4313 = vadd.f32 %v4244, %v4312
        %v4314 = vpop.f32.mrb[0].mxu0
        %4315 = vmatprep.mubr.f32.mxu0 0.0
        %4316 = vmatmul.mubr.f32.gmra.mrb[0].mxu0 %v2990
        %v4317 = vpop.f32.mrb[0].mxu0
        %v4318 = vadd.f32 %v4244, %v4317
        %v4319 = vpop.f32.mrb[0].mxu0
        %4320 = vdwg.mxu0
        %v4322 = vsel %vm787, %v4137, 0
        %v4325 = vsel %vm787, %v4142, 0
        %v4328 = vsel %vm787, %v4225, 0
        %v4331 = vsel %vm787, %v4230, 0
        %4333 = vmatprep.subr.mxu0 0.0
        %4334 = vmatpush1.xpose.msra.mxu0 %v4328
        %4335 = vmatprep.subr.mxu0 0.0
        %4336 = vmatpush1.xpose.msra.mxu0 %v4331
        %4337 = vmatprep.subr.mxu0 0.0
        %4338 = vmatpush1.xpose.msra.mxu0 0.0
        %4339 = vmatprep.subr.mxu0 0.0
        %4340 = vmatpush1.xpose.msra.mxu0 0.0
        %4341 = vmatprep.subr.mxu0 0.0
        %4342 = vmatpush1.xpose.msra.mxu0 0.0
        %4343 = vmatprep.subr.mxu0 0.0
        %4344 = vmatpush1.xpose.msra.mxu0 0.0
        %4345 = vmatprep.subr.mxu0 0.0
        %4346 = vmatpush1.xpose.msra.mxu0 0.0
        %4347 = vmatprep.subr.mxu0 0.0
        %4348 = vmatpush1.xpose.msra.mxu0 0.0
        %4349 = vmatprep.subr.mxu0 0.0
        %4350 = vmatpush1.xpose.msra.mxu0 0.0
        %4351 = vmatprep.subr.mxu0 0.0
        %4352 = vmatpush1.xpose.msra.mxu0 0.0
        %4353 = vmatprep.subr.mxu0 0.0
        %4354 = vmatpush1.xpose.msra.mxu0 0.0
        %4355 = vmatprep.subr.mxu0 0.0
        %4356 = vmatpush1.xpose.msra.mxu0 0.0
        %4357 = vmatprep.subr.mxu0 0.0
        %4358 = vmatpush1.xpose.msra.mxu0 0.0
        %4359 = vmatprep.subr.mxu0 0.0
        %4360 = vmatpush1.xpose.msra.mxu0 0.0
        %4361 = vmatprep.subr.mxu0 0.0
        %4362 = vmatpush1.xpose.msra.mxu0 0.0
        %4363 = vmatprep.subr.mxu0 0.0
        %4364 = vmatpush1.xpose.msra.mxu0 0.0
        %4365 = vmatprep.subr.mxu0 0.0
        %4366 = vmatpush1.xpose.msra.mxu0 0.0
        %4367 = vmatprep.subr.mxu0 0.0
        %4368 = vmatpush1.xpose.msra.mxu0 0.0
        %4369 = vmatprep.subr.mxu0 0.0
        %4370 = vmatpush1.xpose.msra.mxu0 0.0
        %4371 = vmatprep.subr.mxu0 0.0
        %4372 = vmatpush1.xpose.msra.mxu0 0.0
        %4373 = vmatprep.subr.mxu0 0.0
        %4374 = vmatpush1.xpose.msra.mxu0 0.0
        %4375 = vmatprep.subr.mxu0 0.0
        %4376 = vmatpush1.xpose.msra.mxu0 0.0
        %4377 = vmatprep.subr.mxu0 0.0
        %4378 = vmatpush1.xpose.msra.mxu0 0.0
        %4379 = vmatprep.subr.mxu0 0.0
        %4380 = vmatpush1.xpose.msra.mxu0 0.0
        %4381 = vmatprep.subr.mxu0 0.0
        %4382 = vmatpush1.xpose.msra.mxu0 0.0
        %4383 = vmatprep.subr.mxu0 0.0
        %4384 = vmatpush1.xpose.msra.mxu0 0.0
        %4385 = vmatprep.subr.mxu0 0.0
        %4386 = vmatpush1.xpose.msra.mxu0 0.0
        %4387 = vmatprep.subr.mxu0 0.0
        %4388 = vmatpush1.xpose.msra.mxu0 0.0
        %4389 = vmatprep.subr.mxu0 0.0
        %4390 = vmatpush1.xpose.msra.mxu0 0.0
        %4391 = vmatprep.subr.mxu0 0.0
        %4392 = vmatpush1.xpose.msra.mxu0 0.0
        %4393 = vmatprep.subr.mxu0 0.0
        %4394 = vmatpush1.xpose.msra.mxu0 0.0
        %4395 = vmatprep.subr.mxu0 0.0
        %4396 = vmatpush1.xpose.msra.mxu0 0.0
        %4397 = vmatprep.mubr.f32.mxu0 0.0
        %4398 = vmatmul.mubr.f32.gmra.mrb[0].mxu0 %v4322
        %v4399 = vpop.f32.mrb[0].mxu0
        %v4400 = vadd.f32 0.0, %v4399
        %v4401 = vpop.f32.mrb[0].mxu0
        %4402 = vmatprep.mubr.f32.mxu0 0.0
        %4403 = vmatmul.mubr.f32.gmra.mrb[0].mxu0 %v4325
        %v4404 = vpop.f32.mrb[0].mxu0
        %v4405 = vadd.f32 0.0, %v4404
        %v4406 = vpop.f32.mrb[0].mxu0
        %4407 = vdwg.mxu0
        %v4408 = vmul.f32 %v4400, 0.35355338
        %v4409 = vmul.f32 %v4405, 0.35355338
        %v4410 = vsel %vm877, %v4408, -inf
        %4411 = vmax.xlane.f32.xlu0 %v4410
        %v4412 = vpop.xlane.xlu0 %4411
        %v4413 = vsel %vm877, %v4409, -inf
        %4414 = vmax.xlane.f32.xlu0 %v4413
        %v4415 = vpop.xlane.xlu0 %4414
        %v4416 = vsub.f32 %v4408, %v4412
        %v4417 = vsub.f32 %v4409, %v4415
        %v4418 = vmul.f32 %v4416, 1.442695
        %v4419 = vpow.pop %v4418
        %v4420 = vmul.f32 %v4417, 1.442695
        %v4421 = vpow.pop %v4420
        %v4422 = vsel %vm877, %v4419, 0.0
        %4423 = vadd.xlane.f32.xlu0 %v4422
        %v4424 = vpop.xlane.xlu0 %4423
        %v4425 = vsel %vm877, %v4421, 0.0
        %4426 = vadd.xlane.f32.xlu0 %v4425
        %v4427 = vpop.xlane.xlu0 %4426
        %v4428 = vrcp.pop %v4424
        %v4429 = vrcp.pop %v4427
        %v4430 = vmul.f32 %v4419, %v4428
        %v4431 = vmul.f32 %v4421, %v4429
        %v4433 = vsel %vm877, %v4430, 0
        %v4436 = vsel %vm877, %v4431, 0
        %4438 = vmatprep.subr.mxu0 0.0
        %4439 = vmatpush1.msra.mxu0 %v4313
        %4440 = vmatprep.subr.mxu0 0.0
        %4441 = vmatpush1.msra.mxu0 %v4318
        %4442 = vmatprep.subr.mxu0 0.0
        %4443 = vmatpush1.msra.mxu0 0.0
        %4444 = vmatprep.subr.mxu0 0.0
        %4445 = vmatpush1.msra.mxu0 0.0
        %4446 = vmatprep.subr.mxu0 0.0
        %4447 = vmatpush1.msra.mxu0 0.0
        %4448 = vmatprep.subr.mxu0 0.0
        %4449 = vmatpush1.msra.mxu0 0.0
        %4450 = vmatprep.subr.mxu0 0.0
        %4451 = vmatpush1.msra.mxu0 0.0
        %4452 = vmatprep.subr.mxu0 0.0
        %4453 = vmatpush1.msra.mxu0 0.0
        %4454 = vmatprep.subr.mxu0 0.0
        %4455 = vmatpush1.msra.mxu0 0.0
        %4456 = vmatprep.subr.mxu0 0.0
        %4457 = vmatpush1.msra.mxu0 0.0
        %4458 = vmatprep.subr.mxu0 0.0
        %4459 = vmatpush1.msra.mxu0 0.0
        %4460 = vmatprep.subr.mxu0 0.0
        %4461 = vmatpush1.msra.mxu0 0.0
        %4462 = vmatprep.subr.mxu0 0.0
        %4463 = vmatpush1.msra.mxu0 0.0
        %4464 = vmatprep.subr.mxu0 0.0
        %4465 = vmatpush1.msra.mxu0 0.0
        %4466 = vmatprep.subr.mxu0 0.0
        %4467 = vmatpush1.msra.mxu0 0.0
        %4468 = vmatprep.subr.mxu0 0.0
        %4469 = vmatpush1.msra.mxu0 0.0
        %4470 = vmatprep.subr.mxu0 0.0
        %4471 = vmatpush1.msra.mxu0 0.0
        %4472 = vmatprep.subr.mxu0 0.0
        %4473 = vmatpush1.msra.mxu0 0.0
        %4474 = vmatprep.subr.mxu0 0.0
        %4475 = vmatpush1.msra.mxu0 0.0
        %4476 = vmatprep.subr.mxu0 0.0
        %4477 = vmatpush1.msra.mxu0 0.0
        %4478 = vmatprep.subr.mxu0 0.0
        %4479 = vmatpush1.msra.mxu0 0.0
        %4480 = vmatprep.subr.mxu0 0.0
        %4481 = vmatpush1.msra.mxu0 0.0
        %4482 = vmatprep.subr.mxu0 0.0
        %4483 = vmatpush1.msra.mxu0 0.0
        %4484 = vmatprep.subr.mxu0 0.0
        %4485 = vmatpush1.msra.mxu0 0.0
        %4486 = vmatprep.subr.mxu0 0.0
        %4487 = vmatpush1.msra.mxu0 0.0
        %4488 = vmatprep.subr.mxu0 0.0
        %4489 = vmatpush1.msra.mxu0 0.0
        %4490 = vmatprep.subr.mxu0 0.0
        %4491 = vmatpush1.msra.mxu0 0.0
        %4492 = vmatprep.subr.mxu0 0.0
        %4493 = vmatpush1.msra.mxu0 0.0
        %4494 = vmatprep.subr.mxu0 0.0
        %4495 = vmatpush1.msra.mxu0 0.0
        %4496 = vmatprep.subr.mxu0 0.0
        %4497 = vmatpush1.msra.mxu0 0.0
        %4498 = vmatprep.subr.mxu0 0.0
        %4499 = vmatpush1.msra.mxu0 0.0
        %4500 = vmatprep.subr.mxu0 0.0
        %4501 = vmatpush1.msra.mxu0 0.0
        %4502 = vmatprep.mubr.f32.mxu0 0.0
        %4503 = vmatmul.mubr.f32.gmra.mrb[0].mxu0 %v4433
        %v4504 = vpop.f32.mrb[0].mxu0
        %v4505 = vadd.f32 0.0, %v4504
        %v4506 = vpop.f32.mrb[0].mxu0
        %4507 = vmatprep.mubr.f32.mxu0 0.0
        %4508 = vmatmul.mubr.f32.gmra.mrb[0].mxu0 %v4436
        %v4509 = vpop.f32.mrb[0].mxu0
        %v4510 = vadd.f32 0.0, %v4509
        %v4511 = vpop.f32.mrb[0].mxu0
        %4512 = vdwg.mxu0
        %s4513 = scalar_lea.vmem %s5, 48
        %v4514 = vld [vmem:[%s4513] sm:$0xff]
        %v4516 = vsel %vm787, %v4505, 0
        %v4519 = vsel %vm787, %v4510, 0
        %4521 = vmatprep.subr.mxu0 0.0
        %4522 = vmatpush1.msra.mxu0 %v4514
        %4523 = vmatprep.subr.mxu0 0.0
        %4524 = vmatpush1.msra.mxu0 0.0
        %4525 = vmatprep.subr.mxu0 0.0
        %4526 = vmatpush1.msra.mxu0 0.0
        %4527 = vmatprep.subr.mxu0 0.0
        %4528 = vmatpush1.msra.mxu0 0.0
        %4529 = vmatprep.subr.mxu0 0.0
        %4530 = vmatpush1.msra.mxu0 0.0
        %4531 = vmatprep.subr.mxu0 0.0
        %4532 = vmatpush1.msra.mxu0 0.0
        %4533 = vmatprep.subr.mxu0 0.0
        %4534 = vmatpush1.msra.mxu0 0.0
        %4535 = vmatprep.subr.mxu0 0.0
        %4536 = vmatpush1.msra.mxu0 0.0
        %4537 = vmatprep.subr.mxu0 0.0
        %4538 = vmatpush1.msra.mxu0 0.0
        %4539 = vmatprep.subr.mxu0 0.0
        %4540 = vmatpush1.msra.mxu0 0.0
        %4541 = vmatprep.subr.mxu0 0.0
        %4542 = vmatpush1.msra.mxu0 0.0
        %4543 = vmatprep.subr.mxu0 0.0
        %4544 = vmatpush1.msra.mxu0 0.0
        %4545 = vmatprep.subr.mxu0 0.0
        %4546 = vmatpush1.msra.mxu0 0.0
        %4547 = vmatprep.subr.mxu0 0.0
        %4548 = vmatpush1.msra.mxu0 0.0
        %4549 = vmatprep.subr.mxu0 0.0
        %4550 = vmatpush1.msra.mxu0 0.0
        %4551 = vmatprep.subr.mxu0 0.0
        %4552 = vmatpush1.msra.mxu0 0.0
        %4553 = vmatprep.subr.mxu0 0.0
        %4554 = vmatpush1.msra.mxu0 0.0
        %4555 = vmatprep.subr.mxu0 0.0
        %4556 = vmatpush1.msra.mxu0 0.0
        %4557 = vmatprep.subr.mxu0 0.0
        %4558 = vmatpush1.msra.mxu0 0.0
        %4559 = vmatprep.subr.mxu0 0.0
        %4560 = vmatpush1.msra.mxu0 0.0
        %4561 = vmatprep.subr.mxu0 0.0
        %4562 = vmatpush1.msra.mxu0 0.0
        %4563 = vmatprep.subr.mxu0 0.0
        %4564 = vmatpush1.msra.mxu0 0.0
        %4565 = vmatprep.subr.mxu0 0.0
        %4566 = vmatpush1.msra.mxu0 0.0
        %4567 = vmatprep.subr.mxu0 0.0
        %4568 = vmatpush1.msra.mxu0 0.0
        %4569 = vmatprep.subr.mxu0 0.0
        %4570 = vmatpush1.msra.mxu0 0.0
        %4571 = vmatprep.subr.mxu0 0.0
        %4572 = vmatpush1.msra.mxu0 0.0
        %4573 = vmatprep.subr.mxu0 0.0
        %4574 = vmatpush1.msra.mxu0 0.0
        %4575 = vmatprep.subr.mxu0 0.0
        %4576 = vmatpush1.msra.mxu0 0.0
        %4577 = vmatprep.subr.mxu0 0.0
        %4578 = vmatpush1.msra.mxu0 0.0
        %4579 = vmatprep.subr.mxu0 0.0
        %4580 = vmatpush1.msra.mxu0 0.0
        %4581 = vmatprep.subr.mxu0 0.0
        %4582 = vmatpush1.msra.mxu0 0.0
        %4583 = vmatprep.subr.mxu0 0.0
        %4584 = vmatpush1.msra.mxu0 0.0
        %4585 = vmatprep.mubr.f32.mxu0 0.0
        %4586 = vmatmul.mubr.f32.gmra.mrb[0].mxu0 %v4516
        %v4587 = vpop.f32.mrb[0].mxu0
        %v4588 = vadd.f32 0.0, %v4587
        %v4589 = vpop.f32.mrb[0].mxu0
        %4590 = vmatprep.mubr.f32.mxu0 0.0
        %4591 = vmatmul.mubr.f32.gmra.mrb[0].mxu0 %v4519
        %v4592 = vpop.f32.mrb[0].mxu0
        %v4593 = vadd.f32 0.0, %v4592
        %v4594 = vpop.f32.mrb[0].mxu0
        %4595 = vdwg.mxu0
        %v4596 = vadd.f32 %v4049, %v4588
        %v4597 = vadd.f32 %v4054, %v4593
        %s4598 = scalar_lea.vmem %s3, 480
        %v4599 = vld [vmem:[%s4598] sm:$0xff]
        %v4600 = vld [vmem:[%s4598 + $0x8] sm:$0xff]
        %v4601 = vld [vmem:[%s4598 + $0x10] sm:$0xff]
        %v4602 = vld [vmem:[%s4598 + $0x18] sm:$0xff]
        %s4603 = scalar_lea.vmem %s4, 15
        %v4604 = vld [vmem:[%s4603] sm:$0x1]
        %v4606 = vlaneseq
        %v4607 = vshrl.u32 %v4606, 7
        %v4608 = vsub.s32 0, %v4607
        %v4609 = vrot.slane %v4604, %v4608
        %4611 = vmatprep.subr.mxu0 0.0
        %4612 = vmatpush1.msra.mxu0 %v4599
        %4613 = vmatprep.subr.mxu0 0.0
        %4614 = vmatpush1.msra.mxu0 %v4600
        %4615 = vmatprep.subr.mxu0 0.0
        %4616 = vmatpush1.msra.mxu0 %v4601
        %4617 = vmatprep.subr.mxu0 0.0
        %4618 = vmatpush1.msra.mxu0 %v4602
        %4619 = vmatprep.subr.mxu0 0.0
        %4620 = vmatpush1.msra.mxu0 0.0
        %4621 = vmatprep.subr.mxu0 0.0
        %4622 = vmatpush1.msra.mxu0 0.0
        %4623 = vmatprep.subr.mxu0 0.0
        %4624 = vmatpush1.msra.mxu0 0.0
        %4625 = vmatprep.subr.mxu0 0.0
        %4626 = vmatpush1.msra.mxu0 0.0
        %4627 = vmatprep.subr.mxu0 0.0
        %4628 = vmatpush1.msra.mxu0 0.0
        %4629 = vmatprep.subr.mxu0 0.0
        %4630 = vmatpush1.msra.mxu0 0.0
        %4631 = vmatprep.subr.mxu0 0.0
        %4632 = vmatpush1.msra.mxu0 0.0
        %4633 = vmatprep.subr.mxu0 0.0
        %4634 = vmatpush1.msra.mxu0 0.0
        %4635 = vmatprep.subr.mxu0 0.0
        %4636 = vmatpush1.msra.mxu0 0.0
        %4637 = vmatprep.subr.mxu0 0.0
        %4638 = vmatpush1.msra.mxu0 0.0
        %4639 = vmatprep.subr.mxu0 0.0
        %4640 = vmatpush1.msra.mxu0 0.0
        %4641 = vmatprep.subr.mxu0 0.0
        %4642 = vmatpush1.msra.mxu0 0.0
        %4643 = vmatprep.subr.mxu0 0.0
        %4644 = vmatpush1.msra.mxu0 0.0
        %4645 = vmatprep.subr.mxu0 0.0
        %4646 = vmatpush1.msra.mxu0 0.0
        %4647 = vmatprep.subr.mxu0 0.0
        %4648 = vmatpush1.msra.mxu0 0.0
        %4649 = vmatprep.subr.mxu0 0.0
        %4650 = vmatpush1.msra.mxu0 0.0
        %4651 = vmatprep.subr.mxu0 0.0
        %4652 = vmatpush1.msra.mxu0 0.0
        %4653 = vmatprep.subr.mxu0 0.0
        %4654 = vmatpush1.msra.mxu0 0.0
        %4655 = vmatprep.subr.mxu0 0.0
        %4656 = vmatpush1.msra.mxu0 0.0
        %4657 = vmatprep.subr.mxu0 0.0
        %4658 = vmatpush1.msra.mxu0 0.0
        %4659 = vmatprep.subr.mxu0 0.0
        %4660 = vmatpush1.msra.mxu0 0.0
        %4661 = vmatprep.subr.mxu0 0.0
        %4662 = vmatpush1.msra.mxu0 0.0
        %4663 = vmatprep.subr.mxu0 0.0
        %4664 = vmatpush1.msra.mxu0 0.0
        %4665 = vmatprep.subr.mxu0 0.0
        %4666 = vmatpush1.msra.mxu0 0.0
        %4667 = vmatprep.subr.mxu0 0.0
        %4668 = vmatpush1.msra.mxu0 0.0
        %4669 = vmatprep.subr.mxu0 0.0
        %4670 = vmatpush1.msra.mxu0 0.0
        %4671 = vmatprep.subr.mxu0 0.0
        %4672 = vmatpush1.msra.mxu0 0.0
        %4673 = vmatprep.subr.mxu0 0.0
        %4674 = vmatpush1.msra.mxu0 0.0
        %4675 = vmatprep.mubr.f32.mxu0 0.0
        %4676 = vmatmul.mubr.f32.gmra.mrb[0].mxu0 %v2987
        %v4677 = vpop.f32.mrb[0].mxu0
        %v4678 = vadd.f32 %v4609, %v4677
        %v4679 = vpop.f32.mrb[0].mxu0
        %4680 = vmatprep.mubr.f32.mxu0 0.0
        %4681 = vmatmul.mubr.f32.gmra.mrb[0].mxu0 %v2990
        %v4682 = vpop.f32.mrb[0].mxu0
        %v4683 = vadd.f32 %v4609, %v4682
        %v4684 = vpop.f32.mrb[0].mxu0
        %4685 = vdwg.mxu0
        %s4686 = scalar_lea.vmem %s3, 608
        %v4687 = vld [vmem:[%s4686] sm:$0xff]
        %v4688 = vld [vmem:[%s4686 + $0x8] sm:$0xff]
        %v4689 = vld [vmem:[%s4686 + $0x10] sm:$0xff]
        %v4690 = vld [vmem:[%s4686 + $0x18] sm:$0xff]
        %s4691 = scalar_lea.vmem %s4, 19
        %v4692 = vld [vmem:[%s4691] sm:$0x1]
        %v4694 = vlaneseq
        %v4695 = vshrl.u32 %v4694, 7
        %v4696 = vsub.s32 0, %v4695
        %v4697 = vrot.slane %v4692, %v4696
        %4699 = vmatprep.subr.mxu0 0.0
        %4700 = vmatpush1.msra.mxu0 %v4687
        %4701 = vmatprep.subr.mxu0 0.0
        %4702 = vmatpush1.msra.mxu0 %v4688
        %4703 = vmatprep.subr.mxu0 0.0
        %4704 = vmatpush1.msra.mxu0 %v4689
        %4705 = vmatprep.subr.mxu0 0.0
        %4706 = vmatpush1.msra.mxu0 %v4690
        %4707 = vmatprep.subr.mxu0 0.0
        %4708 = vmatpush1.msra.mxu0 0.0
        %4709 = vmatprep.subr.mxu0 0.0
        %4710 = vmatpush1.msra.mxu0 0.0
        %4711 = vmatprep.subr.mxu0 0.0
        %4712 = vmatpush1.msra.mxu0 0.0
        %4713 = vmatprep.subr.mxu0 0.0
        %4714 = vmatpush1.msra.mxu0 0.0
        %4715 = vmatprep.subr.mxu0 0.0
        %4716 = vmatpush1.msra.mxu0 0.0
        %4717 = vmatprep.subr.mxu0 0.0
        %4718 = vmatpush1.msra.mxu0 0.0
        %4719 = vmatprep.subr.mxu0 0.0
        %4720 = vmatpush1.msra.mxu0 0.0
        %4721 = vmatprep.subr.mxu0 0.0
        %4722 = vmatpush1.msra.mxu0 0.0
        %4723 = vmatprep.subr.mxu0 0.0
        %4724 = vmatpush1.msra.mxu0 0.0
        %4725 = vmatprep.subr.mxu0 0.0
        %4726 = vmatpush1.msra.mxu0 0.0
        %4727 = vmatprep.subr.mxu0 0.0
        %4728 = vmatpush1.msra.mxu0 0.0
        %4729 = vmatprep.subr.mxu0 0.0
        %4730 = vmatpush1.msra.mxu0 0.0
        %4731 = vmatprep.subr.mxu0 0.0
        %4732 = vmatpush1.msra.mxu0 0.0
        %4733 = vmatprep.subr.mxu0 0.0
        %4734 = vmatpush1.msra.mxu0 0.0
        %4735 = vmatprep.subr.mxu0 0.0
        %4736 = vmatpush1.msra.mxu0 0.0
        %4737 = vmatprep.subr.mxu0 0.0
        %4738 = vmatpush1.msra.mxu0 0.0
        %4739 = vmatprep.subr.mxu0 0.0
        %4740 = vmatpush1.msra.mxu0 0.0
        %4741 = vmatprep.subr.mxu0 0.0
        %4742 = vmatpush1.msra.mxu0 0.0
        %4743 = vmatprep.subr.mxu0 0.0
        %4744 = vmatpush1.msra.mxu0 0.0
        %4745 = vmatprep.subr.mxu0 0.0
        %4746 = vmatpush1.msra.mxu0 0.0
        %4747 = vmatprep.subr.mxu0 0.0
        %4748 = vmatpush1.msra.mxu0 0.0
        %4749 = vmatprep.subr.mxu0 0.0
        %4750 = vmatpush1.msra.mxu0 0.0
        %4751 = vmatprep.subr.mxu0 0.0
        %4752 = vmatpush1.msra.mxu0 0.0
        %4753 = vmatprep.subr.mxu0 0.0
        %4754 = vmatpush1.msra.mxu0 0.0
        %4755 = vmatprep.subr.mxu0 0.0
        %4756 = vmatpush1.msra.mxu0 0.0
        %4757 = vmatprep.subr.mxu0 0.0
        %4758 = vmatpush1.msra.mxu0 0.0
        %4759 = vmatprep.subr.mxu0 0.0
        %4760 = vmatpush1.msra.mxu0 0.0
        %4761 = vmatprep.subr.mxu0 0.0
        %4762 = vmatpush1.msra.mxu0 0.0
        %4763 = vmatprep.mubr.f32.mxu0 0.0
        %4764 = vmatmul.mubr.f32.gmra.mrb[0].mxu0 %v2987
        %v4765 = vpop.f32.mrb[0].mxu0
        %v4766 = vadd.f32 %v4697, %v4765
        %v4767 = vpop.f32.mrb[0].mxu0
        %4768 = vmatprep.mubr.f32.mxu0 0.0
        %4769 = vmatmul.mubr.f32.gmra.mrb[0].mxu0 %v2990
        %v4770 = vpop.f32.mrb[0].mxu0
        %v4771 = vadd.f32 %v4697, %v4770
        %v4772 = vpop.f32.mrb[0].mxu0
        %4773 = vdwg.mxu0
        %s4774 = scalar_lea.vmem %s3, 736
        %v4775 = vld [vmem:[%s4774] sm:$0xff]
        %v4776 = vld [vmem:[%s4774 + $0x8] sm:$0xff]
        %v4777 = vld [vmem:[%s4774 + $0x10] sm:$0xff]
        %v4778 = vld [vmem:[%s4774 + $0x18] sm:$0xff]
        %s4779 = scalar_lea.vmem %s4, 23
        %v4780 = vld [vmem:[%s4779] sm:$0x1]
        %v4782 = vlaneseq
        %v4783 = vshrl.u32 %v4782, 7
        %v4784 = vsub.s32 0, %v4783
        %v4785 = vrot.slane %v4780, %v4784
        %4787 = vmatprep.subr.mxu0 0.0
        %4788 = vmatpush1.msra.mxu0 %v4775
        %4789 = vmatprep.subr.mxu0 0.0
        %4790 = vmatpush1.msra.mxu0 %v4776
        %4791 = vmatprep.subr.mxu0 0.0
        %4792 = vmatpush1.msra.mxu0 %v4777
        %4793 = vmatprep.subr.mxu0 0.0
        %4794 = vmatpush1.msra.mxu0 %v4778
        %4795 = vmatprep.subr.mxu0 0.0
        %4796 = vmatpush1.msra.mxu0 0.0
        %4797 = vmatprep.subr.mxu0 0.0
        %4798 = vmatpush1.msra.mxu0 0.0
        %4799 = vmatprep.subr.mxu0 0.0
        %4800 = vmatpush1.msra.mxu0 0.0
        %4801 = vmatprep.subr.mxu0 0.0
        %4802 = vmatpush1.msra.mxu0 0.0
        %4803 = vmatprep.subr.mxu0 0.0
        %4804 = vmatpush1.msra.mxu0 0.0
        %4805 = vmatprep.subr.mxu0 0.0
        %4806 = vmatpush1.msra.mxu0 0.0
        %4807 = vmatprep.subr.mxu0 0.0
        %4808 = vmatpush1.msra.mxu0 0.0
        %4809 = vmatprep.subr.mxu0 0.0
        %4810 = vmatpush1.msra.mxu0 0.0
        %4811 = vmatprep.subr.mxu0 0.0
        %4812 = vmatpush1.msra.mxu0 0.0
        %4813 = vmatprep.subr.mxu0 0.0
        %4814 = vmatpush1.msra.mxu0 0.0
        %4815 = vmatprep.subr.mxu0 0.0
        %4816 = vmatpush1.msra.mxu0 0.0
        %4817 = vmatprep.subr.mxu0 0.0
        %4818 = vmatpush1.msra.mxu0 0.0
        %4819 = vmatprep.subr.mxu0 0.0
        %4820 = vmatpush1.msra.mxu0 0.0
        %4821 = vmatprep.subr.mxu0 0.0
        %4822 = vmatpush1.msra.mxu0 0.0
        %4823 = vmatprep.subr.mxu0 0.0
        %4824 = vmatpush1.msra.mxu0 0.0
        %4825 = vmatprep.subr.mxu0 0.0
        %4826 = vmatpush1.msra.mxu0 0.0
        %4827 = vmatprep.subr.mxu0 0.0
        %4828 = vmatpush1.msra.mxu0 0.0
        %4829 = vmatprep.subr.mxu0 0.0
        %4830 = vmatpush1.msra.mxu0 0.0
        %4831 = vmatprep.subr.mxu0 0.0
        %4832 = vmatpush1.msra.mxu0 0.0
        %4833 = vmatprep.subr.mxu0 0.0
        %4834 = vmatpush1.msra.mxu0 0.0
        %4835 = vmatprep.subr.mxu0 0.0
        %4836 = vmatpush1.msra.mxu0 0.0
        %4837 = vmatprep.subr.mxu0 0.0
        %4838 = vmatpush1.msra.mxu0 0.0
        %4839 = vmatprep.subr.mxu0 0.0
        %4840 = vmatpush1.msra.mxu0 0.0
        %4841 = vmatprep.subr.mxu0 0.0
        %4842 = vmatpush1.msra.mxu0 0.0
        %4843 = vmatprep.subr.mxu0 0.0
        %4844 = vmatpush1.msra.mxu0 0.0
        %4845 = vmatprep.subr.mxu0 0.0
        %4846 = vmatpush1.msra.mxu0 0.0
        %4847 = vmatprep.subr.mxu0 0.0
        %4848 = vmatpush1.msra.mxu0 0.0
        %4849 = vmatprep.subr.mxu0 0.0
        %4850 = vmatpush1.msra.mxu0 0.0
        %4851 = vmatprep.mubr.f32.mxu0 0.0
        %4852 = vmatmul.mubr.f32.gmra.mrb[0].mxu0 %v2987
        %v4853 = vpop.f32.mrb[0].mxu0
        %v4854 = vadd.f32 %v4785, %v4853
        %v4855 = vpop.f32.mrb[0].mxu0
        %4856 = vmatprep.mubr.f32.mxu0 0.0
        %4857 = vmatmul.mubr.f32.gmra.mrb[0].mxu0 %v2990
        %v4858 = vpop.f32.mrb[0].mxu0
        %v4859 = vadd.f32 %v4785, %v4858
        %v4860 = vpop.f32.mrb[0].mxu0
        %4861 = vdwg.mxu0
        %v4863 = vsel %vm787, %v4678, 0
        %v4866 = vsel %vm787, %v4683, 0
        %v4869 = vsel %vm787, %v4766, 0
        %v4872 = vsel %vm787, %v4771, 0
        %4874 = vmatprep.subr.mxu0 0.0
        %4875 = vmatpush1.xpose.msra.mxu0 %v4869
        %4876 = vmatprep.subr.mxu0 0.0
        %4877 = vmatpush1.xpose.msra.mxu0 %v4872
        %4878 = vmatprep.subr.mxu0 0.0
        %4879 = vmatpush1.xpose.msra.mxu0 0.0
        %4880 = vmatprep.subr.mxu0 0.0
        %4881 = vmatpush1.xpose.msra.mxu0 0.0
        %4882 = vmatprep.subr.mxu0 0.0
        %4883 = vmatpush1.xpose.msra.mxu0 0.0
        %4884 = vmatprep.subr.mxu0 0.0
        %4885 = vmatpush1.xpose.msra.mxu0 0.0
        %4886 = vmatprep.subr.mxu0 0.0
        %4887 = vmatpush1.xpose.msra.mxu0 0.0
        %4888 = vmatprep.subr.mxu0 0.0
        %4889 = vmatpush1.xpose.msra.mxu0 0.0
        %4890 = vmatprep.subr.mxu0 0.0
        %4891 = vmatpush1.xpose.msra.mxu0 0.0
        %4892 = vmatprep.subr.mxu0 0.0
        %4893 = vmatpush1.xpose.msra.mxu0 0.0
        %4894 = vmatprep.subr.mxu0 0.0
        %4895 = vmatpush1.xpose.msra.mxu0 0.0
        %4896 = vmatprep.subr.mxu0 0.0
        %4897 = vmatpush1.xpose.msra.mxu0 0.0
        %4898 = vmatprep.subr.mxu0 0.0
        %4899 = vmatpush1.xpose.msra.mxu0 0.0
        %4900 = vmatprep.subr.mxu0 0.0
        %4901 = vmatpush1.xpose.msra.mxu0 0.0
        %4902 = vmatprep.subr.mxu0 0.0
        %4903 = vmatpush1.xpose.msra.mxu0 0.0
        %4904 = vmatprep.subr.mxu0 0.0
        %4905 = vmatpush1.xpose.msra.mxu0 0.0
        %4906 = vmatprep.subr.mxu0 0.0
        %4907 = vmatpush1.xpose.msra.mxu0 0.0
        %4908 = vmatprep.subr.mxu0 0.0
        %4909 = vmatpush1.xpose.msra.mxu0 0.0
        %4910 = vmatprep.subr.mxu0 0.0
        %4911 = vmatpush1.xpose.msra.mxu0 0.0
        %4912 = vmatprep.subr.mxu0 0.0
        %4913 = vmatpush1.xpose.msra.mxu0 0.0
        %4914 = vmatprep.subr.mxu0 0.0
        %4915 = vmatpush1.xpose.msra.mxu0 0.0
        %4916 = vmatprep.subr.mxu0 0.0
        %4917 = vmatpush1.xpose.msra.mxu0 0.0
        %4918 = vmatprep.subr.mxu0 0.0
        %4919 = vmatpush1.xpose.msra.mxu0 0.0
        %4920 = vmatprep.subr.mxu0 0.0
        %4921 = vmatpush1.xpose.msra.mxu0 0.0
        %4922 = vmatprep.subr.mxu0 0.0
        %4923 = vmatpush1.xpose.msra.mxu0 0.0
        %4924 = vmatprep.subr.mxu0 0.0
        %4925 = vmatpush1.xpose.msra.mxu0 0.0
        %4926 = vmatprep.subr.mxu0 0.0
        %4927 = vmatpush1.xpose.msra.mxu0 0.0
        %4928 = vmatprep.subr.mxu0 0.0
        %4929 = vmatpush1.xpose.msra.mxu0 0.0
        %4930 = vmatprep.subr.mxu0 0.0
        %4931 = vmatpush1.xpose.msra.mxu0 0.0
        %4932 = vmatprep.subr.mxu0 0.0
        %4933 = vmatpush1.xpose.msra.mxu0 0.0
        %4934 = vmatprep.subr.mxu0 0.0
        %4935 = vmatpush1.xpose.msra.mxu0 0.0
        %4936 = vmatprep.subr.mxu0 0.0
        %4937 = vmatpush1.xpose.msra.mxu0 0.0
        %4938 = vmatprep.mubr.f32.mxu0 0.0
        %4939 = vmatmul.mubr.f32.gmra.mrb[0].mxu0 %v4863
        %v4940 = vpop.f32.mrb[0].mxu0
        %v4941 = vadd.f32 0.0, %v4940
        %v4942 = vpop.f32.mrb[0].mxu0
        %4943 = vmatprep.mubr.f32.mxu0 0.0
        %4944 = vmatmul.mubr.f32.gmra.mrb[0].mxu0 %v4866
        %v4945 = vpop.f32.mrb[0].mxu0
        %v4946 = vadd.f32 0.0, %v4945
        %v4947 = vpop.f32.mrb[0].mxu0
        %4948 = vdwg.mxu0
        %v4949 = vmul.f32 %v4941, 0.35355338
        %v4950 = vmul.f32 %v4946, 0.35355338
        %v4951 = vsel %vm877, %v4949, -inf
        %4952 = vmax.xlane.f32.xlu0 %v4951
        %v4953 = vpop.xlane.xlu0 %4952
        %v4954 = vsel %vm877, %v4950, -inf
        %4955 = vmax.xlane.f32.xlu0 %v4954
        %v4956 = vpop.xlane.xlu0 %4955
        %v4957 = vsub.f32 %v4949, %v4953
        %v4958 = vsub.f32 %v4950, %v4956
        %v4959 = vmul.f32 %v4957, 1.442695
        %v4960 = vpow.pop %v4959
        %v4961 = vmul.f32 %v4958, 1.442695
        %v4962 = vpow.pop %v4961
        %v4963 = vsel %vm877, %v4960, 0.0
        %4964 = vadd.xlane.f32.xlu0 %v4963
        %v4965 = vpop.xlane.xlu0 %4964
        %v4966 = vsel %vm877, %v4962, 0.0
        %4967 = vadd.xlane.f32.xlu0 %v4966
        %v4968 = vpop.xlane.xlu0 %4967
        %v4969 = vrcp.pop %v4965
        %v4970 = vrcp.pop %v4968
        %v4971 = vmul.f32 %v4960, %v4969
        %v4972 = vmul.f32 %v4962, %v4970
        %v4974 = vsel %vm877, %v4971, 0
        %v4977 = vsel %vm877, %v4972, 0
        %4979 = vmatprep.subr.mxu0 0.0
        %4980 = vmatpush1.msra.mxu0 %v4854
        %4981 = vmatprep.subr.mxu0 0.0
        %4982 = vmatpush1.msra.mxu0 %v4859
        %4983 = vmatprep.subr.mxu0 0.0
        %4984 = vmatpush1.msra.mxu0 0.0
        %4985 = vmatprep.subr.mxu0 0.0
        %4986 = vmatpush1.msra.mxu0 0.0
        %4987 = vmatprep.subr.mxu0 0.0
        %4988 = vmatpush1.msra.mxu0 0.0
        %4989 = vmatprep.subr.mxu0 0.0
        %4990 = vmatpush1.msra.mxu0 0.0
        %4991 = vmatprep.subr.mxu0 0.0
        %4992 = vmatpush1.msra.mxu0 0.0
        %4993 = vmatprep.subr.mxu0 0.0
        %4994 = vmatpush1.msra.mxu0 0.0
        %4995 = vmatprep.subr.mxu0 0.0
        %4996 = vmatpush1.msra.mxu0 0.0
        %4997 = vmatprep.subr.mxu0 0.0
        %4998 = vmatpush1.msra.mxu0 0.0
        %4999 = vmatprep.subr.mxu0 0.0
        %5000 = vmatpush1.msra.mxu0 0.0
        %5001 = vmatprep.subr.mxu0 0.0
        %5002 = vmatpush1.msra.mxu0 0.0
        %5003 = vmatprep.subr.mxu0 0.0
        %5004 = vmatpush1.msra.mxu0 0.0
        %5005 = vmatprep.subr.mxu0 0.0
        %5006 = vmatpush1.msra.mxu0 0.0
        %5007 = vmatprep.subr.mxu0 0.0
        %5008 = vmatpush1.msra.mxu0 0.0
        %5009 = vmatprep.subr.mxu0 0.0
        %5010 = vmatpush1.msra.mxu0 0.0
        %5011 = vmatprep.subr.mxu0 0.0
        %5012 = vmatpush1.msra.mxu0 0.0
        %5013 = vmatprep.subr.mxu0 0.0
        %5014 = vmatpush1.msra.mxu0 0.0
        %5015 = vmatprep.subr.mxu0 0.0
        %5016 = vmatpush1.msra.mxu0 0.0
        %5017 = vmatprep.subr.mxu0 0.0
        %5018 = vmatpush1.msra.mxu0 0.0
        %5019 = vmatprep.subr.mxu0 0.0
        %5020 = vmatpush1.msra.mxu0 0.0
        %5021 = vmatprep.subr.mxu0 0.0
        %5022 = vmatpush1.msra.mxu0 0.0
        %5023 = vmatprep.subr.mxu0 0.0
        %5024 = vmatpush1.msra.mxu0 0.0
        %5025 = vmatprep.subr.mxu0 0.0
        %5026 = vmatpush1.msra.mxu0 0.0
        %5027 = vmatprep.subr.mxu0 0.0
        %5028 = vmatpush1.msra.mxu0 0.0
        %5029 = vmatprep.subr.mxu0 0.0
        %5030 = vmatpush1.msra.mxu0 0.0
        %5031 = vmatprep.subr.mxu0 0.0
        %5032 = vmatpush1.msra.mxu0 0.0
        %5033 = vmatprep.subr.mxu0 0.0
        %5034 = vmatpush1.msra.mxu0 0.0
        %5035 = vmatprep.subr.mxu0 0.0
        %5036 = vmatpush1.msra.mxu0 0.0
        %5037 = vmatprep.subr.mxu0 0.0
        %5038 = vmatpush1.msra.mxu0 0.0
        %5039 = vmatprep.subr.mxu0 0.0
        %5040 = vmatpush1.msra.mxu0 0.0
        %5041 = vmatprep.subr.mxu0 0.0
        %5042 = vmatpush1.msra.mxu0 0.0
        %5043 = vmatprep.mubr.f32.mxu0 0.0
        %5044 = vmatmul.mubr.f32.gmra.mrb[0].mxu0 %v4974
        %v5045 = vpop.f32.mrb[0].mxu0
        %v5046 = vadd.f32 0.0, %v5045
        %v5047 = vpop.f32.mrb[0].mxu0
        %5048 = vmatprep.mubr.f32.mxu0 0.0
        %5049 = vmatmul.mubr.f32.gmra.mrb[0].mxu0 %v4977
        %v5050 = vpop.f32.mrb[0].mxu0
        %v5051 = vadd.f32 0.0, %v5050
        %v5052 = vpop.f32.mrb[0].mxu0
        %5053 = vdwg.mxu0
        %s5054 = scalar_lea.vmem %s5, 56
        %v5055 = vld [vmem:[%s5054] sm:$0xff]
        %v5057 = vsel %vm787, %v5046, 0
        %v5060 = vsel %vm787, %v5051, 0
        %5062 = vmatprep.subr.mxu0 0.0
        %5063 = vmatpush1.msra.mxu0 %v5055
        %5064 = vmatprep.subr.mxu0 0.0
        %5065 = vmatpush1.msra.mxu0 0.0
        %5066 = vmatprep.subr.mxu0 0.0
        %5067 = vmatpush1.msra.mxu0 0.0
        %5068 = vmatprep.subr.mxu0 0.0
        %5069 = vmatpush1.msra.mxu0 0.0
        %5070 = vmatprep.subr.mxu0 0.0
        %5071 = vmatpush1.msra.mxu0 0.0
        %5072 = vmatprep.subr.mxu0 0.0
        %5073 = vmatpush1.msra.mxu0 0.0
        %5074 = vmatprep.subr.mxu0 0.0
        %5075 = vmatpush1.msra.mxu0 0.0
        %5076 = vmatprep.subr.mxu0 0.0
        %5077 = vmatpush1.msra.mxu0 0.0
        %5078 = vmatprep.subr.mxu0 0.0
        %5079 = vmatpush1.msra.mxu0 0.0
        %5080 = vmatprep.subr.mxu0 0.0
        %5081 = vmatpush1.msra.mxu0 0.0
        %5082 = vmatprep.subr.mxu0 0.0
        %5083 = vmatpush1.msra.mxu0 0.0
        %5084 = vmatprep.subr.mxu0 0.0
        %5085 = vmatpush1.msra.mxu0 0.0
        %5086 = vmatprep.subr.mxu0 0.0
        %5087 = vmatpush1.msra.mxu0 0.0
        %5088 = vmatprep.subr.mxu0 0.0
        %5089 = vmatpush1.msra.mxu0 0.0
        %5090 = vmatprep.subr.mxu0 0.0
        %5091 = vmatpush1.msra.mxu0 0.0
        %5092 = vmatprep.subr.mxu0 0.0
        %5093 = vmatpush1.msra.mxu0 0.0
        %5094 = vmatprep.subr.mxu0 0.0
        %5095 = vmatpush1.msra.mxu0 0.0
        %5096 = vmatprep.subr.mxu0 0.0
        %5097 = vmatpush1.msra.mxu0 0.0
        %5098 = vmatprep.subr.mxu0 0.0
        %5099 = vmatpush1.msra.mxu0 0.0
        %5100 = vmatprep.subr.mxu0 0.0
        %5101 = vmatpush1.msra.mxu0 0.0
        %5102 = vmatprep.subr.mxu0 0.0
        %5103 = vmatpush1.msra.mxu0 0.0
        %5104 = vmatprep.subr.mxu0 0.0
        %5105 = vmatpush1.msra.mxu0 0.0
        %5106 = vmatprep.subr.mxu0 0.0
        %5107 = vmatpush1.msra.mxu0 0.0
        %5108 = vmatprep.subr.mxu0 0.0
        %5109 = vmatpush1.msra.mxu0 0.0
        %5110 = vmatprep.subr.mxu0 0.0
        %5111 = vmatpush1.msra.mxu0 0.0
        %5112 = vmatprep.subr.mxu0 0.0
        %5113 = vmatpush1.msra.mxu0 0.0
        %5114 = vmatprep.subr.mxu0 0.0
        %5115 = vmatpush1.msra.mxu0 0.0
        %5116 = vmatprep.subr.mxu0 0.0
        %5117 = vmatpush1.msra.mxu0 0.0
        %5118 = vmatprep.subr.mxu0 0.0
        %5119 = vmatpush1.msra.mxu0 0.0
        %5120 = vmatprep.subr.mxu0 0.0
        %5121 = vmatpush1.msra.mxu0 0.0
        %5122 = vmatprep.subr.mxu0 0.0
        %5123 = vmatpush1.msra.mxu0 0.0
        %5124 = vmatprep.subr.mxu0 0.0
        %5125 = vmatpush1.msra.mxu0 0.0
        %5126 = vmatprep.mubr.f32.mxu0 0.0
        %5127 = vmatmul.mubr.f32.gmra.mrb[0].mxu0 %v5057
        %v5128 = vpop.f32.mrb[0].mxu0
        %v5129 = vadd.f32 0.0, %v5128
        %v5130 = vpop.f32.mrb[0].mxu0
        %5131 = vmatprep.mubr.f32.mxu0 0.0
        %5132 = vmatmul.mubr.f32.gmra.mrb[0].mxu0 %v5060
        %v5133 = vpop.f32.mrb[0].mxu0
        %v5134 = vadd.f32 0.0, %v5133
        %v5135 = vpop.f32.mrb[0].mxu0
        %5136 = vdwg.mxu0
        %v5137 = vadd.f32 %v4596, %v5129
        %v5138 = vadd.f32 %v4597, %v5134
        %v5139 = vld [vmem:[%s2932 + $0x4] sm:$0x1]
        %v5140 = vlaneseq
        %v5141 = vshrl.u32 %v5140, 7
        %v5142 = vsub.s32 0, %v5141
        %v5143 = vrot.slane %v5139, %v5142
        %v5144 = vadd.f32 %v5137, %v5143
        %v5145 = vadd.f32 %v5138, %v5143
        %v5146 = vadd.f32 %v5144, %v2930
        %v5147 = vadd.f32 %v5145, %v2931
        %v5148 = vld [vmem:[%s2932 + $0x2] sm:$0x1]
        %v5149 = vld [vmem:[%s2932 + $0x3] sm:$0x1]
        %v5150 = vsel %vm479, %v5146, 0.0
        %5151 = vadd.xlane.f32.xlu0 %v5150
        %v5152 = vpop.xlane.xlu0 %5151
        %v5153 = vsel %vm479, %v5147, 0.0
        %5154 = vadd.xlane.f32.xlu0 %v5153
        %v5155 = vpop.xlane.xlu0 %5154
        %v5156 = vmul.f32 %v5152, %v486
        %v5157 = vmul.f32 %v5155, %v486
        %v5158 = vsub.f32 %v5146, %v5156
        %v5159 = vsub.f32 %v5147, %v5157
        %v5160 = vmul.f32 %v5158, %v5158
        %v5161 = vmul.f32 %v5159, %v5159
        %v5162 = vsel %vm479, %v5160, 0.0
        %5163 = vadd.xlane.f32.xlu0 %v5162
        %v5164 = vpop.xlane.xlu0 %5163
        %v5165 = vsel %vm479, %v5161, 0.0
        %5166 = vadd.xlane.f32.xlu0 %v5165
        %v5167 = vpop.xlane.xlu0 %5166
        %v5168 = vmul.f32 %v5164, %v486
        %v5169 = vmul.f32 %v5167, %v486
        %v5170 = vadd.f32 %v5168, 1e-06
        %v5171 = vadd.f32 %v5169, 1e-06
        %v5172 = vrsqrt.pop %v5170
        %v5173 = vrsqrt.pop %v5171
        %v5174 = vmul.f32 %v5158, %v5172
        %v5175 = vmul.f32 %v5159, %v5173
        %v5176 = vlaneseq
        %v5177 = vshrl.u32 %v5176, 7
        %v5178 = vsub.s32 0, %v5177
        %v5179 = vrot.slane %v5148, %v5178
        %v5180 = vmul.f32 %v5174, %v5179
        %v5181 = vmul.f32 %v5175, %v5179
        %v5182 = vlaneseq
        %v5183 = vshrl.u32 %v5182, 7
        %v5184 = vsub.s32 0, %v5183
        %v5185 = vrot.slane %v5149, %v5184
        %v5186 = vadd.f32 %v5180, %v5185
        %v5187 = vadd.f32 %v5181, %v5185
        %s5188 = scalar_lea.vmem %s7, 32
        %v5189 = vld [vmem:[%s5188] sm:$0xff]
        %v5190 = vld [vmem:[%s5188 + $0x8] sm:$0xff]
        %v5191 = vld [vmem:[%s5188 + $0x10] sm:$0xff]
        %v5192 = vld [vmem:[%s5188 + $0x18] sm:$0xff]
        %s5193 = scalar_lea.vmem %s8, 1
        %v5194 = vld [vmem:[%s5193] sm:$0x1]
        %v5196 = vlaneseq
        %v5197 = vshrl.u32 %v5196, 7
        %v5198 = vsub.s32 0, %v5197
        %v5199 = vrot.slane %v5194, %v5198
        %v5202 = vsel %vm479, %v5186, 0
        %v5205 = vsel %vm479, %v5187, 0
        %5207 = vmatprep.subr.mxu0 0.0
        %5208 = vmatpush1.msra.mxu0 %v5189
        %5209 = vmatprep.subr.mxu0 0.0
        %5210 = vmatpush1.msra.mxu0 %v5190
        %5211 = vmatprep.subr.mxu0 0.0
        %5212 = vmatpush1.msra.mxu0 %v5191
        %5213 = vmatprep.subr.mxu0 0.0
        %5214 = vmatpush1.msra.mxu0 %v5192
        %5215 = vmatprep.subr.mxu0 0.0
        %5216 = vmatpush1.msra.mxu0 0.0
        %5217 = vmatprep.subr.mxu0 0.0
        %5218 = vmatpush1.msra.mxu0 0.0
        %5219 = vmatprep.subr.mxu0 0.0
        %5220 = vmatpush1.msra.mxu0 0.0
        %5221 = vmatprep.subr.mxu0 0.0
        %5222 = vmatpush1.msra.mxu0 0.0
        %5223 = vmatprep.subr.mxu0 0.0
        %5224 = vmatpush1.msra.mxu0 0.0
        %5225 = vmatprep.subr.mxu0 0.0
        %5226 = vmatpush1.msra.mxu0 0.0
        %5227 = vmatprep.subr.mxu0 0.0
        %5228 = vmatpush1.msra.mxu0 0.0
        %5229 = vmatprep.subr.mxu0 0.0
        %5230 = vmatpush1.msra.mxu0 0.0
        %5231 = vmatprep.subr.mxu0 0.0
        %5232 = vmatpush1.msra.mxu0 0.0
        %5233 = vmatprep.subr.mxu0 0.0
        %5234 = vmatpush1.msra.mxu0 0.0
        %5235 = vmatprep.subr.mxu0 0.0
        %5236 = vmatpush1.msra.mxu0 0.0
        %5237 = vmatprep.subr.mxu0 0.0
        %5238 = vmatpush1.msra.mxu0 0.0
        %5239 = vmatprep.subr.mxu0 0.0
        %5240 = vmatpush1.msra.mxu0 0.0
        %5241 = vmatprep.subr.mxu0 0.0
        %5242 = vmatpush1.msra.mxu0 0.0
        %5243 = vmatprep.subr.mxu0 0.0
        %5244 = vmatpush1.msra.mxu0 0.0
        %5245 = vmatprep.subr.mxu0 0.0
        %5246 = vmatpush1.msra.mxu0 0.0
        %5247 = vmatprep.subr.mxu0 0.0
        %5248 = vmatpush1.msra.mxu0 0.0
        %5249 = vmatprep.subr.mxu0 0.0
        %5250 = vmatpush1.msra.mxu0 0.0
        %5251 = vmatprep.subr.mxu0 0.0
        %5252 = vmatpush1.msra.mxu0 0.0
        %5253 = vmatprep.subr.mxu0 0.0
        %5254 = vmatpush1.msra.mxu0 0.0
        %5255 = vmatprep.subr.mxu0 0.0
        %5256 = vmatpush1.msra.mxu0 0.0
        %5257 = vmatprep.subr.mxu0 0.0
        %5258 = vmatpush1.msra.mxu0 0.0
        %5259 = vmatprep.subr.mxu0 0.0
        %5260 = vmatpush1.msra.mxu0 0.0
        %5261 = vmatprep.subr.mxu0 0.0
        %5262 = vmatpush1.msra.mxu0 0.0
        %5263 = vmatprep.subr.mxu0 0.0
        %5264 = vmatpush1.msra.mxu0 0.0
        %5265 = vmatprep.subr.mxu0 0.0
        %5266 = vmatpush1.msra.mxu0 0.0
        %5267 = vmatprep.subr.mxu0 0.0
        %5268 = vmatpush1.msra.mxu0 0.0
        %5269 = vmatprep.subr.mxu0 0.0
        %5270 = vmatpush1.msra.mxu0 0.0
        %5271 = vmatprep.mubr.f32.mxu0 0.0
        %5272 = vmatmul.mubr.f32.gmra.mrb[0].mxu0 %v5202
        %v5273 = vpop.f32.mrb[0].mxu0
        %v5274 = vadd.f32 %v5199, %v5273
        %v5275 = vpop.f32.mrb[0].mxu0
        %5276 = vmatprep.mubr.f32.mxu0 0.0
        %5277 = vmatmul.mubr.f32.gmra.mrb[0].mxu0 %v5205
        %v5278 = vpop.f32.mrb[0].mxu0
        %v5279 = vadd.f32 %v5199, %v5278
        %v5280 = vpop.f32.mrb[0].mxu0
        %5281 = vdwg.mxu0
        %v5282 = vmul.f32 %v5274, 0.5
        %v5283 = vmul.f32 %v5279, 0.5
        %v5284 = vmul.f32 %v5274, 0.70710677
        %v5285 = vmul.f32 %v5279, 0.70710677
        %v5286 = verf.f32.pop %v5284
        %v5287 = verf.f32.pop %v5285
        %v5288 = vadd.f32 %v5286, 1.0
        %v5289 = vadd.f32 %v5287, 1.0
        %v5290 = vmul.f32 %v5282, %v5288
        %v5291 = vmul.f32 %v5283, %v5289
        %s5292 = scalar_lea.vmem %s9, 64
        %v5293 = vld [vmem:[%s5292] sm:$0xff]
        %v5294 = vld [vmem:[%s5292 + $0x8] sm:$0xff]
        %v5295 = vld [vmem:[%s5292 + $0x10] sm:$0xff]
        %v5296 = vld [vmem:[%s5292 + $0x18] sm:$0xff]
        %v5297 = vld [vmem:[%s5292 + $0x20] sm:$0xff]
        %v5298 = vld [vmem:[%s5292 + $0x28] sm:$0xff]
        %v5299 = vld [vmem:[%s5292 + $0x30] sm:$0xff]
        %v5300 = vld [vmem:[%s5292 + $0x38] sm:$0xff]
        %v5301 = vld [vmem:[%s2932 + $0x5] sm:$0x1]
        %v5302 = vlaneseq
        %v5303 = vshrl.u32 %v5302, 7
        %v5304 = vsub.s32 0, %v5303
        %v5305 = vrot.slane %v5301, %v5304
        %v5307 = vsel %vm2848, %v5290, 0
        %v5310 = vsel %vm2848, %v5291, 0
        %5312 = vmatprep.subr.mxu0 0.0
        %5313 = vmatpush1.msra.mxu0 %v5293
        %5314 = vmatprep.subr.mxu0 0.0
        %5315 = vmatpush1.msra.mxu0 %v5294
        %5316 = vmatprep.subr.mxu0 0.0
        %5317 = vmatpush1.msra.mxu0 %v5295
        %5318 = vmatprep.subr.mxu0 0.0
        %5319 = vmatpush1.msra.mxu0 %v5296
        %5320 = vmatprep.subr.mxu0 0.0
        %5321 = vmatpush1.msra.mxu0 %v5297
        %5322 = vmatprep.subr.mxu0 0.0
        %5323 = vmatpush1.msra.mxu0 %v5298
        %5324 = vmatprep.subr.mxu0 0.0
        %5325 = vmatpush1.msra.mxu0 %v5299
        %5326 = vmatprep.subr.mxu0 0.0
        %5327 = vmatpush1.msra.mxu0 %v5300
        %5328 = vmatprep.subr.mxu0 0.0
        %5329 = vmatpush1.msra.mxu0 0.0
        %5330 = vmatprep.subr.mxu0 0.0
        %5331 = vmatpush1.msra.mxu0 0.0
        %5332 = vmatprep.subr.mxu0 0.0
        %5333 = vmatpush1.msra.mxu0 0.0
        %5334 = vmatprep.subr.mxu0 0.0
        %5335 = vmatpush1.msra.mxu0 0.0
        %5336 = vmatprep.subr.mxu0 0.0
        %5337 = vmatpush1.msra.mxu0 0.0
        %5338 = vmatprep.subr.mxu0 0.0
        %5339 = vmatpush1.msra.mxu0 0.0
        %5340 = vmatprep.subr.mxu0 0.0
        %5341 = vmatpush1.msra.mxu0 0.0
        %5342 = vmatprep.subr.mxu0 0.0
        %5343 = vmatpush1.msra.mxu0 0.0
        %5344 = vmatprep.subr.mxu0 0.0
        %5345 = vmatpush1.msra.mxu0 0.0
        %5346 = vmatprep.subr.mxu0 0.0
        %5347 = vmatpush1.msra.mxu0 0.0
        %5348 = vmatprep.subr.mxu0 0.0
        %5349 = vmatpush1.msra.mxu0 0.0
        %5350 = vmatprep.subr.mxu0 0.0
        %5351 = vmatpush1.msra.mxu0 0.0
        %5352 = vmatprep.subr.mxu0 0.0
        %5353 = vmatpush1.msra.mxu0 0.0
        %5354 = vmatprep.subr.mxu0 0.0
        %5355 = vmatpush1.msra.mxu0 0.0
        %5356 = vmatprep.subr.mxu0 0.0
        %5357 = vmatpush1.msra.mxu0 0.0
        %5358 = vmatprep.subr.mxu0 0.0
        %5359 = vmatpush1.msra.mxu0 0.0
        %5360 = vmatprep.subr.mxu0 0.0
        %5361 = vmatpush1.msra.mxu0 0.0
        %5362 = vmatprep.subr.mxu0 0.0
        %5363 = vmatpush1.msra.mxu0 0.0
        %5364 = vmatprep.subr.mxu0 0.0
        %5365 = vmatpush1.msra.mxu0 0.0
        %5366 = vmatprep.subr.mxu0 0.0
        %5367 = vmatpush1.msra.mxu0 0.0
        %5368 = vmatprep.subr.mxu0 0.0
        %5369 = vmatpush1.msra.mxu0 0.0
        %5370 = vmatprep.subr.mxu0 0.0
        %5371 = vmatpush1.msra.mxu0 0.0
        %5372 = vmatprep.subr.mxu0 0.0
        %5373 = vmatpush1.msra.mxu0 0.0
        %5374 = vmatprep.subr.mxu0 0.0
        %5375 = vmatpush1.msra.mxu0 0.0
        %5376 = vmatprep.mubr.f32.mxu0 0.0
        %5377 = vmatmul.mubr.f32.gmra.mrb[0].mxu0 %v5307
        %v5378 = vpop.f32.mrb[0].mxu0
        %v5379 = vadd.f32 %v5305, %v5378
        %v5380 = vpop.f32.mrb[0].mxu0
        %5381 = vmatprep.mubr.f32.mxu0 0.0
        %5382 = vmatmul.mubr.f32.gmra.mrb[0].mxu0 %v5310
        %v5383 = vpop.f32.mrb[0].mxu0
        %v5384 = vadd.f32 %v5305, %v5383
        %v5385 = vpop.f32.mrb[0].mxu0
        %5386 = vdwg.mxu0
        %v5387 = vadd.f32 %v5379, %v5146
        %v5388 = vadd.f32 %v5384, %v5147
        %v5389 = vld [vmem:[%s10] sm:$0x1]
        %v5390 = vld [vmem:[%s10 + $0x1] sm:$0x1]
        %v5391 = vsel %vm479, %v5387, 0.0
        %5392 = vadd.xlane.f32.xlu0 %v5391
        %v5393 = vpop.xlane.xlu0 %5392
        %v5394 = vsel %vm479, %v5388, 0.0
        %5395 = vadd.xlane.f32.xlu0 %v5394
        %v5396 = vpop.xlane.xlu0 %5395
        %v5397 = vmul.f32 %v5393, %v486
        %v5398 = vmul.f32 %v5396, %v486
        %v5399 = vsub.f32 %v5387, %v5397
        %v5400 = vsub.f32 %v5388, %v5398
        %v5401 = vmul.f32 %v5399, %v5399
        %v5402 = vmul.f32 %v5400, %v5400
        %v5403 = vsel %vm479, %v5401, 0.0
        %5404 = vadd.xlane.f32.xlu0 %v5403
        %v5405 = vpop.xlane.xlu0 %5404
        %v5406 = vsel %vm479, %v5402, 0.0
        %5407 = vadd.xlane.f32.xlu0 %v5406
        %v5408 = vpop.xlane.xlu0 %5407
        %v5409 = vmul.f32 %v5405, %v486
        %v5410 = vmul.f32 %v5408, %v486
        %v5411 = vadd.f32 %v5409, 1e-06
        %v5412 = vadd.f32 %v5410, 1e-06
        %v5413 = vrsqrt.pop %v5411
        %v5414 = vrsqrt.pop %v5412
        %v5415 = vmul.f32 %v5399, %v5413
        %v5416 = vmul.f32 %v5400, %v5414
        %v5417 = vlaneseq
        %v5418 = vshrl.u32 %v5417, 7
        %v5419 = vsub.s32 0, %v5418
        %v5420 = vrot.slane %v5389, %v5419
        %v5421 = vmul.f32 %v5415, %v5420
        %v5422 = vmul.f32 %v5416, %v5420
        %v5423 = vlaneseq
        %v5424 = vshrl.u32 %v5423, 7
        %v5425 = vsub.s32 0, %v5424
        %v5426 = vrot.slane %v5390, %v5425
        %v5427 = vadd.f32 %v5421, %v5426
        %v5428 = vadd.f32 %v5422, %v5426
        %5429 = vst.msk [vmem:[%s379] sm:$0xff] %vm479, %v5427
        %5430 = vst.msk [vmem:[%s379 + $0x8] sm:$0xff] %vm479, %v5428
        %s5431 = sand.u32 %s269, 1
        %s5432 = scalar_lea.sflag [#allocation3], %s5431
        %s5433 = sand.u32 %s269, 1
        %s5434 = smul.addr %s5433, 16
        %s5435 = scalar_lea.vmem [#allocation2], %s5434
        // Predicated region
        $region65: #{transformer_forward.1} parent=63 // pred_check
          %p5436 = pneg %p279
        $region66: #{transformer_forward.1} parent=63 // pred_check_branch
          %5438 = sbr.rel (%p5436) target = $region68
        $region67: #{transformer_forward.1} parent=63 // pred_region
          %s5440 = ssub.s32 256, 256
          %5441 = vsyncadd %s5432, %s5440
          %s5442 = smul.addr %s25, 2
          %s5443 = smul.addr %s5442, 128
          %s5444 = scalar_lea.hbm %s11, %s5443
          %s5445 = sshll.u32 %s5435, 4
          %s5446 = int_to_ptr.vmem [resolvable:$true] %s5445
          %5451 = dma.vmem_to_hbm [thread:$0]  %s5446, 256, %s5444, %s5432, 128, 128, 8
        $region68: #{transformer_forward.1} parent=63 // pred_fallthru
          _
      $region64: #{transformer_forward.1} parent=5 // pred_fallthru
        _
      %p5452 = scmp.le.s32.totalorder 2, %s20
      // Predicated region
      $region69: #{transformer_forward.1} parent=5 // pred_check
        %p5453 = pneg %p5452
      $region70: #{transformer_forward.1} parent=5 // pred_check_branch
        %5455 = sbr.rel (%p5453) target = $region72
      $region71: #{transformer_forward.1} parent=5 // pred_region
        %s5456 = ssub.s32 %s20, 2
        // Predicated region
        $region73: #{transformer_forward.1} parent=71 // pred_check
          %p5457 = pneg %p285
        $region74: #{transformer_forward.1} parent=71 // pred_check_branch
          %5459 = sbr.rel (%p5457) target = $region76
        $region75: #{transformer_forward.1} parent=71 // pred_region
          %s5460 = sand.u32 %s270, 1
          %s5461 = scalar_lea.sflag [#allocation3], %s5460
          %s5462 = sand.u32 %s270, 1
          %s5463 = smul.addr %s5462, 16
          %s5464 = scalar_lea.vmem [#allocation2], %s5463
          %5465 = dma.done %s5461, 256
        $region76: #{transformer_forward.1} parent=71 // pred_fallthru
          _
      $region72: #{transformer_forward.1} parent=5 // pred_fallthru
        _
    $region6: #{transformer_forward.1} parent=1 // loop_footer
      %s24 = sadd.s32 1, %s20
    $region7: #{transformer_forward.1} parent=1 // loop_footer_branch
      %19 = sbr.rel target = $region3
    $region8: #{transformer_forward.1} parent=1 // loop_exit
      _
    %5466 = vsyncpa [#allocation3], 1
    %s5467 = scalar_lea.sflag [#allocation3], 1
    %5468 = vsyncpa %s5467, 1

</llo_original>
